<compile_context>
chip_gen: v7x
topology: tpu7x:2x2x1
jax: 0.10.0
libtpu: 0.0.40
codegen_flags: <defaults>
</compile_context>

<pallas_src>
import math
import functools

import jax
import jax.numpy as jnp
from jax.experimental import pallas as pl
from jax.experimental.pallas import tpu as pltpu


def _round_up(v, m):
    return (v + m - 1) // m * m


def _vmem_limit_bytes():
    # Use most of physical VMEM (128 MiB on v5e/v6e, 64 MiB on v7x), leave headroom.
    cap = 64 * 1024 * 1024
    try:
        cap = int(pltpu.get_tpu_info().vmem_capacity_bytes)
    except Exception:
        pass
    return max(32 * 1024 * 1024, min((cap * 3) // 4, 110 * 1024 * 1024))


# ------------------------ fused decoder stack (all layers) ------------------------

def _decoder_stack_kernel(
    x_ref,
    wqkv_ref, bqkv_ref, wo_s_ref, bo_s_ref,
    wq_c_ref, bq_c_ref, wkv_c_ref, bkv_c_ref, wo_c_ref, bo_c_ref,
    w1_ref, b1_ref, w2_ref, b2_ref,
    ln1_g_ref, ln1_b_ref, ln2_g_ref, ln2_b_ref, ln3_g_ref, ln3_b_ref,
    o_ref,
    *, bt, seq, heads, dhp, e_true, scale, eps):
    layer = pl.program_id(1)

    # The output block is resident across the (arbitrary) layer axis: use it as the
    # residual-stream carry.  Initialize it from the pos-encoded embedding at layer 0.
    @pl.when(layer == 0)
    def _():
        o_ref[...] = x_ref[...]

    ep = x_ref.shape[-1]
    rows = bt * seq
    hd = heads * dhp

    x = o_ref[...].reshape(rows, ep)      # residual carry, f32, padded lanes == 0
    mem = x_ref[...].reshape(rows, ep)    # memory = pos-encoded embedding (all layers)

    feat_mask = (jax.lax.broadcasted_iota(jnp.int32, (1, ep), 1)
                 < e_true).astype(jnp.float32)

    def mm(a, w_ref, b_ref):
        # bf16 MXU inputs, f32 accumulation, f32 bias.
        return jnp.dot(a.astype(jnp.bfloat16), w_ref[0],
                       preferred_element_type=jnp.float32) + b_ref[0]

    def layernorm(z, g_ref, b_ref):
        # f32 stats over the real E features only (padded lanes are zero);
        # biased variance like torch.nn.LayerNorm.
        mu = jnp.sum(z, axis=-1, keepdims=True) * (1.0 / e_true)
        d = (z - mu) * feat_mask
        var = jnp.sum(d * d, axis=-1, keepdims=True) * (1.0 / e_true)
        return d * jax.lax.rsqrt(var + eps) * g_ref[0] + b_ref[0]

    row_i = jax.lax.broadcasted_iota(jnp.int32, (seq, seq), 0)
    col_i = jax.lax.broadcasted_iota(jnp.int32, (seq, seq), 1)
    causal_keep = (col_i <= row_i)[None, :, :]          # (1, S, S)

    def mha(q, k, v, wo_ref, bo_ref, causal):
        # q/k/v: (rows, H*Dhp) f32, q pre-scaled by 1/sqrt(Dh); head slices are
        # 128-aligned lane blocks.  Batch rows are handled as an einsum batch dim.
        # TODO(synk): for long sequences, stream K/V in tiles with online softmax
        # instead of materializing the (S, S) score block per head.
        outs = []
        for h in range(heads):
            sl = slice(h * dhp, (h + 1) * dhp)
            qh = q[:, sl].reshape(bt, seq, dhp).astype(jnp.bfloat16)
            kh = k[:, sl].reshape(bt, seq, dhp).astype(jnp.bfloat16)
            vh = v[:, sl].reshape(bt, seq, dhp).astype(jnp.bfloat16)
            s = jnp.einsum('bqd,bkd->bqk', qh, kh,
                           preferred_element_type=jnp.float32)      # f32 scores
            if causal:
                s = jnp.where(causal_keep, s, -1e30)
            m = jnp.max(s, axis=-1, keepdims=True)
            p = jnp.exp(s - m)
            p = p / jnp.sum(p, axis=-1, keepdims=True)               # exact division
            oh = jnp.einsum('bqk,bkd->bqd', p.astype(jnp.bfloat16), vh,
                            preferred_element_type=jnp.float32)
            outs.append(oh.reshape(rows, dhp))
        # Concatenate heads -> single full-width output projection (one MXU pass).
        cat = jnp.concatenate(outs, axis=-1)                         # (rows, H*Dhp)
        return jnp.dot(cat.astype(jnp.bfloat16), wo_ref[0],
                       preferred_element_type=jnp.float32) + bo_ref[0]

    # ---- causal self-attention + residual + LN1 (post-norm) ----
    qkv = mm(x, wqkv_ref, bqkv_ref)                                  # fused q|k|v
    q = qkv[:, 0:hd] * scale
    k = qkv[:, hd:2 * hd]
    v = qkv[:, 2 * hd:3 * hd]
    x1 = layernorm(x + mha(q, k, v, wo_s_ref, bo_s_ref, True),
                   ln1_g_ref, ln1_b_ref)

    # ---- cross-attention over memory + residual + LN2 ----
    qc = mm(x1, wq_c_ref, bq_c_ref) * scale
    kv = mm(mem, wkv_c_ref, bkv_c_ref)                               # fused k|v
    x2 = layernorm(x1 + mha(qc, kv[:, 0:hd], kv[:, hd:2 * hd],
                            wo_c_ref, bo_c_ref, False),
                   ln2_g_ref, ln2_b_ref)

    # ---- FFN (w1 + ReLU + w2 fused in VMEM) + residual + LN3 ----
    hmid = jnp.maximum(mm(x2, w1_ref, b1_ref), 0.0)
    x3 = layernorm(x2 + mm(hmid, w2_ref, b2_ref), ln3_g_ref, ln3_b_ref)

    o_ref[...] = x3.reshape(bt, seq, ep)


def decoder_stack(x, stacked, *, num_heads, head_dim, dhp, e_true, eps=1e-5,
                  block_b=None):
    B, S, Ep = x.shape
    names = ["wqkv", "bqkv", "wo_s", "bo_s", "wq_c", "bq_c", "wkv_c", "bkv_c",
             "wo_c", "bo_c", "w1", "b1", "w2", "b2",
             "ln1_g", "ln1_b", "ln2_g", "ln2_b", "ln3_g", "ln3_b"]
    ws = [stacked[n] for n in names]
    L = ws[0].shape[0]

    bt = B if block_b is None else block_b
    assert B % bt == 0

    x_spec = pl.BlockSpec((bt, S, Ep), lambda b, l: (b, 0, 0))

    def w_spec(a):
        return pl.BlockSpec((1,) + a.shape[1:], lambda b, l: (l, 0, 0))

    kernel = functools.partial(
        _decoder_stack_kernel, bt=bt, seq=S, heads=num_heads, dhp=dhp,
        e_true=e_true, scale=1.0 / math.sqrt(head_dim), eps=eps)

    return pl.pallas_call(
        kernel,
        out_shape=jax.ShapeDtypeStruct((B, S, Ep), jnp.float32),
        grid=(B // bt, L),
        in_specs=[x_spec] + [w_spec(a) for a in ws],
        out_specs=x_spec,
        compiler_params=pltpu.CompilerParams(
            dimension_semantics=("parallel", "arbitrary"),
            vmem_limit_bytes=_vmem_limit_bytes()),
    )(x, *ws)


# ------------------------------ vocab projection ------------------------------

def _out_proj_kernel(x_ref, w_ref, b_ref, o_ref):
    o_ref[...] = (jnp.dot(x_ref[...].astype(jnp.bfloat16), w_ref[...],
                          preferred_element_type=jnp.float32) + b_ref[...])


def out_proj(x, w, b):
    B, S, Ep = x.shape
    Vp = w.shape[1]
    R = B * S
    x2 = x.reshape(R, Ep)
    tr = 256 if (R > 256 and R % 256 == 0) else R        # row tile
    tv = 512 if Vp % 512 == 0 else Vp                    # lane-dense vocab tile
    out = pl.pallas_call(
        _out_proj_kernel,
        out_shape=jax.ShapeDtypeStruct((R, Vp), jnp.float32),
        grid=(R // tr, Vp // tv),
        in_specs=[pl.BlockSpec((tr, Ep), lambda r, v: (r, 0)),
                  pl.BlockSpec((Ep, tv), lambda r, v: (0, v)),
                  pl.BlockSpec((1, tv), lambda r, v: (0, v))],
        out_specs=pl.BlockSpec((tr, tv), lambda r, v: (r, v)),
        compiler_params=pltpu.CompilerParams(
            dimension_semantics=("parallel", "arbitrary"),
            vmem_limit_bytes=_vmem_limit_bytes()),
    )(x2, w, b)
    return out.reshape(B, S, Vp)


# ------------------------------ model glue (JAX) ------------------------------

def positional_encoding_table(max_len, d_model):
    pos = jnp.arange(max_len, dtype=jnp.float32)[:, None]
    div = jnp.exp(jnp.arange(0, d_model, 2, dtype=jnp.float32)
                  * (-math.log(10000.0) / d_model))
    pe = jnp.zeros((max_len, d_model), jnp.float32)
    pe = pe.at[:, 0::2].set(jnp.sin(pos * div))
    pe = pe.at[:, 1::2].set(jnp.cos(pos * div))
    return pe


def transformer_forward(params, tokens, *, num_heads, e_true, head_dim, dhp, vocab):
    B, S = tokens.shape
    # Embedding gather + positional encoding stay in XLA glue (tiny, data-dependent).
    x = jnp.take(params["emb"], tokens, axis=0) + params["pe"][None, :S, :]
    # Dropout (p=0.1 / p=0.0) is identity in eval mode.
    x = decoder_stack(x, params["layers"], num_heads=num_heads,
                      head_dim=head_dim, dhp=dhp, e_true=e_true)
    logits = out_proj(x, params["w_out"], params["b_out"])
    return logits[:, :, :vocab]


# ------------------------------ parameter init --------------------------------

def init_params(key, vocab, E, L, H, ctx, ff):
    Dh = E // H
    Ep, Dhp = _round_up(E, 128), _round_up(Dh, 128)
    FFp, Vp = _round_up(ff, 128), _round_up(vocab, 128)
    HD = H * Dhp

    keys = iter(jax.random.split(key, 2 + 10 * L))

    def rnd(shape):
        return jax.random.normal(next(keys), shape, jnp.float32) * 0.02

    def pad2(w, rows, cols):
        return jnp.zeros((rows, cols), jnp.float32).at[:w.shape[0], :w.shape[1]].set(w)

    def head_cols(w):                        # (E, H*Dh) -> (Ep, H*Dhp), per-head 128 blocks
        buf = jnp.zeros((Ep, HD), jnp.float32)
        for h in range(H):
            buf = buf.at[:E, h * Dhp:h * Dhp + Dh].set(w[:, h * Dh:(h + 1) * Dh])
        return buf

    def head_rows(w):                        # (H*Dh, E) -> (H*Dhp, Ep)
        buf = jnp.zeros((HD, Ep), jnp.float32)
        for h in range(H):
            buf = buf.at[h * Dhp:h * Dhp + Dh, :E].set(w[h * Dh:(h + 1) * Dh, :])
        return buf

    def bf16(w):
        return w.astype(jnp.bfloat16)        # bf16 weight storage (f32 MXU accumulation)

    ln_gamma = jnp.zeros((1, Ep), jnp.float32).at[0, :E].set(1.0)
    ln_beta = jnp.zeros((1, Ep), jnp.float32)

    emb = pad2(rnd((vocab, E)), vocab, Ep)
    pe = pad2(positional_encoding_table(ctx, E), ctx, Ep)

    layers = []
    for _ in range(L):
        wq, wk, wv, wo_s = rnd((E, E)), rnd((E, E)), rnd((E, E)), rnd((E, E))
        wq_c, wk_c, wv_c, wo_c = rnd((E, E)), rnd((E, E)), rnd((E, E)), rnd((E, E))
        w1, w2 = rnd((E, ff)), rnd((ff, E))
        layers.append({
            "wqkv": bf16(jnp.concatenate([head_cols(wq), head_cols(wk),
                                          head_cols(wv)], axis=1)),
            "bqkv": jnp.zeros((1, 3 * HD), jnp.float32),
            "wo_s": bf16(head_rows(wo_s)),
            "bo_s": jnp.zeros((1, Ep), jnp.float32),
            "wq_c": bf16(head_cols(wq_c)),
            "bq_c": jnp.zeros((1, HD), jnp.float32),
            "wkv_c": bf16(jnp.concatenate([head_cols(wk_c), head_cols(wv_c)], axis=1)),
            "bkv_c": jnp.zeros((1, 2 * HD), jnp.float32),
            "wo_c": bf16(head_rows(wo_c)),
            "bo_c": jnp.zeros((1, Ep), jnp.float32),
            "w1": bf16(pad2(w1, Ep, FFp)), "b1": jnp.zeros((1, FFp), jnp.float32),
            "w2": bf16(pad2(w2, FFp, Ep)), "b2": jnp.zeros((1, Ep), jnp.float32),
            "ln1_g": ln_gamma, "ln1_b": ln_beta,
            "ln2_g": ln_gamma, "ln2_b": ln_beta,
            "ln3_g": ln_gamma, "ln3_b": ln_beta,
        })

    stacked = {k: jnp.stack([lyr[k] for lyr in layers], axis=0) for k in layers[0]}

    params = {
        "emb": emb, "pe": pe, "layers": stacked,
        "w_out": bf16(pad2(rnd((E, vocab)), Ep, Vp)),
        "b_out": jnp.zeros((1, Vp), jnp.float32),
    }
    cfg = dict(num_heads=H, e_true=E, head_dim=Dh, dhp=Dhp, vocab=vocab)
    return params, cfg


# ------------------------------------ main -------------------------------------

if __name__ == "__main__":
    vocab_size, embed_dim, num_layers, num_heads = 64, 32, 2, 4
    context_size, ff_size = 16, 64
    B, S = 2, 8

    key = jax.random.PRNGKey(0)
    pkey, dkey = jax.random.split(key)
    params, cfg = init_params(pkey, vocab_size, embed_dim, num_layers, num_heads,
                              context_size, ff_size)
    tokens = jax.random.randint(dkey, (B, S), 0, vocab_size, dtype=jnp.int32)

    fwd = jax.jit(functools.partial(transformer_forward, **cfg))
    out = jax.block_until_ready(fwd(params, tokens))

    assert out.shape == (B, S, vocab_size), out.shape
    assert bool(jnp.all(jnp.isfinite(out)))
    print("KERNEL_OK")
</pallas_src>

<mosaic_0001>
module attributes {stable_mosaic.version = 11 : i64} {
  func.func @_out_proj_kernel(%arg0: i32, %arg1: i32, %arg2: memref<16x128xf32, #tpu.memory_space<vmem>>, %arg3: memref<128x128xbf16, #tpu.memory_space<vmem>>, %arg4: memref<1x128xf32, #tpu.memory_space<vmem>>, %arg5: memref<16x128xf32, #tpu.memory_space<vmem>>) attributes {dimension_semantics = [#tpu.dimension_semantics<parallel>, #tpu.dimension_semantics<arbitrary>], iteration_bounds = array<i64: 1, 1>, scalar_prefetch = 0 : i64, scratch_operands = 0 : i64, tpu.core_type = #tpu.core_type<tc>, window_params = [{transform_indices = @transform_0, window_bounds = array<i64: 16, 128>}, {transform_indices = @transform_1, window_bounds = array<i64: 128, 128>}, {transform_indices = @transform_2, window_bounds = array<i64: 1, 128>}, {transform_indices = @transform_3, window_bounds = array<i64: 16, 128>}]} {
    %c0 = arith.constant 0 : index
    %c0_0 = arith.constant 0 : index
    %0 = vector.load %arg2[%c0, %c0_0] : memref<16x128xf32, #tpu.memory_space<vmem>>, vector<16x128xf32>
    %1 = arith.truncf %0 : vector<16x128xf32> to vector<16x128xbf16>
    %c0_1 = arith.constant 0 : index
    %c0_2 = arith.constant 0 : index
    %2 = vector.load %arg3[%c0_1, %c0_2] : memref<128x128xbf16, #tpu.memory_space<vmem>>, vector<128x128xbf16>
    %cst = arith.constant dense<0.000000e+00> : vector<16x128xf32>
    %3 = tpu.matmul %1, %2, %cst {dimension_numbers = #tpu.dot_dimension_numbers<[1], [0], [0], [1], [0, 0, 1, 1], [], []>} : vector<16x128xbf16>, vector<128x128xbf16>, vector<16x128xf32> -> vector<16x128xf32>
    %c0_3 = arith.constant 0 : index
    %c0_4 = arith.constant 0 : index
    %4 = vector.load %arg4[%c0_3, %c0_4] : memref<1x128xf32, #tpu.memory_space<vmem>>, vector<1x128xf32>
    %5 = vector.broadcast %4 : vector<1x128xf32> to vector<16x128xf32>
    %6 = arith.addf %3, %5 : vector<16x128xf32>
    %c0_5 = arith.constant 0 : index
    %c0_6 = arith.constant 0 : index
    %7 = vector.load %arg5[%c0_5, %c0_6] : memref<16x128xf32, #tpu.memory_space<vmem>>, vector<16x128xf32>
    tpu.vector_store %arg5[%c0_5, %c0_6], %6 {strides = array<i32>} : memref<16x128xf32, #tpu.memory_space<vmem>>, vector<16x128xf32>,
    return
  }
  func.func @transform_0(%arg0: i32, %arg1: i32) -> (i32, i32) {
    %c0_i32 = arith.constant 0 : i32
    %c0_i32_0 = arith.constant 0 : i32
    return %arg0, %c0_i32 : i32, i32
  }
  func.func @transform_1(%arg0: i32, %arg1: i32) -> (i32, i32) {
    %c0_i32 = arith.constant 0 : i32
    %c0_i32_0 = arith.constant 0 : i32
    return %c0_i32, %arg1 : i32, i32
  }
  func.func @transform_2(%arg0: i32, %arg1: i32) -> (i32, i32) {
    %c0_i32 = arith.constant 0 : i32
    %c0_i32_0 = arith.constant 0 : i32
    return %c0_i32, %arg1 : i32, i32
  }
  func.func @transform_3(%arg0: i32, %arg1: i32) -> (i32, i32) {
    %c0_i32 = arith.constant 0 : i32
    return %arg0, %arg1 : i32, i32
  }
}

module attributes {stable_mosaic.version = 11 : i64} {
  func.func @_decoder_stack_kernel(%arg0: i32, %arg1: i32, %arg2: memref<2x8x128xf32, #tpu.memory_space<vmem>>, %arg3: memref<1x128x1536xbf16, #tpu.memory_space<vmem>>, %arg4: memref<1x1x1536xf32, #tpu.memory_space<vmem>>, %arg5: memref<1x512x128xbf16, #tpu.memory_space<vmem>>, %arg6: memref<1x1x128xf32, #tpu.memory_space<vmem>>, %arg7: memref<1x128x512xbf16, #tpu.memory_space<vmem>>, %arg8: memref<1x1x512xf32, #tpu.memory_space<vmem>>, %arg9: memref<1x128x1024xbf16, #tpu.memory_space<vmem>>, %arg10: memref<1x1x1024xf32, #tpu.memory_space<vmem>>, %arg11: memref<1x512x128xbf16, #tpu.memory_space<vmem>>, %arg12: memref<1x1x128xf32, #tpu.memory_space<vmem>>, %arg13: memref<1x128x128xbf16, #tpu.memory_space<vmem>>, %arg14: memref<1x1x128xf32, #tpu.memory_space<vmem>>, %arg15: memref<1x128x128xbf16, #tpu.memory_space<vmem>>, %arg16: memref<1x1x128xf32, #tpu.memory_space<vmem>>, %arg17: memref<1x1x128xf32, #tpu.memory_space<vmem>>, %arg18: memref<1x1x128xf32, #tpu.memory_space<vmem>>, %arg19: memref<1x1x128xf32, #tpu.memory_space<vmem>>, %arg20: memref<1x1x128xf32, #tpu.memory_space<vmem>>, %arg21: memref<1x1x128xf32, #tpu.memory_space<vmem>>, %arg22: memref<1x1x128xf32, #tpu.memory_space<vmem>>, %arg23: memref<2x8x128xf32, #tpu.memory_space<vmem>>) attributes {dimension_semantics = [#tpu.dimension_semantics<parallel>, #tpu.dimension_semantics<arbitrary>], iteration_bounds = array<i64: 1, 2>, scalar_prefetch = 0 : i64, scratch_operands = 0 : i64, tpu.core_type = #tpu.core_type<tc>, window_params = [{transform_indices = @transform_0, window_bounds = array<i64: 2, 8, 128>}, {transform_indices = @transform_1, window_bounds = array<i64: 1, 128, 1536>}, {transform_indices = @transform_2, window_bounds = array<i64: 1, 1, 1536>}, {transform_indices = @transform_3, window_bounds = array<i64: 1, 512, 128>}, {transform_indices = @transform_4, window_bounds = array<i64: 1, 1, 128>}, {transform_indices = @transform_5, window_bounds = array<i64: 1, 128, 512>}, {transform_indices = @transform_6, window_bounds = array<i64: 1, 1, 512>}, {transform_indices = @transform_7, window_bounds = array<i64: 1, 128, 1024>}, {transform_indices = @transform_8, window_bounds = array<i64: 1, 1, 1024>}, {transform_indices = @transform_9, window_bounds = array<i64: 1, 512, 128>}, {transform_indices = @transform_10, window_bounds = array<i64: 1, 1, 128>}, {transform_indices = @transform_11, window_bounds = array<i64: 1, 128, 128>}, {transform_indices = @transform_12, window_bounds = array<i64: 1, 1, 128>}, {transform_indices = @transform_13, window_bounds = array<i64: 1, 128, 128>}, {transform_indices = @transform_14, window_bounds = array<i64: 1, 1, 128>}, {transform_indices = @transform_15, window_bounds = array<i64: 1, 1, 128>}, {transform_indices = @transform_16, window_bounds = array<i64: 1, 1, 128>}, {transform_indices = @transform_17, window_bounds = array<i64: 1, 1, 128>}, {transform_indices = @transform_18, window_bounds = array<i64: 1, 1, 128>}, {transform_indices = @transform_19, window_bounds = array<i64: 1, 1, 128>}, {transform_indices = @transform_20, window_bounds = array<i64: 1, 1, 128>}, {transform_indices = @transform_21, window_bounds = array<i64: 2, 8, 128>}]} {
    %c0_i32 = arith.constant 0 : i32
    %0 = arith.cmpi eq, %arg1, %c0_i32 : i32
    %1 = arith.extui %0 : i1 to i32
    %c0_i32_0 = arith.constant 0 : i32
    %2 = arith.cmpi ne, %1, %c0_i32_0 : i32
    scf.if %2 {
      %c0_129 = arith.constant 0 : index
      %c0_130 = arith.constant 0 : index
      %c0_131 = arith.constant 0 : index
      %360 = vector.load %arg2[%c0_129, %c0_130, %c0_131] : memref<2x8x128xf32, #tpu.memory_space<vmem>>, vector<2x8x128xf32>
      %c0_132 = arith.constant 0 : index
      %c0_133 = arith.constant 0 : index
      %c0_134 = arith.constant 0 : index
      %361 = vector.load %arg23[%c0_132, %c0_133, %c0_134] : memref<2x8x128xf32, #tpu.memory_space<vmem>>, vector<2x8x128xf32>
      tpu.vector_store %arg23[%c0_132, %c0_133, %c0_134], %360 {strides = array<i32>} : memref<2x8x128xf32, #tpu.memory_space<vmem>>, vector<2x8x128xf32>,
    } else {
    }
    %c0 = arith.constant 0 : index
    %c0_1 = arith.constant 0 : index
    %c0_2 = arith.constant 0 : index
    %3 = vector.load %arg23[%c0, %c0_1, %c0_2] : memref<2x8x128xf32, #tpu.memory_space<vmem>>, vector<2x8x128xf32>
    %4 = vector.shape_cast %3 : vector<2x8x128xf32> to vector<16x128xf32>
    %c0_3 = arith.constant 0 : index
    %c0_4 = arith.constant 0 : index
    %c0_5 = arith.constant 0 : index
    %5 = vector.load %arg2[%c0_3, %c0_4, %c0_5] : memref<2x8x128xf32, #tpu.memory_space<vmem>>, vector<2x8x128xf32>
    %6 = vector.shape_cast %5 : vector<2x8x128xf32> to vector<16x128xf32>
    %7 = tpu.iota {dimensions = array<i32: 1>} : vector<1x128xi32>
    %c32_i32 = arith.constant 32 : i32
    %8 = vector.broadcast %c32_i32 : i32 to vector<1x128xi32>
    %9 = arith.cmpi slt, %7, %8 : vector<1x128xi32>
    %10 = arith.extui %9 : vector<1x128xi1> to vector<1x128xi32>
    %11 = arith.sitofp %10 : vector<1x128xi32> to vector<1x128xf32>
    %12 = tpu.iota {dimensions = array<i32: 0>} : vector<8x8xi32>
    %13 = tpu.iota {dimensions = array<i32: 1>} : vector<8x8xi32>
    %14 = arith.cmpi sle, %13, %12 : vector<8x8xi32>
    %15 = vector.shape_cast %14 : vector<8x8xi1> to vector<1x8x8xi1>
    %16 = arith.truncf %4 : vector<16x128xf32> to vector<16x128xbf16>
    %c0_6 = arith.constant 0 : index
    %c0_7 = arith.constant 0 : index
    %c0_8 = arith.constant 0 : index
    %17 = vector.load %arg3[%c0_6, %c0_7, %c0_8] : memref<1x128x1536xbf16, #tpu.memory_space<vmem>>, vector<1x128x1536xbf16>
    %18 = vector.shape_cast %17 : vector<1x128x1536xbf16> to vector<128x1536xbf16>
    %cst = arith.constant dense<0.000000e+00> : vector<16x1536xf32>
    %19 = tpu.matmul %16, %18, %cst {dimension_numbers = #tpu.dot_dimension_numbers<[1], [0], [0], [1], [0, 0, 1, 1], [], []>} : vector<16x128xbf16>, vector<128x1536xbf16>, vector<16x1536xf32> -> vector<16x1536xf32>
    %c0_9 = arith.constant 0 : index
    %c0_10 = arith.constant 0 : index
    %c0_11 = arith.constant 0 : index
    %20 = vector.load %arg4[%c0_9, %c0_10, %c0_11] : memref<1x1x1536xf32, #tpu.memory_space<vmem>>, vector<1x1x1536xf32>
    %21 = vector.shape_cast %20 : vector<1x1x1536xf32> to vector<1x1536xf32>
    %22 = vector.broadcast %21 : vector<1x1536xf32> to vector<16x1536xf32>
    %23 = arith.addf %19, %22 : vector<16x1536xf32>
    %24 = vector.extract_strided_slice %23 {offsets = [0, 0], sizes = [16, 512], strides = [1, 1]} : vector<16x1536xf32> to vector<16x512xf32>
    %cst_12 = arith.constant 0.353553385 : f32
    %25 = vector.broadcast %cst_12 : f32 to vector<16x512xf32>
    %26 = arith.mulf %24, %25 : vector<16x512xf32>
    %27 = vector.extract_strided_slice %23 {offsets = [0, 512], sizes = [16, 512], strides = [1, 1]} : vector<16x1536xf32> to vector<16x512xf32>
    %28 = vector.extract_strided_slice %23 {offsets = [0, 1024], sizes = [16, 512], strides = [1, 1]} : vector<16x1536xf32> to vector<16x512xf32>
    %29 = vector.extract_strided_slice %26 {offsets = [0, 0], sizes = [16, 128], strides = [1, 1]} : vector<16x512xf32> to vector<16x128xf32>
    %30 = vector.shape_cast %29 : vector<16x128xf32> to vector<2x8x128xf32>
    %31 = arith.truncf %30 : vector<2x8x128xf32> to vector<2x8x128xbf16>
    %32 = vector.extract_strided_slice %27 {offsets = [0, 0], sizes = [16, 128], strides = [1, 1]} : vector<16x512xf32> to vector<16x128xf32>
    %33 = vector.shape_cast %32 : vector<16x128xf32> to vector<2x8x128xf32>
    %34 = arith.truncf %33 : vector<2x8x128xf32> to vector<2x8x128xbf16>
    %35 = vector.extract_strided_slice %28 {offsets = [0, 0], sizes = [16, 128], strides = [1, 1]} : vector<16x512xf32> to vector<16x128xf32>
    %36 = vector.shape_cast %35 : vector<16x128xf32> to vector<2x8x128xf32>
    %37 = arith.truncf %36 : vector<2x8x128xf32> to vector<2x8x128xbf16>
    "tpu.trace_start"() <{level = 10 : i32, message = "bqd,bkd->bqk"}> : () -> ()
    %cst_13 = arith.constant dense<0.000000e+00> : vector<2x8x8xf32>
    %38 = tpu.matmul %31, %34, %cst_13 {dimension_numbers = #tpu.dot_dimension_numbers<[2], [2], [1], [1], [0, 0, 0, 1, 1, 1], [0], [0]>} : vector<2x8x128xbf16>, vector<2x8x128xbf16>, vector<2x8x8xf32> -> vector<2x8x8xf32>
    %cst_14 = arith.constant -1.000000e+30 : f32
    "tpu.trace_stop"() : () -> ()
    %39 = vector.shape_cast %15 : vector<1x8x8xi1> to vector<1x8x8xi1>
    %40 = vector.broadcast %39 : vector<1x8x8xi1> to vector<2x8x8xi1>
    %41 = vector.broadcast %cst_14 : f32 to vector<2x8x8xf32>
    %42 = arith.select %40, %38, %41 : vector<2x8x8xi1>, vector<2x8x8xf32>
    %cst_15 = arith.constant dense<0xFF800000> : vector<2x8xf32>
    %43 = vector.multi_reduction <maximumf>, %42, %cst_15 [2] : vector<2x8x8xf32> to vector<2x8xf32>
    %44 = vector.shape_cast %43 : vector<2x8xf32> to vector<2x8x1xf32>
    %45 = vector.broadcast %44 : vector<2x8x1xf32> to vector<2x8x8xf32>
    %46 = arith.subf %42, %45 : vector<2x8x8xf32>
    %47 = math.exp %46 : vector<2x8x8xf32>
    %cst_16 = arith.constant dense<0.000000e+00> : vector<2x8xf32>
    %48 = vector.multi_reduction <add>, %47, %cst_16 [2] : vector<2x8x8xf32> to vector<2x8xf32>
    %49 = vector.shape_cast %48 : vector<2x8xf32> to vector<2x8x1xf32>
    %50 = vector.broadcast %49 : vector<2x8x1xf32> to vector<2x8x8xf32>
    %51 = arith.divf %47, %50 : vector<2x8x8xf32>
    %52 = arith.truncf %51 : vector<2x8x8xf32> to vector<2x8x8xbf16>
    "tpu.trace_start"() <{level = 10 : i32, message = "bqk,bkd->bqd"}> : () -> ()
    %cst_17 = arith.constant dense<0.000000e+00> : vector<2x8x128xf32>
    %53 = tpu.matmul %52, %37, %cst_17 {dimension_numbers = #tpu.dot_dimension_numbers<[2], [1], [1], [2], [0, 0, 0, 1, 1, 2], [0], [0]>} : vector<2x8x8xbf16>, vector<2x8x128xbf16>, vector<2x8x128xf32> -> vector<2x8x128xf32>
    "tpu.trace_stop"() : () -> ()
    %54 = vector.shape_cast %53 : vector<2x8x128xf32> to vector<16x128xf32>
    %55 = vector.extract_strided_slice %26 {offsets = [0, 128], sizes = [16, 128], strides = [1, 1]} : vector<16x512xf32> to vector<16x128xf32>
    %56 = vector.shape_cast %55 : vector<16x128xf32> to vector<2x8x128xf32>
    %57 = arith.truncf %56 : vector<2x8x128xf32> to vector<2x8x128xbf16>
    %58 = vector.extract_strided_slice %27 {offsets = [0, 128], sizes = [16, 128], strides = [1, 1]} : vector<16x512xf32> to vector<16x128xf32>
    %59 = vector.shape_cast %58 : vector<16x128xf32> to vector<2x8x128xf32>
    %60 = arith.truncf %59 : vector<2x8x128xf32> to vector<2x8x128xbf16>
    %61 = vector.extract_strided_slice %28 {offsets = [0, 128], sizes = [16, 128], strides = [1, 1]} : vector<16x512xf32> to vector<16x128xf32>
    %62 = vector.shape_cast %61 : vector<16x128xf32> to vector<2x8x128xf32>
    %63 = arith.truncf %62 : vector<2x8x128xf32> to vector<2x8x128xbf16>
    "tpu.trace_start"() <{level = 10 : i32, message = "bqd,bkd->bqk"}> : () -> ()
    %cst_18 = arith.constant dense<0.000000e+00> : vector<2x8x8xf32>
    %64 = tpu.matmul %57, %60, %cst_18 {dimension_numbers = #tpu.dot_dimension_numbers<[2], [2], [1], [1], [0, 0, 0, 1, 1, 1], [0], [0]>} : vector<2x8x128xbf16>, vector<2x8x128xbf16>, vector<2x8x8xf32> -> vector<2x8x8xf32>
    %cst_19 = arith.constant -1.000000e+30 : f32
    "tpu.trace_stop"() : () -> ()
    %65 = vector.shape_cast %15 : vector<1x8x8xi1> to vector<1x8x8xi1>
    %66 = vector.broadcast %65 : vector<1x8x8xi1> to vector<2x8x8xi1>
    %67 = vector.broadcast %cst_19 : f32 to vector<2x8x8xf32>
    %68 = arith.select %66, %64, %67 : vector<2x8x8xi1>, vector<2x8x8xf32>
    %cst_20 = arith.constant dense<0xFF800000> : vector<2x8xf32>
    %69 = vector.multi_reduction <maximumf>, %68, %cst_20 [2] : vector<2x8x8xf32> to vector<2x8xf32>
    %70 = vector.shape_cast %69 : vector<2x8xf32> to vector<2x8x1xf32>
    %71 = vector.broadcast %70 : vector<2x8x1xf32> to vector<2x8x8xf32>
    %72 = arith.subf %68, %71 : vector<2x8x8xf32>
    %73 = math.exp %72 : vector<2x8x8xf32>
    %cst_21 = arith.constant dense<0.000000e+00> : vector<2x8xf32>
    %74 = vector.multi_reduction <add>, %73, %cst_21 [2] : vector<2x8x8xf32> to vector<2x8xf32>
    %75 = vector.shape_cast %74 : vector<2x8xf32> to vector<2x8x1xf32>
    %76 = vector.broadcast %75 : vector<2x8x1xf32> to vector<2x8x8xf32>
    %77 = arith.divf %73, %76 : vector<2x8x8xf32>
    %78 = arith.truncf %77 : vector<2x8x8xf32> to vector<2x8x8xbf16>
    "tpu.trace_start"() <{level = 10 : i32, message = "bqk,bkd->bqd"}> : () -> ()
    %cst_22 = arith.constant dense<0.000000e+00> : vector<2x8x128xf32>
    %79 = tpu.matmul %78, %63, %cst_22 {dimension_numbers = #tpu.dot_dimension_numbers<[2], [1], [1], [2], [0, 0, 0, 1, 1, 2], [0], [0]>} : vector<2x8x8xbf16>, vector<2x8x128xbf16>, vector<2x8x128xf32> -> vector<2x8x128xf32>
    "tpu.trace_stop"() : () -> ()
    %80 = vector.shape_cast %79 : vector<2x8x128xf32> to vector<16x128xf32>
    %81 = vector.extract_strided_slice %26 {offsets = [0, 256], sizes = [16, 128], strides = [1, 1]} : vector<16x512xf32> to vector<16x128xf32>
    %82 = vector.shape_cast %81 : vector<16x128xf32> to vector<2x8x128xf32>
    %83 = arith.truncf %82 : vector<2x8x128xf32> to vector<2x8x128xbf16>
    %84 = vector.extract_strided_slice %27 {offsets = [0, 256], sizes = [16, 128], strides = [1, 1]} : vector<16x512xf32> to vector<16x128xf32>
    %85 = vector.shape_cast %84 : vector<16x128xf32> to vector<2x8x128xf32>
    %86 = arith.truncf %85 : vector<2x8x128xf32> to vector<2x8x128xbf16>
    %87 = vector.extract_strided_slice %28 {offsets = [0, 256], sizes = [16, 128], strides = [1, 1]} : vector<16x512xf32> to vector<16x128xf32>
    %88 = vector.shape_cast %87 : vector<16x128xf32> to vector<2x8x128xf32>
    %89 = arith.truncf %88 : vector<2x8x128xf32> to vector<2x8x128xbf16>
    "tpu.trace_start"() <{level = 10 : i32, message = "bqd,bkd->bqk"}> : () -> ()
    %cst_23 = arith.constant dense<0.000000e+00> : vector<2x8x8xf32>
    %90 = tpu.matmul %83, %86, %cst_23 {dimension_numbers = #tpu.dot_dimension_numbers<[2], [2], [1], [1], [0, 0, 0, 1, 1, 1], [0], [0]>} : vector<2x8x128xbf16>, vector<2x8x128xbf16>, vector<2x8x8xf32> -> vector<2x8x8xf32>
    %cst_24 = arith.constant -1.000000e+30 : f32
    "tpu.trace_stop"() : () -> ()
    %91 = vector.shape_cast %15 : vector<1x8x8xi1> to vector<1x8x8xi1>
    %92 = vector.broadcast %91 : vector<1x8x8xi1> to vector<2x8x8xi1>
    %93 = vector.broadcast %cst_24 : f32 to vector<2x8x8xf32>
    %94 = arith.select %92, %90, %93 : vector<2x8x8xi1>, vector<2x8x8xf32>
    %cst_25 = arith.constant dense<0xFF800000> : vector<2x8xf32>
    %95 = vector.multi_reduction <maximumf>, %94, %cst_25 [2] : vector<2x8x8xf32> to vector<2x8xf32>
    %96 = vector.shape_cast %95 : vector<2x8xf32> to vector<2x8x1xf32>
    %97 = vector.broadcast %96 : vector<2x8x1xf32> to vector<2x8x8xf32>
    %98 = arith.subf %94, %97 : vector<2x8x8xf32>
    %99 = math.exp %98 : vector<2x8x8xf32>
    %cst_26 = arith.constant dense<0.000000e+00> : vector<2x8xf32>
    %100 = vector.multi_reduction <add>, %99, %cst_26 [2] : vector<2x8x8xf32> to vector<2x8xf32>
    %101 = vector.shape_cast %100 : vector<2x8xf32> to vector<2x8x1xf32>
    %102 = vector.broadcast %101 : vector<2x8x1xf32> to vector<2x8x8xf32>
    %103 = arith.divf %99, %102 : vector<2x8x8xf32>
    %104 = arith.truncf %103 : vector<2x8x8xf32> to vector<2x8x8xbf16>
    "tpu.trace_start"() <{level = 10 : i32, message = "bqk,bkd->bqd"}> : () -> ()
    %cst_27 = arith.constant dense<0.000000e+00> : vector<2x8x128xf32>
    %105 = tpu.matmul %104, %89, %cst_27 {dimension_numbers = #tpu.dot_dimension_numbers<[2], [1], [1], [2], [0, 0, 0, 1, 1, 2], [0], [0]>} : vector<2x8x8xbf16>, vector<2x8x128xbf16>, vector<2x8x128xf32> -> vector<2x8x128xf32>
    "tpu.trace_stop"() : () -> ()
    %106 = vector.shape_cast %105 : vector<2x8x128xf32> to vector<16x128xf32>
    %107 = vector.extract_strided_slice %26 {offsets = [0, 384], sizes = [16, 128], strides = [1, 1]} : vector<16x512xf32> to vector<16x128xf32>
    %108 = vector.shape_cast %107 : vector<16x128xf32> to vector<2x8x128xf32>
    %109 = arith.truncf %108 : vector<2x8x128xf32> to vector<2x8x128xbf16>
    %110 = vector.extract_strided_slice %27 {offsets = [0, 384], sizes = [16, 128], strides = [1, 1]} : vector<16x512xf32> to vector<16x128xf32>
    %111 = vector.shape_cast %110 : vector<16x128xf32> to vector<2x8x128xf32>
    %112 = arith.truncf %111 : vector<2x8x128xf32> to vector<2x8x128xbf16>
    %113 = vector.extract_strided_slice %28 {offsets = [0, 384], sizes = [16, 128], strides = [1, 1]} : vector<16x512xf32> to vector<16x128xf32>
    %114 = vector.shape_cast %113 : vector<16x128xf32> to vector<2x8x128xf32>
    %115 = arith.truncf %114 : vector<2x8x128xf32> to vector<2x8x128xbf16>
    "tpu.trace_start"() <{level = 10 : i32, message = "bqd,bkd->bqk"}> : () -> ()
    %cst_28 = arith.constant dense<0.000000e+00> : vector<2x8x8xf32>
    %116 = tpu.matmul %109, %112, %cst_28 {dimension_numbers = #tpu.dot_dimension_numbers<[2], [2], [1], [1], [0, 0, 0, 1, 1, 1], [0], [0]>} : vector<2x8x128xbf16>, vector<2x8x128xbf16>, vector<2x8x8xf32> -> vector<2x8x8xf32>
    %cst_29 = arith.constant -1.000000e+30 : f32
    "tpu.trace_stop"() : () -> ()
    %117 = vector.shape_cast %15 : vector<1x8x8xi1> to vector<1x8x8xi1>
    %118 = vector.broadcast %117 : vector<1x8x8xi1> to vector<2x8x8xi1>
    %119 = vector.broadcast %cst_29 : f32 to vector<2x8x8xf32>
    %120 = arith.select %118, %116, %119 : vector<2x8x8xi1>, vector<2x8x8xf32>
    %cst_30 = arith.constant dense<0xFF800000> : vector<2x8xf32>
    %121 = vector.multi_reduction <maximumf>, %120, %cst_30 [2] : vector<2x8x8xf32> to vector<2x8xf32>
    %122 = vector.shape_cast %121 : vector<2x8xf32> to vector<2x8x1xf32>
    %123 = vector.broadcast %122 : vector<2x8x1xf32> to vector<2x8x8xf32>
    %124 = arith.subf %120, %123 : vector<2x8x8xf32>
    %125 = math.exp %124 : vector<2x8x8xf32>
    %cst_31 = arith.constant dense<0.000000e+00> : vector<2x8xf32>
    %126 = vector.multi_reduction <add>, %125, %cst_31 [2] : vector<2x8x8xf32> to vector<2x8xf32>
    %127 = vector.shape_cast %126 : vector<2x8xf32> to vector<2x8x1xf32>
    %128 = vector.broadcast %127 : vector<2x8x1xf32> to vector<2x8x8xf32>
    %129 = arith.divf %125, %128 : vector<2x8x8xf32>
    %130 = arith.truncf %129 : vector<2x8x8xf32> to vector<2x8x8xbf16>
    "tpu.trace_start"() <{level = 10 : i32, message = "bqk,bkd->bqd"}> : () -> ()
    %cst_32 = arith.constant dense<0.000000e+00> : vector<2x8x128xf32>
    %131 = tpu.matmul %130, %115, %cst_32 {dimension_numbers = #tpu.dot_dimension_numbers<[2], [1], [1], [2], [0, 0, 0, 1, 1, 2], [0], [0]>} : vector<2x8x8xbf16>, vector<2x8x128xbf16>, vector<2x8x128xf32> -> vector<2x8x128xf32>
    "tpu.trace_stop"() : () -> ()
    %132 = vector.shape_cast %131 : vector<2x8x128xf32> to vector<16x128xf32>
    %133 = tpu.concatenate %54, %80, %106, %132 in 1 : vector<16x128xf32>, vector<16x128xf32>, vector<16x128xf32>, vector<16x128xf32> -> vector<16x512xf32>
    %134 = arith.truncf %133 : vector<16x512xf32> to vector<16x512xbf16>
    %c0_33 = arith.constant 0 : index
    %c0_34 = arith.constant 0 : index
    %c0_35 = arith.constant 0 : index
    %135 = vector.load %arg5[%c0_33, %c0_34, %c0_35] : memref<1x512x128xbf16, #tpu.memory_space<vmem>>, vector<1x512x128xbf16>
    %136 = vector.shape_cast %135 : vector<1x512x128xbf16> to vector<512x128xbf16>
    %cst_36 = arith.constant dense<0.000000e+00> : vector<16x128xf32>
    %137 = tpu.matmul %134, %136, %cst_36 {dimension_numbers = #tpu.dot_dimension_numbers<[1], [0], [0], [1], [0, 0, 1, 1], [], []>} : vector<16x512xbf16>, vector<512x128xbf16>, vector<16x128xf32> -> vector<16x128xf32>
    %c0_37 = arith.constant 0 : index
    %c0_38 = arith.constant 0 : index
    %c0_39 = arith.constant 0 : index
    %138 = vector.load %arg6[%c0_37, %c0_38, %c0_39] : memref<1x1x128xf32, #tpu.memory_space<vmem>>, vector<1x1x128xf32>
    %139 = vector.shape_cast %138 : vector<1x1x128xf32> to vector<1x128xf32>
    %140 = vector.broadcast %139 : vector<1x128xf32> to vector<16x128xf32>
    %141 = arith.addf %137, %140 : vector<16x128xf32>
    %142 = arith.addf %4, %141 : vector<16x128xf32>
    %cst_40 = arith.constant dense<0.000000e+00> : vector<16xf32>
    %143 = vector.multi_reduction <add>, %142, %cst_40 [1] : vector<16x128xf32> to vector<16xf32>
    %144 = vector.shape_cast %143 : vector<16xf32> to vector<16x1xf32>
    %cst_41 = arith.constant 3.125000e-02 : f32
    %145 = vector.broadcast %cst_41 : f32 to vector<16x1xf32>
    %146 = arith.mulf %144, %145 : vector<16x1xf32>
    %147 = vector.broadcast %146 : vector<16x1xf32> to vector<16x128xf32>
    %148 = arith.subf %142, %147 : vector<16x128xf32>
    %149 = vector.broadcast %11 : vector<1x128xf32> to vector<16x128xf32>
    %150 = arith.mulf %148, %149 : vector<16x128xf32>
    %151 = arith.mulf %150, %150 : vector<16x128xf32>
    %cst_42 = arith.constant dense<0.000000e+00> : vector<16xf32>
    %152 = vector.multi_reduction <add>, %151, %cst_42 [1] : vector<16x128xf32> to vector<16xf32>
    %153 = vector.shape_cast %152 : vector<16xf32> to vector<16x1xf32>
    %cst_43 = arith.constant 3.125000e-02 : f32
    %154 = vector.broadcast %cst_43 : f32 to vector<16x1xf32>
    %155 = arith.mulf %153, %154 : vector<16x1xf32>
    %cst_44 = arith.constant 9.99999974E-6 : f32
    %156 = vector.broadcast %cst_44 : f32 to vector<16x1xf32>
    %157 = arith.addf %155, %156 : vector<16x1xf32>
    %158 = math.rsqrt %157 : vector<16x1xf32>
    %159 = vector.broadcast %158 : vector<16x1xf32> to vector<16x128xf32>
    %160 = arith.mulf %150, %159 : vector<16x128xf32>
    %c0_45 = arith.constant 0 : index
    %c0_46 = arith.constant 0 : index
    %c0_47 = arith.constant 0 : index
    %161 = vector.load %arg17[%c0_45, %c0_46, %c0_47] : memref<1x1x128xf32, #tpu.memory_space<vmem>>, vector<1x1x128xf32>
    %162 = vector.shape_cast %161 : vector<1x1x128xf32> to vector<1x128xf32>
    %163 = vector.broadcast %162 : vector<1x128xf32> to vector<16x128xf32>
    %164 = arith.mulf %160, %163 : vector<16x128xf32>
    %c0_48 = arith.constant 0 : index
    %c0_49 = arith.constant 0 : index
    %c0_50 = arith.constant 0 : index
    %165 = vector.load %arg18[%c0_48, %c0_49, %c0_50] : memref<1x1x128xf32, #tpu.memory_space<vmem>>, vector<1x1x128xf32>
    %166 = vector.shape_cast %165 : vector<1x1x128xf32> to vector<1x128xf32>
    %167 = vector.broadcast %166 : vector<1x128xf32> to vector<16x128xf32>
    %168 = arith.addf %164, %167 : vector<16x128xf32>
    %169 = arith.truncf %168 : vector<16x128xf32> to vector<16x128xbf16>
    %c0_51 = arith.constant 0 : index
    %c0_52 = arith.constant 0 : index
    %c0_53 = arith.constant 0 : index
    %170 = vector.load %arg7[%c0_51, %c0_52, %c0_53] : memref<1x128x512xbf16, #tpu.memory_space<vmem>>, vector<1x128x512xbf16>
    %171 = vector.shape_cast %170 : vector<1x128x512xbf16> to vector<128x512xbf16>
    %cst_54 = arith.constant dense<0.000000e+00> : vector<16x512xf32>
    %172 = tpu.matmul %169, %171, %cst_54 {dimension_numbers = #tpu.dot_dimension_numbers<[1], [0], [0], [1], [0, 0, 1, 1], [], []>} : vector<16x128xbf16>, vector<128x512xbf16>, vector<16x512xf32> -> vector<16x512xf32>
    %c0_55 = arith.constant 0 : index
    %c0_56 = arith.constant 0 : index
    %c0_57 = arith.constant 0 : index
    %173 = vector.load %arg8[%c0_55, %c0_56, %c0_57] : memref<1x1x512xf32, #tpu.memory_space<vmem>>, vector<1x1x512xf32>
    %174 = vector.shape_cast %173 : vector<1x1x512xf32> to vector<1x512xf32>
    %175 = vector.broadcast %174 : vector<1x512xf32> to vector<16x512xf32>
    %176 = arith.addf %172, %175 : vector<16x512xf32>
    %cst_58 = arith.constant 0.353553385 : f32
    %177 = vector.broadcast %cst_58 : f32 to vector<16x512xf32>
    %178 = arith.mulf %176, %177 : vector<16x512xf32>
    %179 = arith.truncf %6 : vector<16x128xf32> to vector<16x128xbf16>
    %c0_59 = arith.constant 0 : index
    %c0_60 = arith.constant 0 : index
    %c0_61 = arith.constant 0 : index
    %180 = vector.load %arg9[%c0_59, %c0_60, %c0_61] : memref<1x128x1024xbf16, #tpu.memory_space<vmem>>, vector<1x128x1024xbf16>
    %181 = vector.shape_cast %180 : vector<1x128x1024xbf16> to vector<128x1024xbf16>
    %cst_62 = arith.constant dense<0.000000e+00> : vector<16x1024xf32>
    %182 = tpu.matmul %179, %181, %cst_62 {dimension_numbers = #tpu.dot_dimension_numbers<[1], [0], [0], [1], [0, 0, 1, 1], [], []>} : vector<16x128xbf16>, vector<128x1024xbf16>, vector<16x1024xf32> -> vector<16x1024xf32>
    %c0_63 = arith.constant 0 : index
    %c0_64 = arith.constant 0 : index
    %c0_65 = arith.constant 0 : index
    %183 = vector.load %arg10[%c0_63, %c0_64, %c0_65] : memref<1x1x1024xf32, #tpu.memory_space<vmem>>, vector<1x1x1024xf32>
    %184 = vector.shape_cast %183 : vector<1x1x1024xf32> to vector<1x1024xf32>
    %185 = vector.broadcast %184 : vector<1x1024xf32> to vector<16x1024xf32>
    %186 = arith.addf %182, %185 : vector<16x1024xf32>
    %187 = vector.extract_strided_slice %186 {offsets = [0, 0], sizes = [16, 512], strides = [1, 1]} : vector<16x1024xf32> to vector<16x512xf32>
    %188 = vector.extract_strided_slice %186 {offsets = [0, 512], sizes = [16, 512], strides = [1, 1]} : vector<16x1024xf32> to vector<16x512xf32>
    %189 = vector.extract_strided_slice %178 {offsets = [0, 0], sizes = [16, 128], strides = [1, 1]} : vector<16x512xf32> to vector<16x128xf32>
    %190 = vector.shape_cast %189 : vector<16x128xf32> to vector<2x8x128xf32>
    %191 = arith.truncf %190 : vector<2x8x128xf32> to vector<2x8x128xbf16>
    %192 = vector.extract_strided_slice %187 {offsets = [0, 0], sizes = [16, 128], strides = [1, 1]} : vector<16x512xf32> to vector<16x128xf32>
    %193 = vector.shape_cast %192 : vector<16x128xf32> to vector<2x8x128xf32>
    %194 = arith.truncf %193 : vector<2x8x128xf32> to vector<2x8x128xbf16>
    %195 = vector.extract_strided_slice %188 {offsets = [0, 0], sizes = [16, 128], strides = [1, 1]} : vector<16x512xf32> to vector<16x128xf32>
    %196 = vector.shape_cast %195 : vector<16x128xf32> to vector<2x8x128xf32>
    %197 = arith.truncf %196 : vector<2x8x128xf32> to vector<2x8x128xbf16>
    "tpu.trace_start"() <{level = 10 : i32, message = "bqd,bkd->bqk"}> : () -> ()
    %cst_66 = arith.constant dense<0.000000e+00> : vector<2x8x8xf32>
    %198 = tpu.matmul %191, %194, %cst_66 {dimension_numbers = #tpu.dot_dimension_numbers<[2], [2], [1], [1], [0, 0, 0, 1, 1, 1], [0], [0]>} : vector<2x8x128xbf16>, vector<2x8x128xbf16>, vector<2x8x8xf32> -> vector<2x8x8xf32>
    "tpu.trace_stop"() : () -> ()
    %cst_67 = arith.constant dense<0xFF800000> : vector<2x8xf32>
    %199 = vector.multi_reduction <maximumf>, %198, %cst_67 [2] : vector<2x8x8xf32> to vector<2x8xf32>
    %200 = vector.shape_cast %199 : vector<2x8xf32> to vector<2x8x1xf32>
    %201 = vector.broadcast %200 : vector<2x8x1xf32> to vector<2x8x8xf32>
    %202 = arith.subf %198, %201 : vector<2x8x8xf32>
    %203 = math.exp %202 : vector<2x8x8xf32>
    %cst_68 = arith.constant dense<0.000000e+00> : vector<2x8xf32>
    %204 = vector.multi_reduction <add>, %203, %cst_68 [2] : vector<2x8x8xf32> to vector<2x8xf32>
    %205 = vector.shape_cast %204 : vector<2x8xf32> to vector<2x8x1xf32>
    %206 = vector.broadcast %205 : vector<2x8x1xf32> to vector<2x8x8xf32>
    %207 = arith.divf %203, %206 : vector<2x8x8xf32>
    %208 = arith.truncf %207 : vector<2x8x8xf32> to vector<2x8x8xbf16>
    "tpu.trace_start"() <{level = 10 : i32, message = "bqk,bkd->bqd"}> : () -> ()
    %cst_69 = arith.constant dense<0.000000e+00> : vector<2x8x128xf32>
    %209 = tpu.matmul %208, %197, %cst_69 {dimension_numbers = #tpu.dot_dimension_numbers<[2], [1], [1], [2], [0, 0, 0, 1, 1, 2], [0], [0]>} : vector<2x8x8xbf16>, vector<2x8x128xbf16>, vector<2x8x128xf32> -> vector<2x8x128xf32>
    "tpu.trace_stop"() : () -> ()
    %210 = vector.shape_cast %209 : vector<2x8x128xf32> to vector<16x128xf32>
    %211 = vector.extract_strided_slice %178 {offsets = [0, 128], sizes = [16, 128], strides = [1, 1]} : vector<16x512xf32> to vector<16x128xf32>
    %212 = vector.shape_cast %211 : vector<16x128xf32> to vector<2x8x128xf32>
    %213 = arith.truncf %212 : vector<2x8x128xf32> to vector<2x8x128xbf16>
    %214 = vector.extract_strided_slice %187 {offsets = [0, 128], sizes = [16, 128], strides = [1, 1]} : vector<16x512xf32> to vector<16x128xf32>
    %215 = vector.shape_cast %214 : vector<16x128xf32> to vector<2x8x128xf32>
    %216 = arith.truncf %215 : vector<2x8x128xf32> to vector<2x8x128xbf16>
    %217 = vector.extract_strided_slice %188 {offsets = [0, 128], sizes = [16, 128], strides = [1, 1]} : vector<16x512xf32> to vector<16x128xf32>
    %218 = vector.shape_cast %217 : vector<16x128xf32> to vector<2x8x128xf32>
    %219 = arith.truncf %218 : vector<2x8x128xf32> to vector<2x8x128xbf16>
    "tpu.trace_start"() <{level = 10 : i32, message = "bqd,bkd->bqk"}> : () -> ()
    %cst_70 = arith.constant dense<0.000000e+00> : vector<2x8x8xf32>
    %220 = tpu.matmul %213, %216, %cst_70 {dimension_numbers = #tpu.dot_dimension_numbers<[2], [2], [1], [1], [0, 0, 0, 1, 1, 1], [0], [0]>} : vector<2x8x128xbf16>, vector<2x8x128xbf16>, vector<2x8x8xf32> -> vector<2x8x8xf32>
    "tpu.trace_stop"() : () -> ()
    %cst_71 = arith.constant dense<0xFF800000> : vector<2x8xf32>
    %221 = vector.multi_reduction <maximumf>, %220, %cst_71 [2] : vector<2x8x8xf32> to vector<2x8xf32>
    %222 = vector.shape_cast %221 : vector<2x8xf32> to vector<2x8x1xf32>
    %223 = vector.broadcast %222 : vector<2x8x1xf32> to vector<2x8x8xf32>
    %224 = arith.subf %220, %223 : vector<2x8x8xf32>
    %225 = math.exp %224 : vector<2x8x8xf32>
    %cst_72 = arith.constant dense<0.000000e+00> : vector<2x8xf32>
    %226 = vector.multi_reduction <add>, %225, %cst_72 [2] : vector<2x8x8xf32> to vector<2x8xf32>
    %227 = vector.shape_cast %226 : vector<2x8xf32> to vector<2x8x1xf32>
    %228 = vector.broadcast %227 : vector<2x8x1xf32> to vector<2x8x8xf32>
    %229 = arith.divf %225, %228 : vector<2x8x8xf32>
    %230 = arith.truncf %229 : vector<2x8x8xf32> to vector<2x8x8xbf16>
    "tpu.trace_start"() <{level = 10 : i32, message = "bqk,bkd->bqd"}> : () -> ()
    %cst_73 = arith.constant dense<0.000000e+00> : vector<2x8x128xf32>
    %231 = tpu.matmul %230, %219, %cst_73 {dimension_numbers = #tpu.dot_dimension_numbers<[2], [1], [1], [2], [0, 0, 0, 1, 1, 2], [0], [0]>} : vector<2x8x8xbf16>, vector<2x8x128xbf16>, vector<2x8x128xf32> -> vector<2x8x128xf32>
    "tpu.trace_stop"() : () -> ()
    %232 = vector.shape_cast %231 : vector<2x8x128xf32> to vector<16x128xf32>
    %233 = vector.extract_strided_slice %178 {offsets = [0, 256], sizes = [16, 128], strides = [1, 1]} : vector<16x512xf32> to vector<16x128xf32>
    %234 = vector.shape_cast %233 : vector<16x128xf32> to vector<2x8x128xf32>
    %235 = arith.truncf %234 : vector<2x8x128xf32> to vector<2x8x128xbf16>
    %236 = vector.extract_strided_slice %187 {offsets = [0, 256], sizes = [16, 128], strides = [1, 1]} : vector<16x512xf32> to vector<16x128xf32>
    %237 = vector.shape_cast %236 : vector<16x128xf32> to vector<2x8x128xf32>
    %238 = arith.truncf %237 : vector<2x8x128xf32> to vector<2x8x128xbf16>
    %239 = vector.extract_strided_slice %188 {offsets = [0, 256], sizes = [16, 128], strides = [1, 1]} : vector<16x512xf32> to vector<16x128xf32>
    %240 = vector.shape_cast %239 : vector<16x128xf32> to vector<2x8x128xf32>
    %241 = arith.truncf %240 : vector<2x8x128xf32> to vector<2x8x128xbf16>
    "tpu.trace_start"() <{level = 10 : i32, message = "bqd,bkd->bqk"}> : () -> ()
    %cst_74 = arith.constant dense<0.000000e+00> : vector<2x8x8xf32>
    %242 = tpu.matmul %235, %238, %cst_74 {dimension_numbers = #tpu.dot_dimension_numbers<[2], [2], [1], [1], [0, 0, 0, 1, 1, 1], [0], [0]>} : vector<2x8x128xbf16>, vector<2x8x128xbf16>, vector<2x8x8xf32> -> vector<2x8x8xf32>
    "tpu.trace_stop"() : () -> ()
    %cst_75 = arith.constant dense<0xFF800000> : vector<2x8xf32>
    %243 = vector.multi_reduction <maximumf>, %242, %cst_75 [2] : vector<2x8x8xf32> to vector<2x8xf32>
    %244 = vector.shape_cast %243 : vector<2x8xf32> to vector<2x8x1xf32>
    %245 = vector.broadcast %244 : vector<2x8x1xf32> to vector<2x8x8xf32>
    %246 = arith.subf %242, %245 : vector<2x8x8xf32>
    %247 = math.exp %246 : vector<2x8x8xf32>
    %cst_76 = arith.constant dense<0.000000e+00> : vector<2x8xf32>
    %248 = vector.multi_reduction <add>, %247, %cst_76 [2] : vector<2x8x8xf32> to vector<2x8xf32>
    %249 = vector.shape_cast %248 : vector<2x8xf32> to vector<2x8x1xf32>
    %250 = vector.broadcast %249 : vector<2x8x1xf32> to vector<2x8x8xf32>
    %251 = arith.divf %247, %250 : vector<2x8x8xf32>
    %252 = arith.truncf %251 : vector<2x8x8xf32> to vector<2x8x8xbf16>
    "tpu.trace_start"() <{level = 10 : i32, message = "bqk,bkd->bqd"}> : () -> ()
    %cst_77 = arith.constant dense<0.000000e+00> : vector<2x8x128xf32>
    %253 = tpu.matmul %252, %241, %cst_77 {dimension_numbers = #tpu.dot_dimension_numbers<[2], [1], [1], [2], [0, 0, 0, 1, 1, 2], [0], [0]>} : vector<2x8x8xbf16>, vector<2x8x128xbf16>, vector<2x8x128xf32> -> vector<2x8x128xf32>
    "tpu.trace_stop"() : () -> ()
    %254 = vector.shape_cast %253 : vector<2x8x128xf32> to vector<16x128xf32>
    %255 = vector.extract_strided_slice %178 {offsets = [0, 384], sizes = [16, 128], strides = [1, 1]} : vector<16x512xf32> to vector<16x128xf32>
    %256 = vector.shape_cast %255 : vector<16x128xf32> to vector<2x8x128xf32>
    %257 = arith.truncf %256 : vector<2x8x128xf32> to vector<2x8x128xbf16>
    %258 = vector.extract_strided_slice %187 {offsets = [0, 384], sizes = [16, 128], strides = [1, 1]} : vector<16x512xf32> to vector<16x128xf32>
    %259 = vector.shape_cast %258 : vector<16x128xf32> to vector<2x8x128xf32>
    %260 = arith.truncf %259 : vector<2x8x128xf32> to vector<2x8x128xbf16>
    %261 = vector.extract_strided_slice %188 {offsets = [0, 384], sizes = [16, 128], strides = [1, 1]} : vector<16x512xf32> to vector<16x128xf32>
    %262 = vector.shape_cast %261 : vector<16x128xf32> to vector<2x8x128xf32>
    %263 = arith.truncf %262 : vector<2x8x128xf32> to vector<2x8x128xbf16>
    "tpu.trace_start"() <{level = 10 : i32, message = "bqd,bkd->bqk"}> : () -> ()
    %cst_78 = arith.constant dense<0.000000e+00> : vector<2x8x8xf32>
    %264 = tpu.matmul %257, %260, %cst_78 {dimension_numbers = #tpu.dot_dimension_numbers<[2], [2], [1], [1], [0, 0, 0, 1, 1, 1], [0], [0]>} : vector<2x8x128xbf16>, vector<2x8x128xbf16>, vector<2x8x8xf32> -> vector<2x8x8xf32>
    "tpu.trace_stop"() : () -> ()
    %cst_79 = arith.constant dense<0xFF800000> : vector<2x8xf32>
    %265 = vector.multi_reduction <maximumf>, %264, %cst_79 [2] : vector<2x8x8xf32> to vector<2x8xf32>
    %266 = vector.shape_cast %265 : vector<2x8xf32> to vector<2x8x1xf32>
    %267 = vector.broadcast %266 : vector<2x8x1xf32> to vector<2x8x8xf32>
    %268 = arith.subf %264, %267 : vector<2x8x8xf32>
    %269 = math.exp %268 : vector<2x8x8xf32>
    %cst_80 = arith.constant dense<0.000000e+00> : vector<2x8xf32>
    %270 = vector.multi_reduction <add>, %269, %cst_80 [2] : vector<2x8x8xf32> to vector<2x8xf32>
    %271 = vector.shape_cast %270 : vector<2x8xf32> to vector<2x8x1xf32>
    %272 = vector.broadcast %271 : vector<2x8x1xf32> to vector<2x8x8xf32>
    %273 = arith.divf %269, %272 : vector<2x8x8xf32>
    %274 = arith.truncf %273 : vector<2x8x8xf32> to vector<2x8x8xbf16>
    "tpu.trace_start"() <{level = 10 : i32, message = "bqk,bkd->bqd"}> : () -> ()
    %cst_81 = arith.constant dense<0.000000e+00> : vector<2x8x128xf32>
    %275 = tpu.matmul %274, %263, %cst_81 {dimension_numbers = #tpu.dot_dimension_numbers<[2], [1], [1], [2], [0, 0, 0, 1, 1, 2], [0], [0]>} : vector<2x8x8xbf16>, vector<2x8x128xbf16>, vector<2x8x128xf32> -> vector<2x8x128xf32>
    "tpu.trace_stop"() : () -> ()
    %276 = vector.shape_cast %275 : vector<2x8x128xf32> to vector<16x128xf32>
    %277 = tpu.concatenate %210, %232, %254, %276 in 1 : vector<16x128xf32>, vector<16x128xf32>, vector<16x128xf32>, vector<16x128xf32> -> vector<16x512xf32>
    %278 = arith.truncf %277 : vector<16x512xf32> to vector<16x512xbf16>
    %c0_82 = arith.constant 0 : index
    %c0_83 = arith.constant 0 : index
    %c0_84 = arith.constant 0 : index
    %279 = vector.load %arg11[%c0_82, %c0_83, %c0_84] : memref<1x512x128xbf16, #tpu.memory_space<vmem>>, vector<1x512x128xbf16>
    %280 = vector.shape_cast %279 : vector<1x512x128xbf16> to vector<512x128xbf16>
    %cst_85 = arith.constant dense<0.000000e+00> : vector<16x128xf32>
    %281 = tpu.matmul %278, %280, %cst_85 {dimension_numbers = #tpu.dot_dimension_numbers<[1], [0], [0], [1], [0, 0, 1, 1], [], []>} : vector<16x512xbf16>, vector<512x128xbf16>, vector<16x128xf32> -> vector<16x128xf32>
    %c0_86 = arith.constant 0 : index
    %c0_87 = arith.constant 0 : index
    %c0_88 = arith.constant 0 : index
    %282 = vector.load %arg12[%c0_86, %c0_87, %c0_88] : memref<1x1x128xf32, #tpu.memory_space<vmem>>, vector<1x1x128xf32>
    %283 = vector.shape_cast %282 : vector<1x1x128xf32> to vector<1x128xf32>
    %284 = vector.broadcast %283 : vector<1x128xf32> to vector<16x128xf32>
    %285 = arith.addf %281, %284 : vector<16x128xf32>
    %286 = arith.addf %168, %285 : vector<16x128xf32>
    %cst_89 = arith.constant dense<0.000000e+00> : vector<16xf32>
    %287 = vector.multi_reduction <add>, %286, %cst_89 [1] : vector<16x128xf32> to vector<16xf32>
    %288 = vector.shape_cast %287 : vector<16xf32> to vector<16x1xf32>
    %cst_90 = arith.constant 3.125000e-02 : f32
    %289 = vector.broadcast %cst_90 : f32 to vector<16x1xf32>
    %290 = arith.mulf %288, %289 : vector<16x1xf32>
    %291 = vector.broadcast %290 : vector<16x1xf32> to vector<16x128xf32>
    %292 = arith.subf %286, %291 : vector<16x128xf32>
    %293 = vector.broadcast %11 : vector<1x128xf32> to vector<16x128xf32>
    %294 = arith.mulf %292, %293 : vector<16x128xf32>
    %295 = arith.mulf %294, %294 : vector<16x128xf32>
    %cst_91 = arith.constant dense<0.000000e+00> : vector<16xf32>
    %296 = vector.multi_reduction <add>, %295, %cst_91 [1] : vector<16x128xf32> to vector<16xf32>
    %297 = vector.shape_cast %296 : vector<16xf32> to vector<16x1xf32>
    %cst_92 = arith.constant 3.125000e-02 : f32
    %298 = vector.broadcast %cst_92 : f32 to vector<16x1xf32>
    %299 = arith.mulf %297, %298 : vector<16x1xf32>
    %cst_93 = arith.constant 9.99999974E-6 : f32
    %300 = vector.broadcast %cst_93 : f32 to vector<16x1xf32>
    %301 = arith.addf %299, %300 : vector<16x1xf32>
    %302 = math.rsqrt %301 : vector<16x1xf32>
    %303 = vector.broadcast %302 : vector<16x1xf32> to vector<16x128xf32>
    %304 = arith.mulf %294, %303 : vector<16x128xf32>
    %c0_94 = arith.constant 0 : index
    %c0_95 = arith.constant 0 : index
    %c0_96 = arith.constant 0 : index
    %305 = vector.load %arg19[%c0_94, %c0_95, %c0_96] : memref<1x1x128xf32, #tpu.memory_space<vmem>>, vector<1x1x128xf32>
    %306 = vector.shape_cast %305 : vector<1x1x128xf32> to vector<1x128xf32>
    %307 = vector.broadcast %306 : vector<1x128xf32> to vector<16x128xf32>
    %308 = arith.mulf %304, %307 : vector<16x128xf32>
    %c0_97 = arith.constant 0 : index
    %c0_98 = arith.constant 0 : index
    %c0_99 = arith.constant 0 : index
    %309 = vector.load %arg20[%c0_97, %c0_98, %c0_99] : memref<1x1x128xf32, #tpu.memory_space<vmem>>, vector<1x1x128xf32>
    %310 = vector.shape_cast %309 : vector<1x1x128xf32> to vector<1x128xf32>
    %311 = vector.broadcast %310 : vector<1x128xf32> to vector<16x128xf32>
    %312 = arith.addf %308, %311 : vector<16x128xf32>
    %313 = arith.truncf %312 : vector<16x128xf32> to vector<16x128xbf16>
    %c0_100 = arith.constant 0 : index
    %c0_101 = arith.constant 0 : index
    %c0_102 = arith.constant 0 : index
    %314 = vector.load %arg13[%c0_100, %c0_101, %c0_102] : memref<1x128x128xbf16, #tpu.memory_space<vmem>>, vector<1x128x128xbf16>
    %315 = vector.shape_cast %314 : vector<1x128x128xbf16> to vector<128x128xbf16>
    %cst_103 = arith.constant dense<0.000000e+00> : vector<16x128xf32>
    %316 = tpu.matmul %313, %315, %cst_103 {dimension_numbers = #tpu.dot_dimension_numbers<[1], [0], [0], [1], [0, 0, 1, 1], [], []>} : vector<16x128xbf16>, vector<128x128xbf16>, vector<16x128xf32> -> vector<16x128xf32>
    %c0_104 = arith.constant 0 : index
    %c0_105 = arith.constant 0 : index
    %c0_106 = arith.constant 0 : index
    %317 = vector.load %arg14[%c0_104, %c0_105, %c0_106] : memref<1x1x128xf32, #tpu.memory_space<vmem>>, vector<1x1x128xf32>
    %318 = vector.shape_cast %317 : vector<1x1x128xf32> to vector<1x128xf32>
    %319 = vector.broadcast %318 : vector<1x128xf32> to vector<16x128xf32>
    %320 = arith.addf %316, %319 : vector<16x128xf32>
    %cst_107 = arith.constant 0.000000e+00 : f32
    %321 = vector.broadcast %cst_107 : f32 to vector<16x128xf32>
    %322 = arith.maximumf %320, %321 : vector<16x128xf32>
    %323 = arith.truncf %322 : vector<16x128xf32> to vector<16x128xbf16>
    %c0_108 = arith.constant 0 : index
    %c0_109 = arith.constant 0 : index
    %c0_110 = arith.constant 0 : index
    %324 = vector.load %arg15[%c0_108, %c0_109, %c0_110] : memref<1x128x128xbf16, #tpu.memory_space<vmem>>, vector<1x128x128xbf16>
    %325 = vector.shape_cast %324 : vector<1x128x128xbf16> to vector<128x128xbf16>
    %cst_111 = arith.constant dense<0.000000e+00> : vector<16x128xf32>
    %326 = tpu.matmul %323, %325, %cst_111 {dimension_numbers = #tpu.dot_dimension_numbers<[1], [0], [0], [1], [0, 0, 1, 1], [], []>} : vector<16x128xbf16>, vector<128x128xbf16>, vector<16x128xf32> -> vector<16x128xf32>
    %c0_112 = arith.constant 0 : index
    %c0_113 = arith.constant 0 : index
    %c0_114 = arith.constant 0 : index
    %327 = vector.load %arg16[%c0_112, %c0_113, %c0_114] : memref<1x1x128xf32, #tpu.memory_space<vmem>>, vector<1x1x128xf32>
    %328 = vector.shape_cast %327 : vector<1x1x128xf32> to vector<1x128xf32>
    %329 = vector.broadcast %328 : vector<1x128xf32> to vector<16x128xf32>
    %330 = arith.addf %326, %329 : vector<16x128xf32>
    %331 = arith.addf %312, %330 : vector<16x128xf32>
    %cst_115 = arith.constant dense<0.000000e+00> : vector<16xf32>
    %332 = vector.multi_reduction <add>, %331, %cst_115 [1] : vector<16x128xf32> to vector<16xf32>
    %333 = vector.shape_cast %332 : vector<16xf32> to vector<16x1xf32>
    %cst_116 = arith.constant 3.125000e-02 : f32
    %334 = vector.broadcast %cst_116 : f32 to vector<16x1xf32>
    %335 = arith.mulf %333, %334 : vector<16x1xf32>
    %336 = vector.broadcast %335 : vector<16x1xf32> to vector<16x128xf32>
    %337 = arith.subf %331, %336 : vector<16x128xf32>
    %338 = vector.broadcast %11 : vector<1x128xf32> to vector<16x128xf32>
    %339 = arith.mulf %337, %338 : vector<16x128xf32>
    %340 = arith.mulf %339, %339 : vector<16x128xf32>
    %cst_117 = arith.constant dense<0.000000e+00> : vector<16xf32>
    %341 = vector.multi_reduction <add>, %340, %cst_117 [1] : vector<16x128xf32> to vector<16xf32>
    %342 = vector.shape_cast %341 : vector<16xf32> to vector<16x1xf32>
    %cst_118 = arith.constant 3.125000e-02 : f32
    %343 = vector.broadcast %cst_118 : f32 to vector<16x1xf32>
    %344 = arith.mulf %342, %343 : vector<16x1xf32>
    %cst_119 = arith.constant 9.99999974E-6 : f32
    %345 = vector.broadcast %cst_119 : f32 to vector<16x1xf32>
    %346 = arith.addf %344, %345 : vector<16x1xf32>
    %347 = math.rsqrt %346 : vector<16x1xf32>
    %348 = vector.broadcast %347 : vector<16x1xf32> to vector<16x128xf32>
    %349 = arith.mulf %339, %348 : vector<16x128xf32>
    %c0_120 = arith.constant 0 : index
    %c0_121 = arith.constant 0 : index
    %c0_122 = arith.constant 0 : index
    %350 = vector.load %arg21[%c0_120, %c0_121, %c0_122] : memref<1x1x128xf32, #tpu.memory_space<vmem>>, vector<1x1x128xf32>
    %351 = vector.shape_cast %350 : vector<1x1x128xf32> to vector<1x128xf32>
    %352 = vector.broadcast %351 : vector<1x128xf32> to vector<16x128xf32>
    %353 = arith.mulf %349, %352 : vector<16x128xf32>
    %c0_123 = arith.constant 0 : index
    %c0_124 = arith.constant 0 : index
    %c0_125 = arith.constant 0 : index
    %354 = vector.load %arg22[%c0_123, %c0_124, %c0_125] : memref<1x1x128xf32, #tpu.memory_space<vmem>>, vector<1x1x128xf32>
    %355 = vector.shape_cast %354 : vector<1x1x128xf32> to vector<1x128xf32>
    %356 = vector.broadcast %355 : vector<1x128xf32> to vector<16x128xf32>
    %357 = arith.addf %353, %356 : vector<16x128xf32>
    %358 = vector.shape_cast %357 : vector<16x128xf32> to vector<2x8x128xf32>
    %c0_126 = arith.constant 0 : index
    %c0_127 = arith.constant 0 : index
    %c0_128 = arith.constant 0 : index
    %359 = vector.load %arg23[%c0_126, %c0_127, %c0_128] : memref<2x8x128xf32, #tpu.memory_space<vmem>>, vector<2x8x128xf32>
    tpu.vector_store %arg23[%c0_126, %c0_127, %c0_128], %358 {strides = array<i32>} : memref<2x8x128xf32, #tpu.memory_space<vmem>>, vector<2x8x128xf32>,
    return
  }
  func.func @transform_0(%arg0: i32, %arg1: i32) -> (i32, i32, i32) {
    %c0_i32 = arith.constant 0 : i32
    %c0_i32_0 = arith.constant 0 : i32
    %c0_i32_1 = arith.constant 0 : i32
    return %arg0, %c0_i32, %c0_i32_0 : i32, i32, i32
  }
  func.func @transform_1(%arg0: i32, %arg1: i32) -> (i32, i32, i32) {
    %c0_i32 = arith.constant 0 : i32
    %c0_i32_0 = arith.constant 0 : i32
    %c0_i32_1 = arith.constant 0 : i32
    return %arg1, %c0_i32, %c0_i32_0 : i32, i32, i32
  }
  func.func @transform_2(%arg0: i32, %arg1: i32) -> (i32, i32, i32) {
    %c0_i32 = arith.constant 0 : i32
    %c0_i32_0 = arith.constant 0 : i32
    %c0_i32_1 = arith.constant 0 : i32
    return %arg1, %c0_i32, %c0_i32_0 : i32, i32, i32
  }
  func.func @transform_3(%arg0: i32, %arg1: i32) -> (i32, i32, i32) {
    %c0_i32 = arith.constant 0 : i32
    %c0_i32_0 = arith.constant 0 : i32
    %c0_i32_1 = arith.constant 0 : i32
    return %arg1, %c0_i32, %c0_i32_0 : i32, i32, i32
  }
  func.func @transform_4(%arg0: i32, %arg1: i32) -> (i32, i32, i32) {
    %c0_i32 = arith.constant 0 : i32
    %c0_i32_0 = arith.constant 0 : i32
    %c0_i32_1 = arith.constant 0 : i32
    return %arg1, %c0_i32, %c0_i32_0 : i32, i32, i32
  }
  func.func @transform_5(%arg0: i32, %arg1: i32) -> (i32, i32, i32) {
    %c0_i32 = arith.constant 0 : i32
    %c0_i32_0 = arith.constant 0 : i32
    %c0_i32_1 = arith.constant 0 : i32
    return %arg1, %c0_i32, %c0_i32_0 : i32, i32, i32
  }
  func.func @transform_6(%arg0: i32, %arg1: i32) -> (i32, i32, i32) {
    %c0_i32 = arith.constant 0 : i32
    %c0_i32_0 = arith.constant 0 : i32
    %c0_i32_1 = arith.constant 0 : i32
    return %arg1, %c0_i32, %c0_i32_0 : i32, i32, i32
  }
  func.func @transform_7(%arg0: i32, %arg1: i32) -> (i32, i32, i32) {
    %c0_i32 = arith.constant 0 : i32
    %c0_i32_0 = arith.constant 0 : i32
    %c0_i32_1 = arith.constant 0 : i32
    return %arg1, %c0_i32, %c0_i32_0 : i32, i32, i32
  }
  func.func @transform_8(%arg0: i32, %arg1: i32) -> (i32, i32, i32) {
    %c0_i32 = arith.constant 0 : i32
    %c0_i32_0 = arith.constant 0 : i32
    %c0_i32_1 = arith.constant 0 : i32
    return %arg1, %c0_i32, %c0_i32_0 : i32, i32, i32
  }
  func.func @transform_9(%arg0: i32, %arg1: i32) -> (i32, i32, i32) {
    %c0_i32 = arith.constant 0 : i32
    %c0_i32_0 = arith.constant 0 : i32
    %c0_i32_1 = arith.constant 0 : i32
    return %arg1, %c0_i32, %c0_i32_0 : i32, i32, i32
  }
  func.func @transform_10(%arg0: i32, %arg1: i32) -> (i32, i32, i32) {
    %c0_i32 = arith.constant 0 : i32
    %c0_i32_0 = arith.constant 0 : i32
    %c0_i32_1 = arith.constant 0 : i32
    return %arg1, %c0_i32, %c0_i32_0 : i32, i32, i32
  }
  func.func @transform_11(%arg0: i32, %arg1: i32) -> (i32, i32, i32) {
    %c0_i32 = arith.constant 0 : i32
    %c0_i32_0 = arith.constant 0 : i32
    %c0_i32_1 = arith.constant 0 : i32
    return %arg1, %c0_i32, %c0_i32_0 : i32, i32, i32
  }
  func.func @transform_12(%arg0: i32, %arg1: i32) -> (i32, i32, i32) {
    %c0_i32 = arith.constant 0 : i32
    %c0_i32_0 = arith.constant 0 : i32
    %c0_i32_1 = arith.constant 0 : i32
    return %arg1, %c0_i32, %c0_i32_0 : i32, i32, i32
  }
  func.func @transform_13(%arg0: i32, %arg1: i32) -> (i32, i32, i32) {
    %c0_i32 = arith.constant 0 : i32
    %c0_i32_0 = arith.constant 0 : i32
    %c0_i32_1 = arith.constant 0 : i32
    return %arg1, %c0_i32, %c0_i32_0 : i32, i32, i32
  }
  func.func @transform_14(%arg0: i32, %arg1: i32) -> (i32, i32, i32) {
    %c0_i32 = arith.constant 0 : i32
    %c0_i32_0 = arith.constant 0 : i32
    %c0_i32_1 = arith.constant 0 : i32
    return %arg1, %c0_i32, %c0_i32_0 : i32, i32, i32
  }
  func.func @transform_15(%arg0: i32, %arg1: i32) -> (i32, i32, i32) {
    %c0_i32 = arith.constant 0 : i32
    %c0_i32_0 = arith.constant 0 : i32
    %c0_i32_1 = arith.constant 0 : i32
    return %arg1, %c0_i32, %c0_i32_0 : i32, i32, i32
  }
  func.func @transform_16(%arg0: i32, %arg1: i32) -> (i32, i32, i32) {
    %c0_i32 = arith.constant 0 : i32
    %c0_i32_0 = arith.constant 0 : i32
    %c0_i32_1 = arith.constant 0 : i32
    return %arg1, %c0_i32, %c0_i32_0 : i32, i32, i32
  }
  func.func @transform_17(%arg0: i32, %arg1: i32) -> (i32, i32, i32) {
    %c0_i32 = arith.constant 0 : i32
    %c0_i32_0 = arith.constant 0 : i32
    %c0_i32_1 = arith.constant 0 : i32
    return %arg1, %c0_i32, %c0_i32_0 : i32, i32, i32
  }
  func.func @transform_18(%arg0: i32, %arg1: i32) -> (i32, i32, i32) {
    %c0_i32 = arith.constant 0 : i32
    %c0_i32_0 = arith.constant 0 : i32
    %c0_i32_1 = arith.constant 0 : i32
    return %arg1, %c0_i32, %c0_i32_0 : i32, i32, i32
  }
  func.func @transform_19(%arg0: i32, %arg1: i32) -> (i32, i32, i32) {
    %c0_i32 = arith.constant 0 : i32
    %c0_i32_0 = arith.constant 0 : i32
    %c0_i32_1 = arith.constant 0 : i32
    return %arg1, %c0_i32, %c0_i32_0 : i32, i32, i32
  }
  func.func @transform_20(%arg0: i32, %arg1: i32) -> (i32, i32, i32) {
    %c0_i32 = arith.constant 0 : i32
    %c0_i32_0 = arith.constant 0 : i32
    %c0_i32_1 = arith.constant 0 : i32
    return %arg1, %c0_i32, %c0_i32_0 : i32, i32, i32
  }
  func.func @transform_21(%arg0: i32, %arg1: i32) -> (i32, i32, i32) {
    %c0_i32 = arith.constant 0 : i32
    %c0_i32_0 = arith.constant 0 : i32
    %c0_i32_1 = arith.constant 0 : i32
    return %arg0, %c0_i32, %c0_i32_0 : i32, i32, i32
  }
}

</mosaic_0001>

<llo_original>
// kernel: transformer_forward.3
$region0: #{transformer_forward.3}
  #allocation0 [shape = 'u32[]', space=smem, size = 0x4, offset = 0x4, fixed_abs, tag = 'smem constant byte address 0x4 - core index']
  #allocation1 [shape = 'u32[144,128]{1,0:T(1,128)}', space=vmem, size = 0x12000, scoped, tag = 'internal scratch']
  %s0 = inlined_call_operand.vmem [shape: f32[16,128], index: 0, kind: input, shape index: {}]
  %s1 = inlined_call_operand.vmem [shape: bf16[128,128], index: 1, kind: input, shape index: {}]
  %s2 = inlined_call_operand.vmem [shape: f32[1,128], index: 2, kind: input, shape index: {}]
  %s3 = inlined_call_operand.hbm [shape: f32[16,128], index: 3, kind: output, shape index: {}]
  %s4 = sld [smem:[#allocation0]]
  $region22: #{transformer_forward.3} parent=0
    _
  %s6 = ssub.s32 1, %s4
  %s7 = scalar_select 0, %s6, %s4
  $region1: #{transformer_forward.3} parent=0
    #allocation2 [shape = 'u8[8192]{0}', space=vmem, size = 0x2000, scoped, tag = 'output window, operand 0, single buffered']
    #allocation3 [shape = 's32[1]{0}', space=sflag, size = 0x4, scoped, tag = 'scoped memory for transformer_forward.3']
    %8 = vsyncpa [#allocation3], 0
    // Predicated region
    $region2: #{transformer_forward.3} parent=1 // pred_check
      _
    $region3: #{transformer_forward.3} parent=1 // pred_check_branch
      %10 = sbr.rel (0) target = $region5
    $region4: #{transformer_forward.3} parent=1 // pred_region
      _
    $region5: #{transformer_forward.3} parent=1 // pred_fallthru
      _
    // Predicated region
    $region6: #{transformer_forward.3} parent=1 // pred_check
      _
    $region7: #{transformer_forward.3} parent=1 // pred_check_branch
      %12 = sbr.rel (0) target = $region9
    $region8: #{transformer_forward.3} parent=1 // pred_region
      _
    $region9: #{transformer_forward.3} parent=1 // pred_fallthru
      _
    // Predicated region
    $region10: #{transformer_forward.3} parent=1 // pred_check
      _
    $region11: #{transformer_forward.3} parent=1 // pred_check_branch
      %14 = sbr.rel (0) target = $region13
    $region12: #{transformer_forward.3} parent=1 // pred_region
      _
    $region13: #{transformer_forward.3} parent=1 // pred_fallthru
      _
    %v16 = vld [vmem:[%s0] sm:$0xff]
    %v17 = vld [vmem:[%s0 + $0x8] sm:$0xff]
    %v18 = vpack.c.bf16 %v17, %v16
    %v19 = vld [vmem:[%s1] sm:$0xf]
    %v20 = vld [vmem:[%s1 + $0x4] sm:$0xf]
    %v21 = vld [vmem:[%s1 + $0x8] sm:$0xf]
    %v22 = vld [vmem:[%s1 + $0xc] sm:$0xf]
    %v23 = vld [vmem:[%s1 + $0x10] sm:$0xf]
    %v24 = vld [vmem:[%s1 + $0x14] sm:$0xf]
    %v25 = vld [vmem:[%s1 + $0x18] sm:$0xf]
    %v26 = vld [vmem:[%s1 + $0x1c] sm:$0xf]
    %v27 = vld [vmem:[%s1 + $0x20] sm:$0xf]
    %v28 = vld [vmem:[%s1 + $0x24] sm:$0xf]
    %v29 = vld [vmem:[%s1 + $0x28] sm:$0xf]
    %v30 = vld [vmem:[%s1 + $0x2c] sm:$0xf]
    %v31 = vld [vmem:[%s1 + $0x30] sm:$0xf]
    %v32 = vld [vmem:[%s1 + $0x34] sm:$0xf]
    %v33 = vld [vmem:[%s1 + $0x38] sm:$0xf]
    %v34 = vld [vmem:[%s1 + $0x3c] sm:$0xf]
    %v35 = vld [vmem:[%s2] sm:$0x1]
    %v37 = vlaneseq
    %v38 = vshrl.u32 %v37, 7
    %v39 = vsub.s32 0, %v38
    %v40 = vrot.slane %v35, %v39
    %v58 = vunpack.c.l.b16 %v19
    %v59 = vunpack.c.l.b16 %v20
    %v60 = vunpack.c.l.b16 %v21
    %v61 = vunpack.c.l.b16 %v22
    %v62 = vunpack.c.l.b16 %v23
    %v63 = vunpack.c.l.b16 %v24
    %v64 = vunpack.c.l.b16 %v25
    %v65 = vunpack.c.l.b16 %v26
    %v66 = vunpack.c.l.b16 %v27
    %v67 = vunpack.c.l.b16 %v28
    %v68 = vunpack.c.l.b16 %v29
    %v69 = vunpack.c.l.b16 %v30
    %v70 = vunpack.c.l.b16 %v31
    %v71 = vunpack.c.l.b16 %v32
    %v72 = vunpack.c.l.b16 %v33
    %v73 = vunpack.c.l.b16 %v34
    %v74 = vpack.c.b16 %v59, %v58
    %v75 = vpack.c.b16 %v61, %v60
    %v76 = vpack.c.b16 %v63, %v62
    %v77 = vpack.c.b16 %v65, %v64
    %v78 = vpack.c.b16 %v67, %v66
    %v79 = vpack.c.b16 %v69, %v68
    %v80 = vpack.c.b16 %v71, %v70
    %v81 = vpack.c.b16 %v73, %v72
    %90 = vmatprep.subr.bf16.mxu0 0
    %91 = vmatpush1.bf16.msra.mxu0 %v74
    %92 = vmatprep.subr.bf16.mxu0 0
    %93 = vmatpush1.bf16.msra.mxu0 %v75
    %94 = vmatprep.subr.bf16.mxu0 0
    %95 = vmatpush1.bf16.msra.mxu0 %v76
    %96 = vmatprep.subr.bf16.mxu0 0
    %97 = vmatpush1.bf16.msra.mxu0 %v77
    %98 = vmatprep.subr.bf16.mxu0 0
    %99 = vmatpush1.bf16.msra.mxu0 %v78
    %100 = vmatprep.subr.bf16.mxu0 0
    %101 = vmatpush1.bf16.msra.mxu0 %v79
    %102 = vmatprep.subr.bf16.mxu0 0
    %103 = vmatpush1.bf16.msra.mxu0 %v80
    %104 = vmatprep.subr.bf16.mxu0 0
    %105 = vmatpush1.bf16.msra.mxu0 %v81
    %106 = vmatprep.subr.bf16.mxu0 0
    %107 = vmatpush1.bf16.msra.mxu0 0
    %108 = vmatprep.subr.bf16.mxu0 0
    %109 = vmatpush1.bf16.msra.mxu0 0
    %110 = vmatprep.subr.bf16.mxu0 0
    %111 = vmatpush1.bf16.msra.mxu0 0
    %112 = vmatprep.subr.bf16.mxu0 0
    %113 = vmatpush1.bf16.msra.mxu0 0
    %114 = vmatprep.subr.bf16.mxu0 0
    %115 = vmatpush1.bf16.msra.mxu0 0
    %116 = vmatprep.subr.bf16.mxu0 0
    %117 = vmatpush1.bf16.msra.mxu0 0
    %118 = vmatprep.subr.bf16.mxu0 0
    %119 = vmatpush1.bf16.msra.mxu0 0
    %120 = vmatprep.subr.bf16.mxu0 0
    %121 = vmatpush1.bf16.msra.mxu0 0
    %122 = vmatprep.mubr.bf16.mxu0 0
    %123 = vmatmul.mubr.bf16.gmra.mrb[0].mxu0 %v18
    %v124 = vpop.f32.mrb[0].mxu0
    %v125 = vadd.f32 %v40, %v124
    %v126 = vpop.f32.mrb[0].mxu0
    %v127 = vpop.f32.mrb[0].mxu0
    %v128 = vadd.f32 %v40, %v127
    %v129 = vpop.f32.mrb[0].mxu0
    %130 = vdwg.mxu0
    %131 = vst [vmem:[#allocation2] sm:$0xff] %v125
    %132 = vst [vmem:[#allocation2 + $0x8] sm:$0xff] %v128
    // Predicated region
    $region14: #{transformer_forward.3} parent=1 // pred_check
      _
    $region15: #{transformer_forward.3} parent=1 // pred_check_branch
      %134 = sbr.rel (0) target = $region17
    $region16: #{transformer_forward.3} parent=1 // pred_region
      %s136 = ssub.s32 256, 256
      %137 = vsyncadd [#allocation3], %s136
      %s138 = sshll.u32 [#allocation2], 4
      %s139 = int_to_ptr.vmem [resolvable:$true] %s138
      %144 = dma.vmem_to_hbm [thread:$0]  %s139, 256, %s3, [#allocation3], 128, 128, 8
    $region17: #{transformer_forward.3} parent=1 // pred_fallthru
      _
    // Predicated region
    $region18: #{transformer_forward.3} parent=1 // pred_check
      _
    $region19: #{transformer_forward.3} parent=1 // pred_check_branch
      %146 = sbr.rel (0) target = $region21
    $region20: #{transformer_forward.3} parent=1 // pred_region
      %147 = dma.done [#allocation3], 256
    $region21: #{transformer_forward.3} parent=1 // pred_fallthru
      _
    %148 = vsyncpa [#allocation3], 1

// kernel: transformer_forward.2
$region0: #{transformer_forward.2}
  #allocation0 [shape = 'u32[]', space=smem, size = 0x4, offset = 0x4, fixed_abs, tag = 'smem constant byte address 0x4 - core index']
  #allocation1 [shape = 'u32[144,128]{1,0:T(1,128)}', space=vmem, size = 0x12000, scoped, tag = 'internal scratch']
  %s0 = inlined_call_operand.vmem [shape: f32[2,8,128], index: 0, kind: input, shape index: {}]
  %s1 = inlined_call_operand.hbm [shape: bf16[2,128,1536], index: 1, kind: input, shape index: {}]
  %s2 = inlined_call_operand.hbm [shape: f32[2,1,1536], index: 2, kind: input, shape index: {}]
  %s3 = inlined_call_operand.hbm [shape: bf16[2,512,128], index: 3, kind: input, shape index: {}]
  %s4 = inlined_call_operand.hbm [shape: f32[2,1,128], index: 4, kind: input, shape index: {}]
  %s5 = inlined_call_operand.hbm [shape: bf16[2,128,512], index: 5, kind: input, shape index: {}]
  %s6 = inlined_call_operand.hbm [shape: f32[2,1,512], index: 6, kind: input, shape index: {}]
  %s7 = inlined_call_operand.hbm [shape: bf16[2,128,1024], index: 7, kind: input, shape index: {}]
  %s8 = inlined_call_operand.hbm [shape: f32[2,1,1024], index: 8, kind: input, shape index: {}]
  %s9 = inlined_call_operand.hbm [shape: bf16[2,512,128], index: 9, kind: input, shape index: {}]
  %s10 = inlined_call_operand.hbm [shape: f32[2,1,128], index: 10, kind: input, shape index: {}]
  %s11 = inlined_call_operand.vmem [shape: bf16[2,128,128], index: 11, kind: input, shape index: {}]
  %s12 = inlined_call_operand.hbm [shape: f32[2,1,128], index: 12, kind: input, shape index: {}]
  %s13 = inlined_call_operand.vmem [shape: bf16[2,128,128], index: 13, kind: input, shape index: {}]
  %s14 = inlined_call_operand.hbm [shape: f32[2,1,128], index: 14, kind: input, shape index: {}]
  %s15 = inlined_call_operand.hbm [shape: f32[2,1,128], index: 15, kind: input, shape index: {}]
  %s16 = inlined_call_operand.hbm [shape: f32[2,1,128], index: 16, kind: input, shape index: {}]
  %s17 = inlined_call_operand.vmem [shape: f32[2,1,128], index: 17, kind: input, shape index: {}]
  %s18 = inlined_call_operand.hbm [shape: f32[2,1,128], index: 18, kind: input, shape index: {}]
  %s19 = inlined_call_operand.vmem [shape: f32[2,1,128], index: 19, kind: input, shape index: {}]
  %s20 = inlined_call_operand.vmem [shape: f32[2,1,128], index: 20, kind: input, shape index: {}]
  %s21 = inlined_call_operand.vmem [shape: f32[2,8,128], index: 21, kind: output, shape index: {}]
  %s22 = sld [smem:[#allocation0]]
  $region181: #{transformer_forward.2} parent=0
    _
  %s24 = ssub.s32 1, %s22
  %s25 = scalar_select 0, %s24, %s22
  $region1: #{transformer_forward.2} parent=0
    #allocation2 [shape = 'u8[786432]{0}', space=vmem, size = 0xc0000, scoped, tag = 'input window, operand 1']
    #allocation3 [shape = 's32[2]{0}', space=sflag, size = 0x8, scoped, tag = 'scoped memory for transformer_forward.2']
    #allocation4 [shape = 'u8[12288]{0}', space=vmem, size = 0x3000, scoped, tag = 'input window, operand 2']
    #allocation5 [shape = 's32[2]{0}', space=sflag, size = 0x8, scoped, tag = 'scoped memory for transformer_forward.2']
    #allocation6 [shape = 'u8[262144]{0}', space=vmem, size = 0x40000, scoped, tag = 'input window, operand 3']
    #allocation7 [shape = 'u8[1024]{0}', space=vmem, size = 0x400, scoped, tag = 'input window, operand 4']
    #allocation8 [shape = 's32[2]{0}', space=sflag, size = 0x8, scoped, tag = 'scoped memory for transformer_forward.2']
    #allocation9 [shape = 'u8[262144]{0}', space=vmem, size = 0x40000, scoped, tag = 'input window, operand 5']
    #allocation10 [shape = 'u8[4096]{0}', space=vmem, size = 0x1000, scoped, tag = 'input window, operand 6']
    #allocation11 [shape = 's32[2]{0}', space=sflag, size = 0x8, scoped, tag = 'scoped memory for transformer_forward.2']
    #allocation12 [shape = 'u8[524288]{0}', space=vmem, size = 0x80000, scoped, tag = 'input window, operand 7']
    #allocation13 [shape = 'u8[8192]{0}', space=vmem, size = 0x2000, scoped, tag = 'input window, operand 8']
    #allocation14 [shape = 's32[2]{0}', space=sflag, size = 0x8, scoped, tag = 'scoped memory for transformer_forward.2']
    #allocation15 [shape = 'u8[262144]{0}', space=vmem, size = 0x40000, scoped, tag = 'input window, operand 9']
    #allocation16 [shape = 'u8[1024]{0}', space=vmem, size = 0x400, scoped, tag = 'input window, operand 10']
    #allocation17 [shape = 's32[2]{0}', space=sflag, size = 0x8, scoped, tag = 'scoped memory for transformer_forward.2']
    #allocation18 [shape = 'u8[1024]{0}', space=vmem, size = 0x400, scoped, tag = 'input window, operand 12']
    #allocation19 [shape = 'u8[1024]{0}', space=vmem, size = 0x400, scoped, tag = 'input window, operand 14']
    #allocation20 [shape = 's32[2]{0}', space=sflag, size = 0x8, scoped, tag = 'scoped memory for transformer_forward.2']
    #allocation21 [shape = 'u8[1024]{0}', space=vmem, size = 0x400, scoped, tag = 'input window, operand 15']
    #allocation22 [shape = 'u8[1024]{0}', space=vmem, size = 0x400, scoped, tag = 'input window, operand 16']
    #allocation23 [shape = 's32[2]{0}', space=sflag, size = 0x8, scoped, tag = 'scoped memory for transformer_forward.2']
    #allocation24 [shape = 'u8[1024]{0}', space=vmem, size = 0x400, scoped, tag = 'input window, operand 18']
    %26 = vsyncpa [#allocation3], 0
    %s27 = scalar_lea.sflag [#allocation3], 1
    %28 = vsyncpa %s27, 0
    %29 = vsyncpa [#allocation5], 0
    %s30 = scalar_lea.sflag [#allocation5], 1
    %31 = vsyncpa %s30, 0
    %32 = vsyncpa [#allocation8], 0
    %s33 = scalar_lea.sflag [#allocation8], 1
    %34 = vsyncpa %s33, 0
    %35 = vsyncpa [#allocation11], 0
    %s36 = scalar_lea.sflag [#allocation11], 1
    %37 = vsyncpa %s36, 0
    %38 = vsyncpa [#allocation14], 0
    %s39 = scalar_lea.sflag [#allocation14], 1
    %40 = vsyncpa %s39, 0
    %41 = vsyncpa [#allocation17], 0
    %s42 = scalar_lea.sflag [#allocation17], 1
    %43 = vsyncpa %s42, 0
    %44 = vsyncpa [#allocation20], 0
    %s45 = scalar_lea.sflag [#allocation20], 1
    %46 = vsyncpa %s45, 0
    %47 = vsyncpa [#allocation23], 0
    %s48 = scalar_lea.sflag [#allocation23], 1
    %49 = vsyncpa %s48, 0
    loop: start=0, step=1, limit=4
    $region2: #{transformer_forward.2} parent=1 // loop_pre_header
      _
    $region3: #{transformer_forward.2} parent=1 // loop_header
      %s51 = sphi 0, %s55
      %p52 = scmp.ge.s32.totalorder %s51, 4
      %s58 = sphi 0, %s70
      %s59 = sphi 0, %s66
      %s60 = sphi 0, %s58
      %s61 = sphi 0, %s59
      %s62 = sphi 0, %s60
      %s63 = sphi 0, %s61
      %s73 = sphi 0, %s75
      %s76 = sphi 0, %s73
      %s77 = sphi 0, %s76
      %s93 = sphi 0, %s77
      %s99 = sphi 0, %s101
      %s102 = sphi 0, %s99
      %s103 = sphi 0, %s102
      %s119 = sphi 0, %s103
      %s125 = sphi 0, %s127
      %s128 = sphi 0, %s125
      %s129 = sphi 0, %s128
      %s145 = sphi 0, %s129
      %s151 = sphi 0, %s153
      %s154 = sphi 0, %s151
      %s155 = sphi 0, %s154
      %s171 = sphi 0, %s155
      %s177 = sphi 0, %s179
      %s180 = sphi 0, %s177
      %s181 = sphi 0, %s180
      %s197 = sphi 0, %s181
      %s203 = sphi 0, %s205
      %s206 = sphi 0, %s203
      %s207 = sphi 0, %s206
      %s223 = sphi 0, %s207
      %s229 = sphi 0, %s231
      %s232 = sphi 0, %s229
      %s233 = sphi 0, %s232
      %s249 = sphi 0, %s233
      %s255 = sphi 0, %s257
      %s258 = sphi 0, %s255
      %s259 = sphi 0, %s258
      %s275 = sphi 0, %s259
      %s281 = sphi 0, %s283
      %s284 = sphi 0, %s281
      %s285 = sphi 0, %s284
      %s301 = sphi 0, %s285
      %s307 = sphi 0, %s309
      %s310 = sphi 0, %s307
      %s311 = sphi 0, %s310
      %s327 = sphi 0, %s311
      %s333 = sphi 0, %s335
      %s336 = sphi 0, %s333
      %s337 = sphi 0, %s336
      %s353 = sphi 0, %s337
      %s359 = sphi 0, %s361
      %s362 = sphi 0, %s359
      %s363 = sphi 0, %s362
      %s379 = sphi 0, %s363
      %s385 = sphi 0, %s387
      %s388 = sphi 0, %s385
      %s389 = sphi 0, %s388
      %s405 = sphi 0, %s389
      %s411 = sphi 0, %s413
      %s414 = sphi 0, %s411
      %s415 = sphi 0, %s414
      %s431 = sphi 0, %s415
      %s437 = sphi 0, %s439
      %s440 = sphi 0, %s437
      %s441 = sphi 0, %s440
      %s457 = sphi 0, %s441
      %s463 = sphi 0, %s465
      %s466 = sphi 0, %s463
      %s467 = sphi 0, %s466
      %s483 = sphi 0, %s467
      %s489 = sphi 0, %s491
      %s492 = sphi 0, %s489
      %s493 = sphi 0, %s492
      %s509 = sphi 0, %s493
      %s515 = sphi 0, %s517
      %s518 = sphi 0, %s515
      %s519 = sphi 0, %s518
      %s535 = sphi 0, %s519
      %s541 = sphi 0, %s543
      %s544 = sphi 0, %s541
      %s545 = sphi 0, %s544
      %s561 = sphi 0, %s545
      %s567 = sphi 0, %s569
      %s570 = sphi 0, %s567
      %s571 = sphi 0, %s570
      %s587 = sphi 0, %s571
      %s593 = sphi 0, %s595
      %s596 = sphi 0, %s593
      %s597 = sphi 0, %s596
      %s613 = sphi 0, %s597
      %s619 = sphi 0, %s621
      %s622 = sphi 0, %s619
      %s623 = sphi 0, %s622
      %s639 = sphi 0, %s623
    $region4: #{transformer_forward.2} parent=1 // loop_header_branch
      %54 = sbr.rel (%p52) target = $region8
    $region5: #{transformer_forward.2} parent=1 // loop_body
      %s56 = ssub.s32 %s51, 1
      %s57 = ssub.s32 %s51, 2
      %s64 = sadd.s32 1, %s59
      %p65 = scmp.ge.s32.totalorder %s64, 2
      %s66 = scalar_select %p65, 0, %s64
      %s67 = sadd.s32 1, %s58
      %s68 = scalar_select %p65, %s67, %s58
      %p69 = scmp.ge.s32.totalorder %s68, 1
      %s70 = scalar_select %p69, 0, %s68
      %s71 = ssub.s32 %s58, %s70
      %p72 = scmp.eq.s32.totalorder %s71, 0
      %s74 = sadd.s32 %s73, 1
      %s75 = scalar_select %p72, %s73, %s74
      %p78 = pneg %p72
      %p79 = scmp.eq.s32.totalorder %s51, 1
      %p80 = por %p78, %p79
      %p81 = scmp.ne.s32.totalorder %s73, %s76
      %p82 = scmp.eq.s32.totalorder %s51, 0
      %p83 = por %p81, %p82
      %p84 = scmp.ne.s32.totalorder %s73, %s76
      %p85 = scmp.eq.s32.totalorder %s56, 1
      %p86 = por %p84, %p85
      %p87 = scmp.ne.s32.totalorder %s76, %s77
      %p88 = scmp.eq.s32.totalorder %s56, 0
      %p89 = por %p87, %p88
      %p90 = scmp.ne.s32.totalorder %s76, %s77
      %p91 = scmp.eq.s32.totalorder %s57, 1
      %p92 = por %p90, %p91
      %p94 = scmp.ne.s32.totalorder %s77, %s93
      %p95 = scmp.eq.s32.totalorder %s57, 0
      %p96 = por %p94, %p95
      %s97 = ssub.s32 %s59, %s66
      %p98 = scmp.eq.s32.totalorder %s97, 0
      %s100 = sadd.s32 %s99, 1
      %s101 = scalar_select %p98, %s99, %s100
      %p104 = pneg %p98
      %p105 = scmp.eq.s32.totalorder %s51, 1
      %p106 = por %p104, %p105
      %p107 = scmp.ne.s32.totalorder %s99, %s102
      %p108 = scmp.eq.s32.totalorder %s51, 0
      %p109 = por %p107, %p108
      %p110 = scmp.ne.s32.totalorder %s99, %s102
      %p111 = scmp.eq.s32.totalorder %s56, 1
      %p112 = por %p110, %p111
      %p113 = scmp.ne.s32.totalorder %s102, %s103
      %p114 = scmp.eq.s32.totalorder %s56, 0
      %p115 = por %p113, %p114
      %p116 = scmp.ne.s32.totalorder %s102, %s103
      %p117 = scmp.eq.s32.totalorder %s57, 1
      %p118 = por %p116, %p117
      %p120 = scmp.ne.s32.totalorder %s103, %s119
      %p121 = scmp.eq.s32.totalorder %s57, 0
      %p122 = por %p120, %p121
      %s123 = ssub.s32 %s59, %s66
      %p124 = scmp.eq.s32.totalorder %s123, 0
      %s126 = sadd.s32 %s125, 1
      %s127 = scalar_select %p124, %s125, %s126
      %p130 = pneg %p124
      %p131 = scmp.eq.s32.totalorder %s51, 1
      %p132 = por %p130, %p131
      %p133 = scmp.ne.s32.totalorder %s125, %s128
      %p134 = scmp.eq.s32.totalorder %s51, 0
      %p135 = por %p133, %p134
      %p136 = scmp.ne.s32.totalorder %s125, %s128
      %p137 = scmp.eq.s32.totalorder %s56, 1
      %p138 = por %p136, %p137
      %p139 = scmp.ne.s32.totalorder %s128, %s129
      %p140 = scmp.eq.s32.totalorder %s56, 0
      %p141 = por %p139, %p140
      %p142 = scmp.ne.s32.totalorder %s128, %s129
      %p143 = scmp.eq.s32.totalorder %s57, 1
      %p144 = por %p142, %p143
      %p146 = scmp.ne.s32.totalorder %s129, %s145
      %p147 = scmp.eq.s32.totalorder %s57, 0
      %p148 = por %p146, %p147
      %s149 = ssub.s32 %s59, %s66
      %p150 = scmp.eq.s32.totalorder %s149, 0
      %s152 = sadd.s32 %s151, 1
      %s153 = scalar_select %p150, %s151, %s152
      %p156 = pneg %p150
      %p157 = scmp.eq.s32.totalorder %s51, 1
      %p158 = por %p156, %p157
      %p159 = scmp.ne.s32.totalorder %s151, %s154
      %p160 = scmp.eq.s32.totalorder %s51, 0
      %p161 = por %p159, %p160
      %p162 = scmp.ne.s32.totalorder %s151, %s154
      %p163 = scmp.eq.s32.totalorder %s56, 1
      %p164 = por %p162, %p163
      %p165 = scmp.ne.s32.totalorder %s154, %s155
      %p166 = scmp.eq.s32.totalorder %s56, 0
      %p167 = por %p165, %p166
      %p168 = scmp.ne.s32.totalorder %s154, %s155
      %p169 = scmp.eq.s32.totalorder %s57, 1
      %p170 = por %p168, %p169
      %p172 = scmp.ne.s32.totalorder %s155, %s171
      %p173 = scmp.eq.s32.totalorder %s57, 0
      %p174 = por %p172, %p173
      %s175 = ssub.s32 %s59, %s66
      %p176 = scmp.eq.s32.totalorder %s175, 0
      %s178 = sadd.s32 %s177, 1
      %s179 = scalar_select %p176, %s177, %s178
      %p182 = pneg %p176
      %p183 = scmp.eq.s32.totalorder %s51, 1
      %p184 = por %p182, %p183
      %p185 = scmp.ne.s32.totalorder %s177, %s180
      %p186 = scmp.eq.s32.totalorder %s51, 0
      %p187 = por %p185, %p186
      %p188 = scmp.ne.s32.totalorder %s177, %s180
      %p189 = scmp.eq.s32.totalorder %s56, 1
      %p190 = por %p188, %p189
      %p191 = scmp.ne.s32.totalorder %s180, %s181
      %p192 = scmp.eq.s32.totalorder %s56, 0
      %p193 = por %p191, %p192
      %p194 = scmp.ne.s32.totalorder %s180, %s181
      %p195 = scmp.eq.s32.totalorder %s57, 1
      %p196 = por %p194, %p195
      %p198 = scmp.ne.s32.totalorder %s181, %s197
      %p199 = scmp.eq.s32.totalorder %s57, 0
      %p200 = por %p198, %p199
      %s201 = ssub.s32 %s59, %s66
      %p202 = scmp.eq.s32.totalorder %s201, 0
      %s204 = sadd.s32 %s203, 1
      %s205 = scalar_select %p202, %s203, %s204
      %p208 = pneg %p202
      %p209 = scmp.eq.s32.totalorder %s51, 1
      %p210 = por %p208, %p209
      %p211 = scmp.ne.s32.totalorder %s203, %s206
      %p212 = scmp.eq.s32.totalorder %s51, 0
      %p213 = por %p211, %p212
      %p214 = scmp.ne.s32.totalorder %s203, %s206
      %p215 = scmp.eq.s32.totalorder %s56, 1
      %p216 = por %p214, %p215
      %p217 = scmp.ne.s32.totalorder %s206, %s207
      %p218 = scmp.eq.s32.totalorder %s56, 0
      %p219 = por %p217, %p218
      %p220 = scmp.ne.s32.totalorder %s206, %s207
      %p221 = scmp.eq.s32.totalorder %s57, 1
      %p222 = por %p220, %p221
      %p224 = scmp.ne.s32.totalorder %s207, %s223
      %p225 = scmp.eq.s32.totalorder %s57, 0
      %p226 = por %p224, %p225
      %s227 = ssub.s32 %s59, %s66
      %p228 = scmp.eq.s32.totalorder %s227, 0
      %s230 = sadd.s32 %s229, 1
      %s231 = scalar_select %p228, %s229, %s230
      %p234 = pneg %p228
      %p235 = scmp.eq.s32.totalorder %s51, 1
      %p236 = por %p234, %p235
      %p237 = scmp.ne.s32.totalorder %s229, %s232
      %p238 = scmp.eq.s32.totalorder %s51, 0
      %p239 = por %p237, %p238
      %p240 = scmp.ne.s32.totalorder %s229, %s232
      %p241 = scmp.eq.s32.totalorder %s56, 1
      %p242 = por %p240, %p241
      %p243 = scmp.ne.s32.totalorder %s232, %s233
      %p244 = scmp.eq.s32.totalorder %s56, 0
      %p245 = por %p243, %p244
      %p246 = scmp.ne.s32.totalorder %s232, %s233
      %p247 = scmp.eq.s32.totalorder %s57, 1
      %p248 = por %p246, %p247
      %p250 = scmp.ne.s32.totalorder %s233, %s249
      %p251 = scmp.eq.s32.totalorder %s57, 0
      %p252 = por %p250, %p251
      %s253 = ssub.s32 %s59, %s66
      %p254 = scmp.eq.s32.totalorder %s253, 0
      %s256 = sadd.s32 %s255, 1
      %s257 = scalar_select %p254, %s255, %s256
      %p260 = pneg %p254
      %p261 = scmp.eq.s32.totalorder %s51, 1
      %p262 = por %p260, %p261
      %p263 = scmp.ne.s32.totalorder %s255, %s258
      %p264 = scmp.eq.s32.totalorder %s51, 0
      %p265 = por %p263, %p264
      %p266 = scmp.ne.s32.totalorder %s255, %s258
      %p267 = scmp.eq.s32.totalorder %s56, 1
      %p268 = por %p266, %p267
      %p269 = scmp.ne.s32.totalorder %s258, %s259
      %p270 = scmp.eq.s32.totalorder %s56, 0
      %p271 = por %p269, %p270
      %p272 = scmp.ne.s32.totalorder %s258, %s259
      %p273 = scmp.eq.s32.totalorder %s57, 1
      %p274 = por %p272, %p273
      %p276 = scmp.ne.s32.totalorder %s259, %s275
      %p277 = scmp.eq.s32.totalorder %s57, 0
      %p278 = por %p276, %p277
      %s279 = ssub.s32 %s59, %s66
      %p280 = scmp.eq.s32.totalorder %s279, 0
      %s282 = sadd.s32 %s281, 1
      %s283 = scalar_select %p280, %s281, %s282
      %p286 = pneg %p280
      %p287 = scmp.eq.s32.totalorder %s51, 1
      %p288 = por %p286, %p287
      %p289 = scmp.ne.s32.totalorder %s281, %s284
      %p290 = scmp.eq.s32.totalorder %s51, 0
      %p291 = por %p289, %p290
      %p292 = scmp.ne.s32.totalorder %s281, %s284
      %p293 = scmp.eq.s32.totalorder %s56, 1
      %p294 = por %p292, %p293
      %p295 = scmp.ne.s32.totalorder %s284, %s285
      %p296 = scmp.eq.s32.totalorder %s56, 0
      %p297 = por %p295, %p296
      %p298 = scmp.ne.s32.totalorder %s284, %s285
      %p299 = scmp.eq.s32.totalorder %s57, 1
      %p300 = por %p298, %p299
      %p302 = scmp.ne.s32.totalorder %s285, %s301
      %p303 = scmp.eq.s32.totalorder %s57, 0
      %p304 = por %p302, %p303
      %s305 = ssub.s32 %s59, %s66
      %p306 = scmp.eq.s32.totalorder %s305, 0
      %s308 = sadd.s32 %s307, 1
      %s309 = scalar_select %p306, %s307, %s308
      %p312 = pneg %p306
      %p313 = scmp.eq.s32.totalorder %s51, 1
      %p314 = por %p312, %p313
      %p315 = scmp.ne.s32.totalorder %s307, %s310
      %p316 = scmp.eq.s32.totalorder %s51, 0
      %p317 = por %p315, %p316
      %p318 = scmp.ne.s32.totalorder %s307, %s310
      %p319 = scmp.eq.s32.totalorder %s56, 1
      %p320 = por %p318, %p319
      %p321 = scmp.ne.s32.totalorder %s310, %s311
      %p322 = scmp.eq.s32.totalorder %s56, 0
      %p323 = por %p321, %p322
      %p324 = scmp.ne.s32.totalorder %s310, %s311
      %p325 = scmp.eq.s32.totalorder %s57, 1
      %p326 = por %p324, %p325
      %p328 = scmp.ne.s32.totalorder %s311, %s327
      %p329 = scmp.eq.s32.totalorder %s57, 0
      %p330 = por %p328, %p329
      %s331 = ssub.s32 %s59, %s66
      %p332 = scmp.eq.s32.totalorder %s331, 0
      %s334 = sadd.s32 %s333, 1
      %s335 = scalar_select %p332, %s333, %s334
      %p338 = pneg %p332
      %p339 = scmp.eq.s32.totalorder %s51, 1
      %p340 = por %p338, %p339
      %p341 = scmp.ne.s32.totalorder %s333, %s336
      %p342 = scmp.eq.s32.totalorder %s51, 0
      %p343 = por %p341, %p342
      %p344 = scmp.ne.s32.totalorder %s333, %s336
      %p345 = scmp.eq.s32.totalorder %s56, 1
      %p346 = por %p344, %p345
      %p347 = scmp.ne.s32.totalorder %s336, %s337
      %p348 = scmp.eq.s32.totalorder %s56, 0
      %p349 = por %p347, %p348
      %p350 = scmp.ne.s32.totalorder %s336, %s337
      %p351 = scmp.eq.s32.totalorder %s57, 1
      %p352 = por %p350, %p351
      %p354 = scmp.ne.s32.totalorder %s337, %s353
      %p355 = scmp.eq.s32.totalorder %s57, 0
      %p356 = por %p354, %p355
      %s357 = ssub.s32 %s59, %s66
      %p358 = scmp.eq.s32.totalorder %s357, 0
      %s360 = sadd.s32 %s359, 1
      %s361 = scalar_select %p358, %s359, %s360
      %p364 = pneg %p358
      %p365 = scmp.eq.s32.totalorder %s51, 1
      %p366 = por %p364, %p365
      %p367 = scmp.ne.s32.totalorder %s359, %s362
      %p368 = scmp.eq.s32.totalorder %s51, 0
      %p369 = por %p367, %p368
      %p370 = scmp.ne.s32.totalorder %s359, %s362
      %p371 = scmp.eq.s32.totalorder %s56, 1
      %p372 = por %p370, %p371
      %p373 = scmp.ne.s32.totalorder %s362, %s363
      %p374 = scmp.eq.s32.totalorder %s56, 0
      %p375 = por %p373, %p374
      %p376 = scmp.ne.s32.totalorder %s362, %s363
      %p377 = scmp.eq.s32.totalorder %s57, 1
      %p378 = por %p376, %p377
      %p380 = scmp.ne.s32.totalorder %s363, %s379
      %p381 = scmp.eq.s32.totalorder %s57, 0
      %p382 = por %p380, %p381
      %s383 = ssub.s32 %s59, %s66
      %p384 = scmp.eq.s32.totalorder %s383, 0
      %s386 = sadd.s32 %s385, 1
      %s387 = scalar_select %p384, %s385, %s386
      %p390 = pneg %p384
      %p391 = scmp.eq.s32.totalorder %s51, 1
      %p392 = por %p390, %p391
      %p393 = scmp.ne.s32.totalorder %s385, %s388
      %p394 = scmp.eq.s32.totalorder %s51, 0
      %p395 = por %p393, %p394
      %p396 = scmp.ne.s32.totalorder %s385, %s388
      %p397 = scmp.eq.s32.totalorder %s56, 1
      %p398 = por %p396, %p397
      %p399 = scmp.ne.s32.totalorder %s388, %s389
      %p400 = scmp.eq.s32.totalorder %s56, 0
      %p401 = por %p399, %p400
      %p402 = scmp.ne.s32.totalorder %s388, %s389
      %p403 = scmp.eq.s32.totalorder %s57, 1
      %p404 = por %p402, %p403
      %p406 = scmp.ne.s32.totalorder %s389, %s405
      %p407 = scmp.eq.s32.totalorder %s57, 0
      %p408 = por %p406, %p407
      %s409 = ssub.s32 %s59, %s66
      %p410 = scmp.eq.s32.totalorder %s409, 0
      %s412 = sadd.s32 %s411, 1
      %s413 = scalar_select %p410, %s411, %s412
      %p416 = pneg %p410
      %p417 = scmp.eq.s32.totalorder %s51, 1
      %p418 = por %p416, %p417
      %p419 = scmp.ne.s32.totalorder %s411, %s414
      %p420 = scmp.eq.s32.totalorder %s51, 0
      %p421 = por %p419, %p420
      %p422 = scmp.ne.s32.totalorder %s411, %s414
      %p423 = scmp.eq.s32.totalorder %s56, 1
      %p424 = por %p422, %p423
      %p425 = scmp.ne.s32.totalorder %s414, %s415
      %p426 = scmp.eq.s32.totalorder %s56, 0
      %p427 = por %p425, %p426
      %p428 = scmp.ne.s32.totalorder %s414, %s415
      %p429 = scmp.eq.s32.totalorder %s57, 1
      %p430 = por %p428, %p429
      %p432 = scmp.ne.s32.totalorder %s415, %s431
      %p433 = scmp.eq.s32.totalorder %s57, 0
      %p434 = por %p432, %p433
      %s435 = ssub.s32 %s59, %s66
      %p436 = scmp.eq.s32.totalorder %s435, 0
      %s438 = sadd.s32 %s437, 1
      %s439 = scalar_select %p436, %s437, %s438
      %p442 = pneg %p436
      %p443 = scmp.eq.s32.totalorder %s51, 1
      %p444 = por %p442, %p443
      %p445 = scmp.ne.s32.totalorder %s437, %s440
      %p446 = scmp.eq.s32.totalorder %s51, 0
      %p447 = por %p445, %p446
      %p448 = scmp.ne.s32.totalorder %s437, %s440
      %p449 = scmp.eq.s32.totalorder %s56, 1
      %p450 = por %p448, %p449
      %p451 = scmp.ne.s32.totalorder %s440, %s441
      %p452 = scmp.eq.s32.totalorder %s56, 0
      %p453 = por %p451, %p452
      %p454 = scmp.ne.s32.totalorder %s440, %s441
      %p455 = scmp.eq.s32.totalorder %s57, 1
      %p456 = por %p454, %p455
      %p458 = scmp.ne.s32.totalorder %s441, %s457
      %p459 = scmp.eq.s32.totalorder %s57, 0
      %p460 = por %p458, %p459
      %s461 = ssub.s32 %s59, %s66
      %p462 = scmp.eq.s32.totalorder %s461, 0
      %s464 = sadd.s32 %s463, 1
      %s465 = scalar_select %p462, %s463, %s464
      %p468 = pneg %p462
      %p469 = scmp.eq.s32.totalorder %s51, 1
      %p470 = por %p468, %p469
      %p471 = scmp.ne.s32.totalorder %s463, %s466
      %p472 = scmp.eq.s32.totalorder %s51, 0
      %p473 = por %p471, %p472
      %p474 = scmp.ne.s32.totalorder %s463, %s466
      %p475 = scmp.eq.s32.totalorder %s56, 1
      %p476 = por %p474, %p475
      %p477 = scmp.ne.s32.totalorder %s466, %s467
      %p478 = scmp.eq.s32.totalorder %s56, 0
      %p479 = por %p477, %p478
      %p480 = scmp.ne.s32.totalorder %s466, %s467
      %p481 = scmp.eq.s32.totalorder %s57, 1
      %p482 = por %p480, %p481
      %p484 = scmp.ne.s32.totalorder %s467, %s483
      %p485 = scmp.eq.s32.totalorder %s57, 0
      %p486 = por %p484, %p485
      %s487 = ssub.s32 %s59, %s66
      %p488 = scmp.eq.s32.totalorder %s487, 0
      %s490 = sadd.s32 %s489, 1
      %s491 = scalar_select %p488, %s489, %s490
      %p494 = pneg %p488
      %p495 = scmp.eq.s32.totalorder %s51, 1
      %p496 = por %p494, %p495
      %p497 = scmp.ne.s32.totalorder %s489, %s492
      %p498 = scmp.eq.s32.totalorder %s51, 0
      %p499 = por %p497, %p498
      %p500 = scmp.ne.s32.totalorder %s489, %s492
      %p501 = scmp.eq.s32.totalorder %s56, 1
      %p502 = por %p500, %p501
      %p503 = scmp.ne.s32.totalorder %s492, %s493
      %p504 = scmp.eq.s32.totalorder %s56, 0
      %p505 = por %p503, %p504
      %p506 = scmp.ne.s32.totalorder %s492, %s493
      %p507 = scmp.eq.s32.totalorder %s57, 1
      %p508 = por %p506, %p507
      %p510 = scmp.ne.s32.totalorder %s493, %s509
      %p511 = scmp.eq.s32.totalorder %s57, 0
      %p512 = por %p510, %p511
      %s513 = ssub.s32 %s59, %s66
      %p514 = scmp.eq.s32.totalorder %s513, 0
      %s516 = sadd.s32 %s515, 1
      %s517 = scalar_select %p514, %s515, %s516
      %p520 = pneg %p514
      %p521 = scmp.eq.s32.totalorder %s51, 1
      %p522 = por %p520, %p521
      %p523 = scmp.ne.s32.totalorder %s515, %s518
      %p524 = scmp.eq.s32.totalorder %s51, 0
      %p525 = por %p523, %p524
      %p526 = scmp.ne.s32.totalorder %s515, %s518
      %p527 = scmp.eq.s32.totalorder %s56, 1
      %p528 = por %p526, %p527
      %p529 = scmp.ne.s32.totalorder %s518, %s519
      %p530 = scmp.eq.s32.totalorder %s56, 0
      %p531 = por %p529, %p530
      %p532 = scmp.ne.s32.totalorder %s518, %s519
      %p533 = scmp.eq.s32.totalorder %s57, 1
      %p534 = por %p532, %p533
      %p536 = scmp.ne.s32.totalorder %s519, %s535
      %p537 = scmp.eq.s32.totalorder %s57, 0
      %p538 = por %p536, %p537
      %s539 = ssub.s32 %s59, %s66
      %p540 = scmp.eq.s32.totalorder %s539, 0
      %s542 = sadd.s32 %s541, 1
      %s543 = scalar_select %p540, %s541, %s542
      %p546 = pneg %p540
      %p547 = scmp.eq.s32.totalorder %s51, 1
      %p548 = por %p546, %p547
      %p549 = scmp.ne.s32.totalorder %s541, %s544
      %p550 = scmp.eq.s32.totalorder %s51, 0
      %p551 = por %p549, %p550
      %p552 = scmp.ne.s32.totalorder %s541, %s544
      %p553 = scmp.eq.s32.totalorder %s56, 1
      %p554 = por %p552, %p553
      %p555 = scmp.ne.s32.totalorder %s544, %s545
      %p556 = scmp.eq.s32.totalorder %s56, 0
      %p557 = por %p555, %p556
      %p558 = scmp.ne.s32.totalorder %s544, %s545
      %p559 = scmp.eq.s32.totalorder %s57, 1
      %p560 = por %p558, %p559
      %p562 = scmp.ne.s32.totalorder %s545, %s561
      %p563 = scmp.eq.s32.totalorder %s57, 0
      %p564 = por %p562, %p563
      %s565 = ssub.s32 %s59, %s66
      %p566 = scmp.eq.s32.totalorder %s565, 0
      %s568 = sadd.s32 %s567, 1
      %s569 = scalar_select %p566, %s567, %s568
      %p572 = pneg %p566
      %p573 = scmp.eq.s32.totalorder %s51, 1
      %p574 = por %p572, %p573
      %p575 = scmp.ne.s32.totalorder %s567, %s570
      %p576 = scmp.eq.s32.totalorder %s51, 0
      %p577 = por %p575, %p576
      %p578 = scmp.ne.s32.totalorder %s567, %s570
      %p579 = scmp.eq.s32.totalorder %s56, 1
      %p580 = por %p578, %p579
      %p581 = scmp.ne.s32.totalorder %s570, %s571
      %p582 = scmp.eq.s32.totalorder %s56, 0
      %p583 = por %p581, %p582
      %p584 = scmp.ne.s32.totalorder %s570, %s571
      %p585 = scmp.eq.s32.totalorder %s57, 1
      %p586 = por %p584, %p585
      %p588 = scmp.ne.s32.totalorder %s571, %s587
      %p589 = scmp.eq.s32.totalorder %s57, 0
      %p590 = por %p588, %p589
      %s591 = ssub.s32 %s59, %s66
      %p592 = scmp.eq.s32.totalorder %s591, 0
      %s594 = sadd.s32 %s593, 1
      %s595 = scalar_select %p592, %s593, %s594
      %p598 = pneg %p592
      %p599 = scmp.eq.s32.totalorder %s51, 1
      %p600 = por %p598, %p599
      %p601 = scmp.ne.s32.totalorder %s593, %s596
      %p602 = scmp.eq.s32.totalorder %s51, 0
      %p603 = por %p601, %p602
      %p604 = scmp.ne.s32.totalorder %s593, %s596
      %p605 = scmp.eq.s32.totalorder %s56, 1
      %p606 = por %p604, %p605
      %p607 = scmp.ne.s32.totalorder %s596, %s597
      %p608 = scmp.eq.s32.totalorder %s56, 0
      %p609 = por %p607, %p608
      %p610 = scmp.ne.s32.totalorder %s596, %s597
      %p611 = scmp.eq.s32.totalorder %s57, 1
      %p612 = por %p610, %p611
      %p614 = scmp.ne.s32.totalorder %s597, %s613
      %p615 = scmp.eq.s32.totalorder %s57, 0
      %p616 = por %p614, %p615
      %s617 = ssub.s32 %s58, %s70
      %p618 = scmp.eq.s32.totalorder %s617, 0
      %s620 = sadd.s32 %s619, 1
      %s621 = scalar_select %p618, %s619, %s620
      %p624 = pneg %p618
      %p625 = scmp.eq.s32.totalorder %s51, 1
      %p626 = por %p624, %p625
      %p627 = scmp.ne.s32.totalorder %s619, %s622
      %p628 = scmp.eq.s32.totalorder %s51, 0
      %p629 = por %p627, %p628
      %p630 = scmp.ne.s32.totalorder %s619, %s622
      %p631 = scmp.eq.s32.totalorder %s56, 1
      %p632 = por %p630, %p631
      %p633 = scmp.ne.s32.totalorder %s622, %s623
      %p634 = scmp.eq.s32.totalorder %s56, 0
      %p635 = por %p633, %p634
      %p636 = scmp.ne.s32.totalorder %s622, %s623
      %p637 = scmp.eq.s32.totalorder %s57, 1
      %p638 = por %p636, %p637
      %p640 = scmp.ne.s32.totalorder %s623, %s639
      %p641 = scmp.eq.s32.totalorder %s57, 0
      %p642 = por %p640, %p641
      %p643 = scmp.le.s32.totalorder 1, %s51
      %p644 = scmp.lt.s32.totalorder %s51, 3
      %p645 = pnand %p643, %p644
      %p646 = pneg %p645
      // Predicated region
      $region9: #{transformer_forward.2} parent=5 // pred_check
        _
      $region10: #{transformer_forward.2} parent=5 // pred_check_branch
        %648 = sbr.rel (%p645) target = $region12
      $region11: #{transformer_forward.2} parent=5 // pred_region
        %s649 = ssub.s32 %s51, 1
        // Predicated region
        $region13: #{transformer_forward.2} parent=11 // pred_check
          %p650 = pneg %p89
        $region14: #{transformer_forward.2} parent=11 // pred_check_branch
          %652 = sbr.rel (%p650) target = $region16
        $region15: #{transformer_forward.2} parent=11 // pred_region
          %s653 = smul.u32 2, %s60
          %p654 = scmp.lt.s32.totalorder %s653, 1
          %s655 = scalar_select %p654, %s653, 1
          %s656 = smul.addr %s655, 8
          %s657 = scalar_lea.vmem %s0, %s656
          %s658 = smul.u32 2, %s60
        $region16: #{transformer_forward.2} parent=11 // pred_fallthru
          _
      $region12: #{transformer_forward.2} parent=5 // pred_fallthru
        _
      %p659 = scmp.lt.s32.totalorder %s51, 2
      // Predicated region
      $region17: #{transformer_forward.2} parent=5 // pred_check
        %p660 = pneg %p659
      $region18: #{transformer_forward.2} parent=5 // pred_check_branch
        %662 = sbr.rel (%p660) target = $region20
      $region19: #{transformer_forward.2} parent=5 // pred_region
        // Predicated region
        $region21: #{transformer_forward.2} parent=19 // pred_check
          %p663 = pneg %p109
        $region22: #{transformer_forward.2} parent=19 // pred_check_branch
          %665 = sbr.rel (%p663) target = $region24
        $region23: #{transformer_forward.2} parent=19 // pred_region
          %s666 = sand.u32 %s99, 1
          %s667 = scalar_lea.sflag [#allocation3], %s666
          %s668 = sand.u32 %s99, 1
          %s669 = smul.addr %s668, 768
          %s670 = scalar_lea.vmem [#allocation2], %s669
          %s672 = ssub.s32 12288, 12288
          %673 = vsyncadd %s667, %s672
          %s674 = smul.addr %s59, 192
          %s675 = smul.addr %s674, 64
          %s676 = scalar_lea.hbm %s1, %s675
          %s677 = sshll.u32 %s670, 4
          %s678 = int_to_ptr.vmem [resolvable:$true] %s677
          %683 = dma.hbm_to_vmem [thread:$0]  %s676, 12288, %s678, %s667, 768, 768, 48
        $region24: #{transformer_forward.2} parent=19 // pred_fallthru
          _
        // Predicated region
        $region25: #{transformer_forward.2} parent=19 // pred_check
          %p684 = pneg %p135
        $region26: #{transformer_forward.2} parent=19 // pred_check_branch
          %686 = sbr.rel (%p684) target = $region28
        $region27: #{transformer_forward.2} parent=19 // pred_region
          %s687 = sand.u32 %s51, 1
          %s688 = scalar_lea.sflag [#allocation5], %s687
          %s689 = sand.u32 %s125, 1
          %s690 = smul.addr %s689, 12
          %s691 = scalar_lea.vmem [#allocation4], %s690
          %s693 = ssub.s32 192, 192
          %694 = vsyncadd %s688, %s693
          %s695 = smul.addr %s59, 12
          %s696 = smul.addr %s695, 16
          %s697 = scalar_lea.hbm %s2, %s696
          %s699 = sshll.u32 %s691, 4
          %s700 = int_to_ptr.vmem [resolvable:$true] %s699
          %702 = dma.hbm_to_vmem [thread:$0]  %s697, 192, %s700, %s688
        $region28: #{transformer_forward.2} parent=19 // pred_fallthru
          _
        // Predicated region
        $region29: #{transformer_forward.2} parent=19 // pred_check
          %p703 = pneg %p161
        $region30: #{transformer_forward.2} parent=19 // pred_check_branch
          %705 = sbr.rel (%p703) target = $region32
        $region31: #{transformer_forward.2} parent=19 // pred_region
          %s706 = sand.u32 %s51, 1
          %s707 = scalar_lea.sflag [#allocation5], %s706
          %s708 = sand.u32 %s151, 1
          %s709 = smul.addr %s708, 256
          %s710 = scalar_lea.vmem [#allocation6], %s709
          %s712 = ssub.s32 4096, 4096
          %713 = vsyncadd %s707, %s712
          %s714 = smul.addr %s59, 64
          %s715 = smul.addr %s714, 64
          %s716 = scalar_lea.hbm %s3, %s715
          %s717 = sshll.u32 %s710, 4
          %s718 = int_to_ptr.vmem [resolvable:$true] %s717
          %723 = dma.hbm_to_vmem [thread:$0]  %s716, 4096, %s718, %s707, 64, 64, 4
        $region32: #{transformer_forward.2} parent=19 // pred_fallthru
          _
        // Predicated region
        $region33: #{transformer_forward.2} parent=19 // pred_check
          %p724 = pneg %p187
        $region34: #{transformer_forward.2} parent=19 // pred_check_branch
          %726 = sbr.rel (%p724) target = $region36
        $region35: #{transformer_forward.2} parent=19 // pred_region
          %s727 = sand.u32 %s51, 1
          %s728 = scalar_lea.sflag [#allocation8], %s727
          %s729 = sand.u32 %s177, 1
          %s730 = scalar_lea.vmem [#allocation7], %s729
          %s732 = ssub.s32 16, 16
          %733 = vsyncadd %s728, %s732
          %s734 = smul.addr %s59, 16
          %s735 = scalar_lea.hbm %s4, %s734
          %s737 = sshll.u32 %s730, 4
          %s738 = int_to_ptr.vmem [resolvable:$true] %s737
          %740 = dma.hbm_to_vmem [thread:$0]  %s735, 16, %s738, %s728
        $region36: #{transformer_forward.2} parent=19 // pred_fallthru
          _
        // Predicated region
        $region37: #{transformer_forward.2} parent=19 // pred_check
          %p741 = pneg %p213
        $region38: #{transformer_forward.2} parent=19 // pred_check_branch
          %743 = sbr.rel (%p741) target = $region40
        $region39: #{transformer_forward.2} parent=19 // pred_region
          %s744 = sand.u32 %s51, 1
          %s745 = scalar_lea.sflag [#allocation8], %s744
          %s746 = sand.u32 %s203, 1
          %s747 = smul.addr %s746, 256
          %s748 = scalar_lea.vmem [#allocation9], %s747
          %s750 = ssub.s32 4096, 4096
          %751 = vsyncadd %s745, %s750
          %s752 = smul.addr %s59, 64
          %s753 = smul.addr %s752, 64
          %s754 = scalar_lea.hbm %s5, %s753
          %s755 = sshll.u32 %s748, 4
          %s756 = int_to_ptr.vmem [resolvable:$true] %s755
          %761 = dma.hbm_to_vmem [thread:$0]  %s754, 4096, %s756, %s745, 256, 256, 16
        $region40: #{transformer_forward.2} parent=19 // pred_fallthru
          _
        // Predicated region
        $region41: #{transformer_forward.2} parent=19 // pred_check
          %p762 = pneg %p239
        $region42: #{transformer_forward.2} parent=19 // pred_check_branch
          %764 = sbr.rel (%p762) target = $region44
        $region43: #{transformer_forward.2} parent=19 // pred_region
          %s765 = sand.u32 %s51, 1
          %s766 = scalar_lea.sflag [#allocation11], %s765
          %s767 = sand.u32 %s229, 1
          %s768 = smul.addr %s767, 4
          %s769 = scalar_lea.vmem [#allocation10], %s768
          %s771 = ssub.s32 64, 64
          %772 = vsyncadd %s766, %s771
          %s773 = smul.addr %s59, 4
          %s774 = smul.addr %s773, 16
          %s775 = scalar_lea.hbm %s6, %s774
          %s777 = sshll.u32 %s769, 4
          %s778 = int_to_ptr.vmem [resolvable:$true] %s777
          %780 = dma.hbm_to_vmem [thread:$0]  %s775, 64, %s778, %s766
        $region44: #{transformer_forward.2} parent=19 // pred_fallthru
          _
        // Predicated region
        $region45: #{transformer_forward.2} parent=19 // pred_check
          %p781 = pneg %p265
        $region46: #{transformer_forward.2} parent=19 // pred_check_branch
          %783 = sbr.rel (%p781) target = $region48
        $region47: #{transformer_forward.2} parent=19 // pred_region
          %s784 = sand.u32 %s51, 1
          %s785 = scalar_lea.sflag [#allocation11], %s784
          %s786 = sand.u32 %s255, 1
          %s787 = smul.addr %s786, 512
          %s788 = scalar_lea.vmem [#allocation12], %s787
          %s790 = ssub.s32 8192, 8192
          %791 = vsyncadd %s785, %s790
          %s792 = smul.addr %s59, 128
          %s793 = smul.addr %s792, 64
          %s794 = scalar_lea.hbm %s7, %s793
          %s795 = sshll.u32 %s788, 4
          %s796 = int_to_ptr.vmem [resolvable:$true] %s795
          %801 = dma.hbm_to_vmem [thread:$0]  %s794, 8192, %s796, %s785, 512, 512, 32
        $region48: #{transformer_forward.2} parent=19 // pred_fallthru
          _
        // Predicated region
        $region49: #{transformer_forward.2} parent=19 // pred_check
          %p802 = pneg %p291
        $region50: #{transformer_forward.2} parent=19 // pred_check_branch
          %804 = sbr.rel (%p802) target = $region52
        $region51: #{transformer_forward.2} parent=19 // pred_region
          %s805 = sand.u32 %s51, 1
          %s806 = scalar_lea.sflag [#allocation14], %s805
          %s807 = sand.u32 %s281, 1
          %s808 = smul.addr %s807, 8
          %s809 = scalar_lea.vmem [#allocation13], %s808
          %s811 = ssub.s32 128, 128
          %812 = vsyncadd %s806, %s811
          %s813 = smul.addr %s59, 8
          %s814 = smul.addr %s813, 16
          %s815 = scalar_lea.hbm %s8, %s814
          %s817 = sshll.u32 %s809, 4
          %s818 = int_to_ptr.vmem [resolvable:$true] %s817
          %820 = dma.hbm_to_vmem [thread:$0]  %s815, 128, %s818, %s806
        $region52: #{transformer_forward.2} parent=19 // pred_fallthru
          _
        // Predicated region
        $region53: #{transformer_forward.2} parent=19 // pred_check
          %p821 = pneg %p317
        $region54: #{transformer_forward.2} parent=19 // pred_check_branch
          %823 = sbr.rel (%p821) target = $region56
        $region55: #{transformer_forward.2} parent=19 // pred_region
          %s824 = sand.u32 %s51, 1
          %s825 = scalar_lea.sflag [#allocation14], %s824
          %s826 = sand.u32 %s307, 1
          %s827 = smul.addr %s826, 256
          %s828 = scalar_lea.vmem [#allocation15], %s827
          %s830 = ssub.s32 4096, 4096
          %831 = vsyncadd %s825, %s830
          %s832 = smul.addr %s59, 64
          %s833 = smul.addr %s832, 64
          %s834 = scalar_lea.hbm %s9, %s833
          %s835 = sshll.u32 %s828, 4
          %s836 = int_to_ptr.vmem [resolvable:$true] %s835
          %841 = dma.hbm_to_vmem [thread:$0]  %s834, 4096, %s836, %s825, 64, 64, 4
        $region56: #{transformer_forward.2} parent=19 // pred_fallthru
          _
        // Predicated region
        $region57: #{transformer_forward.2} parent=19 // pred_check
          %p842 = pneg %p343
        $region58: #{transformer_forward.2} parent=19 // pred_check_branch
          %844 = sbr.rel (%p842) target = $region60
        $region59: #{transformer_forward.2} parent=19 // pred_region
          %s845 = sand.u32 %s51, 1
          %s846 = scalar_lea.sflag [#allocation17], %s845
          %s847 = sand.u32 %s333, 1
          %s848 = scalar_lea.vmem [#allocation16], %s847
          %s850 = ssub.s32 16, 16
          %851 = vsyncadd %s846, %s850
          %s852 = smul.addr %s59, 16
          %s853 = scalar_lea.hbm %s10, %s852
          %s855 = sshll.u32 %s848, 4
          %s856 = int_to_ptr.vmem [resolvable:$true] %s855
          %858 = dma.hbm_to_vmem [thread:$0]  %s853, 16, %s856, %s846
        $region60: #{transformer_forward.2} parent=19 // pred_fallthru
          _
        // Predicated region
        $region61: #{transformer_forward.2} parent=19 // pred_check
          %p859 = pneg %p369
        $region62: #{transformer_forward.2} parent=19 // pred_check_branch
          %861 = sbr.rel (%p859) target = $region64
        $region63: #{transformer_forward.2} parent=19 // pred_region
          %p862 = scmp.lt.s32.totalorder %s59, 1
          %s863 = scalar_select %p862, %s59, 1
          %s864 = smul.addr %s863, 16
          %s865 = smul.addr %s864, 4
          %s866 = scalar_lea.vmem %s11, %s865
        $region64: #{transformer_forward.2} parent=19 // pred_fallthru
          _
        // Predicated region
        $region65: #{transformer_forward.2} parent=19 // pred_check
          %p867 = pneg %p395
        $region66: #{transformer_forward.2} parent=19 // pred_check_branch
          %869 = sbr.rel (%p867) target = $region68
        $region67: #{transformer_forward.2} parent=19 // pred_region
          %s870 = sand.u32 %s51, 1
          %s871 = scalar_lea.sflag [#allocation17], %s870
          %s872 = sand.u32 %s385, 1
          %s873 = scalar_lea.vmem [#allocation18], %s872
          %s875 = ssub.s32 16, 16
          %876 = vsyncadd %s871, %s875
          %s877 = smul.addr %s59, 16
          %s878 = scalar_lea.hbm %s12, %s877
          %s880 = sshll.u32 %s873, 4
          %s881 = int_to_ptr.vmem [resolvable:$true] %s880
          %883 = dma.hbm_to_vmem [thread:$0]  %s878, 16, %s881, %s871
        $region68: #{transformer_forward.2} parent=19 // pred_fallthru
          _
        // Predicated region
        $region69: #{transformer_forward.2} parent=19 // pred_check
          %p884 = pneg %p421
        $region70: #{transformer_forward.2} parent=19 // pred_check_branch
          %886 = sbr.rel (%p884) target = $region72
        $region71: #{transformer_forward.2} parent=19 // pred_region
          %p887 = scmp.lt.s32.totalorder %s59, 1
          %s888 = scalar_select %p887, %s59, 1
          %s889 = smul.addr %s888, 16
          %s890 = smul.addr %s889, 4
          %s891 = scalar_lea.vmem %s13, %s890
        $region72: #{transformer_forward.2} parent=19 // pred_fallthru
          _
        // Predicated region
        $region73: #{transformer_forward.2} parent=19 // pred_check
          %p892 = pneg %p447
        $region74: #{transformer_forward.2} parent=19 // pred_check_branch
          %894 = sbr.rel (%p892) target = $region76
        $region75: #{transformer_forward.2} parent=19 // pred_region
          %s895 = sand.u32 %s51, 1
          %s896 = scalar_lea.sflag [#allocation20], %s895
          %s897 = sand.u32 %s437, 1
          %s898 = scalar_lea.vmem [#allocation19], %s897
          %s900 = ssub.s32 16, 16
          %901 = vsyncadd %s896, %s900
          %s902 = smul.addr %s59, 16
          %s903 = scalar_lea.hbm %s14, %s902
          %s905 = sshll.u32 %s898, 4
          %s906 = int_to_ptr.vmem [resolvable:$true] %s905
          %908 = dma.hbm_to_vmem [thread:$0]  %s903, 16, %s906, %s896
        $region76: #{transformer_forward.2} parent=19 // pred_fallthru
          _
        // Predicated region
        $region77: #{transformer_forward.2} parent=19 // pred_check
          %p909 = pneg %p473
        $region78: #{transformer_forward.2} parent=19 // pred_check_branch
          %911 = sbr.rel (%p909) target = $region80
        $region79: #{transformer_forward.2} parent=19 // pred_region
          %s912 = sand.u32 %s51, 1
          %s913 = scalar_lea.sflag [#allocation20], %s912
          %s914 = sand.u32 %s463, 1
          %s915 = scalar_lea.vmem [#allocation21], %s914
          %s917 = ssub.s32 16, 16
          %918 = vsyncadd %s913, %s917
          %s919 = smul.addr %s59, 16
          %s920 = scalar_lea.hbm %s15, %s919
          %s922 = sshll.u32 %s915, 4
          %s923 = int_to_ptr.vmem [resolvable:$true] %s922
          %925 = dma.hbm_to_vmem [thread:$0]  %s920, 16, %s923, %s913
        $region80: #{transformer_forward.2} parent=19 // pred_fallthru
          _
        // Predicated region
        $region81: #{transformer_forward.2} parent=19 // pred_check
          %p926 = pneg %p499
        $region82: #{transformer_forward.2} parent=19 // pred_check_branch
          %928 = sbr.rel (%p926) target = $region84
        $region83: #{transformer_forward.2} parent=19 // pred_region
          %s929 = sand.u32 %s51, 1
          %s930 = scalar_lea.sflag [#allocation23], %s929
          %s931 = sand.u32 %s489, 1
          %s932 = scalar_lea.vmem [#allocation22], %s931
          %s934 = ssub.s32 16, 16
          %935 = vsyncadd %s930, %s934
          %s936 = smul.addr %s59, 16
          %s937 = scalar_lea.hbm %s16, %s936
          %s939 = sshll.u32 %s932, 4
          %s940 = int_to_ptr.vmem [resolvable:$true] %s939
          %942 = dma.hbm_to_vmem [thread:$0]  %s937, 16, %s940, %s930
        $region84: #{transformer_forward.2} parent=19 // pred_fallthru
          _
        // Predicated region
        $region85: #{transformer_forward.2} parent=19 // pred_check
          %p943 = pneg %p525
        $region86: #{transformer_forward.2} parent=19 // pred_check_branch
          %945 = sbr.rel (%p943) target = $region88
        $region87: #{transformer_forward.2} parent=19 // pred_region
          %p946 = scmp.lt.s32.totalorder %s59, 1
          %s947 = scalar_select %p946, %s59, 1
          %s948 = scalar_lea.vmem %s17, %s947
        $region88: #{transformer_forward.2} parent=19 // pred_fallthru
          _
        // Predicated region
        $region89: #{transformer_forward.2} parent=19 // pred_check
          %p949 = pneg %p551
        $region90: #{transformer_forward.2} parent=19 // pred_check_branch
          %951 = sbr.rel (%p949) target = $region92
        $region91: #{transformer_forward.2} parent=19 // pred_region
          %s952 = sand.u32 %s51, 1
          %s953 = scalar_lea.sflag [#allocation23], %s952
          %s954 = sand.u32 %s541, 1
          %s955 = scalar_lea.vmem [#allocation24], %s954
          %s957 = ssub.s32 16, 16
          %958 = vsyncadd %s953, %s957
          %s959 = smul.addr %s59, 16
          %s960 = scalar_lea.hbm %s18, %s959
          %s962 = sshll.u32 %s955, 4
          %s963 = int_to_ptr.vmem [resolvable:$true] %s962
          %965 = dma.hbm_to_vmem [thread:$0]  %s960, 16, %s963, %s953
        $region92: #{transformer_forward.2} parent=19 // pred_fallthru
          _
        // Predicated region
        $region93: #{transformer_forward.2} parent=19 // pred_check
          %p966 = pneg %p577
        $region94: #{transformer_forward.2} parent=19 // pred_check_branch
          %968 = sbr.rel (%p966) target = $region96
        $region95: #{transformer_forward.2} parent=19 // pred_region
          %p969 = scmp.lt.s32.totalorder %s59, 1
          %s970 = scalar_select %p969, %s59, 1
          %s971 = scalar_lea.vmem %s19, %s970
        $region96: #{transformer_forward.2} parent=19 // pred_fallthru
          _
        // Predicated region
        $region97: #{transformer_forward.2} parent=19 // pred_check
          %p972 = pneg %p603
        $region98: #{transformer_forward.2} parent=19 // pred_check_branch
          %974 = sbr.rel (%p972) target = $region100
        $region99: #{transformer_forward.2} parent=19 // pred_region
          %p975 = scmp.lt.s32.totalorder %s59, 1
          %s976 = scalar_select %p975, %s59, 1
          %s977 = scalar_lea.vmem %s20, %s976
        $region100: #{transformer_forward.2} parent=19 // pred_fallthru
          _
      $region20: #{transformer_forward.2} parent=5 // pred_fallthru
        _
      %p978 = scmp.le.s32.totalorder 1, %s51
      %p979 = scmp.lt.s32.totalorder %s51, 3
      %p980 = pnand %p978, %p979
      %p981 = pneg %p980
      // Predicated region
      $region101: #{transformer_forward.2} parent=5 // pred_check
        _
      $region102: #{transformer_forward.2} parent=5 // pred_check_branch
        %983 = sbr.rel (%p980) target = $region104
      $region103: #{transformer_forward.2} parent=5 // pred_region
        %s984 = ssub.s32 %s51, 1
        %s985 = sand.u32 %s102, 1
        %s986 = scalar_lea.sflag [#allocation3], %s985
        %s987 = sand.u32 %s102, 1
        %s988 = smul.addr %s987, 768
        %s989 = scalar_lea.vmem [#allocation2], %s988
        // Predicated region
        $region105: #{transformer_forward.2} parent=103 // pred_check
          %p990 = pneg %p115
        $region106: #{transformer_forward.2} parent=103 // pred_check_branch
          %992 = sbr.rel (%p990) target = $region108
        $region107: #{transformer_forward.2} parent=103 // pred_region
          %993 = dma.done %s986, 12288
        $region108: #{transformer_forward.2} parent=103 // pred_fallthru
          _
        %s994 = sand.u32 %s56, 1
        %s995 = scalar_lea.sflag [#allocation5], %s994
        %s996 = sand.u32 %s128, 1
        %s997 = smul.addr %s996, 12
        %s998 = scalar_lea.vmem [#allocation4], %s997
        // Predicated region
        $region109: #{transformer_forward.2} parent=103 // pred_check
          %p999 = pneg %p141
        $region110: #{transformer_forward.2} parent=103 // pred_check_branch
          %1001 = sbr.rel (%p999) target = $region112
        $region111: #{transformer_forward.2} parent=103 // pred_region
          %1002 = dma.done %s995, 192
        $region112: #{transformer_forward.2} parent=103 // pred_fallthru
          _
        %s1003 = sand.u32 %s56, 1
        %s1004 = scalar_lea.sflag [#allocation5], %s1003
        %s1005 = sand.u32 %s154, 1
        %s1006 = smul.addr %s1005, 256
        %s1007 = scalar_lea.vmem [#allocation6], %s1006
        // Predicated region
        $region113: #{transformer_forward.2} parent=103 // pred_check
          %p1008 = pneg %p167
        $region114: #{transformer_forward.2} parent=103 // pred_check_branch
          %1010 = sbr.rel (%p1008) target = $region116
        $region115: #{transformer_forward.2} parent=103 // pred_region
          %1011 = dma.done %s1004, 4096
        $region116: #{transformer_forward.2} parent=103 // pred_fallthru
          _
        %s1012 = sand.u32 %s56, 1
        %s1013 = scalar_lea.sflag [#allocation8], %s1012
        %s1014 = sand.u32 %s180, 1
        %s1015 = scalar_lea.vmem [#allocation7], %s1014
        // Predicated region
        $region117: #{transformer_forward.2} parent=103 // pred_check
          %p1016 = pneg %p193
        $region118: #{transformer_forward.2} parent=103 // pred_check_branch
          %1018 = sbr.rel (%p1016) target = $region120
        $region119: #{transformer_forward.2} parent=103 // pred_region
          %1019 = dma.done %s1013, 16
        $region120: #{transformer_forward.2} parent=103 // pred_fallthru
          _
        %s1020 = sand.u32 %s56, 1
        %s1021 = scalar_lea.sflag [#allocation8], %s1020
        %s1022 = sand.u32 %s206, 1
        %s1023 = smul.addr %s1022, 256
        %s1024 = scalar_lea.vmem [#allocation9], %s1023
        // Predicated region
        $region121: #{transformer_forward.2} parent=103 // pred_check
          %p1025 = pneg %p219
        $region122: #{transformer_forward.2} parent=103 // pred_check_branch
          %1027 = sbr.rel (%p1025) target = $region124
        $region123: #{transformer_forward.2} parent=103 // pred_region
          %1028 = dma.done %s1021, 4096
        $region124: #{transformer_forward.2} parent=103 // pred_fallthru
          _
        %s1029 = sand.u32 %s56, 1
        %s1030 = scalar_lea.sflag [#allocation11], %s1029
        %s1031 = sand.u32 %s232, 1
        %s1032 = smul.addr %s1031, 4
        %s1033 = scalar_lea.vmem [#allocation10], %s1032
        // Predicated region
        $region125: #{transformer_forward.2} parent=103 // pred_check
          %p1034 = pneg %p245
        $region126: #{transformer_forward.2} parent=103 // pred_check_branch
          %1036 = sbr.rel (%p1034) target = $region128
        $region127: #{transformer_forward.2} parent=103 // pred_region
          %1037 = dma.done %s1030, 64
        $region128: #{transformer_forward.2} parent=103 // pred_fallthru
          _
        %s1038 = sand.u32 %s56, 1
        %s1039 = scalar_lea.sflag [#allocation11], %s1038
        %s1040 = sand.u32 %s258, 1
        %s1041 = smul.addr %s1040, 512
        %s1042 = scalar_lea.vmem [#allocation12], %s1041
        // Predicated region
        $region129: #{transformer_forward.2} parent=103 // pred_check
          %p1043 = pneg %p271
        $region130: #{transformer_forward.2} parent=103 // pred_check_branch
          %1045 = sbr.rel (%p1043) target = $region132
        $region131: #{transformer_forward.2} parent=103 // pred_region
          %1046 = dma.done %s1039, 8192
        $region132: #{transformer_forward.2} parent=103 // pred_fallthru
          _
        %s1047 = sand.u32 %s56, 1
        %s1048 = scalar_lea.sflag [#allocation14], %s1047
        %s1049 = sand.u32 %s284, 1
        %s1050 = smul.addr %s1049, 8
        %s1051 = scalar_lea.vmem [#allocation13], %s1050
        // Predicated region
        $region133: #{transformer_forward.2} parent=103 // pred_check
          %p1052 = pneg %p297
        $region134: #{transformer_forward.2} parent=103 // pred_check_branch
          %1054 = sbr.rel (%p1052) target = $region136
        $region135: #{transformer_forward.2} parent=103 // pred_region
          %1055 = dma.done %s1048, 128
        $region136: #{transformer_forward.2} parent=103 // pred_fallthru
          _
        %s1056 = sand.u32 %s56, 1
        %s1057 = scalar_lea.sflag [#allocation14], %s1056
        %s1058 = sand.u32 %s310, 1
        %s1059 = smul.addr %s1058, 256
        %s1060 = scalar_lea.vmem [#allocation15], %s1059
        // Predicated region
        $region137: #{transformer_forward.2} parent=103 // pred_check
          %p1061 = pneg %p323
        $region138: #{transformer_forward.2} parent=103 // pred_check_branch
          %1063 = sbr.rel (%p1061) target = $region140
        $region139: #{transformer_forward.2} parent=103 // pred_region
          %1064 = dma.done %s1057, 4096
        $region140: #{transformer_forward.2} parent=103 // pred_fallthru
          _
        %s1065 = sand.u32 %s56, 1
        %s1066 = scalar_lea.sflag [#allocation17], %s1065
        %s1067 = sand.u32 %s336, 1
        %s1068 = scalar_lea.vmem [#allocation16], %s1067
        // Predicated region
        $region141: #{transformer_forward.2} parent=103 // pred_check
          %p1069 = pneg %p349
        $region142: #{transformer_forward.2} parent=103 // pred_check_branch
          %1071 = sbr.rel (%p1069) target = $region144
        $region143: #{transformer_forward.2} parent=103 // pred_region
          %1072 = dma.done %s1066, 16
        $region144: #{transformer_forward.2} parent=103 // pred_fallthru
          _
        %s1073 = sand.u32 %s56, 1
        %s1074 = scalar_lea.sflag [#allocation17], %s1073
        %s1075 = sand.u32 %s388, 1
        %s1076 = scalar_lea.vmem [#allocation18], %s1075
        // Predicated region
        $region145: #{transformer_forward.2} parent=103 // pred_check
          %p1077 = pneg %p401
        $region146: #{transformer_forward.2} parent=103 // pred_check_branch
          %1079 = sbr.rel (%p1077) target = $region148
        $region147: #{transformer_forward.2} parent=103 // pred_region
          %1080 = dma.done %s1074, 16
        $region148: #{transformer_forward.2} parent=103 // pred_fallthru
          _
        %s1081 = sand.u32 %s56, 1
        %s1082 = scalar_lea.sflag [#allocation20], %s1081
        %s1083 = sand.u32 %s440, 1
        %s1084 = scalar_lea.vmem [#allocation19], %s1083
        // Predicated region
        $region149: #{transformer_forward.2} parent=103 // pred_check
          %p1085 = pneg %p453
        $region150: #{transformer_forward.2} parent=103 // pred_check_branch
          %1087 = sbr.rel (%p1085) target = $region152
        $region151: #{transformer_forward.2} parent=103 // pred_region
          %1088 = dma.done %s1082, 16
        $region152: #{transformer_forward.2} parent=103 // pred_fallthru
          _
        %s1089 = sand.u32 %s56, 1
        %s1090 = scalar_lea.sflag [#allocation20], %s1089
        %s1091 = sand.u32 %s466, 1
        %s1092 = scalar_lea.vmem [#allocation21], %s1091
        // Predicated region
        $region153: #{transformer_forward.2} parent=103 // pred_check
          %p1093 = pneg %p479
        $region154: #{transformer_forward.2} parent=103 // pred_check_branch
          %1095 = sbr.rel (%p1093) target = $region156
        $region155: #{transformer_forward.2} parent=103 // pred_region
          %1096 = dma.done %s1090, 16
        $region156: #{transformer_forward.2} parent=103 // pred_fallthru
          _
        %s1097 = sand.u32 %s56, 1
        %s1098 = scalar_lea.sflag [#allocation23], %s1097
        %s1099 = sand.u32 %s492, 1
        %s1100 = scalar_lea.vmem [#allocation22], %s1099
        // Predicated region
        $region157: #{transformer_forward.2} parent=103 // pred_check
          %p1101 = pneg %p505
        $region158: #{transformer_forward.2} parent=103 // pred_check_branch
          %1103 = sbr.rel (%p1101) target = $region160
        $region159: #{transformer_forward.2} parent=103 // pred_region
          %1104 = dma.done %s1098, 16
        $region160: #{transformer_forward.2} parent=103 // pred_fallthru
          _
        %s1105 = sand.u32 %s56, 1
        %s1106 = scalar_lea.sflag [#allocation23], %s1105
        %s1107 = sand.u32 %s544, 1
        %s1108 = scalar_lea.vmem [#allocation24], %s1107
        // Predicated region
        $region161: #{transformer_forward.2} parent=103 // pred_check
          %p1109 = pneg %p557
        $region162: #{transformer_forward.2} parent=103 // pred_check_branch
          %1111 = sbr.rel (%p1109) target = $region164
        $region163: #{transformer_forward.2} parent=103 // pred_region
          %1112 = dma.done %s1106, 16
        $region164: #{transformer_forward.2} parent=103 // pred_fallthru
          _
        %s1113 = smul.u32 2, %s60
        %p1114 = scmp.lt.s32.totalorder %s1113, 1
        %s1115 = scalar_select %p1114, %s1113, 1
        %s1116 = smul.addr %s1115, 8
        %s1117 = scalar_lea.vmem %s0, %s1116
        %p1118 = pneg %p89
        %p1119 = pneg %p86
        %s1120 = sand.u32 %s102, 1
        %s1121 = scalar_lea.sflag [#allocation3], %s1120
        %s1122 = sand.u32 %s102, 1
        %s1123 = smul.addr %s1122, 768
        %s1124 = scalar_lea.vmem [#allocation2], %s1123
        %p1125 = pneg %p115
        %p1126 = pneg %p112
        %s1127 = sand.u32 %s56, 1
        %s1128 = scalar_lea.sflag [#allocation5], %s1127
        %s1129 = sand.u32 %s128, 1
        %s1130 = smul.addr %s1129, 12
        %s1131 = scalar_lea.vmem [#allocation4], %s1130
        %p1132 = pneg %p141
        %p1133 = pneg %p138
        %s1134 = sand.u32 %s56, 1
        %s1135 = scalar_lea.sflag [#allocation5], %s1134
        %s1136 = sand.u32 %s154, 1
        %s1137 = smul.addr %s1136, 256
        %s1138 = scalar_lea.vmem [#allocation6], %s1137
        %p1139 = pneg %p167
        %p1140 = pneg %p164
        %s1141 = sand.u32 %s56, 1
        %s1142 = scalar_lea.sflag [#allocation8], %s1141
        %s1143 = sand.u32 %s180, 1
        %s1144 = scalar_lea.vmem [#allocation7], %s1143
        %p1145 = pneg %p193
        %p1146 = pneg %p190
        %s1147 = sand.u32 %s56, 1
        %s1148 = scalar_lea.sflag [#allocation8], %s1147
        %s1149 = sand.u32 %s206, 1
        %s1150 = smul.addr %s1149, 256
        %s1151 = scalar_lea.vmem [#allocation9], %s1150
        %p1152 = pneg %p219
        %p1153 = pneg %p216
        %s1154 = sand.u32 %s56, 1
        %s1155 = scalar_lea.sflag [#allocation11], %s1154
        %s1156 = sand.u32 %s232, 1
        %s1157 = smul.addr %s1156, 4
        %s1158 = scalar_lea.vmem [#allocation10], %s1157
        %p1159 = pneg %p245
        %p1160 = pneg %p242
        %s1161 = sand.u32 %s56, 1
        %s1162 = scalar_lea.sflag [#allocation11], %s1161
        %s1163 = sand.u32 %s258, 1
        %s1164 = smul.addr %s1163, 512
        %s1165 = scalar_lea.vmem [#allocation12], %s1164
        %p1166 = pneg %p271
        %p1167 = pneg %p268
        %s1168 = sand.u32 %s56, 1
        %s1169 = scalar_lea.sflag [#allocation14], %s1168
        %s1170 = sand.u32 %s284, 1
        %s1171 = smul.addr %s1170, 8
        %s1172 = scalar_lea.vmem [#allocation13], %s1171
        %p1173 = pneg %p297
        %p1174 = pneg %p294
        %s1175 = sand.u32 %s56, 1
        %s1176 = scalar_lea.sflag [#allocation14], %s1175
        %s1177 = sand.u32 %s310, 1
        %s1178 = smul.addr %s1177, 256
        %s1179 = scalar_lea.vmem [#allocation15], %s1178
        %p1180 = pneg %p323
        %p1181 = pneg %p320
        %s1182 = sand.u32 %s56, 1
        %s1183 = scalar_lea.sflag [#allocation17], %s1182
        %s1184 = sand.u32 %s336, 1
        %s1185 = scalar_lea.vmem [#allocation16], %s1184
        %p1186 = pneg %p349
        %p1187 = pneg %p346
        %p1188 = scmp.lt.s32.totalorder %s61, 1
        %s1189 = scalar_select %p1188, %s61, 1
        %s1190 = smul.addr %s1189, 16
        %s1191 = smul.addr %s1190, 4
        %s1192 = scalar_lea.vmem %s11, %s1191
        %p1193 = pneg %p375
        %p1194 = pneg %p372
        %s1195 = sand.u32 %s56, 1
        %s1196 = scalar_lea.sflag [#allocation17], %s1195
        %s1197 = sand.u32 %s388, 1
        %s1198 = scalar_lea.vmem [#allocation18], %s1197
        %p1199 = pneg %p401
        %p1200 = pneg %p398
        %p1201 = scmp.lt.s32.totalorder %s61, 1
        %s1202 = scalar_select %p1201, %s61, 1
        %s1203 = smul.addr %s1202, 16
        %s1204 = smul.addr %s1203, 4
        %s1205 = scalar_lea.vmem %s13, %s1204
        %p1206 = pneg %p427
        %p1207 = pneg %p424
        %s1208 = sand.u32 %s56, 1
        %s1209 = scalar_lea.sflag [#allocation20], %s1208
        %s1210 = sand.u32 %s440, 1
        %s1211 = scalar_lea.vmem [#allocation19], %s1210
        %p1212 = pneg %p453
        %p1213 = pneg %p450
        %s1214 = sand.u32 %s56, 1
        %s1215 = scalar_lea.sflag [#allocation20], %s1214
        %s1216 = sand.u32 %s466, 1
        %s1217 = scalar_lea.vmem [#allocation21], %s1216
        %p1218 = pneg %p479
        %p1219 = pneg %p476
        %s1220 = sand.u32 %s56, 1
        %s1221 = scalar_lea.sflag [#allocation23], %s1220
        %s1222 = sand.u32 %s492, 1
        %s1223 = scalar_lea.vmem [#allocation22], %s1222
        %p1224 = pneg %p505
        %p1225 = pneg %p502
        %p1226 = scmp.lt.s32.totalorder %s61, 1
        %s1227 = scalar_select %p1226, %s61, 1
        %s1228 = scalar_lea.vmem %s17, %s1227
        %p1229 = pneg %p531
        %p1230 = pneg %p528
        %s1231 = sand.u32 %s56, 1
        %s1232 = scalar_lea.sflag [#allocation23], %s1231
        %s1233 = sand.u32 %s544, 1
        %s1234 = scalar_lea.vmem [#allocation24], %s1233
        %p1235 = pneg %p557
        %p1236 = pneg %p554
        %p1237 = scmp.lt.s32.totalorder %s61, 1
        %s1238 = scalar_select %p1237, %s61, 1
        %s1239 = scalar_lea.vmem %s19, %s1238
        %p1240 = pneg %p583
        %p1241 = pneg %p580
        %p1242 = scmp.lt.s32.totalorder %s61, 1
        %s1243 = scalar_select %p1242, %s61, 1
        %s1244 = scalar_lea.vmem %s20, %s1243
        %p1245 = pneg %p609
        %p1246 = pneg %p606
        %p1247 = pneg %p635
        %p1248 = pneg %p632
        %s1249 = smul.u32 2, %s60
        %p1250 = scmp.lt.s32.totalorder %s1249, 1
        %s1251 = scalar_select %p1250, %s1249, 1
        %s1252 = smul.addr %s1251, 8
        %s1253 = scalar_lea.vmem %s21, %s1252
        %s1254 = smul.u32 2, %s60
        %p1255 = scmp.lt.s32.totalorder %s1254, 1
        %s1256 = scalar_select %p1255, %s1254, 1
        %s1257 = smul.addr %s1256, 8
        %s1258 = scalar_lea.vmem %s0, %s1257
        %s1259 = smul.u32 2, %s60
        %p1260 = scmp.lt.s32.totalorder %s61, 1
        %s1261 = scalar_select %p1260, %s61, 1
        %s1262 = smul.addr %s1261, 16
        %s1263 = smul.addr %s1262, 4
        %s1264 = scalar_lea.vmem %s11, %s1263
        %p1265 = scmp.lt.s32.totalorder %s61, 1
        %s1266 = scalar_select %p1265, %s61, 1
        %s1267 = smul.addr %s1266, 16
        %s1268 = smul.addr %s1267, 4
        %s1269 = scalar_lea.vmem %s13, %s1268
        %p1270 = scmp.lt.s32.totalorder %s61, 1
        %s1271 = scalar_select %p1270, %s61, 1
        %s1272 = scalar_lea.vmem %s17, %s1271
        %p1273 = scmp.lt.s32.totalorder %s61, 1
        %s1274 = scalar_select %p1273, %s61, 1
        %s1275 = scalar_lea.vmem %s19, %s1274
        %p1276 = scmp.lt.s32.totalorder %s61, 1
        %s1277 = scalar_select %p1276, %s61, 1
        %s1278 = scalar_lea.vmem %s20, %s1277
        %s1279 = smul.u32 2, %s60
        %p1280 = scmp.lt.s32.totalorder %s1279, 1
        %s1281 = scalar_select %p1280, %s1279, 1
        %s1282 = smul.addr %s1281, 8
        %s1283 = scalar_lea.vmem %s21, %s1282
        %s1284 = smul.u32 2, %s60
        %p1286 = scmp.eq.s32.totalorder %s61, 0
        // Predicated region
        $region165: #{transformer_forward.2} parent=103 // pred_check
          %p1287 = pneg %p1286
        $region166: #{transformer_forward.2} parent=103 // pred_check_branch
          %1289 = sbr.rel (%p1287) target = $region168
        $region167: #{transformer_forward.2} parent=103 // pred_region
          %v1290 = vld [vmem:[%s1258] sm:$0xff]
          %v1291 = vld [vmem:[%s1258 + $0x8] sm:$0xff]
          %1292 = vst [vmem:[%s1283] sm:$0xff] %v1290
          %1293 = vst [vmem:[%s1283 + $0x8] sm:$0xff] %v1291
        $region168: #{transformer_forward.2} parent=103 // pred_fallthru
          _
        %v1294 = vld [vmem:[%s1283] sm:$0xff]
        %v1295 = vld [vmem:[%s1283 + $0x8] sm:$0xff]
        %v1296 = vld [vmem:[%s1258] sm:$0xff]
        %v1297 = vld [vmem:[%s1258 + $0x8] sm:$0xff]
        %v1298 = vlaneseq
        %v1299 = vand.u32 %v1298, 127
        %vm1300 = vcmp.lt.s32.totalorder %v1299, 32
        %v1301 = vsel %vm1300, 1, 0
        %v1302 = vcvt.s32.f32 %v1301
        %v1303 = vlaneseq
        %v1304 = vshrl.u32 %v1303, 7
        %vm1305 = vcmp.le.s32.totalorder %v1299, %v1304
        %v1306 = vpack.c.bf16 %v1295, %v1294
        %v1307 = vld [vmem:[%s989] sm:$0xff]
        %v1308 = vld [vmem:[%s989 + $0x8] sm:$0xff]
        %v1309 = vld [vmem:[%s989 + $0x10] sm:$0xff]
        %v1310 = vld [vmem:[%s989 + $0x18] sm:$0xff]
        %v1311 = vld [vmem:[%s989 + $0x20] sm:$0xff]
        %v1312 = vld [vmem:[%s989 + $0x28] sm:$0xff]
        %v1313 = vld [vmem:[%s989 + $0x30] sm:$0xff]
        %v1314 = vld [vmem:[%s989 + $0x38] sm:$0xff]
        %v1315 = vld [vmem:[%s989 + $0x40] sm:$0xff]
        %v1316 = vld [vmem:[%s989 + $0x48] sm:$0xff]
        %v1317 = vld [vmem:[%s989 + $0x50] sm:$0xff]
        %v1318 = vld [vmem:[%s989 + $0x58] sm:$0xff]
        %v1319 = vld [vmem:[%s989 + $0x60] sm:$0xff]
        %v1320 = vld [vmem:[%s989 + $0x68] sm:$0xff]
        %v1321 = vld [vmem:[%s989 + $0x70] sm:$0xff]
        %v1322 = vld [vmem:[%s989 + $0x78] sm:$0xff]
        %v1323 = vld [vmem:[%s989 + $0x80] sm:$0xff]
        %v1324 = vld [vmem:[%s989 + $0x88] sm:$0xff]
        %v1325 = vld [vmem:[%s989 + $0x90] sm:$0xff]
        %v1326 = vld [vmem:[%s989 + $0x98] sm:$0xff]
        %v1327 = vld [vmem:[%s989 + $0xa0] sm:$0xff]
        %v1328 = vld [vmem:[%s989 + $0xa8] sm:$0xff]
        %v1329 = vld [vmem:[%s989 + $0xb0] sm:$0xff]
        %v1330 = vld [vmem:[%s989 + $0xb8] sm:$0xff]
        %v1331 = vld [vmem:[%s989 + $0xc0] sm:$0xff]
        %v1332 = vld [vmem:[%s989 + $0xc8] sm:$0xff]
        %v1333 = vld [vmem:[%s989 + $0xd0] sm:$0xff]
        %v1334 = vld [vmem:[%s989 + $0xd8] sm:$0xff]
        %v1335 = vld [vmem:[%s989 + $0xe0] sm:$0xff]
        %v1336 = vld [vmem:[%s989 + $0xe8] sm:$0xff]
        %v1337 = vld [vmem:[%s989 + $0xf0] sm:$0xff]
        %v1338 = vld [vmem:[%s989 + $0xf8] sm:$0xff]
        %v1339 = vld [vmem:[%s989 + $0x100] sm:$0xff]
        %v1340 = vld [vmem:[%s989 + $0x108] sm:$0xff]
        %v1341 = vld [vmem:[%s989 + $0x110] sm:$0xff]
        %v1342 = vld [vmem:[%s989 + $0x118] sm:$0xff]
        %v1343 = vld [vmem:[%s989 + $0x120] sm:$0xff]
        %v1344 = vld [vmem:[%s989 + $0x128] sm:$0xff]
        %v1345 = vld [vmem:[%s989 + $0x130] sm:$0xff]
        %v1346 = vld [vmem:[%s989 + $0x138] sm:$0xff]
        %v1347 = vld [vmem:[%s989 + $0x140] sm:$0xff]
        %v1348 = vld [vmem:[%s989 + $0x148] sm:$0xff]
        %v1349 = vld [vmem:[%s989 + $0x150] sm:$0xff]
        %v1350 = vld [vmem:[%s989 + $0x158] sm:$0xff]
        %v1351 = vld [vmem:[%s989 + $0x160] sm:$0xff]
        %v1352 = vld [vmem:[%s989 + $0x168] sm:$0xff]
        %v1353 = vld [vmem:[%s989 + $0x170] sm:$0xff]
        %v1354 = vld [vmem:[%s989 + $0x178] sm:$0xff]
        %v1355 = vld [vmem:[%s989 + $0x180] sm:$0xff]
        %v1356 = vld [vmem:[%s989 + $0x188] sm:$0xff]
        %v1357 = vld [vmem:[%s989 + $0x190] sm:$0xff]
        %v1358 = vld [vmem:[%s989 + $0x198] sm:$0xff]
        %v1359 = vld [vmem:[%s989 + $0x1a0] sm:$0xff]
        %v1360 = vld [vmem:[%s989 + $0x1a8] sm:$0xff]
        %v1361 = vld [vmem:[%s989 + $0x1b0] sm:$0xff]
        %v1362 = vld [vmem:[%s989 + $0x1b8] sm:$0xff]
        %v1363 = vld [vmem:[%s989 + $0x1c0] sm:$0xff]
        %v1364 = vld [vmem:[%s989 + $0x1c8] sm:$0xff]
        %v1365 = vld [vmem:[%s989 + $0x1d0] sm:$0xff]
        %v1366 = vld [vmem:[%s989 + $0x1d8] sm:$0xff]
        %v1367 = vld [vmem:[%s989 + $0x1e0] sm:$0xff]
        %v1368 = vld [vmem:[%s989 + $0x1e8] sm:$0xff]
        %v1369 = vld [vmem:[%s989 + $0x1f0] sm:$0xff]
        %v1370 = vld [vmem:[%s989 + $0x1f8] sm:$0xff]
        %v1371 = vld [vmem:[%s989 + $0x200] sm:$0xff]
        %v1372 = vld [vmem:[%s989 + $0x208] sm:$0xff]
        %v1373 = vld [vmem:[%s989 + $0x210] sm:$0xff]
        %v1374 = vld [vmem:[%s989 + $0x218] sm:$0xff]
        %v1375 = vld [vmem:[%s989 + $0x220] sm:$0xff]
        %v1376 = vld [vmem:[%s989 + $0x228] sm:$0xff]
        %v1377 = vld [vmem:[%s989 + $0x230] sm:$0xff]
        %v1378 = vld [vmem:[%s989 + $0x238] sm:$0xff]
        %v1379 = vld [vmem:[%s989 + $0x240] sm:$0xff]
        %v1380 = vld [vmem:[%s989 + $0x248] sm:$0xff]
        %v1381 = vld [vmem:[%s989 + $0x250] sm:$0xff]
        %v1382 = vld [vmem:[%s989 + $0x258] sm:$0xff]
        %v1383 = vld [vmem:[%s989 + $0x260] sm:$0xff]
        %v1384 = vld [vmem:[%s989 + $0x268] sm:$0xff]
        %v1385 = vld [vmem:[%s989 + $0x270] sm:$0xff]
        %v1386 = vld [vmem:[%s989 + $0x278] sm:$0xff]
        %v1387 = vld [vmem:[%s989 + $0x280] sm:$0xff]
        %v1388 = vld [vmem:[%s989 + $0x288] sm:$0xff]
        %v1389 = vld [vmem:[%s989 + $0x290] sm:$0xff]
        %v1390 = vld [vmem:[%s989 + $0x298] sm:$0xff]
        %v1391 = vld [vmem:[%s989 + $0x2a0] sm:$0xff]
        %v1392 = vld [vmem:[%s989 + $0x2a8] sm:$0xff]
        %v1393 = vld [vmem:[%s989 + $0x2b0] sm:$0xff]
        %v1394 = vld [vmem:[%s989 + $0x2b8] sm:$0xff]
        %v1395 = vld [vmem:[%s989 + $0x2c0] sm:$0xff]
        %v1396 = vld [vmem:[%s989 + $0x2c8] sm:$0xff]
        %v1397 = vld [vmem:[%s989 + $0x2d0] sm:$0xff]
        %v1398 = vld [vmem:[%s989 + $0x2d8] sm:$0xff]
        %v1399 = vld [vmem:[%s989 + $0x2e0] sm:$0xff]
        %v1400 = vld [vmem:[%s989 + $0x2e8] sm:$0xff]
        %v1401 = vld [vmem:[%s989 + $0x2f0] sm:$0xff]
        %v1402 = vld [vmem:[%s989 + $0x2f8] sm:$0xff]
        %v1403 = vld [vmem:[%s998] sm:$0xff]
        %v1404 = vld [vmem:[%s998 + $0x8] sm:$0xf]
        %v1407 = vlaneseq
        %v1408 = vshrl.u32 %v1407, 7
        %v1409 = vsub.s32 0, %v1408
        %v1410 = vrot.slane %v1403, %v1409
        %v1411 = vlaneseq
        %v1412 = vshrl.u32 %v1411, 7
        %v1413 = vsub.s32 1, %v1412
        %v1414 = vrot.slane %v1403, %v1413
        %v1415 = vlaneseq
        %v1416 = vshrl.u32 %v1415, 7
        %v1417 = vsub.s32 2, %v1416
        %v1418 = vrot.slane %v1403, %v1417
        %v1419 = vlaneseq
        %v1420 = vshrl.u32 %v1419, 7
        %v1421 = vsub.s32 3, %v1420
        %v1422 = vrot.slane %v1403, %v1421
        %v1423 = vlaneseq
        %v1424 = vshrl.u32 %v1423, 7
        %v1425 = vsub.s32 4, %v1424
        %v1426 = vrot.slane %v1403, %v1425
        %v1427 = vlaneseq
        %v1428 = vshrl.u32 %v1427, 7
        %v1429 = vsub.s32 5, %v1428
        %v1430 = vrot.slane %v1403, %v1429
        %v1431 = vlaneseq
        %v1432 = vshrl.u32 %v1431, 7
        %v1433 = vsub.s32 6, %v1432
        %v1434 = vrot.slane %v1403, %v1433
        %v1435 = vlaneseq
        %v1436 = vshrl.u32 %v1435, 7
        %v1437 = vsub.s32 7, %v1436
        %v1438 = vrot.slane %v1403, %v1437
        %v1439 = vlaneseq
        %v1440 = vshrl.u32 %v1439, 7
        %v1441 = vsub.s32 0, %v1440
        %v1442 = vrot.slane %v1404, %v1441
        %v1443 = vlaneseq
        %v1444 = vshrl.u32 %v1443, 7
        %v1445 = vsub.s32 1, %v1444
        %v1446 = vrot.slane %v1404, %v1445
        %v1447 = vlaneseq
        %v1448 = vshrl.u32 %v1447, 7
        %v1449 = vsub.s32 2, %v1448
        %v1450 = vrot.slane %v1404, %v1449
        %v1451 = vlaneseq
        %v1452 = vshrl.u32 %v1451, 7
        %v1453 = vsub.s32 3, %v1452
        %v1454 = vrot.slane %v1404, %v1453
        %v1563 = vunpack.c.l.b16 %v1307
        %v1564 = vunpack.c.h.b16 %v1307
        %v1565 = vunpack.c.l.b16 %v1308
        %v1566 = vunpack.c.h.b16 %v1308
        %v1567 = vunpack.c.l.b16 %v1309
        %v1568 = vunpack.c.h.b16 %v1309
        %v1569 = vunpack.c.l.b16 %v1310
        %v1570 = vunpack.c.h.b16 %v1310
        %v1571 = vunpack.c.l.b16 %v1311
        %v1572 = vunpack.c.h.b16 %v1311
        %v1573 = vunpack.c.l.b16 %v1312
        %v1574 = vunpack.c.h.b16 %v1312
        %v1575 = vunpack.c.l.b16 %v1313
        %v1576 = vunpack.c.h.b16 %v1313
        %v1577 = vunpack.c.l.b16 %v1314
        %v1578 = vunpack.c.h.b16 %v1314
        %v1579 = vunpack.c.l.b16 %v1315
        %v1580 = vunpack.c.h.b16 %v1315
        %v1581 = vunpack.c.l.b16 %v1316
        %v1582 = vunpack.c.h.b16 %v1316
        %v1583 = vunpack.c.l.b16 %v1317
        %v1584 = vunpack.c.h.b16 %v1317
        %v1585 = vunpack.c.l.b16 %v1318
        %v1586 = vunpack.c.h.b16 %v1318
        %v1587 = vunpack.c.l.b16 %v1319
        %v1588 = vunpack.c.h.b16 %v1319
        %v1589 = vunpack.c.l.b16 %v1320
        %v1590 = vunpack.c.h.b16 %v1320
        %v1591 = vunpack.c.l.b16 %v1321
        %v1592 = vunpack.c.h.b16 %v1321
        %v1593 = vunpack.c.l.b16 %v1322
        %v1594 = vunpack.c.h.b16 %v1322
        %v1595 = vunpack.c.l.b16 %v1323
        %v1596 = vunpack.c.h.b16 %v1323
        %v1597 = vunpack.c.l.b16 %v1324
        %v1598 = vunpack.c.h.b16 %v1324
        %v1599 = vunpack.c.l.b16 %v1325
        %v1600 = vunpack.c.h.b16 %v1325
        %v1601 = vunpack.c.l.b16 %v1326
        %v1602 = vunpack.c.h.b16 %v1326
        %v1603 = vunpack.c.l.b16 %v1327
        %v1604 = vunpack.c.h.b16 %v1327
        %v1605 = vunpack.c.l.b16 %v1328
        %v1606 = vunpack.c.h.b16 %v1328
        %v1607 = vunpack.c.l.b16 %v1329
        %v1608 = vunpack.c.h.b16 %v1329
        %v1609 = vunpack.c.l.b16 %v1330
        %v1610 = vunpack.c.h.b16 %v1330
        %v1611 = vunpack.c.l.b16 %v1331
        %v1612 = vunpack.c.h.b16 %v1331
        %v1613 = vunpack.c.l.b16 %v1332
        %v1614 = vunpack.c.h.b16 %v1332
        %v1615 = vunpack.c.l.b16 %v1333
        %v1616 = vunpack.c.h.b16 %v1333
        %v1617 = vunpack.c.l.b16 %v1334
        %v1618 = vunpack.c.h.b16 %v1334
        %v1619 = vunpack.c.l.b16 %v1335
        %v1620 = vunpack.c.h.b16 %v1335
        %v1621 = vunpack.c.l.b16 %v1336
        %v1622 = vunpack.c.h.b16 %v1336
        %v1623 = vunpack.c.l.b16 %v1337
        %v1624 = vunpack.c.h.b16 %v1337
        %v1625 = vunpack.c.l.b16 %v1338
        %v1626 = vunpack.c.h.b16 %v1338
        %v1627 = vunpack.c.l.b16 %v1339
        %v1628 = vunpack.c.h.b16 %v1339
        %v1629 = vunpack.c.l.b16 %v1340
        %v1630 = vunpack.c.h.b16 %v1340
        %v1631 = vunpack.c.l.b16 %v1341
        %v1632 = vunpack.c.h.b16 %v1341
        %v1633 = vunpack.c.l.b16 %v1342
        %v1634 = vunpack.c.h.b16 %v1342
        %v1635 = vunpack.c.l.b16 %v1343
        %v1636 = vunpack.c.h.b16 %v1343
        %v1637 = vunpack.c.l.b16 %v1344
        %v1638 = vunpack.c.h.b16 %v1344
        %v1639 = vunpack.c.l.b16 %v1345
        %v1640 = vunpack.c.h.b16 %v1345
        %v1641 = vunpack.c.l.b16 %v1346
        %v1642 = vunpack.c.h.b16 %v1346
        %v1643 = vunpack.c.l.b16 %v1347
        %v1644 = vunpack.c.h.b16 %v1347
        %v1645 = vunpack.c.l.b16 %v1348
        %v1646 = vunpack.c.h.b16 %v1348
        %v1647 = vunpack.c.l.b16 %v1349
        %v1648 = vunpack.c.h.b16 %v1349
        %v1649 = vunpack.c.l.b16 %v1350
        %v1650 = vunpack.c.h.b16 %v1350
        %v1651 = vunpack.c.l.b16 %v1351
        %v1652 = vunpack.c.h.b16 %v1351
        %v1653 = vunpack.c.l.b16 %v1352
        %v1654 = vunpack.c.h.b16 %v1352
        %v1655 = vunpack.c.l.b16 %v1353
        %v1656 = vunpack.c.h.b16 %v1353
        %v1657 = vunpack.c.l.b16 %v1354
        %v1658 = vunpack.c.h.b16 %v1354
        %v1659 = vunpack.c.l.b16 %v1355
        %v1660 = vunpack.c.h.b16 %v1355
        %v1661 = vunpack.c.l.b16 %v1356
        %v1662 = vunpack.c.h.b16 %v1356
        %v1663 = vunpack.c.l.b16 %v1357
        %v1664 = vunpack.c.h.b16 %v1357
        %v1665 = vunpack.c.l.b16 %v1358
        %v1666 = vunpack.c.h.b16 %v1358
        %v1667 = vunpack.c.l.b16 %v1359
        %v1668 = vunpack.c.h.b16 %v1359
        %v1669 = vunpack.c.l.b16 %v1360
        %v1670 = vunpack.c.h.b16 %v1360
        %v1671 = vunpack.c.l.b16 %v1361
        %v1672 = vunpack.c.h.b16 %v1361
        %v1673 = vunpack.c.l.b16 %v1362
        %v1674 = vunpack.c.h.b16 %v1362
        %v1675 = vunpack.c.l.b16 %v1363
        %v1676 = vunpack.c.h.b16 %v1363
        %v1677 = vunpack.c.l.b16 %v1364
        %v1678 = vunpack.c.h.b16 %v1364
        %v1679 = vunpack.c.l.b16 %v1365
        %v1680 = vunpack.c.h.b16 %v1365
        %v1681 = vunpack.c.l.b16 %v1366
        %v1682 = vunpack.c.h.b16 %v1366
        %v1683 = vunpack.c.l.b16 %v1367
        %v1684 = vunpack.c.h.b16 %v1367
        %v1685 = vunpack.c.l.b16 %v1368
        %v1686 = vunpack.c.h.b16 %v1368
        %v1687 = vunpack.c.l.b16 %v1369
        %v1688 = vunpack.c.h.b16 %v1369
        %v1689 = vunpack.c.l.b16 %v1370
        %v1690 = vunpack.c.h.b16 %v1370
        %v1691 = vunpack.c.l.b16 %v1371
        %v1692 = vunpack.c.h.b16 %v1371
        %v1693 = vunpack.c.l.b16 %v1372
        %v1694 = vunpack.c.h.b16 %v1372
        %v1695 = vunpack.c.l.b16 %v1373
        %v1696 = vunpack.c.h.b16 %v1373
        %v1697 = vunpack.c.l.b16 %v1374
        %v1698 = vunpack.c.h.b16 %v1374
        %v1699 = vunpack.c.l.b16 %v1375
        %v1700 = vunpack.c.h.b16 %v1375
        %v1701 = vunpack.c.l.b16 %v1376
        %v1702 = vunpack.c.h.b16 %v1376
        %v1703 = vunpack.c.l.b16 %v1377
        %v1704 = vunpack.c.h.b16 %v1377
        %v1705 = vunpack.c.l.b16 %v1378
        %v1706 = vunpack.c.h.b16 %v1378
        %v1707 = vunpack.c.l.b16 %v1379
        %v1708 = vunpack.c.h.b16 %v1379
        %v1709 = vunpack.c.l.b16 %v1380
        %v1710 = vunpack.c.h.b16 %v1380
        %v1711 = vunpack.c.l.b16 %v1381
        %v1712 = vunpack.c.h.b16 %v1381
        %v1713 = vunpack.c.l.b16 %v1382
        %v1714 = vunpack.c.h.b16 %v1382
        %v1715 = vunpack.c.l.b16 %v1383
        %v1716 = vunpack.c.h.b16 %v1383
        %v1717 = vunpack.c.l.b16 %v1384
        %v1718 = vunpack.c.h.b16 %v1384
        %v1719 = vunpack.c.l.b16 %v1385
        %v1720 = vunpack.c.h.b16 %v1385
        %v1721 = vunpack.c.l.b16 %v1386
        %v1722 = vunpack.c.h.b16 %v1386
        %v1723 = vunpack.c.l.b16 %v1387
        %v1724 = vunpack.c.h.b16 %v1387
        %v1725 = vunpack.c.l.b16 %v1388
        %v1726 = vunpack.c.h.b16 %v1388
        %v1727 = vunpack.c.l.b16 %v1389
        %v1728 = vunpack.c.h.b16 %v1389
        %v1729 = vunpack.c.l.b16 %v1390
        %v1730 = vunpack.c.h.b16 %v1390
        %v1731 = vunpack.c.l.b16 %v1391
        %v1732 = vunpack.c.h.b16 %v1391
        %v1733 = vunpack.c.l.b16 %v1392
        %v1734 = vunpack.c.h.b16 %v1392
        %v1735 = vunpack.c.l.b16 %v1393
        %v1736 = vunpack.c.h.b16 %v1393
        %v1737 = vunpack.c.l.b16 %v1394
        %v1738 = vunpack.c.h.b16 %v1394
        %v1739 = vunpack.c.l.b16 %v1395
        %v1740 = vunpack.c.h.b16 %v1395
        %v1741 = vunpack.c.l.b16 %v1396
        %v1742 = vunpack.c.h.b16 %v1396
        %v1743 = vunpack.c.l.b16 %v1397
        %v1744 = vunpack.c.h.b16 %v1397
        %v1745 = vunpack.c.l.b16 %v1398
        %v1746 = vunpack.c.h.b16 %v1398
        %v1747 = vunpack.c.l.b16 %v1399
        %v1748 = vunpack.c.h.b16 %v1399
        %v1749 = vunpack.c.l.b16 %v1400
        %v1750 = vunpack.c.h.b16 %v1400
        %v1751 = vunpack.c.l.b16 %v1401
        %v1752 = vunpack.c.h.b16 %v1401
        %v1753 = vunpack.c.l.b16 %v1402
        %v1754 = vunpack.c.h.b16 %v1402
        %v1755 = vpack.c.b16 %v1575, %v1563
        %v1756 = vpack.c.b16 %v1576, %v1564
        %v1757 = vpack.c.b16 %v1577, %v1565
        %v1758 = vpack.c.b16 %v1578, %v1566
        %v1759 = vpack.c.b16 %v1579, %v1567
        %v1760 = vpack.c.b16 %v1580, %v1568
        %v1761 = vpack.c.b16 %v1581, %v1569
        %v1762 = vpack.c.b16 %v1582, %v1570
        %v1763 = vpack.c.b16 %v1583, %v1571
        %v1764 = vpack.c.b16 %v1584, %v1572
        %v1765 = vpack.c.b16 %v1585, %v1573
        %v1766 = vpack.c.b16 %v1586, %v1574
        %v1767 = vpack.c.b16 %v1599, %v1587
        %v1768 = vpack.c.b16 %v1600, %v1588
        %v1769 = vpack.c.b16 %v1601, %v1589
        %v1770 = vpack.c.b16 %v1602, %v1590
        %v1771 = vpack.c.b16 %v1603, %v1591
        %v1772 = vpack.c.b16 %v1604, %v1592
        %v1773 = vpack.c.b16 %v1605, %v1593
        %v1774 = vpack.c.b16 %v1606, %v1594
        %v1775 = vpack.c.b16 %v1607, %v1595
        %v1776 = vpack.c.b16 %v1608, %v1596
        %v1777 = vpack.c.b16 %v1609, %v1597
        %v1778 = vpack.c.b16 %v1610, %v1598
        %v1779 = vpack.c.b16 %v1623, %v1611
        %v1780 = vpack.c.b16 %v1624, %v1612
        %v1781 = vpack.c.b16 %v1625, %v1613
        %v1782 = vpack.c.b16 %v1626, %v1614
        %v1783 = vpack.c.b16 %v1627, %v1615
        %v1784 = vpack.c.b16 %v1628, %v1616
        %v1785 = vpack.c.b16 %v1629, %v1617
        %v1786 = vpack.c.b16 %v1630, %v1618
        %v1787 = vpack.c.b16 %v1631, %v1619
        %v1788 = vpack.c.b16 %v1632, %v1620
        %v1789 = vpack.c.b16 %v1633, %v1621
        %v1790 = vpack.c.b16 %v1634, %v1622
        %v1791 = vpack.c.b16 %v1647, %v1635
        %v1792 = vpack.c.b16 %v1648, %v1636
        %v1793 = vpack.c.b16 %v1649, %v1637
        %v1794 = vpack.c.b16 %v1650, %v1638
        %v1795 = vpack.c.b16 %v1651, %v1639
        %v1796 = vpack.c.b16 %v1652, %v1640
        %v1797 = vpack.c.b16 %v1653, %v1641
        %v1798 = vpack.c.b16 %v1654, %v1642
        %v1799 = vpack.c.b16 %v1655, %v1643
        %v1800 = vpack.c.b16 %v1656, %v1644
        %v1801 = vpack.c.b16 %v1657, %v1645
        %v1802 = vpack.c.b16 %v1658, %v1646
        %v1803 = vpack.c.b16 %v1671, %v1659
        %v1804 = vpack.c.b16 %v1672, %v1660
        %v1805 = vpack.c.b16 %v1673, %v1661
        %v1806 = vpack.c.b16 %v1674, %v1662
        %v1807 = vpack.c.b16 %v1675, %v1663
        %v1808 = vpack.c.b16 %v1676, %v1664
        %v1809 = vpack.c.b16 %v1677, %v1665
        %v1810 = vpack.c.b16 %v1678, %v1666
        %v1811 = vpack.c.b16 %v1679, %v1667
        %v1812 = vpack.c.b16 %v1680, %v1668
        %v1813 = vpack.c.b16 %v1681, %v1669
        %v1814 = vpack.c.b16 %v1682, %v1670
        %v1815 = vpack.c.b16 %v1695, %v1683
        %v1816 = vpack.c.b16 %v1696, %v1684
        %v1817 = vpack.c.b16 %v1697, %v1685
        %v1818 = vpack.c.b16 %v1698, %v1686
        %v1819 = vpack.c.b16 %v1699, %v1687
        %v1820 = vpack.c.b16 %v1700, %v1688
        %v1821 = vpack.c.b16 %v1701, %v1689
        %v1822 = vpack.c.b16 %v1702, %v1690
        %v1823 = vpack.c.b16 %v1703, %v1691
        %v1824 = vpack.c.b16 %v1704, %v1692
        %v1825 = vpack.c.b16 %v1705, %v1693
        %v1826 = vpack.c.b16 %v1706, %v1694
        %v1827 = vpack.c.b16 %v1719, %v1707
        %v1828 = vpack.c.b16 %v1720, %v1708
        %v1829 = vpack.c.b16 %v1721, %v1709
        %v1830 = vpack.c.b16 %v1722, %v1710
        %v1831 = vpack.c.b16 %v1723, %v1711
        %v1832 = vpack.c.b16 %v1724, %v1712
        %v1833 = vpack.c.b16 %v1725, %v1713
        %v1834 = vpack.c.b16 %v1726, %v1714
        %v1835 = vpack.c.b16 %v1727, %v1715
        %v1836 = vpack.c.b16 %v1728, %v1716
        %v1837 = vpack.c.b16 %v1729, %v1717
        %v1838 = vpack.c.b16 %v1730, %v1718
        %v1839 = vpack.c.b16 %v1743, %v1731
        %v1840 = vpack.c.b16 %v1744, %v1732
        %v1841 = vpack.c.b16 %v1745, %v1733
        %v1842 = vpack.c.b16 %v1746, %v1734
        %v1843 = vpack.c.b16 %v1747, %v1735
        %v1844 = vpack.c.b16 %v1748, %v1736
        %v1845 = vpack.c.b16 %v1749, %v1737
        %v1846 = vpack.c.b16 %v1750, %v1738
        %v1847 = vpack.c.b16 %v1751, %v1739
        %v1848 = vpack.c.b16 %v1752, %v1740
        %v1849 = vpack.c.b16 %v1753, %v1741
        %v1850 = vpack.c.b16 %v1754, %v1742
        %1947 = vmatprep.subr.bf16.mxu0 %v1756
        %1948 = vmatpush1.bf16.msra.mxu0 %v1755
        %1949 = vmatprep.subr.bf16.mxu0 %v1768
        %1950 = vmatpush1.bf16.msra.mxu0 %v1767
        %1951 = vmatprep.subr.bf16.mxu0 %v1780
        %1952 = vmatpush1.bf16.msra.mxu0 %v1779
        %1953 = vmatprep.subr.bf16.mxu0 %v1792
        %1954 = vmatpush1.bf16.msra.mxu0 %v1791
        %1955 = vmatprep.subr.bf16.mxu0 %v1804
        %1956 = vmatpush1.bf16.msra.mxu0 %v1803
        %1957 = vmatprep.subr.bf16.mxu0 %v1816
        %1958 = vmatpush1.bf16.msra.mxu0 %v1815
        %1959 = vmatprep.subr.bf16.mxu0 %v1828
        %1960 = vmatpush1.bf16.msra.mxu0 %v1827
        %1961 = vmatprep.subr.bf16.mxu0 %v1840
        %1962 = vmatpush1.bf16.msra.mxu0 %v1839
        %1963 = vmatprep.subr.bf16.mxu0 0
        %1964 = vmatpush1.bf16.msra.mxu0 0
        %1965 = vmatprep.subr.bf16.mxu0 0
        %1966 = vmatpush1.bf16.msra.mxu0 0
        %1967 = vmatprep.subr.bf16.mxu0 0
        %1968 = vmatpush1.bf16.msra.mxu0 0
        %1969 = vmatprep.subr.bf16.mxu0 0
        %1970 = vmatpush1.bf16.msra.mxu0 0
        %1971 = vmatprep.subr.bf16.mxu0 0
        %1972 = vmatpush1.bf16.msra.mxu0 0
        %1973 = vmatprep.subr.bf16.mxu0 0
        %1974 = vmatpush1.bf16.msra.mxu0 0
        %1975 = vmatprep.subr.bf16.mxu0 0
        %1976 = vmatpush1.bf16.msra.mxu0 0
        %1977 = vmatprep.subr.bf16.mxu0 0
        %1978 = vmatpush1.bf16.msra.mxu0 0
        %1979 = vmatprep.mubr.bf16.mxu0 0
        %1980 = vmatmul.mubr.bf16.gmra.mrb[0].mxu0 %v1306
        %v1981 = vpop.f32.mrb[0].mxu0
        %v1982 = vadd.f32 %v1410, %v1981
        %v1983 = vpop.f32.mrb[0].mxu0
        %v1984 = vadd.f32 %v1414, %v1983
        %v1985 = vpop.f32.mrb[0].mxu0
        %v1986 = vadd.f32 %v1410, %v1985
        %v1987 = vpop.f32.mrb[0].mxu0
        %v1988 = vadd.f32 %v1414, %v1987
        %1989 = vdwg.mxu0
        %1990 = vmatprep.subr.bf16.mxu0 %v1758
        %1991 = vmatpush1.bf16.msra.mxu0 %v1757
        %1992 = vmatprep.subr.bf16.mxu0 %v1770
        %1993 = vmatpush1.bf16.msra.mxu0 %v1769
        %1994 = vmatprep.subr.bf16.mxu0 %v1782
        %1995 = vmatpush1.bf16.msra.mxu0 %v1781
        %1996 = vmatprep.subr.bf16.mxu0 %v1794
        %1997 = vmatpush1.bf16.msra.mxu0 %v1793
        %1998 = vmatprep.subr.bf16.mxu0 %v1806
        %1999 = vmatpush1.bf16.msra.mxu0 %v1805
        %2000 = vmatprep.subr.bf16.mxu0 %v1818
        %2001 = vmatpush1.bf16.msra.mxu0 %v1817
        %2002 = vmatprep.subr.bf16.mxu0 %v1830
        %2003 = vmatpush1.bf16.msra.mxu0 %v1829
        %2004 = vmatprep.subr.bf16.mxu0 %v1842
        %2005 = vmatpush1.bf16.msra.mxu0 %v1841
        %2006 = vmatprep.subr.bf16.mxu0 0
        %2007 = vmatpush1.bf16.msra.mxu0 0
        %2008 = vmatprep.subr.bf16.mxu0 0
        %2009 = vmatpush1.bf16.msra.mxu0 0
        %2010 = vmatprep.subr.bf16.mxu0 0
        %2011 = vmatpush1.bf16.msra.mxu0 0
        %2012 = vmatprep.subr.bf16.mxu0 0
        %2013 = vmatpush1.bf16.msra.mxu0 0
        %2014 = vmatprep.subr.bf16.mxu0 0
        %2015 = vmatpush1.bf16.msra.mxu0 0
        %2016 = vmatprep.subr.bf16.mxu0 0
        %2017 = vmatpush1.bf16.msra.mxu0 0
        %2018 = vmatprep.subr.bf16.mxu0 0
        %2019 = vmatpush1.bf16.msra.mxu0 0
        %2020 = vmatprep.subr.bf16.mxu0 0
        %2021 = vmatpush1.bf16.msra.mxu0 0
        %2022 = vmatprep.mubr.bf16.mxu0 0
        %2023 = vmatmul.mubr.bf16.gmra.mrb[0].mxu0 %v1306
        %v2024 = vpop.f32.mrb[0].mxu0
        %v2025 = vadd.f32 %v1418, %v2024
        %v2026 = vpop.f32.mrb[0].mxu0
        %v2027 = vadd.f32 %v1422, %v2026
        %v2028 = vpop.f32.mrb[0].mxu0
        %v2029 = vadd.f32 %v1418, %v2028
        %v2030 = vpop.f32.mrb[0].mxu0
        %v2031 = vadd.f32 %v1422, %v2030
        %2032 = vdwg.mxu0
        %2033 = vmatprep.subr.bf16.mxu0 %v1760
        %2034 = vmatpush1.bf16.msra.mxu0 %v1759
        %2035 = vmatprep.subr.bf16.mxu0 %v1772
        %2036 = vmatpush1.bf16.msra.mxu0 %v1771
        %2037 = vmatprep.subr.bf16.mxu0 %v1784
        %2038 = vmatpush1.bf16.msra.mxu0 %v1783
        %2039 = vmatprep.subr.bf16.mxu0 %v1796
        %2040 = vmatpush1.bf16.msra.mxu0 %v1795
        %2041 = vmatprep.subr.bf16.mxu0 %v1808
        %2042 = vmatpush1.bf16.msra.mxu0 %v1807
        %2043 = vmatprep.subr.bf16.mxu0 %v1820
        %2044 = vmatpush1.bf16.msra.mxu0 %v1819
        %2045 = vmatprep.subr.bf16.mxu0 %v1832
        %2046 = vmatpush1.bf16.msra.mxu0 %v1831
        %2047 = vmatprep.subr.bf16.mxu0 %v1844
        %2048 = vmatpush1.bf16.msra.mxu0 %v1843
        %2049 = vmatprep.subr.bf16.mxu0 0
        %2050 = vmatpush1.bf16.msra.mxu0 0
        %2051 = vmatprep.subr.bf16.mxu0 0
        %2052 = vmatpush1.bf16.msra.mxu0 0
        %2053 = vmatprep.subr.bf16.mxu0 0
        %2054 = vmatpush1.bf16.msra.mxu0 0
        %2055 = vmatprep.subr.bf16.mxu0 0
        %2056 = vmatpush1.bf16.msra.mxu0 0
        %2057 = vmatprep.subr.bf16.mxu0 0
        %2058 = vmatpush1.bf16.msra.mxu0 0
        %2059 = vmatprep.subr.bf16.mxu0 0
        %2060 = vmatpush1.bf16.msra.mxu0 0
        %2061 = vmatprep.subr.bf16.mxu0 0
        %2062 = vmatpush1.bf16.msra.mxu0 0
        %2063 = vmatprep.subr.bf16.mxu0 0
        %2064 = vmatpush1.bf16.msra.mxu0 0
        %2065 = vmatprep.mubr.bf16.mxu0 0
        %2066 = vmatmul.mubr.bf16.gmra.mrb[0].mxu0 %v1306
        %v2067 = vpop.f32.mrb[0].mxu0
        %v2068 = vadd.f32 %v1426, %v2067
        %v2069 = vpop.f32.mrb[0].mxu0
        %v2070 = vadd.f32 %v1430, %v2069
        %v2071 = vpop.f32.mrb[0].mxu0
        %v2072 = vadd.f32 %v1426, %v2071
        %v2073 = vpop.f32.mrb[0].mxu0
        %v2074 = vadd.f32 %v1430, %v2073
        %2075 = vdwg.mxu0
        %2076 = vmatprep.subr.bf16.mxu0 %v1762
        %2077 = vmatpush1.bf16.msra.mxu0 %v1761
        %2078 = vmatprep.subr.bf16.mxu0 %v1774
        %2079 = vmatpush1.bf16.msra.mxu0 %v1773
        %2080 = vmatprep.subr.bf16.mxu0 %v1786
        %2081 = vmatpush1.bf16.msra.mxu0 %v1785
        %2082 = vmatprep.subr.bf16.mxu0 %v1798
        %2083 = vmatpush1.bf16.msra.mxu0 %v1797
        %2084 = vmatprep.subr.bf16.mxu0 %v1810
        %2085 = vmatpush1.bf16.msra.mxu0 %v1809
        %2086 = vmatprep.subr.bf16.mxu0 %v1822
        %2087 = vmatpush1.bf16.msra.mxu0 %v1821
        %2088 = vmatprep.subr.bf16.mxu0 %v1834
        %2089 = vmatpush1.bf16.msra.mxu0 %v1833
        %2090 = vmatprep.subr.bf16.mxu0 %v1846
        %2091 = vmatpush1.bf16.msra.mxu0 %v1845
        %2092 = vmatprep.subr.bf16.mxu0 0
        %2093 = vmatpush1.bf16.msra.mxu0 0
        %2094 = vmatprep.subr.bf16.mxu0 0
        %2095 = vmatpush1.bf16.msra.mxu0 0
        %2096 = vmatprep.subr.bf16.mxu0 0
        %2097 = vmatpush1.bf16.msra.mxu0 0
        %2098 = vmatprep.subr.bf16.mxu0 0
        %2099 = vmatpush1.bf16.msra.mxu0 0
        %2100 = vmatprep.subr.bf16.mxu0 0
        %2101 = vmatpush1.bf16.msra.mxu0 0
        %2102 = vmatprep.subr.bf16.mxu0 0
        %2103 = vmatpush1.bf16.msra.mxu0 0
        %2104 = vmatprep.subr.bf16.mxu0 0
        %2105 = vmatpush1.bf16.msra.mxu0 0
        %2106 = vmatprep.subr.bf16.mxu0 0
        %2107 = vmatpush1.bf16.msra.mxu0 0
        %2108 = vmatprep.mubr.bf16.mxu0 0
        %2109 = vmatmul.mubr.bf16.gmra.mrb[0].mxu0 %v1306
        %v2110 = vpop.f32.mrb[0].mxu0
        %v2111 = vadd.f32 %v1434, %v2110
        %v2112 = vpop.f32.mrb[0].mxu0
        %v2113 = vadd.f32 %v1438, %v2112
        %v2114 = vpop.f32.mrb[0].mxu0
        %v2115 = vadd.f32 %v1434, %v2114
        %v2116 = vpop.f32.mrb[0].mxu0
        %v2117 = vadd.f32 %v1438, %v2116
        %2118 = vdwg.mxu0
        %2119 = vmatprep.subr.bf16.mxu0 %v1764
        %2120 = vmatpush1.bf16.msra.mxu0 %v1763
        %2121 = vmatprep.subr.bf16.mxu0 %v1776
        %2122 = vmatpush1.bf16.msra.mxu0 %v1775
        %2123 = vmatprep.subr.bf16.mxu0 %v1788
        %2124 = vmatpush1.bf16.msra.mxu0 %v1787
        %2125 = vmatprep.subr.bf16.mxu0 %v1800
        %2126 = vmatpush1.bf16.msra.mxu0 %v1799
        %2127 = vmatprep.subr.bf16.mxu0 %v1812
        %2128 = vmatpush1.bf16.msra.mxu0 %v1811
        %2129 = vmatprep.subr.bf16.mxu0 %v1824
        %2130 = vmatpush1.bf16.msra.mxu0 %v1823
        %2131 = vmatprep.subr.bf16.mxu0 %v1836
        %2132 = vmatpush1.bf16.msra.mxu0 %v1835
        %2133 = vmatprep.subr.bf16.mxu0 %v1848
        %2134 = vmatpush1.bf16.msra.mxu0 %v1847
        %2135 = vmatprep.subr.bf16.mxu0 0
        %2136 = vmatpush1.bf16.msra.mxu0 0
        %2137 = vmatprep.subr.bf16.mxu0 0
        %2138 = vmatpush1.bf16.msra.mxu0 0
        %2139 = vmatprep.subr.bf16.mxu0 0
        %2140 = vmatpush1.bf16.msra.mxu0 0
        %2141 = vmatprep.subr.bf16.mxu0 0
        %2142 = vmatpush1.bf16.msra.mxu0 0
        %2143 = vmatprep.subr.bf16.mxu0 0
        %2144 = vmatpush1.bf16.msra.mxu0 0
        %2145 = vmatprep.subr.bf16.mxu0 0
        %2146 = vmatpush1.bf16.msra.mxu0 0
        %2147 = vmatprep.subr.bf16.mxu0 0
        %2148 = vmatpush1.bf16.msra.mxu0 0
        %2149 = vmatprep.subr.bf16.mxu0 0
        %2150 = vmatpush1.bf16.msra.mxu0 0
        %2151 = vmatprep.mubr.bf16.mxu0 0
        %2152 = vmatmul.mubr.bf16.gmra.mrb[0].mxu0 %v1306
        %v2153 = vpop.f32.mrb[0].mxu0
        %v2154 = vadd.f32 %v1442, %v2153
        %v2155 = vpop.f32.mrb[0].mxu0
        %v2156 = vadd.f32 %v1446, %v2155
        %v2157 = vpop.f32.mrb[0].mxu0
        %v2158 = vadd.f32 %v1442, %v2157
        %v2159 = vpop.f32.mrb[0].mxu0
        %v2160 = vadd.f32 %v1446, %v2159
        %2161 = vdwg.mxu0
        %2162 = vmatprep.subr.bf16.mxu0 %v1766
        %2163 = vmatpush1.bf16.msra.mxu0 %v1765
        %2164 = vmatprep.subr.bf16.mxu0 %v1778
        %2165 = vmatpush1.bf16.msra.mxu0 %v1777
        %2166 = vmatprep.subr.bf16.mxu0 %v1790
        %2167 = vmatpush1.bf16.msra.mxu0 %v1789
        %2168 = vmatprep.subr.bf16.mxu0 %v1802
        %2169 = vmatpush1.bf16.msra.mxu0 %v1801
        %2170 = vmatprep.subr.bf16.mxu0 %v1814
        %2171 = vmatpush1.bf16.msra.mxu0 %v1813
        %2172 = vmatprep.subr.bf16.mxu0 %v1826
        %2173 = vmatpush1.bf16.msra.mxu0 %v1825
        %2174 = vmatprep.subr.bf16.mxu0 %v1838
        %2175 = vmatpush1.bf16.msra.mxu0 %v1837
        %2176 = vmatprep.subr.bf16.mxu0 %v1850
        %2177 = vmatpush1.bf16.msra.mxu0 %v1849
        %2178 = vmatprep.subr.bf16.mxu0 0
        %2179 = vmatpush1.bf16.msra.mxu0 0
        %2180 = vmatprep.subr.bf16.mxu0 0
        %2181 = vmatpush1.bf16.msra.mxu0 0
        %2182 = vmatprep.subr.bf16.mxu0 0
        %2183 = vmatpush1.bf16.msra.mxu0 0
        %2184 = vmatprep.subr.bf16.mxu0 0
        %2185 = vmatpush1.bf16.msra.mxu0 0
        %2186 = vmatprep.subr.bf16.mxu0 0
        %2187 = vmatpush1.bf16.msra.mxu0 0
        %2188 = vmatprep.subr.bf16.mxu0 0
        %2189 = vmatpush1.bf16.msra.mxu0 0
        %2190 = vmatprep.subr.bf16.mxu0 0
        %2191 = vmatpush1.bf16.msra.mxu0 0
        %2192 = vmatprep.subr.bf16.mxu0 0
        %2193 = vmatpush1.bf16.msra.mxu0 0
        %2194 = vmatprep.mubr.bf16.mxu0 0
        %2195 = vmatmul.mubr.bf16.gmra.mrb[0].mxu0 %v1306
        %v2196 = vpop.f32.mrb[0].mxu0
        %v2197 = vadd.f32 %v1450, %v2196
        %v2198 = vpop.f32.mrb[0].mxu0
        %v2199 = vadd.f32 %v1454, %v2198
        %v2200 = vpop.f32.mrb[0].mxu0
        %v2201 = vadd.f32 %v1450, %v2200
        %v2202 = vpop.f32.mrb[0].mxu0
        %v2203 = vadd.f32 %v1454, %v2202
        %2204 = vdwg.mxu0
        %v2205 = vmul.f32 %v1982, 0.35355338
        %v2206 = vmul.f32 %v1984, 0.35355338
        %v2207 = vmul.f32 %v2025, 0.35355338
        %v2208 = vmul.f32 %v2027, 0.35355338
        %v2209 = vmul.f32 %v1986, 0.35355338
        %v2210 = vmul.f32 %v1988, 0.35355338
        %v2211 = vmul.f32 %v2029, 0.35355338
        %v2212 = vmul.f32 %v2031, 0.35355338
        %v2213 = vpack.c.bf16 %v2205, %v2205
        %v2214 = vpack.c.bf16 %v2209, %v2209
        %v2215 = vpack.c.bf16 %v2068, %v2068
        %v2216 = vpack.c.bf16 %v2072, %v2072
        %v2217 = vpack.c.bf16 %v2154, %v2154
        %v2218 = vpack.c.bf16 %v2158, %v2158
        %2219 = vmatprep.subr.bf16.mxu0 0
        %2220 = vmatpush1.bf16.xpose.msra.mxu0 %v2215
        %2221 = vmatprep.subr.bf16.mxu0 0
        %2222 = vmatpush1.bf16.xpose.msra.mxu0 0
        %2223 = vmatprep.subr.bf16.mxu0 0
        %2224 = vmatpush1.bf16.xpose.msra.mxu0 0
        %2225 = vmatprep.subr.bf16.mxu0 0
        %2226 = vmatpush1.bf16.xpose.msra.mxu0 0
        %2227 = vmatprep.subr.bf16.mxu0 0
        %2228 = vmatpush1.bf16.xpose.msra.mxu0 0
        %2229 = vmatprep.subr.bf16.mxu0 0
        %2230 = vmatpush1.bf16.xpose.msra.mxu0 0
        %2231 = vmatprep.subr.bf16.mxu0 0
        %2232 = vmatpush1.bf16.xpose.msra.mxu0 0
        %2233 = vmatprep.subr.bf16.mxu0 0
        %2234 = vmatpush1.bf16.xpose.msra.mxu0 0
        %2235 = vmatprep.subr.bf16.mxu0 0
        %2236 = vmatpush1.bf16.xpose.msra.mxu0 0
        %2237 = vmatprep.subr.bf16.mxu0 0
        %2238 = vmatpush1.bf16.xpose.msra.mxu0 0
        %2239 = vmatprep.subr.bf16.mxu0 0
        %2240 = vmatpush1.bf16.xpose.msra.mxu0 0
        %2241 = vmatprep.subr.bf16.mxu0 0
        %2242 = vmatpush1.bf16.xpose.msra.mxu0 0
        %2243 = vmatprep.subr.bf16.mxu0 0
        %2244 = vmatpush1.bf16.xpose.msra.mxu0 0
        %2245 = vmatprep.subr.bf16.mxu0 0
        %2246 = vmatpush1.bf16.xpose.msra.mxu0 0
        %2247 = vmatprep.subr.bf16.mxu0 0
        %2248 = vmatpush1.bf16.xpose.msra.mxu0 0
        %2249 = vmatprep.subr.bf16.mxu0 0
        %2250 = vmatpush1.bf16.xpose.msra.mxu0 0
        %2251 = vmatprep.mubr.bf16.mxu0 0
        %2252 = vmatmul.mubr.bf16.gmra.mrb[0].mxu0 %v2213
        %v2253 = vpop.f32.mrb[0].mxu0
        %v2254 = vadd.f32 0.0, %v2253
        %v2255 = vpop.f32.mrb[0].mxu0
        %v2256 = vpop.f32.mrb[0].mxu0
        %v2257 = vpop.f32.mrb[0].mxu0
        %2258 = vdwg.mxu0
        %2259 = vmatprep.subr.bf16.mxu0 0
        %2260 = vmatpush1.bf16.xpose.msra.mxu0 %v2216
        %2261 = vmatprep.subr.bf16.mxu0 0
        %2262 = vmatpush1.bf16.xpose.msra.mxu0 0
        %2263 = vmatprep.subr.bf16.mxu0 0
        %2264 = vmatpush1.bf16.xpose.msra.mxu0 0
        %2265 = vmatprep.subr.bf16.mxu0 0
        %2266 = vmatpush1.bf16.xpose.msra.mxu0 0
        %2267 = vmatprep.subr.bf16.mxu0 0
        %2268 = vmatpush1.bf16.xpose.msra.mxu0 0
        %2269 = vmatprep.subr.bf16.mxu0 0
        %2270 = vmatpush1.bf16.xpose.msra.mxu0 0
        %2271 = vmatprep.subr.bf16.mxu0 0
        %2272 = vmatpush1.bf16.xpose.msra.mxu0 0
        %2273 = vmatprep.subr.bf16.mxu0 0
        %2274 = vmatpush1.bf16.xpose.msra.mxu0 0
        %2275 = vmatprep.subr.bf16.mxu0 0
        %2276 = vmatpush1.bf16.xpose.msra.mxu0 0
        %2277 = vmatprep.subr.bf16.mxu0 0
        %2278 = vmatpush1.bf16.xpose.msra.mxu0 0
        %2279 = vmatprep.subr.bf16.mxu0 0
        %2280 = vmatpush1.bf16.xpose.msra.mxu0 0
        %2281 = vmatprep.subr.bf16.mxu0 0
        %2282 = vmatpush1.bf16.xpose.msra.mxu0 0
        %2283 = vmatprep.subr.bf16.mxu0 0
        %2284 = vmatpush1.bf16.xpose.msra.mxu0 0
        %2285 = vmatprep.subr.bf16.mxu0 0
        %2286 = vmatpush1.bf16.xpose.msra.mxu0 0
        %2287 = vmatprep.subr.bf16.mxu0 0
        %2288 = vmatpush1.bf16.xpose.msra.mxu0 0
        %2289 = vmatprep.subr.bf16.mxu0 0
        %2290 = vmatpush1.bf16.xpose.msra.mxu0 0
        %2291 = vmatprep.mubr.bf16.mxu0 0
        %2292 = vmatmul.mubr.bf16.gmra.mrb[0].mxu0 %v2214
        %v2293 = vpop.f32.mrb[0].mxu0
        %v2294 = vadd.f32 0.0, %v2293
        %v2295 = vpop.f32.mrb[0].mxu0
        %v2296 = vpop.f32.mrb[0].mxu0
        %v2297 = vpop.f32.mrb[0].mxu0
        %2298 = vdwg.mxu0
        %v2299 = vsel %vm1305, 1, 0
        %vm2300 = vcmp.eq.s32.totalorder %v2299, 1
        %v2301 = vsel %vm2300, %v2254, -1e+30
        %v2302 = vsel %vm2300, %v2294, -1e+30
        %vm2303 = vcmask 64512
        %v2304 = vsel %vm2303, %v2301, -inf
        %2305 = vmax.xlane.f32.xlu0 %v2304
        %v2306 = vpop.xlane.xlu0 %2305
        %v2307 = vsel %vm2303, %v2302, -inf
        %2308 = vmax.xlane.f32.xlu0 %v2307
        %v2309 = vpop.xlane.xlu0 %2308
        %v2310 = vsub.f32 %v2301, %v2306
        %v2311 = vsub.f32 %v2302, %v2309
        %v2312 = vmul.f32 %v2310, 1.442695
        %v2313 = vpow.pop %v2312
        %v2314 = vmul.f32 %v2311, 1.442695
        %v2315 = vpow.pop %v2314
        %v2316 = vsel %vm2303, %v2313, 0.0
        %2317 = vadd.xlane.f32.xlu0 %v2316
        %v2318 = vpop.xlane.xlu0 %2317
        %v2319 = vsel %vm2303, %v2315, 0.0
        %2320 = vadd.xlane.f32.xlu0 %v2319
        %v2321 = vpop.xlane.xlu0 %2320
        %v2322 = vrcp.pop %v2318
        %v2323 = vmul.f32 %v2313, %v2322
        %v2324 = vrcp.pop %v2321
        %v2325 = vmul.f32 %v2315, %v2324
        %v2326 = vpack.c.bf16 %v2323, %v2323
        %v2327 = vpack.c.bf16 %v2325, %v2325
        %v2329 = vsel %vm2303, %v2326, 0
        %vm2331 = vcmask 1043456
        %v2333 = vsel %vm2331, %v2217, 0
        %2335 = vmatprep.subr.bf16.mxu0 0
        %2336 = vmatpush1.bf16.msra.mxu0 %v2333
        %2337 = vmatprep.subr.bf16.mxu0 0
        %2338 = vmatpush1.bf16.msra.mxu0 0
        %2339 = vmatprep.subr.bf16.mxu0 0
        %2340 = vmatpush1.bf16.msra.mxu0 0
        %2341 = vmatprep.subr.bf16.mxu0 0
        %2342 = vmatpush1.bf16.msra.mxu0 0
        %2343 = vmatprep.subr.bf16.mxu0 0
        %2344 = vmatpush1.bf16.msra.mxu0 0
        %2345 = vmatprep.subr.bf16.mxu0 0
        %2346 = vmatpush1.bf16.msra.mxu0 0
        %2347 = vmatprep.subr.bf16.mxu0 0
        %2348 = vmatpush1.bf16.msra.mxu0 0
        %2349 = vmatprep.subr.bf16.mxu0 0
        %2350 = vmatpush1.bf16.msra.mxu0 0
        %2351 = vmatprep.subr.bf16.mxu0 0
        %2352 = vmatpush1.bf16.msra.mxu0 0
        %2353 = vmatprep.subr.bf16.mxu0 0
        %2354 = vmatpush1.bf16.msra.mxu0 0
        %2355 = vmatprep.subr.bf16.mxu0 0
        %2356 = vmatpush1.bf16.msra.mxu0 0
        %2357 = vmatprep.subr.bf16.mxu0 0
        %2358 = vmatpush1.bf16.msra.mxu0 0
        %2359 = vmatprep.subr.bf16.mxu0 0
        %2360 = vmatpush1.bf16.msra.mxu0 0
        %2361 = vmatprep.subr.bf16.mxu0 0
        %2362 = vmatpush1.bf16.msra.mxu0 0
        %2363 = vmatprep.subr.bf16.mxu0 0
        %2364 = vmatpush1.bf16.msra.mxu0 0
        %2365 = vmatprep.subr.bf16.mxu0 0
        %2366 = vmatpush1.bf16.msra.mxu0 0
        %2367 = vmatprep.mubr.bf16.mxu0 0
        %2368 = vmatmul.mubr.bf16.gmra.mrb[0].mxu0 %v2329
        %v2369 = vpop.f32.mrb[0].mxu0
        %v2370 = vadd.f32 0.0, %v2369
        %v2371 = vpop.f32.mrb[0].mxu0
        %v2372 = vpop.f32.mrb[0].mxu0
        %v2373 = vpop.f32.mrb[0].mxu0
        %2374 = vdwg.mxu0
        %v2376 = vsel %vm2303, %v2327, 0
        %v2379 = vsel %vm2331, %v2218, 0
        %2381 = vmatprep.subr.bf16.mxu0 0
        %2382 = vmatpush1.bf16.msra.mxu0 %v2379
        %2383 = vmatprep.subr.bf16.mxu0 0
        %2384 = vmatpush1.bf16.msra.mxu0 0
        %2385 = vmatprep.subr.bf16.mxu0 0
        %2386 = vmatpush1.bf16.msra.mxu0 0
        %2387 = vmatprep.subr.bf16.mxu0 0
        %2388 = vmatpush1.bf16.msra.mxu0 0
        %2389 = vmatprep.subr.bf16.mxu0 0
        %2390 = vmatpush1.bf16.msra.mxu0 0
        %2391 = vmatprep.subr.bf16.mxu0 0
        %2392 = vmatpush1.bf16.msra.mxu0 0
        %2393 = vmatprep.subr.bf16.mxu0 0
        %2394 = vmatpush1.bf16.msra.mxu0 0
        %2395 = vmatprep.subr.bf16.mxu0 0
        %2396 = vmatpush1.bf16.msra.mxu0 0
        %2397 = vmatprep.subr.bf16.mxu0 0
        %2398 = vmatpush1.bf16.msra.mxu0 0
        %2399 = vmatprep.subr.bf16.mxu0 0
        %2400 = vmatpush1.bf16.msra.mxu0 0
        %2401 = vmatprep.subr.bf16.mxu0 0
        %2402 = vmatpush1.bf16.msra.mxu0 0
        %2403 = vmatprep.subr.bf16.mxu0 0
        %2404 = vmatpush1.bf16.msra.mxu0 0
        %2405 = vmatprep.subr.bf16.mxu0 0
        %2406 = vmatpush1.bf16.msra.mxu0 0
        %2407 = vmatprep.subr.bf16.mxu0 0
        %2408 = vmatpush1.bf16.msra.mxu0 0
        %2409 = vmatprep.subr.bf16.mxu0 0
        %2410 = vmatpush1.bf16.msra.mxu0 0
        %2411 = vmatprep.subr.bf16.mxu0 0
        %2412 = vmatpush1.bf16.msra.mxu0 0
        %2413 = vmatprep.mubr.bf16.mxu0 0
        %2414 = vmatmul.mubr.bf16.gmra.mrb[0].mxu0 %v2376
        %v2415 = vpop.f32.mrb[0].mxu0
        %v2416 = vadd.f32 0.0, %v2415
        %v2417 = vpop.f32.mrb[0].mxu0
        %v2418 = vpop.f32.mrb[0].mxu0
        %v2419 = vpop.f32.mrb[0].mxu0
        %2420 = vdwg.mxu0
        %v2421 = vpack.c.bf16 %v2206, %v2206
        %v2422 = vpack.c.bf16 %v2210, %v2210
        %v2423 = vpack.c.bf16 %v2070, %v2070
        %v2424 = vpack.c.bf16 %v2074, %v2074
        %v2425 = vpack.c.bf16 %v2156, %v2156
        %v2426 = vpack.c.bf16 %v2160, %v2160
        %2427 = vmatprep.subr.bf16.mxu0 0
        %2428 = vmatpush1.bf16.xpose.msra.mxu0 %v2423
        %2429 = vmatprep.subr.bf16.mxu0 0
        %2430 = vmatpush1.bf16.xpose.msra.mxu0 0
        %2431 = vmatprep.subr.bf16.mxu0 0
        %2432 = vmatpush1.bf16.xpose.msra.mxu0 0
        %2433 = vmatprep.subr.bf16.mxu0 0
        %2434 = vmatpush1.bf16.xpose.msra.mxu0 0
        %2435 = vmatprep.subr.bf16.mxu0 0
        %2436 = vmatpush1.bf16.xpose.msra.mxu0 0
        %2437 = vmatprep.subr.bf16.mxu0 0
        %2438 = vmatpush1.bf16.xpose.msra.mxu0 0
        %2439 = vmatprep.subr.bf16.mxu0 0
        %2440 = vmatpush1.bf16.xpose.msra.mxu0 0
        %2441 = vmatprep.subr.bf16.mxu0 0
        %2442 = vmatpush1.bf16.xpose.msra.mxu0 0
        %2443 = vmatprep.subr.bf16.mxu0 0
        %2444 = vmatpush1.bf16.xpose.msra.mxu0 0
        %2445 = vmatprep.subr.bf16.mxu0 0
        %2446 = vmatpush1.bf16.xpose.msra.mxu0 0
        %2447 = vmatprep.subr.bf16.mxu0 0
        %2448 = vmatpush1.bf16.xpose.msra.mxu0 0
        %2449 = vmatprep.subr.bf16.mxu0 0
        %2450 = vmatpush1.bf16.xpose.msra.mxu0 0
        %2451 = vmatprep.subr.bf16.mxu0 0
        %2452 = vmatpush1.bf16.xpose.msra.mxu0 0
        %2453 = vmatprep.subr.bf16.mxu0 0
        %2454 = vmatpush1.bf16.xpose.msra.mxu0 0
        %2455 = vmatprep.subr.bf16.mxu0 0
        %2456 = vmatpush1.bf16.xpose.msra.mxu0 0
        %2457 = vmatprep.subr.bf16.mxu0 0
        %2458 = vmatpush1.bf16.xpose.msra.mxu0 0
        %2459 = vmatprep.mubr.bf16.mxu0 0
        %2460 = vmatmul.mubr.bf16.gmra.mrb[0].mxu0 %v2421
        %v2461 = vpop.f32.mrb[0].mxu0
        %v2462 = vadd.f32 0.0, %v2461
        %v2463 = vpop.f32.mrb[0].mxu0
        %v2464 = vpop.f32.mrb[0].mxu0
        %v2465 = vpop.f32.mrb[0].mxu0
        %2466 = vdwg.mxu0
        %2467 = vmatprep.subr.bf16.mxu0 0
        %2468 = vmatpush1.bf16.xpose.msra.mxu0 %v2424
        %2469 = vmatprep.subr.bf16.mxu0 0
        %2470 = vmatpush1.bf16.xpose.msra.mxu0 0
        %2471 = vmatprep.subr.bf16.mxu0 0
        %2472 = vmatpush1.bf16.xpose.msra.mxu0 0
        %2473 = vmatprep.subr.bf16.mxu0 0
        %2474 = vmatpush1.bf16.xpose.msra.mxu0 0
        %2475 = vmatprep.subr.bf16.mxu0 0
        %2476 = vmatpush1.bf16.xpose.msra.mxu0 0
        %2477 = vmatprep.subr.bf16.mxu0 0
        %2478 = vmatpush1.bf16.xpose.msra.mxu0 0
        %2479 = vmatprep.subr.bf16.mxu0 0
        %2480 = vmatpush1.bf16.xpose.msra.mxu0 0
        %2481 = vmatprep.subr.bf16.mxu0 0
        %2482 = vmatpush1.bf16.xpose.msra.mxu0 0
        %2483 = vmatprep.subr.bf16.mxu0 0
        %2484 = vmatpush1.bf16.xpose.msra.mxu0 0
        %2485 = vmatprep.subr.bf16.mxu0 0
        %2486 = vmatpush1.bf16.xpose.msra.mxu0 0
        %2487 = vmatprep.subr.bf16.mxu0 0
        %2488 = vmatpush1.bf16.xpose.msra.mxu0 0
        %2489 = vmatprep.subr.bf16.mxu0 0
        %2490 = vmatpush1.bf16.xpose.msra.mxu0 0
        %2491 = vmatprep.subr.bf16.mxu0 0
        %2492 = vmatpush1.bf16.xpose.msra.mxu0 0
        %2493 = vmatprep.subr.bf16.mxu0 0
        %2494 = vmatpush1.bf16.xpose.msra.mxu0 0
        %2495 = vmatprep.subr.bf16.mxu0 0
        %2496 = vmatpush1.bf16.xpose.msra.mxu0 0
        %2497 = vmatprep.subr.bf16.mxu0 0
        %2498 = vmatpush1.bf16.xpose.msra.mxu0 0
        %2499 = vmatprep.mubr.bf16.mxu0 0
        %2500 = vmatmul.mubr.bf16.gmra.mrb[0].mxu0 %v2422
        %v2501 = vpop.f32.mrb[0].mxu0
        %v2502 = vadd.f32 0.0, %v2501
        %v2503 = vpop.f32.mrb[0].mxu0
        %v2504 = vpop.f32.mrb[0].mxu0
        %v2505 = vpop.f32.mrb[0].mxu0
        %2506 = vdwg.mxu0
        %v2507 = vsel %vm2300, %v2462, -1e+30
        %v2508 = vsel %vm2300, %v2502, -1e+30
        %v2509 = vsel %vm2303, %v2507, -inf
        %2510 = vmax.xlane.f32.xlu0 %v2509
        %v2511 = vpop.xlane.xlu0 %2510
        %v2512 = vsel %vm2303, %v2508, -inf
        %2513 = vmax.xlane.f32.xlu0 %v2512
        %v2514 = vpop.xlane.xlu0 %2513
        %v2515 = vsub.f32 %v2507, %v2511
        %v2516 = vsub.f32 %v2508, %v2514
        %v2517 = vmul.f32 %v2515, 1.442695
        %v2518 = vpow.pop %v2517
        %v2519 = vmul.f32 %v2516, 1.442695
        %v2520 = vpow.pop %v2519
        %v2521 = vsel %vm2303, %v2518, 0.0
        %2522 = vadd.xlane.f32.xlu0 %v2521
        %v2523 = vpop.xlane.xlu0 %2522
        %v2524 = vsel %vm2303, %v2520, 0.0
        %2525 = vadd.xlane.f32.xlu0 %v2524
        %v2526 = vpop.xlane.xlu0 %2525
        %v2527 = vrcp.pop %v2523
        %v2528 = vmul.f32 %v2518, %v2527
        %v2529 = vrcp.pop %v2526
        %v2530 = vmul.f32 %v2520, %v2529
        %v2531 = vpack.c.bf16 %v2528, %v2528
        %v2532 = vpack.c.bf16 %v2530, %v2530
        %v2534 = vsel %vm2303, %v2531, 0
        %v2537 = vsel %vm2331, %v2425, 0
        %2539 = vmatprep.subr.bf16.mxu0 0
        %2540 = vmatpush1.bf16.msra.mxu0 %v2537
        %2541 = vmatprep.subr.bf16.mxu0 0
        %2542 = vmatpush1.bf16.msra.mxu0 0
        %2543 = vmatprep.subr.bf16.mxu0 0
        %2544 = vmatpush1.bf16.msra.mxu0 0
        %2545 = vmatprep.subr.bf16.mxu0 0
        %2546 = vmatpush1.bf16.msra.mxu0 0
        %2547 = vmatprep.subr.bf16.mxu0 0
        %2548 = vmatpush1.bf16.msra.mxu0 0
        %2549 = vmatprep.subr.bf16.mxu0 0
        %2550 = vmatpush1.bf16.msra.mxu0 0
        %2551 = vmatprep.subr.bf16.mxu0 0
        %2552 = vmatpush1.bf16.msra.mxu0 0
        %2553 = vmatprep.subr.bf16.mxu0 0
        %2554 = vmatpush1.bf16.msra.mxu0 0
        %2555 = vmatprep.subr.bf16.mxu0 0
        %2556 = vmatpush1.bf16.msra.mxu0 0
        %2557 = vmatprep.subr.bf16.mxu0 0
        %2558 = vmatpush1.bf16.msra.mxu0 0
        %2559 = vmatprep.subr.bf16.mxu0 0
        %2560 = vmatpush1.bf16.msra.mxu0 0
        %2561 = vmatprep.subr.bf16.mxu0 0
        %2562 = vmatpush1.bf16.msra.mxu0 0
        %2563 = vmatprep.subr.bf16.mxu0 0
        %2564 = vmatpush1.bf16.msra.mxu0 0
        %2565 = vmatprep.subr.bf16.mxu0 0
        %2566 = vmatpush1.bf16.msra.mxu0 0
        %2567 = vmatprep.subr.bf16.mxu0 0
        %2568 = vmatpush1.bf16.msra.mxu0 0
        %2569 = vmatprep.subr.bf16.mxu0 0
        %2570 = vmatpush1.bf16.msra.mxu0 0
        %2571 = vmatprep.mubr.bf16.mxu0 0
        %2572 = vmatmul.mubr.bf16.gmra.mrb[0].mxu0 %v2534
        %v2573 = vpop.f32.mrb[0].mxu0
        %v2574 = vadd.f32 0.0, %v2573
        %v2575 = vpop.f32.mrb[0].mxu0
        %v2576 = vpop.f32.mrb[0].mxu0
        %v2577 = vpop.f32.mrb[0].mxu0
        %2578 = vdwg.mxu0
        %v2580 = vsel %vm2303, %v2532, 0
        %v2583 = vsel %vm2331, %v2426, 0
        %2585 = vmatprep.subr.bf16.mxu0 0
        %2586 = vmatpush1.bf16.msra.mxu0 %v2583
        %2587 = vmatprep.subr.bf16.mxu0 0
        %2588 = vmatpush1.bf16.msra.mxu0 0
        %2589 = vmatprep.subr.bf16.mxu0 0
        %2590 = vmatpush1.bf16.msra.mxu0 0
        %2591 = vmatprep.subr.bf16.mxu0 0
        %2592 = vmatpush1.bf16.msra.mxu0 0
        %2593 = vmatprep.subr.bf16.mxu0 0
        %2594 = vmatpush1.bf16.msra.mxu0 0
        %2595 = vmatprep.subr.bf16.mxu0 0
        %2596 = vmatpush1.bf16.msra.mxu0 0
        %2597 = vmatprep.subr.bf16.mxu0 0
        %2598 = vmatpush1.bf16.msra.mxu0 0
        %2599 = vmatprep.subr.bf16.mxu0 0
        %2600 = vmatpush1.bf16.msra.mxu0 0
        %2601 = vmatprep.subr.bf16.mxu0 0
        %2602 = vmatpush1.bf16.msra.mxu0 0
        %2603 = vmatprep.subr.bf16.mxu0 0
        %2604 = vmatpush1.bf16.msra.mxu0 0
        %2605 = vmatprep.subr.bf16.mxu0 0
        %2606 = vmatpush1.bf16.msra.mxu0 0
        %2607 = vmatprep.subr.bf16.mxu0 0
        %2608 = vmatpush1.bf16.msra.mxu0 0
        %2609 = vmatprep.subr.bf16.mxu0 0
        %2610 = vmatpush1.bf16.msra.mxu0 0
        %2611 = vmatprep.subr.bf16.mxu0 0
        %2612 = vmatpush1.bf16.msra.mxu0 0
        %2613 = vmatprep.subr.bf16.mxu0 0
        %2614 = vmatpush1.bf16.msra.mxu0 0
        %2615 = vmatprep.subr.bf16.mxu0 0
        %2616 = vmatpush1.bf16.msra.mxu0 0
        %2617 = vmatprep.mubr.bf16.mxu0 0
        %2618 = vmatmul.mubr.bf16.gmra.mrb[0].mxu0 %v2580
        %v2619 = vpop.f32.mrb[0].mxu0
        %v2620 = vadd.f32 0.0, %v2619
        %v2621 = vpop.f32.mrb[0].mxu0
        %v2622 = vpop.f32.mrb[0].mxu0
        %v2623 = vpop.f32.mrb[0].mxu0
        %2624 = vdwg.mxu0
        %v2625 = vpack.c.bf16 %v2207, %v2207
        %v2626 = vpack.c.bf16 %v2211, %v2211
        %v2627 = vpack.c.bf16 %v2111, %v2111
        %v2628 = vpack.c.bf16 %v2115, %v2115
        %v2629 = vpack.c.bf16 %v2197, %v2197
        %v2630 = vpack.c.bf16 %v2201, %v2201
        %2631 = vmatprep.subr.bf16.mxu0 0
        %2632 = vmatpush1.bf16.xpose.msra.mxu0 %v2627
        %2633 = vmatprep.subr.bf16.mxu0 0
        %2634 = vmatpush1.bf16.xpose.msra.mxu0 0
        %2635 = vmatprep.subr.bf16.mxu0 0
        %2636 = vmatpush1.bf16.xpose.msra.mxu0 0
        %2637 = vmatprep.subr.bf16.mxu0 0
        %2638 = vmatpush1.bf16.xpose.msra.mxu0 0
        %2639 = vmatprep.subr.bf16.mxu0 0
        %2640 = vmatpush1.bf16.xpose.msra.mxu0 0
        %2641 = vmatprep.subr.bf16.mxu0 0
        %2642 = vmatpush1.bf16.xpose.msra.mxu0 0
        %2643 = vmatprep.subr.bf16.mxu0 0
        %2644 = vmatpush1.bf16.xpose.msra.mxu0 0
        %2645 = vmatprep.subr.bf16.mxu0 0
        %2646 = vmatpush1.bf16.xpose.msra.mxu0 0
        %2647 = vmatprep.subr.bf16.mxu0 0
        %2648 = vmatpush1.bf16.xpose.msra.mxu0 0
        %2649 = vmatprep.subr.bf16.mxu0 0
        %2650 = vmatpush1.bf16.xpose.msra.mxu0 0
        %2651 = vmatprep.subr.bf16.mxu0 0
        %2652 = vmatpush1.bf16.xpose.msra.mxu0 0
        %2653 = vmatprep.subr.bf16.mxu0 0
        %2654 = vmatpush1.bf16.xpose.msra.mxu0 0
        %2655 = vmatprep.subr.bf16.mxu0 0
        %2656 = vmatpush1.bf16.xpose.msra.mxu0 0
        %2657 = vmatprep.subr.bf16.mxu0 0
        %2658 = vmatpush1.bf16.xpose.msra.mxu0 0
        %2659 = vmatprep.subr.bf16.mxu0 0
        %2660 = vmatpush1.bf16.xpose.msra.mxu0 0
        %2661 = vmatprep.subr.bf16.mxu0 0
        %2662 = vmatpush1.bf16.xpose.msra.mxu0 0
        %2663 = vmatprep.mubr.bf16.mxu0 0
        %2664 = vmatmul.mubr.bf16.gmra.mrb[0].mxu0 %v2625
        %v2665 = vpop.f32.mrb[0].mxu0
        %v2666 = vadd.f32 0.0, %v2665
        %v2667 = vpop.f32.mrb[0].mxu0
        %v2668 = vpop.f32.mrb[0].mxu0
        %v2669 = vpop.f32.mrb[0].mxu0
        %2670 = vdwg.mxu0
        %2671 = vmatprep.subr.bf16.mxu0 0
        %2672 = vmatpush1.bf16.xpose.msra.mxu0 %v2628
        %2673 = vmatprep.subr.bf16.mxu0 0
        %2674 = vmatpush1.bf16.xpose.msra.mxu0 0
        %2675 = vmatprep.subr.bf16.mxu0 0
        %2676 = vmatpush1.bf16.xpose.msra.mxu0 0
        %2677 = vmatprep.subr.bf16.mxu0 0
        %2678 = vmatpush1.bf16.xpose.msra.mxu0 0
        %2679 = vmatprep.subr.bf16.mxu0 0
        %2680 = vmatpush1.bf16.xpose.msra.mxu0 0
        %2681 = vmatprep.subr.bf16.mxu0 0
        %2682 = vmatpush1.bf16.xpose.msra.mxu0 0
        %2683 = vmatprep.subr.bf16.mxu0 0
        %2684 = vmatpush1.bf16.xpose.msra.mxu0 0
        %2685 = vmatprep.subr.bf16.mxu0 0
        %2686 = vmatpush1.bf16.xpose.msra.mxu0 0
        %2687 = vmatprep.subr.bf16.mxu0 0
        %2688 = vmatpush1.bf16.xpose.msra.mxu0 0
        %2689 = vmatprep.subr.bf16.mxu0 0
        %2690 = vmatpush1.bf16.xpose.msra.mxu0 0
        %2691 = vmatprep.subr.bf16.mxu0 0
        %2692 = vmatpush1.bf16.xpose.msra.mxu0 0
        %2693 = vmatprep.subr.bf16.mxu0 0
        %2694 = vmatpush1.bf16.xpose.msra.mxu0 0
        %2695 = vmatprep.subr.bf16.mxu0 0
        %2696 = vmatpush1.bf16.xpose.msra.mxu0 0
        %2697 = vmatprep.subr.bf16.mxu0 0
        %2698 = vmatpush1.bf16.xpose.msra.mxu0 0
        %2699 = vmatprep.subr.bf16.mxu0 0
        %2700 = vmatpush1.bf16.xpose.msra.mxu0 0
        %2701 = vmatprep.subr.bf16.mxu0 0
        %2702 = vmatpush1.bf16.xpose.msra.mxu0 0
        %2703 = vmatprep.mubr.bf16.mxu0 0
        %2704 = vmatmul.mubr.bf16.gmra.mrb[0].mxu0 %v2626
        %v2705 = vpop.f32.mrb[0].mxu0
        %v2706 = vadd.f32 0.0, %v2705
        %v2707 = vpop.f32.mrb[0].mxu0
        %v2708 = vpop.f32.mrb[0].mxu0
        %v2709 = vpop.f32.mrb[0].mxu0
        %2710 = vdwg.mxu0
        %v2711 = vsel %vm2300, %v2666, -1e+30
        %v2712 = vsel %vm2300, %v2706, -1e+30
        %v2713 = vsel %vm2303, %v2711, -inf
        %2714 = vmax.xlane.f32.xlu0 %v2713
        %v2715 = vpop.xlane.xlu0 %2714
        %v2716 = vsel %vm2303, %v2712, -inf
        %2717 = vmax.xlane.f32.xlu0 %v2716
        %v2718 = vpop.xlane.xlu0 %2717
        %v2719 = vsub.f32 %v2711, %v2715
        %v2720 = vsub.f32 %v2712, %v2718
        %v2721 = vmul.f32 %v2719, 1.442695
        %v2722 = vpow.pop %v2721
        %v2723 = vmul.f32 %v2720, 1.442695
        %v2724 = vpow.pop %v2723
        %v2725 = vsel %vm2303, %v2722, 0.0
        %2726 = vadd.xlane.f32.xlu0 %v2725
        %v2727 = vpop.xlane.xlu0 %2726
        %v2728 = vsel %vm2303, %v2724, 0.0
        %2729 = vadd.xlane.f32.xlu0 %v2728
        %v2730 = vpop.xlane.xlu0 %2729
        %v2731 = vrcp.pop %v2727
        %v2732 = vmul.f32 %v2722, %v2731
        %v2733 = vrcp.pop %v2730
        %v2734 = vmul.f32 %v2724, %v2733
        %v2735 = vpack.c.bf16 %v2732, %v2732
        %v2736 = vpack.c.bf16 %v2734, %v2734
        %v2738 = vsel %vm2303, %v2735, 0
        %v2741 = vsel %vm2331, %v2629, 0
        %2743 = vmatprep.subr.bf16.mxu0 0
        %2744 = vmatpush1.bf16.msra.mxu0 %v2741
        %2745 = vmatprep.subr.bf16.mxu0 0
        %2746 = vmatpush1.bf16.msra.mxu0 0
        %2747 = vmatprep.subr.bf16.mxu0 0
        %2748 = vmatpush1.bf16.msra.mxu0 0
        %2749 = vmatprep.subr.bf16.mxu0 0
        %2750 = vmatpush1.bf16.msra.mxu0 0
        %2751 = vmatprep.subr.bf16.mxu0 0
        %2752 = vmatpush1.bf16.msra.mxu0 0
        %2753 = vmatprep.subr.bf16.mxu0 0
        %2754 = vmatpush1.bf16.msra.mxu0 0
        %2755 = vmatprep.subr.bf16.mxu0 0
        %2756 = vmatpush1.bf16.msra.mxu0 0
        %2757 = vmatprep.subr.bf16.mxu0 0
        %2758 = vmatpush1.bf16.msra.mxu0 0
        %2759 = vmatprep.subr.bf16.mxu0 0
        %2760 = vmatpush1.bf16.msra.mxu0 0
        %2761 = vmatprep.subr.bf16.mxu0 0
        %2762 = vmatpush1.bf16.msra.mxu0 0
        %2763 = vmatprep.subr.bf16.mxu0 0
        %2764 = vmatpush1.bf16.msra.mxu0 0
        %2765 = vmatprep.subr.bf16.mxu0 0
        %2766 = vmatpush1.bf16.msra.mxu0 0
        %2767 = vmatprep.subr.bf16.mxu0 0
        %2768 = vmatpush1.bf16.msra.mxu0 0
        %2769 = vmatprep.subr.bf16.mxu0 0
        %2770 = vmatpush1.bf16.msra.mxu0 0
        %2771 = vmatprep.subr.bf16.mxu0 0
        %2772 = vmatpush1.bf16.msra.mxu0 0
        %2773 = vmatprep.subr.bf16.mxu0 0
        %2774 = vmatpush1.bf16.msra.mxu0 0
        %2775 = vmatprep.mubr.bf16.mxu0 0
        %2776 = vmatmul.mubr.bf16.gmra.mrb[0].mxu0 %v2738
        %v2777 = vpop.f32.mrb[0].mxu0
        %v2778 = vadd.f32 0.0, %v2777
        %v2779 = vpop.f32.mrb[0].mxu0
        %v2780 = vpop.f32.mrb[0].mxu0
        %v2781 = vpop.f32.mrb[0].mxu0
        %2782 = vdwg.mxu0
        %v2784 = vsel %vm2303, %v2736, 0
        %v2787 = vsel %vm2331, %v2630, 0
        %2789 = vmatprep.subr.bf16.mxu0 0
        %2790 = vmatpush1.bf16.msra.mxu0 %v2787
        %2791 = vmatprep.subr.bf16.mxu0 0
        %2792 = vmatpush1.bf16.msra.mxu0 0
        %2793 = vmatprep.subr.bf16.mxu0 0
        %2794 = vmatpush1.bf16.msra.mxu0 0
        %2795 = vmatprep.subr.bf16.mxu0 0
        %2796 = vmatpush1.bf16.msra.mxu0 0
        %2797 = vmatprep.subr.bf16.mxu0 0
        %2798 = vmatpush1.bf16.msra.mxu0 0
        %2799 = vmatprep.subr.bf16.mxu0 0
        %2800 = vmatpush1.bf16.msra.mxu0 0
        %2801 = vmatprep.subr.bf16.mxu0 0
        %2802 = vmatpush1.bf16.msra.mxu0 0
        %2803 = vmatprep.subr.bf16.mxu0 0
        %2804 = vmatpush1.bf16.msra.mxu0 0
        %2805 = vmatprep.subr.bf16.mxu0 0
        %2806 = vmatpush1.bf16.msra.mxu0 0
        %2807 = vmatprep.subr.bf16.mxu0 0
        %2808 = vmatpush1.bf16.msra.mxu0 0
        %2809 = vmatprep.subr.bf16.mxu0 0
        %2810 = vmatpush1.bf16.msra.mxu0 0
        %2811 = vmatprep.subr.bf16.mxu0 0
        %2812 = vmatpush1.bf16.msra.mxu0 0
        %2813 = vmatprep.subr.bf16.mxu0 0
        %2814 = vmatpush1.bf16.msra.mxu0 0
        %2815 = vmatprep.subr.bf16.mxu0 0
        %2816 = vmatpush1.bf16.msra.mxu0 0
        %2817 = vmatprep.subr.bf16.mxu0 0
        %2818 = vmatpush1.bf16.msra.mxu0 0
        %2819 = vmatprep.subr.bf16.mxu0 0
        %2820 = vmatpush1.bf16.msra.mxu0 0
        %2821 = vmatprep.mubr.bf16.mxu0 0
        %2822 = vmatmul.mubr.bf16.gmra.mrb[0].mxu0 %v2784
        %v2823 = vpop.f32.mrb[0].mxu0
        %v2824 = vadd.f32 0.0, %v2823
        %v2825 = vpop.f32.mrb[0].mxu0
        %v2826 = vpop.f32.mrb[0].mxu0
        %v2827 = vpop.f32.mrb[0].mxu0
        %2828 = vdwg.mxu0
        %v2829 = vpack.c.bf16 %v2208, %v2208
        %v2830 = vpack.c.bf16 %v2212, %v2212
        %v2831 = vpack.c.bf16 %v2113, %v2113
        %v2832 = vpack.c.bf16 %v2117, %v2117
        %v2833 = vpack.c.bf16 %v2199, %v2199
        %v2834 = vpack.c.bf16 %v2203, %v2203
        %2835 = vmatprep.subr.bf16.mxu0 0
        %2836 = vmatpush1.bf16.xpose.msra.mxu0 %v2831
        %2837 = vmatprep.subr.bf16.mxu0 0
        %2838 = vmatpush1.bf16.xpose.msra.mxu0 0
        %2839 = vmatprep.subr.bf16.mxu0 0
        %2840 = vmatpush1.bf16.xpose.msra.mxu0 0
        %2841 = vmatprep.subr.bf16.mxu0 0
        %2842 = vmatpush1.bf16.xpose.msra.mxu0 0
        %2843 = vmatprep.subr.bf16.mxu0 0
        %2844 = vmatpush1.bf16.xpose.msra.mxu0 0
        %2845 = vmatprep.subr.bf16.mxu0 0
        %2846 = vmatpush1.bf16.xpose.msra.mxu0 0
        %2847 = vmatprep.subr.bf16.mxu0 0
        %2848 = vmatpush1.bf16.xpose.msra.mxu0 0
        %2849 = vmatprep.subr.bf16.mxu0 0
        %2850 = vmatpush1.bf16.xpose.msra.mxu0 0
        %2851 = vmatprep.subr.bf16.mxu0 0
        %2852 = vmatpush1.bf16.xpose.msra.mxu0 0
        %2853 = vmatprep.subr.bf16.mxu0 0
        %2854 = vmatpush1.bf16.xpose.msra.mxu0 0
        %2855 = vmatprep.subr.bf16.mxu0 0
        %2856 = vmatpush1.bf16.xpose.msra.mxu0 0
        %2857 = vmatprep.subr.bf16.mxu0 0
        %2858 = vmatpush1.bf16.xpose.msra.mxu0 0
        %2859 = vmatprep.subr.bf16.mxu0 0
        %2860 = vmatpush1.bf16.xpose.msra.mxu0 0
        %2861 = vmatprep.subr.bf16.mxu0 0
        %2862 = vmatpush1.bf16.xpose.msra.mxu0 0
        %2863 = vmatprep.subr.bf16.mxu0 0
        %2864 = vmatpush1.bf16.xpose.msra.mxu0 0
        %2865 = vmatprep.subr.bf16.mxu0 0
        %2866 = vmatpush1.bf16.xpose.msra.mxu0 0
        %2867 = vmatprep.mubr.bf16.mxu0 0
        %2868 = vmatmul.mubr.bf16.gmra.mrb[0].mxu0 %v2829
        %v2869 = vpop.f32.mrb[0].mxu0
        %v2870 = vadd.f32 0.0, %v2869
        %v2871 = vpop.f32.mrb[0].mxu0
        %v2872 = vpop.f32.mrb[0].mxu0
        %v2873 = vpop.f32.mrb[0].mxu0
        %2874 = vdwg.mxu0
        %2875 = vmatprep.subr.bf16.mxu0 0
        %2876 = vmatpush1.bf16.xpose.msra.mxu0 %v2832
        %2877 = vmatprep.subr.bf16.mxu0 0
        %2878 = vmatpush1.bf16.xpose.msra.mxu0 0
        %2879 = vmatprep.subr.bf16.mxu0 0
        %2880 = vmatpush1.bf16.xpose.msra.mxu0 0
        %2881 = vmatprep.subr.bf16.mxu0 0
        %2882 = vmatpush1.bf16.xpose.msra.mxu0 0
        %2883 = vmatprep.subr.bf16.mxu0 0
        %2884 = vmatpush1.bf16.xpose.msra.mxu0 0
        %2885 = vmatprep.subr.bf16.mxu0 0
        %2886 = vmatpush1.bf16.xpose.msra.mxu0 0
        %2887 = vmatprep.subr.bf16.mxu0 0
        %2888 = vmatpush1.bf16.xpose.msra.mxu0 0
        %2889 = vmatprep.subr.bf16.mxu0 0
        %2890 = vmatpush1.bf16.xpose.msra.mxu0 0
        %2891 = vmatprep.subr.bf16.mxu0 0
        %2892 = vmatpush1.bf16.xpose.msra.mxu0 0
        %2893 = vmatprep.subr.bf16.mxu0 0
        %2894 = vmatpush1.bf16.xpose.msra.mxu0 0
        %2895 = vmatprep.subr.bf16.mxu0 0
        %2896 = vmatpush1.bf16.xpose.msra.mxu0 0
        %2897 = vmatprep.subr.bf16.mxu0 0
        %2898 = vmatpush1.bf16.xpose.msra.mxu0 0
        %2899 = vmatprep.subr.bf16.mxu0 0
        %2900 = vmatpush1.bf16.xpose.msra.mxu0 0
        %2901 = vmatprep.subr.bf16.mxu0 0
        %2902 = vmatpush1.bf16.xpose.msra.mxu0 0
        %2903 = vmatprep.subr.bf16.mxu0 0
        %2904 = vmatpush1.bf16.xpose.msra.mxu0 0
        %2905 = vmatprep.subr.bf16.mxu0 0
        %2906 = vmatpush1.bf16.xpose.msra.mxu0 0
        %2907 = vmatprep.mubr.bf16.mxu0 0
        %2908 = vmatmul.mubr.bf16.gmra.mrb[0].mxu0 %v2830
        %v2909 = vpop.f32.mrb[0].mxu0
        %v2910 = vadd.f32 0.0, %v2909
        %v2911 = vpop.f32.mrb[0].mxu0
        %v2912 = vpop.f32.mrb[0].mxu0
        %v2913 = vpop.f32.mrb[0].mxu0
        %2914 = vdwg.mxu0
        %v2915 = vsel %vm2300, %v2870, -1e+30
        %v2916 = vsel %vm2300, %v2910, -1e+30
        %v2917 = vsel %vm2303, %v2915, -inf
        %2918 = vmax.xlane.f32.xlu0 %v2917
        %v2919 = vpop.xlane.xlu0 %2918
        %v2920 = vsel %vm2303, %v2916, -inf
        %2921 = vmax.xlane.f32.xlu0 %v2920
        %v2922 = vpop.xlane.xlu0 %2921
        %v2923 = vsub.f32 %v2915, %v2919
        %v2924 = vsub.f32 %v2916, %v2922
        %v2925 = vmul.f32 %v2923, 1.442695
        %v2926 = vpow.pop %v2925
        %v2927 = vmul.f32 %v2924, 1.442695
        %v2928 = vpow.pop %v2927
        %v2929 = vsel %vm2303, %v2926, 0.0
        %2930 = vadd.xlane.f32.xlu0 %v2929
        %v2931 = vpop.xlane.xlu0 %2930
        %v2932 = vsel %vm2303, %v2928, 0.0
        %2933 = vadd.xlane.f32.xlu0 %v2932
        %v2934 = vpop.xlane.xlu0 %2933
        %v2935 = vrcp.pop %v2931
        %v2936 = vmul.f32 %v2926, %v2935
        %v2937 = vrcp.pop %v2934
        %v2938 = vmul.f32 %v2928, %v2937
        %v2939 = vpack.c.bf16 %v2936, %v2936
        %v2940 = vpack.c.bf16 %v2938, %v2938
        %v2942 = vsel %vm2303, %v2939, 0
        %v2945 = vsel %vm2331, %v2833, 0
        %2947 = vmatprep.subr.bf16.mxu0 0
        %2948 = vmatpush1.bf16.msra.mxu0 %v2945
        %2949 = vmatprep.subr.bf16.mxu0 0
        %2950 = vmatpush1.bf16.msra.mxu0 0
        %2951 = vmatprep.subr.bf16.mxu0 0
        %2952 = vmatpush1.bf16.msra.mxu0 0
        %2953 = vmatprep.subr.bf16.mxu0 0
        %2954 = vmatpush1.bf16.msra.mxu0 0
        %2955 = vmatprep.subr.bf16.mxu0 0
        %2956 = vmatpush1.bf16.msra.mxu0 0
        %2957 = vmatprep.subr.bf16.mxu0 0
        %2958 = vmatpush1.bf16.msra.mxu0 0
        %2959 = vmatprep.subr.bf16.mxu0 0
        %2960 = vmatpush1.bf16.msra.mxu0 0
        %2961 = vmatprep.subr.bf16.mxu0 0
        %2962 = vmatpush1.bf16.msra.mxu0 0
        %2963 = vmatprep.subr.bf16.mxu0 0
        %2964 = vmatpush1.bf16.msra.mxu0 0
        %2965 = vmatprep.subr.bf16.mxu0 0
        %2966 = vmatpush1.bf16.msra.mxu0 0
        %2967 = vmatprep.subr.bf16.mxu0 0
        %2968 = vmatpush1.bf16.msra.mxu0 0
        %2969 = vmatprep.subr.bf16.mxu0 0
        %2970 = vmatpush1.bf16.msra.mxu0 0
        %2971 = vmatprep.subr.bf16.mxu0 0
        %2972 = vmatpush1.bf16.msra.mxu0 0
        %2973 = vmatprep.subr.bf16.mxu0 0
        %2974 = vmatpush1.bf16.msra.mxu0 0
        %2975 = vmatprep.subr.bf16.mxu0 0
        %2976 = vmatpush1.bf16.msra.mxu0 0
        %2977 = vmatprep.subr.bf16.mxu0 0
        %2978 = vmatpush1.bf16.msra.mxu0 0
        %2979 = vmatprep.mubr.bf16.mxu0 0
        %2980 = vmatmul.mubr.bf16.gmra.mrb[0].mxu0 %v2942
        %v2981 = vpop.f32.mrb[0].mxu0
        %v2982 = vadd.f32 0.0, %v2981
        %v2983 = vpop.f32.mrb[0].mxu0
        %v2984 = vpop.f32.mrb[0].mxu0
        %v2985 = vpop.f32.mrb[0].mxu0
        %2986 = vdwg.mxu0
        %v2988 = vsel %vm2303, %v2940, 0
        %v2991 = vsel %vm2331, %v2834, 0
        %2993 = vmatprep.subr.bf16.mxu0 0
        %2994 = vmatpush1.bf16.msra.mxu0 %v2991
        %2995 = vmatprep.subr.bf16.mxu0 0
        %2996 = vmatpush1.bf16.msra.mxu0 0
        %2997 = vmatprep.subr.bf16.mxu0 0
        %2998 = vmatpush1.bf16.msra.mxu0 0
        %2999 = vmatprep.subr.bf16.mxu0 0
        %3000 = vmatpush1.bf16.msra.mxu0 0
        %3001 = vmatprep.subr.bf16.mxu0 0
        %3002 = vmatpush1.bf16.msra.mxu0 0
        %3003 = vmatprep.subr.bf16.mxu0 0
        %3004 = vmatpush1.bf16.msra.mxu0 0
        %3005 = vmatprep.subr.bf16.mxu0 0
        %3006 = vmatpush1.bf16.msra.mxu0 0
        %3007 = vmatprep.subr.bf16.mxu0 0
        %3008 = vmatpush1.bf16.msra.mxu0 0
        %3009 = vmatprep.subr.bf16.mxu0 0
        %3010 = vmatpush1.bf16.msra.mxu0 0
        %3011 = vmatprep.subr.bf16.mxu0 0
        %3012 = vmatpush1.bf16.msra.mxu0 0
        %3013 = vmatprep.subr.bf16.mxu0 0
        %3014 = vmatpush1.bf16.msra.mxu0 0
        %3015 = vmatprep.subr.bf16.mxu0 0
        %3016 = vmatpush1.bf16.msra.mxu0 0
        %3017 = vmatprep.subr.bf16.mxu0 0
        %3018 = vmatpush1.bf16.msra.mxu0 0
        %3019 = vmatprep.subr.bf16.mxu0 0
        %3020 = vmatpush1.bf16.msra.mxu0 0
        %3021 = vmatprep.subr.bf16.mxu0 0
        %3022 = vmatpush1.bf16.msra.mxu0 0
        %3023 = vmatprep.subr.bf16.mxu0 0
        %3024 = vmatpush1.bf16.msra.mxu0 0
        %3025 = vmatprep.mubr.bf16.mxu0 0
        %3026 = vmatmul.mubr.bf16.gmra.mrb[0].mxu0 %v2988
        %v3027 = vpop.f32.mrb[0].mxu0
        %v3028 = vadd.f32 0.0, %v3027
        %v3029 = vpop.f32.mrb[0].mxu0
        %v3030 = vpop.f32.mrb[0].mxu0
        %v3031 = vpop.f32.mrb[0].mxu0
        %3032 = vdwg.mxu0
        %v3033 = vpack.c.bf16 %v2416, %v2370
        %v3034 = vpack.c.bf16 %v2620, %v2574
        %v3035 = vpack.c.bf16 %v2824, %v2778
        %v3036 = vpack.c.bf16 %v3028, %v2982
        %v3037 = vld [vmem:[%s1007] sm:$0xf]
        %v3038 = vld [vmem:[%s1007 + $0x4] sm:$0xf]
        %v3039 = vld [vmem:[%s1007 + $0x8] sm:$0xf]
        %v3040 = vld [vmem:[%s1007 + $0xc] sm:$0xf]
        %v3041 = vld [vmem:[%s1007 + $0x10] sm:$0xf]
        %v3042 = vld [vmem:[%s1007 + $0x14] sm:$0xf]
        %v3043 = vld [vmem:[%s1007 + $0x18] sm:$0xf]
        %v3044 = vld [vmem:[%s1007 + $0x1c] sm:$0xf]
        %v3045 = vld [vmem:[%s1007 + $0x20] sm:$0xf]
        %v3046 = vld [vmem:[%s1007 + $0x24] sm:$0xf]
        %v3047 = vld [vmem:[%s1007 + $0x28] sm:$0xf]
        %v3048 = vld [vmem:[%s1007 + $0x2c] sm:$0xf]
        %v3049 = vld [vmem:[%s1007 + $0x30] sm:$0xf]
        %v3050 = vld [vmem:[%s1007 + $0x34] sm:$0xf]
        %v3051 = vld [vmem:[%s1007 + $0x38] sm:$0xf]
        %v3052 = vld [vmem:[%s1007 + $0x3c] sm:$0xf]
        %v3053 = vld [vmem:[%s1007 + $0x40] sm:$0xf]
        %v3054 = vld [vmem:[%s1007 + $0x44] sm:$0xf]
        %v3055 = vld [vmem:[%s1007 + $0x48] sm:$0xf]
        %v3056 = vld [vmem:[%s1007 + $0x4c] sm:$0xf]
        %v3057 = vld [vmem:[%s1007 + $0x50] sm:$0xf]
        %v3058 = vld [vmem:[%s1007 + $0x54] sm:$0xf]
        %v3059 = vld [vmem:[%s1007 + $0x58] sm:$0xf]
        %v3060 = vld [vmem:[%s1007 + $0x5c] sm:$0xf]
        %v3061 = vld [vmem:[%s1007 + $0x60] sm:$0xf]
        %v3062 = vld [vmem:[%s1007 + $0x64] sm:$0xf]
        %v3063 = vld [vmem:[%s1007 + $0x68] sm:$0xf]
        %v3064 = vld [vmem:[%s1007 + $0x6c] sm:$0xf]
        %v3065 = vld [vmem:[%s1007 + $0x70] sm:$0xf]
        %v3066 = vld [vmem:[%s1007 + $0x74] sm:$0xf]
        %v3067 = vld [vmem:[%s1007 + $0x78] sm:$0xf]
        %v3068 = vld [vmem:[%s1007 + $0x7c] sm:$0xf]
        %v3069 = vld [vmem:[%s1007 + $0x80] sm:$0xf]
        %v3070 = vld [vmem:[%s1007 + $0x84] sm:$0xf]
        %v3071 = vld [vmem:[%s1007 + $0x88] sm:$0xf]
        %v3072 = vld [vmem:[%s1007 + $0x8c] sm:$0xf]
        %v3073 = vld [vmem:[%s1007 + $0x90] sm:$0xf]
        %v3074 = vld [vmem:[%s1007 + $0x94] sm:$0xf]
        %v3075 = vld [vmem:[%s1007 + $0x98] sm:$0xf]
        %v3076 = vld [vmem:[%s1007 + $0x9c] sm:$0xf]
        %v3077 = vld [vmem:[%s1007 + $0xa0] sm:$0xf]
        %v3078 = vld [vmem:[%s1007 + $0xa4] sm:$0xf]
        %v3079 = vld [vmem:[%s1007 + $0xa8] sm:$0xf]
        %v3080 = vld [vmem:[%s1007 + $0xac] sm:$0xf]
        %v3081 = vld [vmem:[%s1007 + $0xb0] sm:$0xf]
        %v3082 = vld [vmem:[%s1007 + $0xb4] sm:$0xf]
        %v3083 = vld [vmem:[%s1007 + $0xb8] sm:$0xf]
        %v3084 = vld [vmem:[%s1007 + $0xbc] sm:$0xf]
        %v3085 = vld [vmem:[%s1007 + $0xc0] sm:$0xf]
        %v3086 = vld [vmem:[%s1007 + $0xc4] sm:$0xf]
        %v3087 = vld [vmem:[%s1007 + $0xc8] sm:$0xf]
        %v3088 = vld [vmem:[%s1007 + $0xcc] sm:$0xf]
        %v3089 = vld [vmem:[%s1007 + $0xd0] sm:$0xf]
        %v3090 = vld [vmem:[%s1007 + $0xd4] sm:$0xf]
        %v3091 = vld [vmem:[%s1007 + $0xd8] sm:$0xf]
        %v3092 = vld [vmem:[%s1007 + $0xdc] sm:$0xf]
        %v3093 = vld [vmem:[%s1007 + $0xe0] sm:$0xf]
        %v3094 = vld [vmem:[%s1007 + $0xe4] sm:$0xf]
        %v3095 = vld [vmem:[%s1007 + $0xe8] sm:$0xf]
        %v3096 = vld [vmem:[%s1007 + $0xec] sm:$0xf]
        %v3097 = vld [vmem:[%s1007 + $0xf0] sm:$0xf]
        %v3098 = vld [vmem:[%s1007 + $0xf4] sm:$0xf]
        %v3099 = vld [vmem:[%s1007 + $0xf8] sm:$0xf]
        %v3100 = vld [vmem:[%s1007 + $0xfc] sm:$0xf]
        %v3101 = vld [vmem:[%s1015] sm:$0x1]
        %v3103 = vlaneseq
        %v3104 = vshrl.u32 %v3103, 7
        %v3105 = vsub.s32 0, %v3104
        %v3106 = vrot.slane %v3101, %v3105
        %v3172 = vunpack.c.l.b16 %v3037
        %v3173 = vunpack.c.l.b16 %v3038
        %v3174 = vunpack.c.l.b16 %v3039
        %v3175 = vunpack.c.l.b16 %v3040
        %v3176 = vunpack.c.l.b16 %v3041
        %v3177 = vunpack.c.l.b16 %v3042
        %v3178 = vunpack.c.l.b16 %v3043
        %v3179 = vunpack.c.l.b16 %v3044
        %v3180 = vunpack.c.l.b16 %v3045
        %v3181 = vunpack.c.l.b16 %v3046
        %v3182 = vunpack.c.l.b16 %v3047
        %v3183 = vunpack.c.l.b16 %v3048
        %v3184 = vunpack.c.l.b16 %v3049
        %v3185 = vunpack.c.l.b16 %v3050
        %v3186 = vunpack.c.l.b16 %v3051
        %v3187 = vunpack.c.l.b16 %v3052
        %v3188 = vunpack.c.l.b16 %v3053
        %v3189 = vunpack.c.l.b16 %v3054
        %v3190 = vunpack.c.l.b16 %v3055
        %v3191 = vunpack.c.l.b16 %v3056
        %v3192 = vunpack.c.l.b16 %v3057
        %v3193 = vunpack.c.l.b16 %v3058
        %v3194 = vunpack.c.l.b16 %v3059
        %v3195 = vunpack.c.l.b16 %v3060
        %v3196 = vunpack.c.l.b16 %v3061
        %v3197 = vunpack.c.l.b16 %v3062
        %v3198 = vunpack.c.l.b16 %v3063
        %v3199 = vunpack.c.l.b16 %v3064
        %v3200 = vunpack.c.l.b16 %v3065
        %v3201 = vunpack.c.l.b16 %v3066
        %v3202 = vunpack.c.l.b16 %v3067
        %v3203 = vunpack.c.l.b16 %v3068
        %v3204 = vunpack.c.l.b16 %v3069
        %v3205 = vunpack.c.l.b16 %v3070
        %v3206 = vunpack.c.l.b16 %v3071
        %v3207 = vunpack.c.l.b16 %v3072
        %v3208 = vunpack.c.l.b16 %v3073
        %v3209 = vunpack.c.l.b16 %v3074
        %v3210 = vunpack.c.l.b16 %v3075
        %v3211 = vunpack.c.l.b16 %v3076
        %v3212 = vunpack.c.l.b16 %v3077
        %v3213 = vunpack.c.l.b16 %v3078
        %v3214 = vunpack.c.l.b16 %v3079
        %v3215 = vunpack.c.l.b16 %v3080
        %v3216 = vunpack.c.l.b16 %v3081
        %v3217 = vunpack.c.l.b16 %v3082
        %v3218 = vunpack.c.l.b16 %v3083
        %v3219 = vunpack.c.l.b16 %v3084
        %v3220 = vunpack.c.l.b16 %v3085
        %v3221 = vunpack.c.l.b16 %v3086
        %v3222 = vunpack.c.l.b16 %v3087
        %v3223 = vunpack.c.l.b16 %v3088
        %v3224 = vunpack.c.l.b16 %v3089
        %v3225 = vunpack.c.l.b16 %v3090
        %v3226 = vunpack.c.l.b16 %v3091
        %v3227 = vunpack.c.l.b16 %v3092
        %v3228 = vunpack.c.l.b16 %v3093
        %v3229 = vunpack.c.l.b16 %v3094
        %v3230 = vunpack.c.l.b16 %v3095
        %v3231 = vunpack.c.l.b16 %v3096
        %v3232 = vunpack.c.l.b16 %v3097
        %v3233 = vunpack.c.l.b16 %v3098
        %v3234 = vunpack.c.l.b16 %v3099
        %v3235 = vunpack.c.l.b16 %v3100
        %v3236 = vpack.c.b16 %v3173, %v3172
        %v3237 = vpack.c.b16 %v3175, %v3174
        %v3238 = vpack.c.b16 %v3177, %v3176
        %v3239 = vpack.c.b16 %v3179, %v3178
        %v3240 = vpack.c.b16 %v3181, %v3180
        %v3241 = vpack.c.b16 %v3183, %v3182
        %v3242 = vpack.c.b16 %v3185, %v3184
        %v3243 = vpack.c.b16 %v3187, %v3186
        %v3244 = vpack.c.b16 %v3189, %v3188
        %v3245 = vpack.c.b16 %v3191, %v3190
        %v3246 = vpack.c.b16 %v3193, %v3192
        %v3247 = vpack.c.b16 %v3195, %v3194
        %v3248 = vpack.c.b16 %v3197, %v3196
        %v3249 = vpack.c.b16 %v3199, %v3198
        %v3250 = vpack.c.b16 %v3201, %v3200
        %v3251 = vpack.c.b16 %v3203, %v3202
        %v3252 = vpack.c.b16 %v3205, %v3204
        %v3253 = vpack.c.b16 %v3207, %v3206
        %v3254 = vpack.c.b16 %v3209, %v3208
        %v3255 = vpack.c.b16 %v3211, %v3210
        %v3256 = vpack.c.b16 %v3213, %v3212
        %v3257 = vpack.c.b16 %v3215, %v3214
        %v3258 = vpack.c.b16 %v3217, %v3216
        %v3259 = vpack.c.b16 %v3219, %v3218
        %v3260 = vpack.c.b16 %v3221, %v3220
        %v3261 = vpack.c.b16 %v3223, %v3222
        %v3262 = vpack.c.b16 %v3225, %v3224
        %v3263 = vpack.c.b16 %v3227, %v3226
        %v3264 = vpack.c.b16 %v3229, %v3228
        %v3265 = vpack.c.b16 %v3231, %v3230
        %v3266 = vpack.c.b16 %v3233, %v3232
        %v3267 = vpack.c.b16 %v3235, %v3234
        %3300 = vmatprep.subr.bf16.mxu0 0
        %3301 = vmatpush1.bf16.msra.mxu0 %v3236
        %3302 = vmatprep.subr.bf16.mxu0 0
        %3303 = vmatpush1.bf16.msra.mxu0 %v3237
        %3304 = vmatprep.subr.bf16.mxu0 0
        %3305 = vmatpush1.bf16.msra.mxu0 %v3238
        %3306 = vmatprep.subr.bf16.mxu0 0
        %3307 = vmatpush1.bf16.msra.mxu0 %v3239
        %3308 = vmatprep.subr.bf16.mxu0 0
        %3309 = vmatpush1.bf16.msra.mxu0 %v3240
        %3310 = vmatprep.subr.bf16.mxu0 0
        %3311 = vmatpush1.bf16.msra.mxu0 %v3241
        %3312 = vmatprep.subr.bf16.mxu0 0
        %3313 = vmatpush1.bf16.msra.mxu0 %v3242
        %3314 = vmatprep.subr.bf16.mxu0 0
        %3315 = vmatpush1.bf16.msra.mxu0 %v3243
        %3316 = vmatprep.subr.bf16.mxu0 0
        %3317 = vmatpush1.bf16.msra.mxu0 %v3244
        %3318 = vmatprep.subr.bf16.mxu0 0
        %3319 = vmatpush1.bf16.msra.mxu0 %v3245
        %3320 = vmatprep.subr.bf16.mxu0 0
        %3321 = vmatpush1.bf16.msra.mxu0 %v3246
        %3322 = vmatprep.subr.bf16.mxu0 0
        %3323 = vmatpush1.bf16.msra.mxu0 %v3247
        %3324 = vmatprep.subr.bf16.mxu0 0
        %3325 = vmatpush1.bf16.msra.mxu0 %v3248
        %3326 = vmatprep.subr.bf16.mxu0 0
        %3327 = vmatpush1.bf16.msra.mxu0 %v3249
        %3328 = vmatprep.subr.bf16.mxu0 0
        %3329 = vmatpush1.bf16.msra.mxu0 %v3250
        %3330 = vmatprep.subr.bf16.mxu0 0
        %3331 = vmatpush1.bf16.msra.mxu0 %v3251
        %3332 = vmatprep.mubr.bf16.mxu0 %v3034
        %3333 = vmatmul.mubr.bf16.gmra.mrb[0].mxu0 %v3033
        %v3334 = vpop.f32.mrb[0].mxu0
        %v3335 = vadd.f32 %v3106, %v3334
        %v3336 = vpop.f32.mrb[0].mxu0
        %v3337 = vpop.f32.mrb[0].mxu0
        %v3338 = vadd.f32 %v3106, %v3337
        %v3339 = vpop.f32.mrb[0].mxu0
        %3340 = vdwg.mxu0
        %3341 = vmatprep.subr.bf16.mxu0 0
        %3342 = vmatpush1.bf16.msra.mxu0 %v3252
        %3343 = vmatprep.subr.bf16.mxu0 0
        %3344 = vmatpush1.bf16.msra.mxu0 %v3253
        %3345 = vmatprep.subr.bf16.mxu0 0
        %3346 = vmatpush1.bf16.msra.mxu0 %v3254
        %3347 = vmatprep.subr.bf16.mxu0 0
        %3348 = vmatpush1.bf16.msra.mxu0 %v3255
        %3349 = vmatprep.subr.bf16.mxu0 0
        %3350 = vmatpush1.bf16.msra.mxu0 %v3256
        %3351 = vmatprep.subr.bf16.mxu0 0
        %3352 = vmatpush1.bf16.msra.mxu0 %v3257
        %3353 = vmatprep.subr.bf16.mxu0 0
        %3354 = vmatpush1.bf16.msra.mxu0 %v3258
        %3355 = vmatprep.subr.bf16.mxu0 0
        %3356 = vmatpush1.bf16.msra.mxu0 %v3259
        %3357 = vmatprep.subr.bf16.mxu0 0
        %3358 = vmatpush1.bf16.msra.mxu0 %v3260
        %3359 = vmatprep.subr.bf16.mxu0 0
        %3360 = vmatpush1.bf16.msra.mxu0 %v3261
        %3361 = vmatprep.subr.bf16.mxu0 0
        %3362 = vmatpush1.bf16.msra.mxu0 %v3262
        %3363 = vmatprep.subr.bf16.mxu0 0
        %3364 = vmatpush1.bf16.msra.mxu0 %v3263
        %3365 = vmatprep.subr.bf16.mxu0 0
        %3366 = vmatpush1.bf16.msra.mxu0 %v3264
        %3367 = vmatprep.subr.bf16.mxu0 0
        %3368 = vmatpush1.bf16.msra.mxu0 %v3265
        %3369 = vmatprep.subr.bf16.mxu0 0
        %3370 = vmatpush1.bf16.msra.mxu0 %v3266
        %3371 = vmatprep.subr.bf16.mxu0 0
        %3372 = vmatpush1.bf16.msra.mxu0 %v3267
        %3373 = vmatprep.mubr.bf16.mxu0 %v3036
        %3374 = vmatmul.mubr.bf16.gmra.mrb[0].mxu0 %v3035
        %v3375 = vpop.f32.mrb[0].mxu0
        %v3376 = vadd.f32 %v3335, %v3375
        %v3377 = vpop.f32.mrb[0].mxu0
        %v3378 = vpop.f32.mrb[0].mxu0
        %v3379 = vadd.f32 %v3338, %v3378
        %v3380 = vpop.f32.mrb[0].mxu0
        %3381 = vdwg.mxu0
        %v3382 = vadd.f32 %v1294, %v3376
        %v3383 = vadd.f32 %v1295, %v3379
        %3384 = vadd.xlane.f32.xlu0 %v3382
        %v3385 = vpop.xlane.xlu0 %3384
        %3386 = vadd.xlane.f32.xlu0 %v3383
        %v3387 = vpop.xlane.xlu0 %3386
        %v3388 = vmul.f32 %v3385, 0.03125
        %v3389 = vmul.f32 %v3387, 0.03125
        %v3390 = vsub.f32 %v3382, %v3388
        %v3391 = vsub.f32 %v3383, %v3389
        %v3392 = vmul.f32 %v3390, %v1302
        %v3393 = vmul.f32 %v3391, %v1302
        %v3394 = vmul.f32 %v3392, %v3392
        %v3395 = vmul.f32 %v3393, %v3393
        %3396 = vadd.xlane.f32.xlu0 %v3394
        %v3397 = vpop.xlane.xlu0 %3396
        %3398 = vadd.xlane.f32.xlu0 %v3395
        %v3399 = vpop.xlane.xlu0 %3398
        %v3400 = vmul.f32 %v3397, 0.03125
        %v3401 = vmul.f32 %v3399, 0.03125
        %v3402 = vadd.f32 %v3400, 1e-05
        %v3403 = vadd.f32 %v3401, 1e-05
        %v3404 = vrsqrt.pop %v3402
        %v3405 = vrsqrt.pop %v3403
        %v3406 = vmul.f32 %v3392, %v3404
        %v3407 = vmul.f32 %v3393, %v3405
        %v3408 = vld [vmem:[%s1092] sm:$0x1]
        %v3410 = vlaneseq
        %v3411 = vshrl.u32 %v3410, 7
        %v3412 = vsub.s32 0, %v3411
        %v3413 = vrot.slane %v3408, %v3412
        %v3415 = vmul.f32 %v3406, %v3413
        %v3416 = vmul.f32 %v3407, %v3413
        %v3417 = vld [vmem:[%s1100] sm:$0x1]
        %v3419 = vlaneseq
        %v3420 = vshrl.u32 %v3419, 7
        %v3421 = vsub.s32 0, %v3420
        %v3422 = vrot.slane %v3417, %v3421
        %v3424 = vadd.f32 %v3415, %v3422
        %v3425 = vadd.f32 %v3416, %v3422
        %v3426 = vpack.c.bf16 %v3425, %v3424
        %v3427 = vld [vmem:[%s1024] sm:$0xff]
        %v3428 = vld [vmem:[%s1024 + $0x8] sm:$0xff]
        %v3429 = vld [vmem:[%s1024 + $0x10] sm:$0xff]
        %v3430 = vld [vmem:[%s1024 + $0x18] sm:$0xff]
        %v3431 = vld [vmem:[%s1024 + $0x20] sm:$0xff]
        %v3432 = vld [vmem:[%s1024 + $0x28] sm:$0xff]
        %v3433 = vld [vmem:[%s1024 + $0x30] sm:$0xff]
        %v3434 = vld [vmem:[%s1024 + $0x38] sm:$0xff]
        %v3435 = vld [vmem:[%s1024 + $0x40] sm:$0xff]
        %v3436 = vld [vmem:[%s1024 + $0x48] sm:$0xff]
        %v3437 = vld [vmem:[%s1024 + $0x50] sm:$0xff]
        %v3438 = vld [vmem:[%s1024 + $0x58] sm:$0xff]
        %v3439 = vld [vmem:[%s1024 + $0x60] sm:$0xff]
        %v3440 = vld [vmem:[%s1024 + $0x68] sm:$0xff]
        %v3441 = vld [vmem:[%s1024 + $0x70] sm:$0xff]
        %v3442 = vld [vmem:[%s1024 + $0x78] sm:$0xff]
        %v3443 = vld [vmem:[%s1024 + $0x80] sm:$0xff]
        %v3444 = vld [vmem:[%s1024 + $0x88] sm:$0xff]
        %v3445 = vld [vmem:[%s1024 + $0x90] sm:$0xff]
        %v3446 = vld [vmem:[%s1024 + $0x98] sm:$0xff]
        %v3447 = vld [vmem:[%s1024 + $0xa0] sm:$0xff]
        %v3448 = vld [vmem:[%s1024 + $0xa8] sm:$0xff]
        %v3449 = vld [vmem:[%s1024 + $0xb0] sm:$0xff]
        %v3450 = vld [vmem:[%s1024 + $0xb8] sm:$0xff]
        %v3451 = vld [vmem:[%s1024 + $0xc0] sm:$0xff]
        %v3452 = vld [vmem:[%s1024 + $0xc8] sm:$0xff]
        %v3453 = vld [vmem:[%s1024 + $0xd0] sm:$0xff]
        %v3454 = vld [vmem:[%s1024 + $0xd8] sm:$0xff]
        %v3455 = vld [vmem:[%s1024 + $0xe0] sm:$0xff]
        %v3456 = vld [vmem:[%s1024 + $0xe8] sm:$0xff]
        %v3457 = vld [vmem:[%s1024 + $0xf0] sm:$0xff]
        %v3458 = vld [vmem:[%s1024 + $0xf8] sm:$0xff]
        %v3459 = vld [vmem:[%s1033] sm:$0xf]
        %v3461 = vlaneseq
        %v3462 = vshrl.u32 %v3461, 7
        %v3463 = vsub.s32 0, %v3462
        %v3464 = vrot.slane %v3459, %v3463
        %v3465 = vlaneseq
        %v3466 = vshrl.u32 %v3465, 7
        %v3467 = vsub.s32 1, %v3466
        %v3468 = vrot.slane %v3459, %v3467
        %v3469 = vlaneseq
        %v3470 = vshrl.u32 %v3469, 7
        %v3471 = vsub.s32 2, %v3470
        %v3472 = vrot.slane %v3459, %v3471
        %v3473 = vlaneseq
        %v3474 = vshrl.u32 %v3473, 7
        %v3475 = vsub.s32 3, %v3474
        %v3476 = vrot.slane %v3459, %v3475
        %v3513 = vunpack.c.l.b16 %v3427
        %v3514 = vunpack.c.h.b16 %v3427
        %v3515 = vunpack.c.l.b16 %v3428
        %v3516 = vunpack.c.h.b16 %v3428
        %v3517 = vunpack.c.l.b16 %v3429
        %v3518 = vunpack.c.h.b16 %v3429
        %v3519 = vunpack.c.l.b16 %v3430
        %v3520 = vunpack.c.h.b16 %v3430
        %v3521 = vunpack.c.l.b16 %v3431
        %v3522 = vunpack.c.h.b16 %v3431
        %v3523 = vunpack.c.l.b16 %v3432
        %v3524 = vunpack.c.h.b16 %v3432
        %v3525 = vunpack.c.l.b16 %v3433
        %v3526 = vunpack.c.h.b16 %v3433
        %v3527 = vunpack.c.l.b16 %v3434
        %v3528 = vunpack.c.h.b16 %v3434
        %v3529 = vunpack.c.l.b16 %v3435
        %v3530 = vunpack.c.h.b16 %v3435
        %v3531 = vunpack.c.l.b16 %v3436
        %v3532 = vunpack.c.h.b16 %v3436
        %v3533 = vunpack.c.l.b16 %v3437
        %v3534 = vunpack.c.h.b16 %v3437
        %v3535 = vunpack.c.l.b16 %v3438
        %v3536 = vunpack.c.h.b16 %v3438
        %v3537 = vunpack.c.l.b16 %v3439
        %v3538 = vunpack.c.h.b16 %v3439
        %v3539 = vunpack.c.l.b16 %v3440
        %v3540 = vunpack.c.h.b16 %v3440
        %v3541 = vunpack.c.l.b16 %v3441
        %v3542 = vunpack.c.h.b16 %v3441
        %v3543 = vunpack.c.l.b16 %v3442
        %v3544 = vunpack.c.h.b16 %v3442
        %v3545 = vunpack.c.l.b16 %v3443
        %v3546 = vunpack.c.h.b16 %v3443
        %v3547 = vunpack.c.l.b16 %v3444
        %v3548 = vunpack.c.h.b16 %v3444
        %v3549 = vunpack.c.l.b16 %v3445
        %v3550 = vunpack.c.h.b16 %v3445
        %v3551 = vunpack.c.l.b16 %v3446
        %v3552 = vunpack.c.h.b16 %v3446
        %v3553 = vunpack.c.l.b16 %v3447
        %v3554 = vunpack.c.h.b16 %v3447
        %v3555 = vunpack.c.l.b16 %v3448
        %v3556 = vunpack.c.h.b16 %v3448
        %v3557 = vunpack.c.l.b16 %v3449
        %v3558 = vunpack.c.h.b16 %v3449
        %v3559 = vunpack.c.l.b16 %v3450
        %v3560 = vunpack.c.h.b16 %v3450
        %v3561 = vunpack.c.l.b16 %v3451
        %v3562 = vunpack.c.h.b16 %v3451
        %v3563 = vunpack.c.l.b16 %v3452
        %v3564 = vunpack.c.h.b16 %v3452
        %v3565 = vunpack.c.l.b16 %v3453
        %v3566 = vunpack.c.h.b16 %v3453
        %v3567 = vunpack.c.l.b16 %v3454
        %v3568 = vunpack.c.h.b16 %v3454
        %v3569 = vunpack.c.l.b16 %v3455
        %v3570 = vunpack.c.h.b16 %v3455
        %v3571 = vunpack.c.l.b16 %v3456
        %v3572 = vunpack.c.h.b16 %v3456
        %v3573 = vunpack.c.l.b16 %v3457
        %v3574 = vunpack.c.h.b16 %v3457
        %v3575 = vunpack.c.l.b16 %v3458
        %v3576 = vunpack.c.h.b16 %v3458
        %v3577 = vpack.c.b16 %v3517, %v3513
        %v3578 = vpack.c.b16 %v3518, %v3514
        %v3579 = vpack.c.b16 %v3519, %v3515
        %v3580 = vpack.c.b16 %v3520, %v3516
        %v3581 = vpack.c.b16 %v3525, %v3521
        %v3582 = vpack.c.b16 %v3526, %v3522
        %v3583 = vpack.c.b16 %v3527, %v3523
        %v3584 = vpack.c.b16 %v3528, %v3524
        %v3585 = vpack.c.b16 %v3533, %v3529
        %v3586 = vpack.c.b16 %v3534, %v3530
        %v3587 = vpack.c.b16 %v3535, %v3531
        %v3588 = vpack.c.b16 %v3536, %v3532
        %v3589 = vpack.c.b16 %v3541, %v3537
        %v3590 = vpack.c.b16 %v3542, %v3538
        %v3591 = vpack.c.b16 %v3543, %v3539
        %v3592 = vpack.c.b16 %v3544, %v3540
        %v3593 = vpack.c.b16 %v3549, %v3545
        %v3594 = vpack.c.b16 %v3550, %v3546
        %v3595 = vpack.c.b16 %v3551, %v3547
        %v3596 = vpack.c.b16 %v3552, %v3548
        %v3597 = vpack.c.b16 %v3557, %v3553
        %v3598 = vpack.c.b16 %v3558, %v3554
        %v3599 = vpack.c.b16 %v3559, %v3555
        %v3600 = vpack.c.b16 %v3560, %v3556
        %v3601 = vpack.c.b16 %v3565, %v3561
        %v3602 = vpack.c.b16 %v3566, %v3562
        %v3603 = vpack.c.b16 %v3567, %v3563
        %v3604 = vpack.c.b16 %v3568, %v3564
        %v3605 = vpack.c.b16 %v3573, %v3569
        %v3606 = vpack.c.b16 %v3574, %v3570
        %v3607 = vpack.c.b16 %v3575, %v3571
        %v3608 = vpack.c.b16 %v3576, %v3572
        %3641 = vmatprep.subr.bf16.mxu0 %v3578
        %3642 = vmatpush1.bf16.msra.mxu0 %v3577
        %3643 = vmatprep.subr.bf16.mxu0 %v3582
        %3644 = vmatpush1.bf16.msra.mxu0 %v3581
        %3645 = vmatprep.subr.bf16.mxu0 %v3586
        %3646 = vmatpush1.bf16.msra.mxu0 %v3585
        %3647 = vmatprep.subr.bf16.mxu0 %v3590
        %3648 = vmatpush1.bf16.msra.mxu0 %v3589
        %3649 = vmatprep.subr.bf16.mxu0 %v3594
        %3650 = vmatpush1.bf16.msra.mxu0 %v3593
        %3651 = vmatprep.subr.bf16.mxu0 %v3598
        %3652 = vmatpush1.bf16.msra.mxu0 %v3597
        %3653 = vmatprep.subr.bf16.mxu0 %v3602
        %3654 = vmatpush1.bf16.msra.mxu0 %v3601
        %3655 = vmatprep.subr.bf16.mxu0 %v3606
        %3656 = vmatpush1.bf16.msra.mxu0 %v3605
        %3657 = vmatprep.subr.bf16.mxu0 0
        %3658 = vmatpush1.bf16.msra.mxu0 0
        %3659 = vmatprep.subr.bf16.mxu0 0
        %3660 = vmatpush1.bf16.msra.mxu0 0
        %3661 = vmatprep.subr.bf16.mxu0 0
        %3662 = vmatpush1.bf16.msra.mxu0 0
        %3663 = vmatprep.subr.bf16.mxu0 0
        %3664 = vmatpush1.bf16.msra.mxu0 0
        %3665 = vmatprep.subr.bf16.mxu0 0
        %3666 = vmatpush1.bf16.msra.mxu0 0
        %3667 = vmatprep.subr.bf16.mxu0 0
        %3668 = vmatpush1.bf16.msra.mxu0 0
        %3669 = vmatprep.subr.bf16.mxu0 0
        %3670 = vmatpush1.bf16.msra.mxu0 0
        %3671 = vmatprep.subr.bf16.mxu0 0
        %3672 = vmatpush1.bf16.msra.mxu0 0
        %3673 = vmatprep.mubr.bf16.mxu0 0
        %3674 = vmatmul.mubr.bf16.gmra.mrb[0].mxu0 %v3426
        %v3675 = vpop.f32.mrb[0].mxu0
        %v3676 = vadd.f32 %v3464, %v3675
        %v3677 = vpop.f32.mrb[0].mxu0
        %v3678 = vadd.f32 %v3468, %v3677
        %v3679 = vpop.f32.mrb[0].mxu0
        %v3680 = vadd.f32 %v3464, %v3679
        %v3681 = vpop.f32.mrb[0].mxu0
        %v3682 = vadd.f32 %v3468, %v3681
        %3683 = vdwg.mxu0
        %3684 = vmatprep.subr.bf16.mxu0 %v3580
        %3685 = vmatpush1.bf16.msra.mxu0 %v3579
        %3686 = vmatprep.subr.bf16.mxu0 %v3584
        %3687 = vmatpush1.bf16.msra.mxu0 %v3583
        %3688 = vmatprep.subr.bf16.mxu0 %v3588
        %3689 = vmatpush1.bf16.msra.mxu0 %v3587
        %3690 = vmatprep.subr.bf16.mxu0 %v3592
        %3691 = vmatpush1.bf16.msra.mxu0 %v3591
        %3692 = vmatprep.subr.bf16.mxu0 %v3596
        %3693 = vmatpush1.bf16.msra.mxu0 %v3595
        %3694 = vmatprep.subr.bf16.mxu0 %v3600
        %3695 = vmatpush1.bf16.msra.mxu0 %v3599
        %3696 = vmatprep.subr.bf16.mxu0 %v3604
        %3697 = vmatpush1.bf16.msra.mxu0 %v3603
        %3698 = vmatprep.subr.bf16.mxu0 %v3608
        %3699 = vmatpush1.bf16.msra.mxu0 %v3607
        %3700 = vmatprep.subr.bf16.mxu0 0
        %3701 = vmatpush1.bf16.msra.mxu0 0
        %3702 = vmatprep.subr.bf16.mxu0 0
        %3703 = vmatpush1.bf16.msra.mxu0 0
        %3704 = vmatprep.subr.bf16.mxu0 0
        %3705 = vmatpush1.bf16.msra.mxu0 0
        %3706 = vmatprep.subr.bf16.mxu0 0
        %3707 = vmatpush1.bf16.msra.mxu0 0
        %3708 = vmatprep.subr.bf16.mxu0 0
        %3709 = vmatpush1.bf16.msra.mxu0 0
        %3710 = vmatprep.subr.bf16.mxu0 0
        %3711 = vmatpush1.bf16.msra.mxu0 0
        %3712 = vmatprep.subr.bf16.mxu0 0
        %3713 = vmatpush1.bf16.msra.mxu0 0
        %3714 = vmatprep.subr.bf16.mxu0 0
        %3715 = vmatpush1.bf16.msra.mxu0 0
        %3716 = vmatprep.mubr.bf16.mxu0 0
        %3717 = vmatmul.mubr.bf16.gmra.mrb[0].mxu0 %v3426
        %v3718 = vpop.f32.mrb[0].mxu0
        %v3719 = vadd.f32 %v3472, %v3718
        %v3720 = vpop.f32.mrb[0].mxu0
        %v3721 = vadd.f32 %v3476, %v3720
        %v3722 = vpop.f32.mrb[0].mxu0
        %v3723 = vadd.f32 %v3472, %v3722
        %v3724 = vpop.f32.mrb[0].mxu0
        %v3725 = vadd.f32 %v3476, %v3724
        %3726 = vdwg.mxu0
        %v3727 = vmul.f32 %v3676, 0.35355338
        %v3728 = vmul.f32 %v3678, 0.35355338
        %v3729 = vmul.f32 %v3719, 0.35355338
        %v3730 = vmul.f32 %v3721, 0.35355338
        %v3731 = vmul.f32 %v3680, 0.35355338
        %v3732 = vmul.f32 %v3682, 0.35355338
        %v3733 = vmul.f32 %v3723, 0.35355338
        %v3734 = vmul.f32 %v3725, 0.35355338
        %v3735 = vpack.c.bf16 %v1297, %v1296
        %v3736 = vld [vmem:[%s1042] sm:$0xff]
        %v3737 = vld [vmem:[%s1042 + $0x8] sm:$0xff]
        %v3738 = vld [vmem:[%s1042 + $0x10] sm:$0xff]
        %v3739 = vld [vmem:[%s1042 + $0x18] sm:$0xff]
        %v3740 = vld [vmem:[%s1042 + $0x20] sm:$0xff]
        %v3741 = vld [vmem:[%s1042 + $0x28] sm:$0xff]
        %v3742 = vld [vmem:[%s1042 + $0x30] sm:$0xff]
        %v3743 = vld [vmem:[%s1042 + $0x38] sm:$0xff]
        %v3744 = vld [vmem:[%s1042 + $0x40] sm:$0xff]
        %v3745 = vld [vmem:[%s1042 + $0x48] sm:$0xff]
        %v3746 = vld [vmem:[%s1042 + $0x50] sm:$0xff]
        %v3747 = vld [vmem:[%s1042 + $0x58] sm:$0xff]
        %v3748 = vld [vmem:[%s1042 + $0x60] sm:$0xff]
        %v3749 = vld [vmem:[%s1042 + $0x68] sm:$0xff]
        %v3750 = vld [vmem:[%s1042 + $0x70] sm:$0xff]
        %v3751 = vld [vmem:[%s1042 + $0x78] sm:$0xff]
        %v3752 = vld [vmem:[%s1042 + $0x80] sm:$0xff]
        %v3753 = vld [vmem:[%s1042 + $0x88] sm:$0xff]
        %v3754 = vld [vmem:[%s1042 + $0x90] sm:$0xff]
        %v3755 = vld [vmem:[%s1042 + $0x98] sm:$0xff]
        %v3756 = vld [vmem:[%s1042 + $0xa0] sm:$0xff]
        %v3757 = vld [vmem:[%s1042 + $0xa8] sm:$0xff]
        %v3758 = vld [vmem:[%s1042 + $0xb0] sm:$0xff]
        %v3759 = vld [vmem:[%s1042 + $0xb8] sm:$0xff]
        %v3760 = vld [vmem:[%s1042 + $0xc0] sm:$0xff]
        %v3761 = vld [vmem:[%s1042 + $0xc8] sm:$0xff]
        %v3762 = vld [vmem:[%s1042 + $0xd0] sm:$0xff]
        %v3763 = vld [vmem:[%s1042 + $0xd8] sm:$0xff]
        %v3764 = vld [vmem:[%s1042 + $0xe0] sm:$0xff]
        %v3765 = vld [vmem:[%s1042 + $0xe8] sm:$0xff]
        %v3766 = vld [vmem:[%s1042 + $0xf0] sm:$0xff]
        %v3767 = vld [vmem:[%s1042 + $0xf8] sm:$0xff]
        %v3768 = vld [vmem:[%s1042 + $0x100] sm:$0xff]
        %v3769 = vld [vmem:[%s1042 + $0x108] sm:$0xff]
        %v3770 = vld [vmem:[%s1042 + $0x110] sm:$0xff]
        %v3771 = vld [vmem:[%s1042 + $0x118] sm:$0xff]
        %v3772 = vld [vmem:[%s1042 + $0x120] sm:$0xff]
        %v3773 = vld [vmem:[%s1042 + $0x128] sm:$0xff]
        %v3774 = vld [vmem:[%s1042 + $0x130] sm:$0xff]
        %v3775 = vld [vmem:[%s1042 + $0x138] sm:$0xff]
        %v3776 = vld [vmem:[%s1042 + $0x140] sm:$0xff]
        %v3777 = vld [vmem:[%s1042 + $0x148] sm:$0xff]
        %v3778 = vld [vmem:[%s1042 + $0x150] sm:$0xff]
        %v3779 = vld [vmem:[%s1042 + $0x158] sm:$0xff]
        %v3780 = vld [vmem:[%s1042 + $0x160] sm:$0xff]
        %v3781 = vld [vmem:[%s1042 + $0x168] sm:$0xff]
        %v3782 = vld [vmem:[%s1042 + $0x170] sm:$0xff]
        %v3783 = vld [vmem:[%s1042 + $0x178] sm:$0xff]
        %v3784 = vld [vmem:[%s1042 + $0x180] sm:$0xff]
        %v3785 = vld [vmem:[%s1042 + $0x188] sm:$0xff]
        %v3786 = vld [vmem:[%s1042 + $0x190] sm:$0xff]
        %v3787 = vld [vmem:[%s1042 + $0x198] sm:$0xff]
        %v3788 = vld [vmem:[%s1042 + $0x1a0] sm:$0xff]
        %v3789 = vld [vmem:[%s1042 + $0x1a8] sm:$0xff]
        %v3790 = vld [vmem:[%s1042 + $0x1b0] sm:$0xff]
        %v3791 = vld [vmem:[%s1042 + $0x1b8] sm:$0xff]
        %v3792 = vld [vmem:[%s1042 + $0x1c0] sm:$0xff]
        %v3793 = vld [vmem:[%s1042 + $0x1c8] sm:$0xff]
        %v3794 = vld [vmem:[%s1042 + $0x1d0] sm:$0xff]
        %v3795 = vld [vmem:[%s1042 + $0x1d8] sm:$0xff]
        %v3796 = vld [vmem:[%s1042 + $0x1e0] sm:$0xff]
        %v3797 = vld [vmem:[%s1042 + $0x1e8] sm:$0xff]
        %v3798 = vld [vmem:[%s1042 + $0x1f0] sm:$0xff]
        %v3799 = vld [vmem:[%s1042 + $0x1f8] sm:$0xff]
        %v3800 = vld [vmem:[%s1051] sm:$0xff]
        %v3802 = vlaneseq
        %v3803 = vshrl.u32 %v3802, 7
        %v3804 = vsub.s32 0, %v3803
        %v3805 = vrot.slane %v3800, %v3804
        %v3806 = vlaneseq
        %v3807 = vshrl.u32 %v3806, 7
        %v3808 = vsub.s32 1, %v3807
        %v3809 = vrot.slane %v3800, %v3808
        %v3810 = vlaneseq
        %v3811 = vshrl.u32 %v3810, 7
        %v3812 = vsub.s32 2, %v3811
        %v3813 = vrot.slane %v3800, %v3812
        %v3814 = vlaneseq
        %v3815 = vshrl.u32 %v3814, 7
        %v3816 = vsub.s32 3, %v3815
        %v3817 = vrot.slane %v3800, %v3816
        %v3818 = vlaneseq
        %v3819 = vshrl.u32 %v3818, 7
        %v3820 = vsub.s32 4, %v3819
        %v3821 = vrot.slane %v3800, %v3820
        %v3822 = vlaneseq
        %v3823 = vshrl.u32 %v3822, 7
        %v3824 = vsub.s32 5, %v3823
        %v3825 = vrot.slane %v3800, %v3824
        %v3826 = vlaneseq
        %v3827 = vshrl.u32 %v3826, 7
        %v3828 = vsub.s32 6, %v3827
        %v3829 = vrot.slane %v3800, %v3828
        %v3830 = vlaneseq
        %v3831 = vshrl.u32 %v3830, 7
        %v3832 = vsub.s32 7, %v3831
        %v3833 = vrot.slane %v3800, %v3832
        %v3906 = vunpack.c.l.b16 %v3736
        %v3907 = vunpack.c.h.b16 %v3736
        %v3908 = vunpack.c.l.b16 %v3737
        %v3909 = vunpack.c.h.b16 %v3737
        %v3910 = vunpack.c.l.b16 %v3738
        %v3911 = vunpack.c.h.b16 %v3738
        %v3912 = vunpack.c.l.b16 %v3739
        %v3913 = vunpack.c.h.b16 %v3739
        %v3914 = vunpack.c.l.b16 %v3740
        %v3915 = vunpack.c.h.b16 %v3740
        %v3916 = vunpack.c.l.b16 %v3741
        %v3917 = vunpack.c.h.b16 %v3741
        %v3918 = vunpack.c.l.b16 %v3742
        %v3919 = vunpack.c.h.b16 %v3742
        %v3920 = vunpack.c.l.b16 %v3743
        %v3921 = vunpack.c.h.b16 %v3743
        %v3922 = vunpack.c.l.b16 %v3744
        %v3923 = vunpack.c.h.b16 %v3744
        %v3924 = vunpack.c.l.b16 %v3745
        %v3925 = vunpack.c.h.b16 %v3745
        %v3926 = vunpack.c.l.b16 %v3746
        %v3927 = vunpack.c.h.b16 %v3746
        %v3928 = vunpack.c.l.b16 %v3747
        %v3929 = vunpack.c.h.b16 %v3747
        %v3930 = vunpack.c.l.b16 %v3748
        %v3931 = vunpack.c.h.b16 %v3748
        %v3932 = vunpack.c.l.b16 %v3749
        %v3933 = vunpack.c.h.b16 %v3749
        %v3934 = vunpack.c.l.b16 %v3750
        %v3935 = vunpack.c.h.b16 %v3750
        %v3936 = vunpack.c.l.b16 %v3751
        %v3937 = vunpack.c.h.b16 %v3751
        %v3938 = vunpack.c.l.b16 %v3752
        %v3939 = vunpack.c.h.b16 %v3752
        %v3940 = vunpack.c.l.b16 %v3753
        %v3941 = vunpack.c.h.b16 %v3753
        %v3942 = vunpack.c.l.b16 %v3754
        %v3943 = vunpack.c.h.b16 %v3754
        %v3944 = vunpack.c.l.b16 %v3755
        %v3945 = vunpack.c.h.b16 %v3755
        %v3946 = vunpack.c.l.b16 %v3756
        %v3947 = vunpack.c.h.b16 %v3756
        %v3948 = vunpack.c.l.b16 %v3757
        %v3949 = vunpack.c.h.b16 %v3757
        %v3950 = vunpack.c.l.b16 %v3758
        %v3951 = vunpack.c.h.b16 %v3758
        %v3952 = vunpack.c.l.b16 %v3759
        %v3953 = vunpack.c.h.b16 %v3759
        %v3954 = vunpack.c.l.b16 %v3760
        %v3955 = vunpack.c.h.b16 %v3760
        %v3956 = vunpack.c.l.b16 %v3761
        %v3957 = vunpack.c.h.b16 %v3761
        %v3958 = vunpack.c.l.b16 %v3762
        %v3959 = vunpack.c.h.b16 %v3762
        %v3960 = vunpack.c.l.b16 %v3763
        %v3961 = vunpack.c.h.b16 %v3763
        %v3962 = vunpack.c.l.b16 %v3764
        %v3963 = vunpack.c.h.b16 %v3764
        %v3964 = vunpack.c.l.b16 %v3765
        %v3965 = vunpack.c.h.b16 %v3765
        %v3966 = vunpack.c.l.b16 %v3766
        %v3967 = vunpack.c.h.b16 %v3766
        %v3968 = vunpack.c.l.b16 %v3767
        %v3969 = vunpack.c.h.b16 %v3767
        %v3970 = vunpack.c.l.b16 %v3768
        %v3971 = vunpack.c.h.b16 %v3768
        %v3972 = vunpack.c.l.b16 %v3769
        %v3973 = vunpack.c.h.b16 %v3769
        %v3974 = vunpack.c.l.b16 %v3770
        %v3975 = vunpack.c.h.b16 %v3770
        %v3976 = vunpack.c.l.b16 %v3771
        %v3977 = vunpack.c.h.b16 %v3771
        %v3978 = vunpack.c.l.b16 %v3772
        %v3979 = vunpack.c.h.b16 %v3772
        %v3980 = vunpack.c.l.b16 %v3773
        %v3981 = vunpack.c.h.b16 %v3773
        %v3982 = vunpack.c.l.b16 %v3774
        %v3983 = vunpack.c.h.b16 %v3774
        %v3984 = vunpack.c.l.b16 %v3775
        %v3985 = vunpack.c.h.b16 %v3775
        %v3986 = vunpack.c.l.b16 %v3776
        %v3987 = vunpack.c.h.b16 %v3776
        %v3988 = vunpack.c.l.b16 %v3777
        %v3989 = vunpack.c.h.b16 %v3777
        %v3990 = vunpack.c.l.b16 %v3778
        %v3991 = vunpack.c.h.b16 %v3778
        %v3992 = vunpack.c.l.b16 %v3779
        %v3993 = vunpack.c.h.b16 %v3779
        %v3994 = vunpack.c.l.b16 %v3780
        %v3995 = vunpack.c.h.b16 %v3780
        %v3996 = vunpack.c.l.b16 %v3781
        %v3997 = vunpack.c.h.b16 %v3781
        %v3998 = vunpack.c.l.b16 %v3782
        %v3999 = vunpack.c.h.b16 %v3782
        %v4000 = vunpack.c.l.b16 %v3783
        %v4001 = vunpack.c.h.b16 %v3783
        %v4002 = vunpack.c.l.b16 %v3784
        %v4003 = vunpack.c.h.b16 %v3784
        %v4004 = vunpack.c.l.b16 %v3785
        %v4005 = vunpack.c.h.b16 %v3785
        %v4006 = vunpack.c.l.b16 %v3786
        %v4007 = vunpack.c.h.b16 %v3786
        %v4008 = vunpack.c.l.b16 %v3787
        %v4009 = vunpack.c.h.b16 %v3787
        %v4010 = vunpack.c.l.b16 %v3788
        %v4011 = vunpack.c.h.b16 %v3788
        %v4012 = vunpack.c.l.b16 %v3789
        %v4013 = vunpack.c.h.b16 %v3789
        %v4014 = vunpack.c.l.b16 %v3790
        %v4015 = vunpack.c.h.b16 %v3790
        %v4016 = vunpack.c.l.b16 %v3791
        %v4017 = vunpack.c.h.b16 %v3791
        %v4018 = vunpack.c.l.b16 %v3792
        %v4019 = vunpack.c.h.b16 %v3792
        %v4020 = vunpack.c.l.b16 %v3793
        %v4021 = vunpack.c.h.b16 %v3793
        %v4022 = vunpack.c.l.b16 %v3794
        %v4023 = vunpack.c.h.b16 %v3794
        %v4024 = vunpack.c.l.b16 %v3795
        %v4025 = vunpack.c.h.b16 %v3795
        %v4026 = vunpack.c.l.b16 %v3796
        %v4027 = vunpack.c.h.b16 %v3796
        %v4028 = vunpack.c.l.b16 %v3797
        %v4029 = vunpack.c.h.b16 %v3797
        %v4030 = vunpack.c.l.b16 %v3798
        %v4031 = vunpack.c.h.b16 %v3798
        %v4032 = vunpack.c.l.b16 %v3799
        %v4033 = vunpack.c.h.b16 %v3799
        %v4034 = vpack.c.b16 %v3914, %v3906
        %v4035 = vpack.c.b16 %v3915, %v3907
        %v4036 = vpack.c.b16 %v3916, %v3908
        %v4037 = vpack.c.b16 %v3917, %v3909
        %v4038 = vpack.c.b16 %v3918, %v3910
        %v4039 = vpack.c.b16 %v3919, %v3911
        %v4040 = vpack.c.b16 %v3920, %v3912
        %v4041 = vpack.c.b16 %v3921, %v3913
        %v4042 = vpack.c.b16 %v3930, %v3922
        %v4043 = vpack.c.b16 %v3931, %v3923
        %v4044 = vpack.c.b16 %v3932, %v3924
        %v4045 = vpack.c.b16 %v3933, %v3925
        %v4046 = vpack.c.b16 %v3934, %v3926
        %v4047 = vpack.c.b16 %v3935, %v3927
        %v4048 = vpack.c.b16 %v3936, %v3928
        %v4049 = vpack.c.b16 %v3937, %v3929
        %v4050 = vpack.c.b16 %v3946, %v3938
        %v4051 = vpack.c.b16 %v3947, %v3939
        %v4052 = vpack.c.b16 %v3948, %v3940
        %v4053 = vpack.c.b16 %v3949, %v3941
        %v4054 = vpack.c.b16 %v3950, %v3942
        %v4055 = vpack.c.b16 %v3951, %v3943
        %v4056 = vpack.c.b16 %v3952, %v3944
        %v4057 = vpack.c.b16 %v3953, %v3945
        %v4058 = vpack.c.b16 %v3962, %v3954
        %v4059 = vpack.c.b16 %v3963, %v3955
        %v4060 = vpack.c.b16 %v3964, %v3956
        %v4061 = vpack.c.b16 %v3965, %v3957
        %v4062 = vpack.c.b16 %v3966, %v3958
        %v4063 = vpack.c.b16 %v3967, %v3959
        %v4064 = vpack.c.b16 %v3968, %v3960
        %v4065 = vpack.c.b16 %v3969, %v3961
        %v4066 = vpack.c.b16 %v3978, %v3970
        %v4067 = vpack.c.b16 %v3979, %v3971
        %v4068 = vpack.c.b16 %v3980, %v3972
        %v4069 = vpack.c.b16 %v3981, %v3973
        %v4070 = vpack.c.b16 %v3982, %v3974
        %v4071 = vpack.c.b16 %v3983, %v3975
        %v4072 = vpack.c.b16 %v3984, %v3976
        %v4073 = vpack.c.b16 %v3985, %v3977
        %v4074 = vpack.c.b16 %v3994, %v3986
        %v4075 = vpack.c.b16 %v3995, %v3987
        %v4076 = vpack.c.b16 %v3996, %v3988
        %v4077 = vpack.c.b16 %v3997, %v3989
        %v4078 = vpack.c.b16 %v3998, %v3990
        %v4079 = vpack.c.b16 %v3999, %v3991
        %v4080 = vpack.c.b16 %v4000, %v3992
        %v4081 = vpack.c.b16 %v4001, %v3993
        %v4082 = vpack.c.b16 %v4010, %v4002
        %v4083 = vpack.c.b16 %v4011, %v4003
        %v4084 = vpack.c.b16 %v4012, %v4004
        %v4085 = vpack.c.b16 %v4013, %v4005
        %v4086 = vpack.c.b16 %v4014, %v4006
        %v4087 = vpack.c.b16 %v4015, %v4007
        %v4088 = vpack.c.b16 %v4016, %v4008
        %v4089 = vpack.c.b16 %v4017, %v4009
        %v4090 = vpack.c.b16 %v4026, %v4018
        %v4091 = vpack.c.b16 %v4027, %v4019
        %v4092 = vpack.c.b16 %v4028, %v4020
        %v4093 = vpack.c.b16 %v4029, %v4021
        %v4094 = vpack.c.b16 %v4030, %v4022
        %v4095 = vpack.c.b16 %v4031, %v4023
        %v4096 = vpack.c.b16 %v4032, %v4024
        %v4097 = vpack.c.b16 %v4033, %v4025
        %4162 = vmatprep.subr.bf16.mxu0 %v4035
        %4163 = vmatpush1.bf16.msra.mxu0 %v4034
        %4164 = vmatprep.subr.bf16.mxu0 %v4043
        %4165 = vmatpush1.bf16.msra.mxu0 %v4042
        %4166 = vmatprep.subr.bf16.mxu0 %v4051
        %4167 = vmatpush1.bf16.msra.mxu0 %v4050
        %4168 = vmatprep.subr.bf16.mxu0 %v4059
        %4169 = vmatpush1.bf16.msra.mxu0 %v4058
        %4170 = vmatprep.subr.bf16.mxu0 %v4067
        %4171 = vmatpush1.bf16.msra.mxu0 %v4066
        %4172 = vmatprep.subr.bf16.mxu0 %v4075
        %4173 = vmatpush1.bf16.msra.mxu0 %v4074
        %4174 = vmatprep.subr.bf16.mxu0 %v4083
        %4175 = vmatpush1.bf16.msra.mxu0 %v4082
        %4176 = vmatprep.subr.bf16.mxu0 %v4091
        %4177 = vmatpush1.bf16.msra.mxu0 %v4090
        %4178 = vmatprep.subr.bf16.mxu0 0
        %4179 = vmatpush1.bf16.msra.mxu0 0
        %4180 = vmatprep.subr.bf16.mxu0 0
        %4181 = vmatpush1.bf16.msra.mxu0 0
        %4182 = vmatprep.subr.bf16.mxu0 0
        %4183 = vmatpush1.bf16.msra.mxu0 0
        %4184 = vmatprep.subr.bf16.mxu0 0
        %4185 = vmatpush1.bf16.msra.mxu0 0
        %4186 = vmatprep.subr.bf16.mxu0 0
        %4187 = vmatpush1.bf16.msra.mxu0 0
        %4188 = vmatprep.subr.bf16.mxu0 0
        %4189 = vmatpush1.bf16.msra.mxu0 0
        %4190 = vmatprep.subr.bf16.mxu0 0
        %4191 = vmatpush1.bf16.msra.mxu0 0
        %4192 = vmatprep.subr.bf16.mxu0 0
        %4193 = vmatpush1.bf16.msra.mxu0 0
        %4194 = vmatprep.mubr.bf16.mxu0 0
        %4195 = vmatmul.mubr.bf16.gmra.mrb[0].mxu0 %v3735
        %v4196 = vpop.f32.mrb[0].mxu0
        %v4197 = vadd.f32 %v3805, %v4196
        %v4198 = vpop.f32.mrb[0].mxu0
        %v4199 = vadd.f32 %v3809, %v4198
        %v4200 = vpop.f32.mrb[0].mxu0
        %v4201 = vadd.f32 %v3805, %v4200
        %v4202 = vpop.f32.mrb[0].mxu0
        %v4203 = vadd.f32 %v3809, %v4202
        %4204 = vdwg.mxu0
        %4205 = vmatprep.subr.bf16.mxu0 %v4037
        %4206 = vmatpush1.bf16.msra.mxu0 %v4036
        %4207 = vmatprep.subr.bf16.mxu0 %v4045
        %4208 = vmatpush1.bf16.msra.mxu0 %v4044
        %4209 = vmatprep.subr.bf16.mxu0 %v4053
        %4210 = vmatpush1.bf16.msra.mxu0 %v4052
        %4211 = vmatprep.subr.bf16.mxu0 %v4061
        %4212 = vmatpush1.bf16.msra.mxu0 %v4060
        %4213 = vmatprep.subr.bf16.mxu0 %v4069
        %4214 = vmatpush1.bf16.msra.mxu0 %v4068
        %4215 = vmatprep.subr.bf16.mxu0 %v4077
        %4216 = vmatpush1.bf16.msra.mxu0 %v4076
        %4217 = vmatprep.subr.bf16.mxu0 %v4085
        %4218 = vmatpush1.bf16.msra.mxu0 %v4084
        %4219 = vmatprep.subr.bf16.mxu0 %v4093
        %4220 = vmatpush1.bf16.msra.mxu0 %v4092
        %4221 = vmatprep.subr.bf16.mxu0 0
        %4222 = vmatpush1.bf16.msra.mxu0 0
        %4223 = vmatprep.subr.bf16.mxu0 0
        %4224 = vmatpush1.bf16.msra.mxu0 0
        %4225 = vmatprep.subr.bf16.mxu0 0
        %4226 = vmatpush1.bf16.msra.mxu0 0
        %4227 = vmatprep.subr.bf16.mxu0 0
        %4228 = vmatpush1.bf16.msra.mxu0 0
        %4229 = vmatprep.subr.bf16.mxu0 0
        %4230 = vmatpush1.bf16.msra.mxu0 0
        %4231 = vmatprep.subr.bf16.mxu0 0
        %4232 = vmatpush1.bf16.msra.mxu0 0
        %4233 = vmatprep.subr.bf16.mxu0 0
        %4234 = vmatpush1.bf16.msra.mxu0 0
        %4235 = vmatprep.subr.bf16.mxu0 0
        %4236 = vmatpush1.bf16.msra.mxu0 0
        %4237 = vmatprep.mubr.bf16.mxu0 0
        %4238 = vmatmul.mubr.bf16.gmra.mrb[0].mxu0 %v3735
        %v4239 = vpop.f32.mrb[0].mxu0
        %v4240 = vadd.f32 %v3813, %v4239
        %v4241 = vpop.f32.mrb[0].mxu0
        %v4242 = vadd.f32 %v3817, %v4241
        %v4243 = vpop.f32.mrb[0].mxu0
        %v4244 = vadd.f32 %v3813, %v4243
        %v4245 = vpop.f32.mrb[0].mxu0
        %v4246 = vadd.f32 %v3817, %v4245
        %4247 = vdwg.mxu0
        %4248 = vmatprep.subr.bf16.mxu0 %v4039
        %4249 = vmatpush1.bf16.msra.mxu0 %v4038
        %4250 = vmatprep.subr.bf16.mxu0 %v4047
        %4251 = vmatpush1.bf16.msra.mxu0 %v4046
        %4252 = vmatprep.subr.bf16.mxu0 %v4055
        %4253 = vmatpush1.bf16.msra.mxu0 %v4054
        %4254 = vmatprep.subr.bf16.mxu0 %v4063
        %4255 = vmatpush1.bf16.msra.mxu0 %v4062
        %4256 = vmatprep.subr.bf16.mxu0 %v4071
        %4257 = vmatpush1.bf16.msra.mxu0 %v4070
        %4258 = vmatprep.subr.bf16.mxu0 %v4079
        %4259 = vmatpush1.bf16.msra.mxu0 %v4078
        %4260 = vmatprep.subr.bf16.mxu0 %v4087
        %4261 = vmatpush1.bf16.msra.mxu0 %v4086
        %4262 = vmatprep.subr.bf16.mxu0 %v4095
        %4263 = vmatpush1.bf16.msra.mxu0 %v4094
        %4264 = vmatprep.subr.bf16.mxu0 0
        %4265 = vmatpush1.bf16.msra.mxu0 0
        %4266 = vmatprep.subr.bf16.mxu0 0
        %4267 = vmatpush1.bf16.msra.mxu0 0
        %4268 = vmatprep.subr.bf16.mxu0 0
        %4269 = vmatpush1.bf16.msra.mxu0 0
        %4270 = vmatprep.subr.bf16.mxu0 0
        %4271 = vmatpush1.bf16.msra.mxu0 0
        %4272 = vmatprep.subr.bf16.mxu0 0
        %4273 = vmatpush1.bf16.msra.mxu0 0
        %4274 = vmatprep.subr.bf16.mxu0 0
        %4275 = vmatpush1.bf16.msra.mxu0 0
        %4276 = vmatprep.subr.bf16.mxu0 0
        %4277 = vmatpush1.bf16.msra.mxu0 0
        %4278 = vmatprep.subr.bf16.mxu0 0
        %4279 = vmatpush1.bf16.msra.mxu0 0
        %4280 = vmatprep.mubr.bf16.mxu0 0
        %4281 = vmatmul.mubr.bf16.gmra.mrb[0].mxu0 %v3735
        %v4282 = vpop.f32.mrb[0].mxu0
        %v4283 = vadd.f32 %v3821, %v4282
        %v4284 = vpop.f32.mrb[0].mxu0
        %v4285 = vadd.f32 %v3825, %v4284
        %v4286 = vpop.f32.mrb[0].mxu0
        %v4287 = vadd.f32 %v3821, %v4286
        %v4288 = vpop.f32.mrb[0].mxu0
        %v4289 = vadd.f32 %v3825, %v4288
        %4290 = vdwg.mxu0
        %4291 = vmatprep.subr.bf16.mxu0 %v4041
        %4292 = vmatpush1.bf16.msra.mxu0 %v4040
        %4293 = vmatprep.subr.bf16.mxu0 %v4049
        %4294 = vmatpush1.bf16.msra.mxu0 %v4048
        %4295 = vmatprep.subr.bf16.mxu0 %v4057
        %4296 = vmatpush1.bf16.msra.mxu0 %v4056
        %4297 = vmatprep.subr.bf16.mxu0 %v4065
        %4298 = vmatpush1.bf16.msra.mxu0 %v4064
        %4299 = vmatprep.subr.bf16.mxu0 %v4073
        %4300 = vmatpush1.bf16.msra.mxu0 %v4072
        %4301 = vmatprep.subr.bf16.mxu0 %v4081
        %4302 = vmatpush1.bf16.msra.mxu0 %v4080
        %4303 = vmatprep.subr.bf16.mxu0 %v4089
        %4304 = vmatpush1.bf16.msra.mxu0 %v4088
        %4305 = vmatprep.subr.bf16.mxu0 %v4097
        %4306 = vmatpush1.bf16.msra.mxu0 %v4096
        %4307 = vmatprep.subr.bf16.mxu0 0
        %4308 = vmatpush1.bf16.msra.mxu0 0
        %4309 = vmatprep.subr.bf16.mxu0 0
        %4310 = vmatpush1.bf16.msra.mxu0 0
        %4311 = vmatprep.subr.bf16.mxu0 0
        %4312 = vmatpush1.bf16.msra.mxu0 0
        %4313 = vmatprep.subr.bf16.mxu0 0
        %4314 = vmatpush1.bf16.msra.mxu0 0
        %4315 = vmatprep.subr.bf16.mxu0 0
        %4316 = vmatpush1.bf16.msra.mxu0 0
        %4317 = vmatprep.subr.bf16.mxu0 0
        %4318 = vmatpush1.bf16.msra.mxu0 0
        %4319 = vmatprep.subr.bf16.mxu0 0
        %4320 = vmatpush1.bf16.msra.mxu0 0
        %4321 = vmatprep.subr.bf16.mxu0 0
        %4322 = vmatpush1.bf16.msra.mxu0 0
        %4323 = vmatprep.mubr.bf16.mxu0 0
        %4324 = vmatmul.mubr.bf16.gmra.mrb[0].mxu0 %v3735
        %v4325 = vpop.f32.mrb[0].mxu0
        %v4326 = vadd.f32 %v3829, %v4325
        %v4327 = vpop.f32.mrb[0].mxu0
        %v4328 = vadd.f32 %v3833, %v4327
        %v4329 = vpop.f32.mrb[0].mxu0
        %v4330 = vadd.f32 %v3829, %v4329
        %v4331 = vpop.f32.mrb[0].mxu0
        %v4332 = vadd.f32 %v3833, %v4331
        %4333 = vdwg.mxu0
        %v4334 = vpack.c.bf16 %v3727, %v3727
        %v4335 = vpack.c.bf16 %v3731, %v3731
        %v4336 = vpack.c.bf16 %v4197, %v4197
        %v4337 = vpack.c.bf16 %v4201, %v4201
        %v4338 = vpack.c.bf16 %v4283, %v4283
        %v4339 = vpack.c.bf16 %v4287, %v4287
        %4340 = vmatprep.subr.bf16.mxu0 0
        %4341 = vmatpush1.bf16.xpose.msra.mxu0 %v4336
        %4342 = vmatprep.subr.bf16.mxu0 0
        %4343 = vmatpush1.bf16.xpose.msra.mxu0 0
        %4344 = vmatprep.subr.bf16.mxu0 0
        %4345 = vmatpush1.bf16.xpose.msra.mxu0 0
        %4346 = vmatprep.subr.bf16.mxu0 0
        %4347 = vmatpush1.bf16.xpose.msra.mxu0 0
        %4348 = vmatprep.subr.bf16.mxu0 0
        %4349 = vmatpush1.bf16.xpose.msra.mxu0 0
        %4350 = vmatprep.subr.bf16.mxu0 0
        %4351 = vmatpush1.bf16.xpose.msra.mxu0 0
        %4352 = vmatprep.subr.bf16.mxu0 0
        %4353 = vmatpush1.bf16.xpose.msra.mxu0 0
        %4354 = vmatprep.subr.bf16.mxu0 0
        %4355 = vmatpush1.bf16.xpose.msra.mxu0 0
        %4356 = vmatprep.subr.bf16.mxu0 0
        %4357 = vmatpush1.bf16.xpose.msra.mxu0 0
        %4358 = vmatprep.subr.bf16.mxu0 0
        %4359 = vmatpush1.bf16.xpose.msra.mxu0 0
        %4360 = vmatprep.subr.bf16.mxu0 0
        %4361 = vmatpush1.bf16.xpose.msra.mxu0 0
        %4362 = vmatprep.subr.bf16.mxu0 0
        %4363 = vmatpush1.bf16.xpose.msra.mxu0 0
        %4364 = vmatprep.subr.bf16.mxu0 0
        %4365 = vmatpush1.bf16.xpose.msra.mxu0 0
        %4366 = vmatprep.subr.bf16.mxu0 0
        %4367 = vmatpush1.bf16.xpose.msra.mxu0 0
        %4368 = vmatprep.subr.bf16.mxu0 0
        %4369 = vmatpush1.bf16.xpose.msra.mxu0 0
        %4370 = vmatprep.subr.bf16.mxu0 0
        %4371 = vmatpush1.bf16.xpose.msra.mxu0 0
        %4372 = vmatprep.mubr.bf16.mxu0 0
        %4373 = vmatmul.mubr.bf16.gmra.mrb[0].mxu0 %v4334
        %v4374 = vpop.f32.mrb[0].mxu0
        %v4375 = vadd.f32 0.0, %v4374
        %v4376 = vpop.f32.mrb[0].mxu0
        %v4377 = vpop.f32.mrb[0].mxu0
        %v4378 = vpop.f32.mrb[0].mxu0
        %4379 = vdwg.mxu0
        %4380 = vmatprep.subr.bf16.mxu0 0
        %4381 = vmatpush1.bf16.xpose.msra.mxu0 %v4337
        %4382 = vmatprep.subr.bf16.mxu0 0
        %4383 = vmatpush1.bf16.xpose.msra.mxu0 0
        %4384 = vmatprep.subr.bf16.mxu0 0
        %4385 = vmatpush1.bf16.xpose.msra.mxu0 0
        %4386 = vmatprep.subr.bf16.mxu0 0
        %4387 = vmatpush1.bf16.xpose.msra.mxu0 0
        %4388 = vmatprep.subr.bf16.mxu0 0
        %4389 = vmatpush1.bf16.xpose.msra.mxu0 0
        %4390 = vmatprep.subr.bf16.mxu0 0
        %4391 = vmatpush1.bf16.xpose.msra.mxu0 0
        %4392 = vmatprep.subr.bf16.mxu0 0
        %4393 = vmatpush1.bf16.xpose.msra.mxu0 0
        %4394 = vmatprep.subr.bf16.mxu0 0
        %4395 = vmatpush1.bf16.xpose.msra.mxu0 0
        %4396 = vmatprep.subr.bf16.mxu0 0
        %4397 = vmatpush1.bf16.xpose.msra.mxu0 0
        %4398 = vmatprep.subr.bf16.mxu0 0
        %4399 = vmatpush1.bf16.xpose.msra.mxu0 0
        %4400 = vmatprep.subr.bf16.mxu0 0
        %4401 = vmatpush1.bf16.xpose.msra.mxu0 0
        %4402 = vmatprep.subr.bf16.mxu0 0
        %4403 = vmatpush1.bf16.xpose.msra.mxu0 0
        %4404 = vmatprep.subr.bf16.mxu0 0
        %4405 = vmatpush1.bf16.xpose.msra.mxu0 0
        %4406 = vmatprep.subr.bf16.mxu0 0
        %4407 = vmatpush1.bf16.xpose.msra.mxu0 0
        %4408 = vmatprep.subr.bf16.mxu0 0
        %4409 = vmatpush1.bf16.xpose.msra.mxu0 0
        %4410 = vmatprep.subr.bf16.mxu0 0
        %4411 = vmatpush1.bf16.xpose.msra.mxu0 0
        %4412 = vmatprep.mubr.bf16.mxu0 0
        %4413 = vmatmul.mubr.bf16.gmra.mrb[0].mxu0 %v4335
        %v4414 = vpop.f32.mrb[0].mxu0
        %v4415 = vadd.f32 0.0, %v4414
        %v4416 = vpop.f32.mrb[0].mxu0
        %v4417 = vpop.f32.mrb[0].mxu0
        %v4418 = vpop.f32.mrb[0].mxu0
        %4419 = vdwg.mxu0
        %v4420 = vsel %vm2303, %v4375, -inf
        %4421 = vmax.xlane.f32.xlu0 %v4420
        %v4422 = vpop.xlane.xlu0 %4421
        %v4423 = vsel %vm2303, %v4415, -inf
        %4424 = vmax.xlane.f32.xlu0 %v4423
        %v4425 = vpop.xlane.xlu0 %4424
        %v4426 = vsub.f32 %v4375, %v4422
        %v4427 = vsub.f32 %v4415, %v4425
        %v4428 = vmul.f32 %v4426, 1.442695
        %v4429 = vpow.pop %v4428
        %v4430 = vmul.f32 %v4427, 1.442695
        %v4431 = vpow.pop %v4430
        %v4432 = vsel %vm2303, %v4429, 0.0
        %4433 = vadd.xlane.f32.xlu0 %v4432
        %v4434 = vpop.xlane.xlu0 %4433
        %v4435 = vsel %vm2303, %v4431, 0.0
        %4436 = vadd.xlane.f32.xlu0 %v4435
        %v4437 = vpop.xlane.xlu0 %4436
        %v4438 = vrcp.pop %v4434
        %v4439 = vmul.f32 %v4429, %v4438
        %v4440 = vrcp.pop %v4437
        %v4441 = vmul.f32 %v4431, %v4440
        %v4442 = vpack.c.bf16 %v4439, %v4439
        %v4443 = vpack.c.bf16 %v4441, %v4441
        %v4445 = vsel %vm2303, %v4442, 0
        %v4448 = vsel %vm2331, %v4338, 0
        %4450 = vmatprep.subr.bf16.mxu0 0
        %4451 = vmatpush1.bf16.msra.mxu0 %v4448
        %4452 = vmatprep.subr.bf16.mxu0 0
        %4453 = vmatpush1.bf16.msra.mxu0 0
        %4454 = vmatprep.subr.bf16.mxu0 0
        %4455 = vmatpush1.bf16.msra.mxu0 0
        %4456 = vmatprep.subr.bf16.mxu0 0
        %4457 = vmatpush1.bf16.msra.mxu0 0
        %4458 = vmatprep.subr.bf16.mxu0 0
        %4459 = vmatpush1.bf16.msra.mxu0 0
        %4460 = vmatprep.subr.bf16.mxu0 0
        %4461 = vmatpush1.bf16.msra.mxu0 0
        %4462 = vmatprep.subr.bf16.mxu0 0
        %4463 = vmatpush1.bf16.msra.mxu0 0
        %4464 = vmatprep.subr.bf16.mxu0 0
        %4465 = vmatpush1.bf16.msra.mxu0 0
        %4466 = vmatprep.subr.bf16.mxu0 0
        %4467 = vmatpush1.bf16.msra.mxu0 0
        %4468 = vmatprep.subr.bf16.mxu0 0
        %4469 = vmatpush1.bf16.msra.mxu0 0
        %4470 = vmatprep.subr.bf16.mxu0 0
        %4471 = vmatpush1.bf16.msra.mxu0 0
        %4472 = vmatprep.subr.bf16.mxu0 0
        %4473 = vmatpush1.bf16.msra.mxu0 0
        %4474 = vmatprep.subr.bf16.mxu0 0
        %4475 = vmatpush1.bf16.msra.mxu0 0
        %4476 = vmatprep.subr.bf16.mxu0 0
        %4477 = vmatpush1.bf16.msra.mxu0 0
        %4478 = vmatprep.subr.bf16.mxu0 0
        %4479 = vmatpush1.bf16.msra.mxu0 0
        %4480 = vmatprep.subr.bf16.mxu0 0
        %4481 = vmatpush1.bf16.msra.mxu0 0
        %4482 = vmatprep.mubr.bf16.mxu0 0
        %4483 = vmatmul.mubr.bf16.gmra.mrb[0].mxu0 %v4445
        %v4484 = vpop.f32.mrb[0].mxu0
        %v4485 = vadd.f32 0.0, %v4484
        %v4486 = vpop.f32.mrb[0].mxu0
        %v4487 = vpop.f32.mrb[0].mxu0
        %v4488 = vpop.f32.mrb[0].mxu0
        %4489 = vdwg.mxu0
        %v4491 = vsel %vm2303, %v4443, 0
        %v4494 = vsel %vm2331, %v4339, 0
        %4496 = vmatprep.subr.bf16.mxu0 0
        %4497 = vmatpush1.bf16.msra.mxu0 %v4494
        %4498 = vmatprep.subr.bf16.mxu0 0
        %4499 = vmatpush1.bf16.msra.mxu0 0
        %4500 = vmatprep.subr.bf16.mxu0 0
        %4501 = vmatpush1.bf16.msra.mxu0 0
        %4502 = vmatprep.subr.bf16.mxu0 0
        %4503 = vmatpush1.bf16.msra.mxu0 0
        %4504 = vmatprep.subr.bf16.mxu0 0
        %4505 = vmatpush1.bf16.msra.mxu0 0
        %4506 = vmatprep.subr.bf16.mxu0 0
        %4507 = vmatpush1.bf16.msra.mxu0 0
        %4508 = vmatprep.subr.bf16.mxu0 0
        %4509 = vmatpush1.bf16.msra.mxu0 0
        %4510 = vmatprep.subr.bf16.mxu0 0
        %4511 = vmatpush1.bf16.msra.mxu0 0
        %4512 = vmatprep.subr.bf16.mxu0 0
        %4513 = vmatpush1.bf16.msra.mxu0 0
        %4514 = vmatprep.subr.bf16.mxu0 0
        %4515 = vmatpush1.bf16.msra.mxu0 0
        %4516 = vmatprep.subr.bf16.mxu0 0
        %4517 = vmatpush1.bf16.msra.mxu0 0
        %4518 = vmatprep.subr.bf16.mxu0 0
        %4519 = vmatpush1.bf16.msra.mxu0 0
        %4520 = vmatprep.subr.bf16.mxu0 0
        %4521 = vmatpush1.bf16.msra.mxu0 0
        %4522 = vmatprep.subr.bf16.mxu0 0
        %4523 = vmatpush1.bf16.msra.mxu0 0
        %4524 = vmatprep.subr.bf16.mxu0 0
        %4525 = vmatpush1.bf16.msra.mxu0 0
        %4526 = vmatprep.subr.bf16.mxu0 0
        %4527 = vmatpush1.bf16.msra.mxu0 0
        %4528 = vmatprep.mubr.bf16.mxu0 0
        %4529 = vmatmul.mubr.bf16.gmra.mrb[0].mxu0 %v4491
        %v4530 = vpop.f32.mrb[0].mxu0
        %v4531 = vadd.f32 0.0, %v4530
        %v4532 = vpop.f32.mrb[0].mxu0
        %v4533 = vpop.f32.mrb[0].mxu0
        %v4534 = vpop.f32.mrb[0].mxu0
        %4535 = vdwg.mxu0
        %v4536 = vpack.c.bf16 %v3728, %v3728
        %v4537 = vpack.c.bf16 %v3732, %v3732
        %v4538 = vpack.c.bf16 %v4199, %v4199
        %v4539 = vpack.c.bf16 %v4203, %v4203
        %v4540 = vpack.c.bf16 %v4285, %v4285
        %v4541 = vpack.c.bf16 %v4289, %v4289
        %4542 = vmatprep.subr.bf16.mxu0 0
        %4543 = vmatpush1.bf16.xpose.msra.mxu0 %v4538
        %4544 = vmatprep.subr.bf16.mxu0 0
        %4545 = vmatpush1.bf16.xpose.msra.mxu0 0
        %4546 = vmatprep.subr.bf16.mxu0 0
        %4547 = vmatpush1.bf16.xpose.msra.mxu0 0
        %4548 = vmatprep.subr.bf16.mxu0 0
        %4549 = vmatpush1.bf16.xpose.msra.mxu0 0
        %4550 = vmatprep.subr.bf16.mxu0 0
        %4551 = vmatpush1.bf16.xpose.msra.mxu0 0
        %4552 = vmatprep.subr.bf16.mxu0 0
        %4553 = vmatpush1.bf16.xpose.msra.mxu0 0
        %4554 = vmatprep.subr.bf16.mxu0 0
        %4555 = vmatpush1.bf16.xpose.msra.mxu0 0
        %4556 = vmatprep.subr.bf16.mxu0 0
        %4557 = vmatpush1.bf16.xpose.msra.mxu0 0
        %4558 = vmatprep.subr.bf16.mxu0 0
        %4559 = vmatpush1.bf16.xpose.msra.mxu0 0
        %4560 = vmatprep.subr.bf16.mxu0 0
        %4561 = vmatpush1.bf16.xpose.msra.mxu0 0
        %4562 = vmatprep.subr.bf16.mxu0 0
        %4563 = vmatpush1.bf16.xpose.msra.mxu0 0
        %4564 = vmatprep.subr.bf16.mxu0 0
        %4565 = vmatpush1.bf16.xpose.msra.mxu0 0
        %4566 = vmatprep.subr.bf16.mxu0 0
        %4567 = vmatpush1.bf16.xpose.msra.mxu0 0
        %4568 = vmatprep.subr.bf16.mxu0 0
        %4569 = vmatpush1.bf16.xpose.msra.mxu0 0
        %4570 = vmatprep.subr.bf16.mxu0 0
        %4571 = vmatpush1.bf16.xpose.msra.mxu0 0
        %4572 = vmatprep.subr.bf16.mxu0 0
        %4573 = vmatpush1.bf16.xpose.msra.mxu0 0
        %4574 = vmatprep.mubr.bf16.mxu0 0
        %4575 = vmatmul.mubr.bf16.gmra.mrb[0].mxu0 %v4536
        %v4576 = vpop.f32.mrb[0].mxu0
        %v4577 = vadd.f32 0.0, %v4576
        %v4578 = vpop.f32.mrb[0].mxu0
        %v4579 = vpop.f32.mrb[0].mxu0
        %v4580 = vpop.f32.mrb[0].mxu0
        %4581 = vdwg.mxu0
        %4582 = vmatprep.subr.bf16.mxu0 0
        %4583 = vmatpush1.bf16.xpose.msra.mxu0 %v4539
        %4584 = vmatprep.subr.bf16.mxu0 0
        %4585 = vmatpush1.bf16.xpose.msra.mxu0 0
        %4586 = vmatprep.subr.bf16.mxu0 0
        %4587 = vmatpush1.bf16.xpose.msra.mxu0 0
        %4588 = vmatprep.subr.bf16.mxu0 0
        %4589 = vmatpush1.bf16.xpose.msra.mxu0 0
        %4590 = vmatprep.subr.bf16.mxu0 0
        %4591 = vmatpush1.bf16.xpose.msra.mxu0 0
        %4592 = vmatprep.subr.bf16.mxu0 0
        %4593 = vmatpush1.bf16.xpose.msra.mxu0 0
        %4594 = vmatprep.subr.bf16.mxu0 0
        %4595 = vmatpush1.bf16.xpose.msra.mxu0 0
        %4596 = vmatprep.subr.bf16.mxu0 0
        %4597 = vmatpush1.bf16.xpose.msra.mxu0 0
        %4598 = vmatprep.subr.bf16.mxu0 0
        %4599 = vmatpush1.bf16.xpose.msra.mxu0 0
        %4600 = vmatprep.subr.bf16.mxu0 0
        %4601 = vmatpush1.bf16.xpose.msra.mxu0 0
        %4602 = vmatprep.subr.bf16.mxu0 0
        %4603 = vmatpush1.bf16.xpose.msra.mxu0 0
        %4604 = vmatprep.subr.bf16.mxu0 0
        %4605 = vmatpush1.bf16.xpose.msra.mxu0 0
        %4606 = vmatprep.subr.bf16.mxu0 0
        %4607 = vmatpush1.bf16.xpose.msra.mxu0 0
        %4608 = vmatprep.subr.bf16.mxu0 0
        %4609 = vmatpush1.bf16.xpose.msra.mxu0 0
        %4610 = vmatprep.subr.bf16.mxu0 0
        %4611 = vmatpush1.bf16.xpose.msra.mxu0 0
        %4612 = vmatprep.subr.bf16.mxu0 0
        %4613 = vmatpush1.bf16.xpose.msra.mxu0 0
        %4614 = vmatprep.mubr.bf16.mxu0 0
        %4615 = vmatmul.mubr.bf16.gmra.mrb[0].mxu0 %v4537
        %v4616 = vpop.f32.mrb[0].mxu0
        %v4617 = vadd.f32 0.0, %v4616
        %v4618 = vpop.f32.mrb[0].mxu0
        %v4619 = vpop.f32.mrb[0].mxu0
        %v4620 = vpop.f32.mrb[0].mxu0
        %4621 = vdwg.mxu0
        %v4622 = vsel %vm2303, %v4577, -inf
        %4623 = vmax.xlane.f32.xlu0 %v4622
        %v4624 = vpop.xlane.xlu0 %4623
        %v4625 = vsel %vm2303, %v4617, -inf
        %4626 = vmax.xlane.f32.xlu0 %v4625
        %v4627 = vpop.xlane.xlu0 %4626
        %v4628 = vsub.f32 %v4577, %v4624
        %v4629 = vsub.f32 %v4617, %v4627
        %v4630 = vmul.f32 %v4628, 1.442695
        %v4631 = vpow.pop %v4630
        %v4632 = vmul.f32 %v4629, 1.442695
        %v4633 = vpow.pop %v4632
        %v4634 = vsel %vm2303, %v4631, 0.0
        %4635 = vadd.xlane.f32.xlu0 %v4634
        %v4636 = vpop.xlane.xlu0 %4635
        %v4637 = vsel %vm2303, %v4633, 0.0
        %4638 = vadd.xlane.f32.xlu0 %v4637
        %v4639 = vpop.xlane.xlu0 %4638
        %v4640 = vrcp.pop %v4636
        %v4641 = vmul.f32 %v4631, %v4640
        %v4642 = vrcp.pop %v4639
        %v4643 = vmul.f32 %v4633, %v4642
        %v4644 = vpack.c.bf16 %v4641, %v4641
        %v4645 = vpack.c.bf16 %v4643, %v4643
        %v4647 = vsel %vm2303, %v4644, 0
        %v4650 = vsel %vm2331, %v4540, 0
        %4652 = vmatprep.subr.bf16.mxu0 0
        %4653 = vmatpush1.bf16.msra.mxu0 %v4650
        %4654 = vmatprep.subr.bf16.mxu0 0
        %4655 = vmatpush1.bf16.msra.mxu0 0
        %4656 = vmatprep.subr.bf16.mxu0 0
        %4657 = vmatpush1.bf16.msra.mxu0 0
        %4658 = vmatprep.subr.bf16.mxu0 0
        %4659 = vmatpush1.bf16.msra.mxu0 0
        %4660 = vmatprep.subr.bf16.mxu0 0
        %4661 = vmatpush1.bf16.msra.mxu0 0
        %4662 = vmatprep.subr.bf16.mxu0 0
        %4663 = vmatpush1.bf16.msra.mxu0 0
        %4664 = vmatprep.subr.bf16.mxu0 0
        %4665 = vmatpush1.bf16.msra.mxu0 0
        %4666 = vmatprep.subr.bf16.mxu0 0
        %4667 = vmatpush1.bf16.msra.mxu0 0
        %4668 = vmatprep.subr.bf16.mxu0 0
        %4669 = vmatpush1.bf16.msra.mxu0 0
        %4670 = vmatprep.subr.bf16.mxu0 0
        %4671 = vmatpush1.bf16.msra.mxu0 0
        %4672 = vmatprep.subr.bf16.mxu0 0
        %4673 = vmatpush1.bf16.msra.mxu0 0
        %4674 = vmatprep.subr.bf16.mxu0 0
        %4675 = vmatpush1.bf16.msra.mxu0 0
        %4676 = vmatprep.subr.bf16.mxu0 0
        %4677 = vmatpush1.bf16.msra.mxu0 0
        %4678 = vmatprep.subr.bf16.mxu0 0
        %4679 = vmatpush1.bf16.msra.mxu0 0
        %4680 = vmatprep.subr.bf16.mxu0 0
        %4681 = vmatpush1.bf16.msra.mxu0 0
        %4682 = vmatprep.subr.bf16.mxu0 0
        %4683 = vmatpush1.bf16.msra.mxu0 0
        %4684 = vmatprep.mubr.bf16.mxu0 0
        %4685 = vmatmul.mubr.bf16.gmra.mrb[0].mxu0 %v4647
        %v4686 = vpop.f32.mrb[0].mxu0
        %v4687 = vadd.f32 0.0, %v4686
        %v4688 = vpop.f32.mrb[0].mxu0
        %v4689 = vpop.f32.mrb[0].mxu0
        %v4690 = vpop.f32.mrb[0].mxu0
        %4691 = vdwg.mxu0
        %v4693 = vsel %vm2303, %v4645, 0
        %v4696 = vsel %vm2331, %v4541, 0
        %4698 = vmatprep.subr.bf16.mxu0 0
        %4699 = vmatpush1.bf16.msra.mxu0 %v4696
        %4700 = vmatprep.subr.bf16.mxu0 0
        %4701 = vmatpush1.bf16.msra.mxu0 0
        %4702 = vmatprep.subr.bf16.mxu0 0
        %4703 = vmatpush1.bf16.msra.mxu0 0
        %4704 = vmatprep.subr.bf16.mxu0 0
        %4705 = vmatpush1.bf16.msra.mxu0 0
        %4706 = vmatprep.subr.bf16.mxu0 0
        %4707 = vmatpush1.bf16.msra.mxu0 0
        %4708 = vmatprep.subr.bf16.mxu0 0
        %4709 = vmatpush1.bf16.msra.mxu0 0
        %4710 = vmatprep.subr.bf16.mxu0 0
        %4711 = vmatpush1.bf16.msra.mxu0 0
        %4712 = vmatprep.subr.bf16.mxu0 0
        %4713 = vmatpush1.bf16.msra.mxu0 0
        %4714 = vmatprep.subr.bf16.mxu0 0
        %4715 = vmatpush1.bf16.msra.mxu0 0
        %4716 = vmatprep.subr.bf16.mxu0 0
        %4717 = vmatpush1.bf16.msra.mxu0 0
        %4718 = vmatprep.subr.bf16.mxu0 0
        %4719 = vmatpush1.bf16.msra.mxu0 0
        %4720 = vmatprep.subr.bf16.mxu0 0
        %4721 = vmatpush1.bf16.msra.mxu0 0
        %4722 = vmatprep.subr.bf16.mxu0 0
        %4723 = vmatpush1.bf16.msra.mxu0 0
        %4724 = vmatprep.subr.bf16.mxu0 0
        %4725 = vmatpush1.bf16.msra.mxu0 0
        %4726 = vmatprep.subr.bf16.mxu0 0
        %4727 = vmatpush1.bf16.msra.mxu0 0
        %4728 = vmatprep.subr.bf16.mxu0 0
        %4729 = vmatpush1.bf16.msra.mxu0 0
        %4730 = vmatprep.mubr.bf16.mxu0 0
        %4731 = vmatmul.mubr.bf16.gmra.mrb[0].mxu0 %v4693
        %v4732 = vpop.f32.mrb[0].mxu0
        %v4733 = vadd.f32 0.0, %v4732
        %v4734 = vpop.f32.mrb[0].mxu0
        %v4735 = vpop.f32.mrb[0].mxu0
        %v4736 = vpop.f32.mrb[0].mxu0
        %4737 = vdwg.mxu0
        %v4738 = vpack.c.bf16 %v3729, %v3729
        %v4739 = vpack.c.bf16 %v3733, %v3733
        %v4740 = vpack.c.bf16 %v4240, %v4240
        %v4741 = vpack.c.bf16 %v4244, %v4244
        %v4742 = vpack.c.bf16 %v4326, %v4326
        %v4743 = vpack.c.bf16 %v4330, %v4330
        %4744 = vmatprep.subr.bf16.mxu0 0
        %4745 = vmatpush1.bf16.xpose.msra.mxu0 %v4740
        %4746 = vmatprep.subr.bf16.mxu0 0
        %4747 = vmatpush1.bf16.xpose.msra.mxu0 0
        %4748 = vmatprep.subr.bf16.mxu0 0
        %4749 = vmatpush1.bf16.xpose.msra.mxu0 0
        %4750 = vmatprep.subr.bf16.mxu0 0
        %4751 = vmatpush1.bf16.xpose.msra.mxu0 0
        %4752 = vmatprep.subr.bf16.mxu0 0
        %4753 = vmatpush1.bf16.xpose.msra.mxu0 0
        %4754 = vmatprep.subr.bf16.mxu0 0
        %4755 = vmatpush1.bf16.xpose.msra.mxu0 0
        %4756 = vmatprep.subr.bf16.mxu0 0
        %4757 = vmatpush1.bf16.xpose.msra.mxu0 0
        %4758 = vmatprep.subr.bf16.mxu0 0
        %4759 = vmatpush1.bf16.xpose.msra.mxu0 0
        %4760 = vmatprep.subr.bf16.mxu0 0
        %4761 = vmatpush1.bf16.xpose.msra.mxu0 0
        %4762 = vmatprep.subr.bf16.mxu0 0
        %4763 = vmatpush1.bf16.xpose.msra.mxu0 0
        %4764 = vmatprep.subr.bf16.mxu0 0
        %4765 = vmatpush1.bf16.xpose.msra.mxu0 0
        %4766 = vmatprep.subr.bf16.mxu0 0
        %4767 = vmatpush1.bf16.xpose.msra.mxu0 0
        %4768 = vmatprep.subr.bf16.mxu0 0
        %4769 = vmatpush1.bf16.xpose.msra.mxu0 0
        %4770 = vmatprep.subr.bf16.mxu0 0
        %4771 = vmatpush1.bf16.xpose.msra.mxu0 0
        %4772 = vmatprep.subr.bf16.mxu0 0
        %4773 = vmatpush1.bf16.xpose.msra.mxu0 0
        %4774 = vmatprep.subr.bf16.mxu0 0
        %4775 = vmatpush1.bf16.xpose.msra.mxu0 0
        %4776 = vmatprep.mubr.bf16.mxu0 0
        %4777 = vmatmul.mubr.bf16.gmra.mrb[0].mxu0 %v4738
        %v4778 = vpop.f32.mrb[0].mxu0
        %v4779 = vadd.f32 0.0, %v4778
        %v4780 = vpop.f32.mrb[0].mxu0
        %v4781 = vpop.f32.mrb[0].mxu0
        %v4782 = vpop.f32.mrb[0].mxu0
        %4783 = vdwg.mxu0
        %4784 = vmatprep.subr.bf16.mxu0 0
        %4785 = vmatpush1.bf16.xpose.msra.mxu0 %v4741
        %4786 = vmatprep.subr.bf16.mxu0 0
        %4787 = vmatpush1.bf16.xpose.msra.mxu0 0
        %4788 = vmatprep.subr.bf16.mxu0 0
        %4789 = vmatpush1.bf16.xpose.msra.mxu0 0
        %4790 = vmatprep.subr.bf16.mxu0 0
        %4791 = vmatpush1.bf16.xpose.msra.mxu0 0
        %4792 = vmatprep.subr.bf16.mxu0 0
        %4793 = vmatpush1.bf16.xpose.msra.mxu0 0
        %4794 = vmatprep.subr.bf16.mxu0 0
        %4795 = vmatpush1.bf16.xpose.msra.mxu0 0
        %4796 = vmatprep.subr.bf16.mxu0 0
        %4797 = vmatpush1.bf16.xpose.msra.mxu0 0
        %4798 = vmatprep.subr.bf16.mxu0 0
        %4799 = vmatpush1.bf16.xpose.msra.mxu0 0
        %4800 = vmatprep.subr.bf16.mxu0 0
        %4801 = vmatpush1.bf16.xpose.msra.mxu0 0
        %4802 = vmatprep.subr.bf16.mxu0 0
        %4803 = vmatpush1.bf16.xpose.msra.mxu0 0
        %4804 = vmatprep.subr.bf16.mxu0 0
        %4805 = vmatpush1.bf16.xpose.msra.mxu0 0
        %4806 = vmatprep.subr.bf16.mxu0 0
        %4807 = vmatpush1.bf16.xpose.msra.mxu0 0
        %4808 = vmatprep.subr.bf16.mxu0 0
        %4809 = vmatpush1.bf16.xpose.msra.mxu0 0
        %4810 = vmatprep.subr.bf16.mxu0 0
        %4811 = vmatpush1.bf16.xpose.msra.mxu0 0
        %4812 = vmatprep.subr.bf16.mxu0 0
        %4813 = vmatpush1.bf16.xpose.msra.mxu0 0
        %4814 = vmatprep.subr.bf16.mxu0 0
        %4815 = vmatpush1.bf16.xpose.msra.mxu0 0
        %4816 = vmatprep.mubr.bf16.mxu0 0
        %4817 = vmatmul.mubr.bf16.gmra.mrb[0].mxu0 %v4739
        %v4818 = vpop.f32.mrb[0].mxu0
        %v4819 = vadd.f32 0.0, %v4818
        %v4820 = vpop.f32.mrb[0].mxu0
        %v4821 = vpop.f32.mrb[0].mxu0
        %v4822 = vpop.f32.mrb[0].mxu0
        %4823 = vdwg.mxu0
        %v4824 = vsel %vm2303, %v4779, -inf
        %4825 = vmax.xlane.f32.xlu0 %v4824
        %v4826 = vpop.xlane.xlu0 %4825
        %v4827 = vsel %vm2303, %v4819, -inf
        %4828 = vmax.xlane.f32.xlu0 %v4827
        %v4829 = vpop.xlane.xlu0 %4828
        %v4830 = vsub.f32 %v4779, %v4826
        %v4831 = vsub.f32 %v4819, %v4829
        %v4832 = vmul.f32 %v4830, 1.442695
        %v4833 = vpow.pop %v4832
        %v4834 = vmul.f32 %v4831, 1.442695
        %v4835 = vpow.pop %v4834
        %v4836 = vsel %vm2303, %v4833, 0.0
        %4837 = vadd.xlane.f32.xlu0 %v4836
        %v4838 = vpop.xlane.xlu0 %4837
        %v4839 = vsel %vm2303, %v4835, 0.0
        %4840 = vadd.xlane.f32.xlu0 %v4839
        %v4841 = vpop.xlane.xlu0 %4840
        %v4842 = vrcp.pop %v4838
        %v4843 = vmul.f32 %v4833, %v4842
        %v4844 = vrcp.pop %v4841
        %v4845 = vmul.f32 %v4835, %v4844
        %v4846 = vpack.c.bf16 %v4843, %v4843
        %v4847 = vpack.c.bf16 %v4845, %v4845
        %v4849 = vsel %vm2303, %v4846, 0
        %v4852 = vsel %vm2331, %v4742, 0
        %4854 = vmatprep.subr.bf16.mxu0 0
        %4855 = vmatpush1.bf16.msra.mxu0 %v4852
        %4856 = vmatprep.subr.bf16.mxu0 0
        %4857 = vmatpush1.bf16.msra.mxu0 0
        %4858 = vmatprep.subr.bf16.mxu0 0
        %4859 = vmatpush1.bf16.msra.mxu0 0
        %4860 = vmatprep.subr.bf16.mxu0 0
        %4861 = vmatpush1.bf16.msra.mxu0 0
        %4862 = vmatprep.subr.bf16.mxu0 0
        %4863 = vmatpush1.bf16.msra.mxu0 0
        %4864 = vmatprep.subr.bf16.mxu0 0
        %4865 = vmatpush1.bf16.msra.mxu0 0
        %4866 = vmatprep.subr.bf16.mxu0 0
        %4867 = vmatpush1.bf16.msra.mxu0 0
        %4868 = vmatprep.subr.bf16.mxu0 0
        %4869 = vmatpush1.bf16.msra.mxu0 0
        %4870 = vmatprep.subr.bf16.mxu0 0
        %4871 = vmatpush1.bf16.msra.mxu0 0
        %4872 = vmatprep.subr.bf16.mxu0 0
        %4873 = vmatpush1.bf16.msra.mxu0 0
        %4874 = vmatprep.subr.bf16.mxu0 0
        %4875 = vmatpush1.bf16.msra.mxu0 0
        %4876 = vmatprep.subr.bf16.mxu0 0
        %4877 = vmatpush1.bf16.msra.mxu0 0
        %4878 = vmatprep.subr.bf16.mxu0 0
        %4879 = vmatpush1.bf16.msra.mxu0 0
        %4880 = vmatprep.subr.bf16.mxu0 0
        %4881 = vmatpush1.bf16.msra.mxu0 0
        %4882 = vmatprep.subr.bf16.mxu0 0
        %4883 = vmatpush1.bf16.msra.mxu0 0
        %4884 = vmatprep.subr.bf16.mxu0 0
        %4885 = vmatpush1.bf16.msra.mxu0 0
        %4886 = vmatprep.mubr.bf16.mxu0 0
        %4887 = vmatmul.mubr.bf16.gmra.mrb[0].mxu0 %v4849
        %v4888 = vpop.f32.mrb[0].mxu0
        %v4889 = vadd.f32 0.0, %v4888
        %v4890 = vpop.f32.mrb[0].mxu0
        %v4891 = vpop.f32.mrb[0].mxu0
        %v4892 = vpop.f32.mrb[0].mxu0
        %4893 = vdwg.mxu0
        %v4895 = vsel %vm2303, %v4847, 0
        %v4898 = vsel %vm2331, %v4743, 0
        %4900 = vmatprep.subr.bf16.mxu0 0
        %4901 = vmatpush1.bf16.msra.mxu0 %v4898
        %4902 = vmatprep.subr.bf16.mxu0 0
        %4903 = vmatpush1.bf16.msra.mxu0 0
        %4904 = vmatprep.subr.bf16.mxu0 0
        %4905 = vmatpush1.bf16.msra.mxu0 0
        %4906 = vmatprep.subr.bf16.mxu0 0
        %4907 = vmatpush1.bf16.msra.mxu0 0
        %4908 = vmatprep.subr.bf16.mxu0 0
        %4909 = vmatpush1.bf16.msra.mxu0 0
        %4910 = vmatprep.subr.bf16.mxu0 0
        %4911 = vmatpush1.bf16.msra.mxu0 0
        %4912 = vmatprep.subr.bf16.mxu0 0
        %4913 = vmatpush1.bf16.msra.mxu0 0
        %4914 = vmatprep.subr.bf16.mxu0 0
        %4915 = vmatpush1.bf16.msra.mxu0 0
        %4916 = vmatprep.subr.bf16.mxu0 0
        %4917 = vmatpush1.bf16.msra.mxu0 0
        %4918 = vmatprep.subr.bf16.mxu0 0
        %4919 = vmatpush1.bf16.msra.mxu0 0
        %4920 = vmatprep.subr.bf16.mxu0 0
        %4921 = vmatpush1.bf16.msra.mxu0 0
        %4922 = vmatprep.subr.bf16.mxu0 0
        %4923 = vmatpush1.bf16.msra.mxu0 0
        %4924 = vmatprep.subr.bf16.mxu0 0
        %4925 = vmatpush1.bf16.msra.mxu0 0
        %4926 = vmatprep.subr.bf16.mxu0 0
        %4927 = vmatpush1.bf16.msra.mxu0 0
        %4928 = vmatprep.subr.bf16.mxu0 0
        %4929 = vmatpush1.bf16.msra.mxu0 0
        %4930 = vmatprep.subr.bf16.mxu0 0
        %4931 = vmatpush1.bf16.msra.mxu0 0
        %4932 = vmatprep.mubr.bf16.mxu0 0
        %4933 = vmatmul.mubr.bf16.gmra.mrb[0].mxu0 %v4895
        %v4934 = vpop.f32.mrb[0].mxu0
        %v4935 = vadd.f32 0.0, %v4934
        %v4936 = vpop.f32.mrb[0].mxu0
        %v4937 = vpop.f32.mrb[0].mxu0
        %v4938 = vpop.f32.mrb[0].mxu0
        %4939 = vdwg.mxu0
        %v4940 = vpack.c.bf16 %v3730, %v3730
        %v4941 = vpack.c.bf16 %v3734, %v3734
        %v4942 = vpack.c.bf16 %v4242, %v4242
        %v4943 = vpack.c.bf16 %v4246, %v4246
        %v4944 = vpack.c.bf16 %v4328, %v4328
        %v4945 = vpack.c.bf16 %v4332, %v4332
        %4946 = vmatprep.subr.bf16.mxu0 0
        %4947 = vmatpush1.bf16.xpose.msra.mxu0 %v4942
        %4948 = vmatprep.subr.bf16.mxu0 0
        %4949 = vmatpush1.bf16.xpose.msra.mxu0 0
        %4950 = vmatprep.subr.bf16.mxu0 0
        %4951 = vmatpush1.bf16.xpose.msra.mxu0 0
        %4952 = vmatprep.subr.bf16.mxu0 0
        %4953 = vmatpush1.bf16.xpose.msra.mxu0 0
        %4954 = vmatprep.subr.bf16.mxu0 0
        %4955 = vmatpush1.bf16.xpose.msra.mxu0 0
        %4956 = vmatprep.subr.bf16.mxu0 0
        %4957 = vmatpush1.bf16.xpose.msra.mxu0 0
        %4958 = vmatprep.subr.bf16.mxu0 0
        %4959 = vmatpush1.bf16.xpose.msra.mxu0 0
        %4960 = vmatprep.subr.bf16.mxu0 0
        %4961 = vmatpush1.bf16.xpose.msra.mxu0 0
        %4962 = vmatprep.subr.bf16.mxu0 0
        %4963 = vmatpush1.bf16.xpose.msra.mxu0 0
        %4964 = vmatprep.subr.bf16.mxu0 0
        %4965 = vmatpush1.bf16.xpose.msra.mxu0 0
        %4966 = vmatprep.subr.bf16.mxu0 0
        %4967 = vmatpush1.bf16.xpose.msra.mxu0 0
        %4968 = vmatprep.subr.bf16.mxu0 0
        %4969 = vmatpush1.bf16.xpose.msra.mxu0 0
        %4970 = vmatprep.subr.bf16.mxu0 0
        %4971 = vmatpush1.bf16.xpose.msra.mxu0 0
        %4972 = vmatprep.subr.bf16.mxu0 0
        %4973 = vmatpush1.bf16.xpose.msra.mxu0 0
        %4974 = vmatprep.subr.bf16.mxu0 0
        %4975 = vmatpush1.bf16.xpose.msra.mxu0 0
        %4976 = vmatprep.subr.bf16.mxu0 0
        %4977 = vmatpush1.bf16.xpose.msra.mxu0 0
        %4978 = vmatprep.mubr.bf16.mxu0 0
        %4979 = vmatmul.mubr.bf16.gmra.mrb[0].mxu0 %v4940
        %v4980 = vpop.f32.mrb[0].mxu0
        %v4981 = vadd.f32 0.0, %v4980
        %v4982 = vpop.f32.mrb[0].mxu0
        %v4983 = vpop.f32.mrb[0].mxu0
        %v4984 = vpop.f32.mrb[0].mxu0
        %4985 = vdwg.mxu0
        %4986 = vmatprep.subr.bf16.mxu0 0
        %4987 = vmatpush1.bf16.xpose.msra.mxu0 %v4943
        %4988 = vmatprep.subr.bf16.mxu0 0
        %4989 = vmatpush1.bf16.xpose.msra.mxu0 0
        %4990 = vmatprep.subr.bf16.mxu0 0
        %4991 = vmatpush1.bf16.xpose.msra.mxu0 0
        %4992 = vmatprep.subr.bf16.mxu0 0
        %4993 = vmatpush1.bf16.xpose.msra.mxu0 0
        %4994 = vmatprep.subr.bf16.mxu0 0
        %4995 = vmatpush1.bf16.xpose.msra.mxu0 0
        %4996 = vmatprep.subr.bf16.mxu0 0
        %4997 = vmatpush1.bf16.xpose.msra.mxu0 0
        %4998 = vmatprep.subr.bf16.mxu0 0
        %4999 = vmatpush1.bf16.xpose.msra.mxu0 0
        %5000 = vmatprep.subr.bf16.mxu0 0
        %5001 = vmatpush1.bf16.xpose.msra.mxu0 0
        %5002 = vmatprep.subr.bf16.mxu0 0
        %5003 = vmatpush1.bf16.xpose.msra.mxu0 0
        %5004 = vmatprep.subr.bf16.mxu0 0
        %5005 = vmatpush1.bf16.xpose.msra.mxu0 0
        %5006 = vmatprep.subr.bf16.mxu0 0
        %5007 = vmatpush1.bf16.xpose.msra.mxu0 0
        %5008 = vmatprep.subr.bf16.mxu0 0
        %5009 = vmatpush1.bf16.xpose.msra.mxu0 0
        %5010 = vmatprep.subr.bf16.mxu0 0
        %5011 = vmatpush1.bf16.xpose.msra.mxu0 0
        %5012 = vmatprep.subr.bf16.mxu0 0
        %5013 = vmatpush1.bf16.xpose.msra.mxu0 0
        %5014 = vmatprep.subr.bf16.mxu0 0
        %5015 = vmatpush1.bf16.xpose.msra.mxu0 0
        %5016 = vmatprep.subr.bf16.mxu0 0
        %5017 = vmatpush1.bf16.xpose.msra.mxu0 0
        %5018 = vmatprep.mubr.bf16.mxu0 0
        %5019 = vmatmul.mubr.bf16.gmra.mrb[0].mxu0 %v4941
        %v5020 = vpop.f32.mrb[0].mxu0
        %v5021 = vadd.f32 0.0, %v5020
        %v5022 = vpop.f32.mrb[0].mxu0
        %v5023 = vpop.f32.mrb[0].mxu0
        %v5024 = vpop.f32.mrb[0].mxu0
        %5025 = vdwg.mxu0
        %v5026 = vsel %vm2303, %v4981, -inf
        %5027 = vmax.xlane.f32.xlu0 %v5026
        %v5028 = vpop.xlane.xlu0 %5027
        %v5029 = vsel %vm2303, %v5021, -inf
        %5030 = vmax.xlane.f32.xlu0 %v5029
        %v5031 = vpop.xlane.xlu0 %5030
        %v5032 = vsub.f32 %v4981, %v5028
        %v5033 = vsub.f32 %v5021, %v5031
        %v5034 = vmul.f32 %v5032, 1.442695
        %v5035 = vpow.pop %v5034
        %v5036 = vmul.f32 %v5033, 1.442695
        %v5037 = vpow.pop %v5036
        %v5038 = vsel %vm2303, %v5035, 0.0
        %5039 = vadd.xlane.f32.xlu0 %v5038
        %v5040 = vpop.xlane.xlu0 %5039
        %v5041 = vsel %vm2303, %v5037, 0.0
        %5042 = vadd.xlane.f32.xlu0 %v5041
        %v5043 = vpop.xlane.xlu0 %5042
        %v5044 = vrcp.pop %v5040
        %v5045 = vmul.f32 %v5035, %v5044
        %v5046 = vrcp.pop %v5043
        %v5047 = vmul.f32 %v5037, %v5046
        %v5048 = vpack.c.bf16 %v5045, %v5045
        %v5049 = vpack.c.bf16 %v5047, %v5047
        %v5051 = vsel %vm2303, %v5048, 0
        %v5054 = vsel %vm2331, %v4944, 0
        %5056 = vmatprep.subr.bf16.mxu0 0
        %5057 = vmatpush1.bf16.msra.mxu0 %v5054
        %5058 = vmatprep.subr.bf16.mxu0 0
        %5059 = vmatpush1.bf16.msra.mxu0 0
        %5060 = vmatprep.subr.bf16.mxu0 0
        %5061 = vmatpush1.bf16.msra.mxu0 0
        %5062 = vmatprep.subr.bf16.mxu0 0
        %5063 = vmatpush1.bf16.msra.mxu0 0
        %5064 = vmatprep.subr.bf16.mxu0 0
        %5065 = vmatpush1.bf16.msra.mxu0 0
        %5066 = vmatprep.subr.bf16.mxu0 0
        %5067 = vmatpush1.bf16.msra.mxu0 0
        %5068 = vmatprep.subr.bf16.mxu0 0
        %5069 = vmatpush1.bf16.msra.mxu0 0
        %5070 = vmatprep.subr.bf16.mxu0 0
        %5071 = vmatpush1.bf16.msra.mxu0 0
        %5072 = vmatprep.subr.bf16.mxu0 0
        %5073 = vmatpush1.bf16.msra.mxu0 0
        %5074 = vmatprep.subr.bf16.mxu0 0
        %5075 = vmatpush1.bf16.msra.mxu0 0
        %5076 = vmatprep.subr.bf16.mxu0 0
        %5077 = vmatpush1.bf16.msra.mxu0 0
        %5078 = vmatprep.subr.bf16.mxu0 0
        %5079 = vmatpush1.bf16.msra.mxu0 0
        %5080 = vmatprep.subr.bf16.mxu0 0
        %5081 = vmatpush1.bf16.msra.mxu0 0
        %5082 = vmatprep.subr.bf16.mxu0 0
        %5083 = vmatpush1.bf16.msra.mxu0 0
        %5084 = vmatprep.subr.bf16.mxu0 0
        %5085 = vmatpush1.bf16.msra.mxu0 0
        %5086 = vmatprep.subr.bf16.mxu0 0
        %5087 = vmatpush1.bf16.msra.mxu0 0
        %5088 = vmatprep.mubr.bf16.mxu0 0
        %5089 = vmatmul.mubr.bf16.gmra.mrb[0].mxu0 %v5051
        %v5090 = vpop.f32.mrb[0].mxu0
        %v5091 = vadd.f32 0.0, %v5090
        %v5092 = vpop.f32.mrb[0].mxu0
        %v5093 = vpop.f32.mrb[0].mxu0
        %v5094 = vpop.f32.mrb[0].mxu0
        %5095 = vdwg.mxu0
        %v5097 = vsel %vm2303, %v5049, 0
        %v5100 = vsel %vm2331, %v4945, 0
        %5102 = vmatprep.subr.bf16.mxu0 0
        %5103 = vmatpush1.bf16.msra.mxu0 %v5100
        %5104 = vmatprep.subr.bf16.mxu0 0
        %5105 = vmatpush1.bf16.msra.mxu0 0
        %5106 = vmatprep.subr.bf16.mxu0 0
        %5107 = vmatpush1.bf16.msra.mxu0 0
        %5108 = vmatprep.subr.bf16.mxu0 0
        %5109 = vmatpush1.bf16.msra.mxu0 0
        %5110 = vmatprep.subr.bf16.mxu0 0
        %5111 = vmatpush1.bf16.msra.mxu0 0
        %5112 = vmatprep.subr.bf16.mxu0 0
        %5113 = vmatpush1.bf16.msra.mxu0 0
        %5114 = vmatprep.subr.bf16.mxu0 0
        %5115 = vmatpush1.bf16.msra.mxu0 0
        %5116 = vmatprep.subr.bf16.mxu0 0
        %5117 = vmatpush1.bf16.msra.mxu0 0
        %5118 = vmatprep.subr.bf16.mxu0 0
        %5119 = vmatpush1.bf16.msra.mxu0 0
        %5120 = vmatprep.subr.bf16.mxu0 0
        %5121 = vmatpush1.bf16.msra.mxu0 0
        %5122 = vmatprep.subr.bf16.mxu0 0
        %5123 = vmatpush1.bf16.msra.mxu0 0
        %5124 = vmatprep.subr.bf16.mxu0 0
        %5125 = vmatpush1.bf16.msra.mxu0 0
        %5126 = vmatprep.subr.bf16.mxu0 0
        %5127 = vmatpush1.bf16.msra.mxu0 0
        %5128 = vmatprep.subr.bf16.mxu0 0
        %5129 = vmatpush1.bf16.msra.mxu0 0
        %5130 = vmatprep.subr.bf16.mxu0 0
        %5131 = vmatpush1.bf16.msra.mxu0 0
        %5132 = vmatprep.subr.bf16.mxu0 0
        %5133 = vmatpush1.bf16.msra.mxu0 0
        %5134 = vmatprep.mubr.bf16.mxu0 0
        %5135 = vmatmul.mubr.bf16.gmra.mrb[0].mxu0 %v5097
        %v5136 = vpop.f32.mrb[0].mxu0
        %v5137 = vadd.f32 0.0, %v5136
        %v5138 = vpop.f32.mrb[0].mxu0
        %v5139 = vpop.f32.mrb[0].mxu0
        %v5140 = vpop.f32.mrb[0].mxu0
        %5141 = vdwg.mxu0
        %v5142 = vpack.c.bf16 %v4531, %v4485
        %v5143 = vpack.c.bf16 %v4733, %v4687
        %v5144 = vpack.c.bf16 %v4935, %v4889
        %v5145 = vpack.c.bf16 %v5137, %v5091
        %v5146 = vld [vmem:[%s1060] sm:$0xf]
        %v5147 = vld [vmem:[%s1060 + $0x4] sm:$0xf]
        %v5148 = vld [vmem:[%s1060 + $0x8] sm:$0xf]
        %v5149 = vld [vmem:[%s1060 + $0xc] sm:$0xf]
        %v5150 = vld [vmem:[%s1060 + $0x10] sm:$0xf]
        %v5151 = vld [vmem:[%s1060 + $0x14] sm:$0xf]
        %v5152 = vld [vmem:[%s1060 + $0x18] sm:$0xf]
        %v5153 = vld [vmem:[%s1060 + $0x1c] sm:$0xf]
        %v5154 = vld [vmem:[%s1060 + $0x20] sm:$0xf]
        %v5155 = vld [vmem:[%s1060 + $0x24] sm:$0xf]
        %v5156 = vld [vmem:[%s1060 + $0x28] sm:$0xf]
        %v5157 = vld [vmem:[%s1060 + $0x2c] sm:$0xf]
        %v5158 = vld [vmem:[%s1060 + $0x30] sm:$0xf]
        %v5159 = vld [vmem:[%s1060 + $0x34] sm:$0xf]
        %v5160 = vld [vmem:[%s1060 + $0x38] sm:$0xf]
        %v5161 = vld [vmem:[%s1060 + $0x3c] sm:$0xf]
        %v5162 = vld [vmem:[%s1060 + $0x40] sm:$0xf]
        %v5163 = vld [vmem:[%s1060 + $0x44] sm:$0xf]
        %v5164 = vld [vmem:[%s1060 + $0x48] sm:$0xf]
        %v5165 = vld [vmem:[%s1060 + $0x4c] sm:$0xf]
        %v5166 = vld [vmem:[%s1060 + $0x50] sm:$0xf]
        %v5167 = vld [vmem:[%s1060 + $0x54] sm:$0xf]
        %v5168 = vld [vmem:[%s1060 + $0x58] sm:$0xf]
        %v5169 = vld [vmem:[%s1060 + $0x5c] sm:$0xf]
        %v5170 = vld [vmem:[%s1060 + $0x60] sm:$0xf]
        %v5171 = vld [vmem:[%s1060 + $0x64] sm:$0xf]
        %v5172 = vld [vmem:[%s1060 + $0x68] sm:$0xf]
        %v5173 = vld [vmem:[%s1060 + $0x6c] sm:$0xf]
        %v5174 = vld [vmem:[%s1060 + $0x70] sm:$0xf]
        %v5175 = vld [vmem:[%s1060 + $0x74] sm:$0xf]
        %v5176 = vld [vmem:[%s1060 + $0x78] sm:$0xf]
        %v5177 = vld [vmem:[%s1060 + $0x7c] sm:$0xf]
        %v5178 = vld [vmem:[%s1060 + $0x80] sm:$0xf]
        %v5179 = vld [vmem:[%s1060 + $0x84] sm:$0xf]
        %v5180 = vld [vmem:[%s1060 + $0x88] sm:$0xf]
        %v5181 = vld [vmem:[%s1060 + $0x8c] sm:$0xf]
        %v5182 = vld [vmem:[%s1060 + $0x90] sm:$0xf]
        %v5183 = vld [vmem:[%s1060 + $0x94] sm:$0xf]
        %v5184 = vld [vmem:[%s1060 + $0x98] sm:$0xf]
        %v5185 = vld [vmem:[%s1060 + $0x9c] sm:$0xf]
        %v5186 = vld [vmem:[%s1060 + $0xa0] sm:$0xf]
        %v5187 = vld [vmem:[%s1060 + $0xa4] sm:$0xf]
        %v5188 = vld [vmem:[%s1060 + $0xa8] sm:$0xf]
        %v5189 = vld [vmem:[%s1060 + $0xac] sm:$0xf]
        %v5190 = vld [vmem:[%s1060 + $0xb0] sm:$0xf]
        %v5191 = vld [vmem:[%s1060 + $0xb4] sm:$0xf]
        %v5192 = vld [vmem:[%s1060 + $0xb8] sm:$0xf]
        %v5193 = vld [vmem:[%s1060 + $0xbc] sm:$0xf]
        %v5194 = vld [vmem:[%s1060 + $0xc0] sm:$0xf]
        %v5195 = vld [vmem:[%s1060 + $0xc4] sm:$0xf]
        %v5196 = vld [vmem:[%s1060 + $0xc8] sm:$0xf]
        %v5197 = vld [vmem:[%s1060 + $0xcc] sm:$0xf]
        %v5198 = vld [vmem:[%s1060 + $0xd0] sm:$0xf]
        %v5199 = vld [vmem:[%s1060 + $0xd4] sm:$0xf]
        %v5200 = vld [vmem:[%s1060 + $0xd8] sm:$0xf]
        %v5201 = vld [vmem:[%s1060 + $0xdc] sm:$0xf]
        %v5202 = vld [vmem:[%s1060 + $0xe0] sm:$0xf]
        %v5203 = vld [vmem:[%s1060 + $0xe4] sm:$0xf]
        %v5204 = vld [vmem:[%s1060 + $0xe8] sm:$0xf]
        %v5205 = vld [vmem:[%s1060 + $0xec] sm:$0xf]
        %v5206 = vld [vmem:[%s1060 + $0xf0] sm:$0xf]
        %v5207 = vld [vmem:[%s1060 + $0xf4] sm:$0xf]
        %v5208 = vld [vmem:[%s1060 + $0xf8] sm:$0xf]
        %v5209 = vld [vmem:[%s1060 + $0xfc] sm:$0xf]
        %v5210 = vld [vmem:[%s1068] sm:$0x1]
        %v5212 = vlaneseq
        %v5213 = vshrl.u32 %v5212, 7
        %v5214 = vsub.s32 0, %v5213
        %v5215 = vrot.slane %v5210, %v5214
        %v5281 = vunpack.c.l.b16 %v5146
        %v5282 = vunpack.c.l.b16 %v5147
        %v5283 = vunpack.c.l.b16 %v5148
        %v5284 = vunpack.c.l.b16 %v5149
        %v5285 = vunpack.c.l.b16 %v5150
        %v5286 = vunpack.c.l.b16 %v5151
        %v5287 = vunpack.c.l.b16 %v5152
        %v5288 = vunpack.c.l.b16 %v5153
        %v5289 = vunpack.c.l.b16 %v5154
        %v5290 = vunpack.c.l.b16 %v5155
        %v5291 = vunpack.c.l.b16 %v5156
        %v5292 = vunpack.c.l.b16 %v5157
        %v5293 = vunpack.c.l.b16 %v5158
        %v5294 = vunpack.c.l.b16 %v5159
        %v5295 = vunpack.c.l.b16 %v5160
        %v5296 = vunpack.c.l.b16 %v5161
        %v5297 = vunpack.c.l.b16 %v5162
        %v5298 = vunpack.c.l.b16 %v5163
        %v5299 = vunpack.c.l.b16 %v5164
        %v5300 = vunpack.c.l.b16 %v5165
        %v5301 = vunpack.c.l.b16 %v5166
        %v5302 = vunpack.c.l.b16 %v5167
        %v5303 = vunpack.c.l.b16 %v5168
        %v5304 = vunpack.c.l.b16 %v5169
        %v5305 = vunpack.c.l.b16 %v5170
        %v5306 = vunpack.c.l.b16 %v5171
        %v5307 = vunpack.c.l.b16 %v5172
        %v5308 = vunpack.c.l.b16 %v5173
        %v5309 = vunpack.c.l.b16 %v5174
        %v5310 = vunpack.c.l.b16 %v5175
        %v5311 = vunpack.c.l.b16 %v5176
        %v5312 = vunpack.c.l.b16 %v5177
        %v5313 = vunpack.c.l.b16 %v5178
        %v5314 = vunpack.c.l.b16 %v5179
        %v5315 = vunpack.c.l.b16 %v5180
        %v5316 = vunpack.c.l.b16 %v5181
        %v5317 = vunpack.c.l.b16 %v5182
        %v5318 = vunpack.c.l.b16 %v5183
        %v5319 = vunpack.c.l.b16 %v5184
        %v5320 = vunpack.c.l.b16 %v5185
        %v5321 = vunpack.c.l.b16 %v5186
        %v5322 = vunpack.c.l.b16 %v5187
        %v5323 = vunpack.c.l.b16 %v5188
        %v5324 = vunpack.c.l.b16 %v5189
        %v5325 = vunpack.c.l.b16 %v5190
        %v5326 = vunpack.c.l.b16 %v5191
        %v5327 = vunpack.c.l.b16 %v5192
        %v5328 = vunpack.c.l.b16 %v5193
        %v5329 = vunpack.c.l.b16 %v5194
        %v5330 = vunpack.c.l.b16 %v5195
        %v5331 = vunpack.c.l.b16 %v5196
        %v5332 = vunpack.c.l.b16 %v5197
        %v5333 = vunpack.c.l.b16 %v5198
        %v5334 = vunpack.c.l.b16 %v5199
        %v5335 = vunpack.c.l.b16 %v5200
        %v5336 = vunpack.c.l.b16 %v5201
        %v5337 = vunpack.c.l.b16 %v5202
        %v5338 = vunpack.c.l.b16 %v5203
        %v5339 = vunpack.c.l.b16 %v5204
        %v5340 = vunpack.c.l.b16 %v5205
        %v5341 = vunpack.c.l.b16 %v5206
        %v5342 = vunpack.c.l.b16 %v5207
        %v5343 = vunpack.c.l.b16 %v5208
        %v5344 = vunpack.c.l.b16 %v5209
        %v5345 = vpack.c.b16 %v5282, %v5281
        %v5346 = vpack.c.b16 %v5284, %v5283
        %v5347 = vpack.c.b16 %v5286, %v5285
        %v5348 = vpack.c.b16 %v5288, %v5287
        %v5349 = vpack.c.b16 %v5290, %v5289
        %v5350 = vpack.c.b16 %v5292, %v5291
        %v5351 = vpack.c.b16 %v5294, %v5293
        %v5352 = vpack.c.b16 %v5296, %v5295
        %v5353 = vpack.c.b16 %v5298, %v5297
        %v5354 = vpack.c.b16 %v5300, %v5299
        %v5355 = vpack.c.b16 %v5302, %v5301
        %v5356 = vpack.c.b16 %v5304, %v5303
        %v5357 = vpack.c.b16 %v5306, %v5305
        %v5358 = vpack.c.b16 %v5308, %v5307
        %v5359 = vpack.c.b16 %v5310, %v5309
        %v5360 = vpack.c.b16 %v5312, %v5311
        %v5361 = vpack.c.b16 %v5314, %v5313
        %v5362 = vpack.c.b16 %v5316, %v5315
        %v5363 = vpack.c.b16 %v5318, %v5317
        %v5364 = vpack.c.b16 %v5320, %v5319
        %v5365 = vpack.c.b16 %v5322, %v5321
        %v5366 = vpack.c.b16 %v5324, %v5323
        %v5367 = vpack.c.b16 %v5326, %v5325
        %v5368 = vpack.c.b16 %v5328, %v5327
        %v5369 = vpack.c.b16 %v5330, %v5329
        %v5370 = vpack.c.b16 %v5332, %v5331
        %v5371 = vpack.c.b16 %v5334, %v5333
        %v5372 = vpack.c.b16 %v5336, %v5335
        %v5373 = vpack.c.b16 %v5338, %v5337
        %v5374 = vpack.c.b16 %v5340, %v5339
        %v5375 = vpack.c.b16 %v5342, %v5341
        %v5376 = vpack.c.b16 %v5344, %v5343
        %5409 = vmatprep.subr.bf16.mxu0 0
        %5410 = vmatpush1.bf16.msra.mxu0 %v5345
        %5411 = vmatprep.subr.bf16.mxu0 0
        %5412 = vmatpush1.bf16.msra.mxu0 %v5346
        %5413 = vmatprep.subr.bf16.mxu0 0
        %5414 = vmatpush1.bf16.msra.mxu0 %v5347
        %5415 = vmatprep.subr.bf16.mxu0 0
        %5416 = vmatpush1.bf16.msra.mxu0 %v5348
        %5417 = vmatprep.subr.bf16.mxu0 0
        %5418 = vmatpush1.bf16.msra.mxu0 %v5349
        %5419 = vmatprep.subr.bf16.mxu0 0
        %5420 = vmatpush1.bf16.msra.mxu0 %v5350
        %5421 = vmatprep.subr.bf16.mxu0 0
        %5422 = vmatpush1.bf16.msra.mxu0 %v5351
        %5423 = vmatprep.subr.bf16.mxu0 0
        %5424 = vmatpush1.bf16.msra.mxu0 %v5352
        %5425 = vmatprep.subr.bf16.mxu0 0
        %5426 = vmatpush1.bf16.msra.mxu0 %v5353
        %5427 = vmatprep.subr.bf16.mxu0 0
        %5428 = vmatpush1.bf16.msra.mxu0 %v5354
        %5429 = vmatprep.subr.bf16.mxu0 0
        %5430 = vmatpush1.bf16.msra.mxu0 %v5355
        %5431 = vmatprep.subr.bf16.mxu0 0
        %5432 = vmatpush1.bf16.msra.mxu0 %v5356
        %5433 = vmatprep.subr.bf16.mxu0 0
        %5434 = vmatpush1.bf16.msra.mxu0 %v5357
        %5435 = vmatprep.subr.bf16.mxu0 0
        %5436 = vmatpush1.bf16.msra.mxu0 %v5358
        %5437 = vmatprep.subr.bf16.mxu0 0
        %5438 = vmatpush1.bf16.msra.mxu0 %v5359
        %5439 = vmatprep.subr.bf16.mxu0 0
        %5440 = vmatpush1.bf16.msra.mxu0 %v5360
        %5441 = vmatprep.mubr.bf16.mxu0 %v5143
        %5442 = vmatmul.mubr.bf16.gmra.mrb[0].mxu0 %v5142
        %v5443 = vpop.f32.mrb[0].mxu0
        %v5444 = vadd.f32 %v5215, %v5443
        %v5445 = vpop.f32.mrb[0].mxu0
        %v5446 = vpop.f32.mrb[0].mxu0
        %v5447 = vadd.f32 %v5215, %v5446
        %v5448 = vpop.f32.mrb[0].mxu0
        %5449 = vdwg.mxu0
        %5450 = vmatprep.subr.bf16.mxu0 0
        %5451 = vmatpush1.bf16.msra.mxu0 %v5361
        %5452 = vmatprep.subr.bf16.mxu0 0
        %5453 = vmatpush1.bf16.msra.mxu0 %v5362
        %5454 = vmatprep.subr.bf16.mxu0 0
        %5455 = vmatpush1.bf16.msra.mxu0 %v5363
        %5456 = vmatprep.subr.bf16.mxu0 0
        %5457 = vmatpush1.bf16.msra.mxu0 %v5364
        %5458 = vmatprep.subr.bf16.mxu0 0
        %5459 = vmatpush1.bf16.msra.mxu0 %v5365
        %5460 = vmatprep.subr.bf16.mxu0 0
        %5461 = vmatpush1.bf16.msra.mxu0 %v5366
        %5462 = vmatprep.subr.bf16.mxu0 0
        %5463 = vmatpush1.bf16.msra.mxu0 %v5367
        %5464 = vmatprep.subr.bf16.mxu0 0
        %5465 = vmatpush1.bf16.msra.mxu0 %v5368
        %5466 = vmatprep.subr.bf16.mxu0 0
        %5467 = vmatpush1.bf16.msra.mxu0 %v5369
        %5468 = vmatprep.subr.bf16.mxu0 0
        %5469 = vmatpush1.bf16.msra.mxu0 %v5370
        %5470 = vmatprep.subr.bf16.mxu0 0
        %5471 = vmatpush1.bf16.msra.mxu0 %v5371
        %5472 = vmatprep.subr.bf16.mxu0 0
        %5473 = vmatpush1.bf16.msra.mxu0 %v5372
        %5474 = vmatprep.subr.bf16.mxu0 0
        %5475 = vmatpush1.bf16.msra.mxu0 %v5373
        %5476 = vmatprep.subr.bf16.mxu0 0
        %5477 = vmatpush1.bf16.msra.mxu0 %v5374
        %5478 = vmatprep.subr.bf16.mxu0 0
        %5479 = vmatpush1.bf16.msra.mxu0 %v5375
        %5480 = vmatprep.subr.bf16.mxu0 0
        %5481 = vmatpush1.bf16.msra.mxu0 %v5376
        %5482 = vmatprep.mubr.bf16.mxu0 %v5145
        %5483 = vmatmul.mubr.bf16.gmra.mrb[0].mxu0 %v5144
        %v5484 = vpop.f32.mrb[0].mxu0
        %v5485 = vadd.f32 %v5444, %v5484
        %v5486 = vpop.f32.mrb[0].mxu0
        %v5487 = vpop.f32.mrb[0].mxu0
        %v5488 = vadd.f32 %v5447, %v5487
        %v5489 = vpop.f32.mrb[0].mxu0
        %5490 = vdwg.mxu0
        %v5491 = vadd.f32 %v3424, %v5485
        %v5492 = vadd.f32 %v3425, %v5488
        %5493 = vadd.xlane.f32.xlu0 %v5491
        %v5494 = vpop.xlane.xlu0 %5493
        %5495 = vadd.xlane.f32.xlu0 %v5492
        %v5496 = vpop.xlane.xlu0 %5495
        %v5497 = vmul.f32 %v5494, 0.03125
        %v5498 = vmul.f32 %v5496, 0.03125
        %v5499 = vsub.f32 %v5491, %v5497
        %v5500 = vsub.f32 %v5492, %v5498
        %v5501 = vmul.f32 %v5499, %v1302
        %v5502 = vmul.f32 %v5500, %v1302
        %v5503 = vmul.f32 %v5501, %v5501
        %v5504 = vmul.f32 %v5502, %v5502
        %5505 = vadd.xlane.f32.xlu0 %v5503
        %v5506 = vpop.xlane.xlu0 %5505
        %5507 = vadd.xlane.f32.xlu0 %v5504
        %v5508 = vpop.xlane.xlu0 %5507
        %v5509 = vmul.f32 %v5506, 0.03125
        %v5510 = vmul.f32 %v5508, 0.03125
        %v5511 = vadd.f32 %v5509, 1e-05
        %v5512 = vadd.f32 %v5510, 1e-05
        %v5513 = vrsqrt.pop %v5511
        %v5514 = vrsqrt.pop %v5512
        %v5515 = vmul.f32 %v5501, %v5513
        %v5516 = vmul.f32 %v5502, %v5514
        %v5517 = vld [vmem:[%s1272] sm:$0x1]
        %v5519 = vlaneseq
        %v5520 = vshrl.u32 %v5519, 7
        %v5521 = vsub.s32 0, %v5520
        %v5522 = vrot.slane %v5517, %v5521
        %v5524 = vmul.f32 %v5515, %v5522
        %v5525 = vmul.f32 %v5516, %v5522
        %v5526 = vld [vmem:[%s1108] sm:$0x1]
        %v5528 = vlaneseq
        %v5529 = vshrl.u32 %v5528, 7
        %v5530 = vsub.s32 0, %v5529
        %v5531 = vrot.slane %v5526, %v5530
        %v5533 = vadd.f32 %v5524, %v5531
        %v5534 = vadd.f32 %v5525, %v5531
        %v5535 = vpack.c.bf16 %v5534, %v5533
        %v5536 = vld [vmem:[%s1264] sm:$0xf]
        %v5537 = vld [vmem:[%s1264 + $0x4] sm:$0xf]
        %v5538 = vld [vmem:[%s1264 + $0x8] sm:$0xf]
        %v5539 = vld [vmem:[%s1264 + $0xc] sm:$0xf]
        %v5540 = vld [vmem:[%s1264 + $0x10] sm:$0xf]
        %v5541 = vld [vmem:[%s1264 + $0x14] sm:$0xf]
        %v5542 = vld [vmem:[%s1264 + $0x18] sm:$0xf]
        %v5543 = vld [vmem:[%s1264 + $0x1c] sm:$0xf]
        %v5544 = vld [vmem:[%s1264 + $0x20] sm:$0xf]
        %v5545 = vld [vmem:[%s1264 + $0x24] sm:$0xf]
        %v5546 = vld [vmem:[%s1264 + $0x28] sm:$0xf]
        %v5547 = vld [vmem:[%s1264 + $0x2c] sm:$0xf]
        %v5548 = vld [vmem:[%s1264 + $0x30] sm:$0xf]
        %v5549 = vld [vmem:[%s1264 + $0x34] sm:$0xf]
        %v5550 = vld [vmem:[%s1264 + $0x38] sm:$0xf]
        %v5551 = vld [vmem:[%s1264 + $0x3c] sm:$0xf]
        %v5552 = vld [vmem:[%s1076] sm:$0x1]
        %v5554 = vlaneseq
        %v5555 = vshrl.u32 %v5554, 7
        %v5556 = vsub.s32 0, %v5555
        %v5557 = vrot.slane %v5552, %v5556
        %v5575 = vunpack.c.l.b16 %v5536
        %v5576 = vunpack.c.l.b16 %v5537
        %v5577 = vunpack.c.l.b16 %v5538
        %v5578 = vunpack.c.l.b16 %v5539
        %v5579 = vunpack.c.l.b16 %v5540
        %v5580 = vunpack.c.l.b16 %v5541
        %v5581 = vunpack.c.l.b16 %v5542
        %v5582 = vunpack.c.l.b16 %v5543
        %v5583 = vunpack.c.l.b16 %v5544
        %v5584 = vunpack.c.l.b16 %v5545
        %v5585 = vunpack.c.l.b16 %v5546
        %v5586 = vunpack.c.l.b16 %v5547
        %v5587 = vunpack.c.l.b16 %v5548
        %v5588 = vunpack.c.l.b16 %v5549
        %v5589 = vunpack.c.l.b16 %v5550
        %v5590 = vunpack.c.l.b16 %v5551
        %v5591 = vpack.c.b16 %v5576, %v5575
        %v5592 = vpack.c.b16 %v5578, %v5577
        %v5593 = vpack.c.b16 %v5580, %v5579
        %v5594 = vpack.c.b16 %v5582, %v5581
        %v5595 = vpack.c.b16 %v5584, %v5583
        %v5596 = vpack.c.b16 %v5586, %v5585
        %v5597 = vpack.c.b16 %v5588, %v5587
        %v5598 = vpack.c.b16 %v5590, %v5589
        %5607 = vmatprep.subr.bf16.mxu0 0
        %5608 = vmatpush1.bf16.msra.mxu0 %v5591
        %5609 = vmatprep.subr.bf16.mxu0 0
        %5610 = vmatpush1.bf16.msra.mxu0 %v5592
        %5611 = vmatprep.subr.bf16.mxu0 0
        %5612 = vmatpush1.bf16.msra.mxu0 %v5593
        %5613 = vmatprep.subr.bf16.mxu0 0
        %5614 = vmatpush1.bf16.msra.mxu0 %v5594
        %5615 = vmatprep.subr.bf16.mxu0 0
        %5616 = vmatpush1.bf16.msra.mxu0 %v5595
        %5617 = vmatprep.subr.bf16.mxu0 0
        %5618 = vmatpush1.bf16.msra.mxu0 %v5596
        %5619 = vmatprep.subr.bf16.mxu0 0
        %5620 = vmatpush1.bf16.msra.mxu0 %v5597
        %5621 = vmatprep.subr.bf16.mxu0 0
        %5622 = vmatpush1.bf16.msra.mxu0 %v5598
        %5623 = vmatprep.subr.bf16.mxu0 0
        %5624 = vmatpush1.bf16.msra.mxu0 0
        %5625 = vmatprep.subr.bf16.mxu0 0
        %5626 = vmatpush1.bf16.msra.mxu0 0
        %5627 = vmatprep.subr.bf16.mxu0 0
        %5628 = vmatpush1.bf16.msra.mxu0 0
        %5629 = vmatprep.subr.bf16.mxu0 0
        %5630 = vmatpush1.bf16.msra.mxu0 0
        %5631 = vmatprep.subr.bf16.mxu0 0
        %5632 = vmatpush1.bf16.msra.mxu0 0
        %5633 = vmatprep.subr.bf16.mxu0 0
        %5634 = vmatpush1.bf16.msra.mxu0 0
        %5635 = vmatprep.subr.bf16.mxu0 0
        %5636 = vmatpush1.bf16.msra.mxu0 0
        %5637 = vmatprep.subr.bf16.mxu0 0
        %5638 = vmatpush1.bf16.msra.mxu0 0
        %5639 = vmatprep.mubr.bf16.mxu0 0
        %5640 = vmatmul.mubr.bf16.gmra.mrb[0].mxu0 %v5535
        %v5641 = vpop.f32.mrb[0].mxu0
        %v5642 = vadd.f32 %v5557, %v5641
        %v5643 = vpop.f32.mrb[0].mxu0
        %v5644 = vpop.f32.mrb[0].mxu0
        %v5645 = vadd.f32 %v5557, %v5644
        %v5646 = vpop.f32.mrb[0].mxu0
        %5647 = vdwg.mxu0
        %v5648 = vmax.f32 %v5642, 0.0
        %v5649 = vmax.f32 %v5645, 0.0
        %v5650 = vpack.c.bf16 %v5649, %v5648
        %v5651 = vld [vmem:[%s1269] sm:$0xf]
        %v5652 = vld [vmem:[%s1269 + $0x4] sm:$0xf]
        %v5653 = vld [vmem:[%s1269 + $0x8] sm:$0xf]
        %v5654 = vld [vmem:[%s1269 + $0xc] sm:$0xf]
        %v5655 = vld [vmem:[%s1269 + $0x10] sm:$0xf]
        %v5656 = vld [vmem:[%s1269 + $0x14] sm:$0xf]
        %v5657 = vld [vmem:[%s1269 + $0x18] sm:$0xf]
        %v5658 = vld [vmem:[%s1269 + $0x1c] sm:$0xf]
        %v5659 = vld [vmem:[%s1269 + $0x20] sm:$0xf]
        %v5660 = vld [vmem:[%s1269 + $0x24] sm:$0xf]
        %v5661 = vld [vmem:[%s1269 + $0x28] sm:$0xf]
        %v5662 = vld [vmem:[%s1269 + $0x2c] sm:$0xf]
        %v5663 = vld [vmem:[%s1269 + $0x30] sm:$0xf]
        %v5664 = vld [vmem:[%s1269 + $0x34] sm:$0xf]
        %v5665 = vld [vmem:[%s1269 + $0x38] sm:$0xf]
        %v5666 = vld [vmem:[%s1269 + $0x3c] sm:$0xf]
        %v5667 = vld [vmem:[%s1084] sm:$0x1]
        %v5669 = vlaneseq
        %v5670 = vshrl.u32 %v5669, 7
        %v5671 = vsub.s32 0, %v5670
        %v5672 = vrot.slane %v5667, %v5671
        %v5690 = vunpack.c.l.b16 %v5651
        %v5691 = vunpack.c.l.b16 %v5652
        %v5692 = vunpack.c.l.b16 %v5653
        %v5693 = vunpack.c.l.b16 %v5654
        %v5694 = vunpack.c.l.b16 %v5655
        %v5695 = vunpack.c.l.b16 %v5656
        %v5696 = vunpack.c.l.b16 %v5657
        %v5697 = vunpack.c.l.b16 %v5658
        %v5698 = vunpack.c.l.b16 %v5659
        %v5699 = vunpack.c.l.b16 %v5660
        %v5700 = vunpack.c.l.b16 %v5661
        %v5701 = vunpack.c.l.b16 %v5662
        %v5702 = vunpack.c.l.b16 %v5663
        %v5703 = vunpack.c.l.b16 %v5664
        %v5704 = vunpack.c.l.b16 %v5665
        %v5705 = vunpack.c.l.b16 %v5666
        %v5706 = vpack.c.b16 %v5691, %v5690
        %v5707 = vpack.c.b16 %v5693, %v5692
        %v5708 = vpack.c.b16 %v5695, %v5694
        %v5709 = vpack.c.b16 %v5697, %v5696
        %v5710 = vpack.c.b16 %v5699, %v5698
        %v5711 = vpack.c.b16 %v5701, %v5700
        %v5712 = vpack.c.b16 %v5703, %v5702
        %v5713 = vpack.c.b16 %v5705, %v5704
        %5722 = vmatprep.subr.bf16.mxu0 0
        %5723 = vmatpush1.bf16.msra.mxu0 %v5706
        %5724 = vmatprep.subr.bf16.mxu0 0
        %5725 = vmatpush1.bf16.msra.mxu0 %v5707
        %5726 = vmatprep.subr.bf16.mxu0 0
        %5727 = vmatpush1.bf16.msra.mxu0 %v5708
        %5728 = vmatprep.subr.bf16.mxu0 0
        %5729 = vmatpush1.bf16.msra.mxu0 %v5709
        %5730 = vmatprep.subr.bf16.mxu0 0
        %5731 = vmatpush1.bf16.msra.mxu0 %v5710
        %5732 = vmatprep.subr.bf16.mxu0 0
        %5733 = vmatpush1.bf16.msra.mxu0 %v5711
        %5734 = vmatprep.subr.bf16.mxu0 0
        %5735 = vmatpush1.bf16.msra.mxu0 %v5712
        %5736 = vmatprep.subr.bf16.mxu0 0
        %5737 = vmatpush1.bf16.msra.mxu0 %v5713
        %5738 = vmatprep.subr.bf16.mxu0 0
        %5739 = vmatpush1.bf16.msra.mxu0 0
        %5740 = vmatprep.subr.bf16.mxu0 0
        %5741 = vmatpush1.bf16.msra.mxu0 0
        %5742 = vmatprep.subr.bf16.mxu0 0
        %5743 = vmatpush1.bf16.msra.mxu0 0
        %5744 = vmatprep.subr.bf16.mxu0 0
        %5745 = vmatpush1.bf16.msra.mxu0 0
        %5746 = vmatprep.subr.bf16.mxu0 0
        %5747 = vmatpush1.bf16.msra.mxu0 0
        %5748 = vmatprep.subr.bf16.mxu0 0
        %5749 = vmatpush1.bf16.msra.mxu0 0
        %5750 = vmatprep.subr.bf16.mxu0 0
        %5751 = vmatpush1.bf16.msra.mxu0 0
        %5752 = vmatprep.subr.bf16.mxu0 0
        %5753 = vmatpush1.bf16.msra.mxu0 0
        %5754 = vmatprep.mubr.bf16.mxu0 0
        %5755 = vmatmul.mubr.bf16.gmra.mrb[0].mxu0 %v5650
        %v5756 = vpop.f32.mrb[0].mxu0
        %v5757 = vadd.f32 %v5672, %v5756
        %v5758 = vpop.f32.mrb[0].mxu0
        %v5759 = vpop.f32.mrb[0].mxu0
        %v5760 = vadd.f32 %v5672, %v5759
        %v5761 = vpop.f32.mrb[0].mxu0
        %5762 = vdwg.mxu0
        %v5763 = vadd.f32 %v5533, %v5757
        %v5764 = vadd.f32 %v5534, %v5760
        %5765 = vadd.xlane.f32.xlu0 %v5763
        %v5766 = vpop.xlane.xlu0 %5765
        %5767 = vadd.xlane.f32.xlu0 %v5764
        %v5768 = vpop.xlane.xlu0 %5767
        %v5769 = vmul.f32 %v5766, 0.03125
        %v5770 = vmul.f32 %v5768, 0.03125
        %v5771 = vsub.f32 %v5763, %v5769
        %v5772 = vsub.f32 %v5764, %v5770
        %v5773 = vmul.f32 %v5771, %v1302
        %v5774 = vmul.f32 %v5772, %v1302
        %v5775 = vmul.f32 %v5773, %v5773
        %v5776 = vmul.f32 %v5774, %v5774
        %5777 = vadd.xlane.f32.xlu0 %v5775
        %v5778 = vpop.xlane.xlu0 %5777
        %5779 = vadd.xlane.f32.xlu0 %v5776
        %v5780 = vpop.xlane.xlu0 %5779
        %v5781 = vmul.f32 %v5778, 0.03125
        %v5782 = vmul.f32 %v5780, 0.03125
        %v5783 = vadd.f32 %v5781, 1e-05
        %v5784 = vadd.f32 %v5782, 1e-05
        %v5785 = vrsqrt.pop %v5783
        %v5786 = vrsqrt.pop %v5784
        %v5787 = vmul.f32 %v5773, %v5785
        %v5788 = vmul.f32 %v5774, %v5786
        %v5789 = vld [vmem:[%s1275] sm:$0x1]
        %v5791 = vlaneseq
        %v5792 = vshrl.u32 %v5791, 7
        %v5793 = vsub.s32 0, %v5792
        %v5794 = vrot.slane %v5789, %v5793
        %v5796 = vmul.f32 %v5787, %v5794
        %v5797 = vmul.f32 %v5788, %v5794
        %v5798 = vld [vmem:[%s1278] sm:$0x1]
        %v5800 = vlaneseq
        %v5801 = vshrl.u32 %v5800, 7
        %v5802 = vsub.s32 0, %v5801
        %v5803 = vrot.slane %v5798, %v5802
        %v5805 = vadd.f32 %v5796, %v5803
        %v5806 = vadd.f32 %v5797, %v5803
        %5807 = vst [vmem:[%s1283] sm:$0xff] %v5805
        %5808 = vst [vmem:[%s1283 + $0x8] sm:$0xff] %v5806
        %s5809 = smul.u32 2, %s60
        %p5810 = scmp.lt.s32.totalorder %s5809, 1
        %s5811 = scalar_select %p5810, %s5809, 1
        %s5812 = smul.addr %s5811, 8
        %s5813 = scalar_lea.vmem %s21, %s5812
        // Predicated region
        $region169: #{transformer_forward.2} parent=103 // pred_check
          %p5814 = pneg %p632
        $region170: #{transformer_forward.2} parent=103 // pred_check_branch
          %5816 = sbr.rel (%p5814) target = $region172
        $region171: #{transformer_forward.2} parent=103 // pred_region
          %s5817 = smul.u32 2, %s60
        $region172: #{transformer_forward.2} parent=103 // pred_fallthru
          _
        // Predicated region
        $region173: #{transformer_forward.2} parent=103 // pred_check
          %p5818 = pneg %p632
        $region174: #{transformer_forward.2} parent=103 // pred_check_branch
          %5820 = sbr.rel (%p5818) target = $region176
        $region175: #{transformer_forward.2} parent=103 // pred_region
          %s5821 = smul.u32 2, %s60
          %p5822 = scmp.lt.s32.totalorder %s5821, 1
          %s5823 = scalar_select %p5822, %s5821, 1
          %s5824 = smul.addr %s5823, 8
          %s5825 = scalar_lea.vmem %s21, %s5824
        $region176: #{transformer_forward.2} parent=103 // pred_fallthru
          _
      $region104: #{transformer_forward.2} parent=5 // pred_fallthru
        _
      %p5826 = scmp.le.s32.totalorder 2, %s51
      // Predicated region
      $region177: #{transformer_forward.2} parent=5 // pred_check
        %p5827 = pneg %p5826
      $region178: #{transformer_forward.2} parent=5 // pred_check_branch
        %5829 = sbr.rel (%p5827) target = $region180
      $region179: #{transformer_forward.2} parent=5 // pred_region
        %s5830 = ssub.s32 %s51, 2
      $region180: #{transformer_forward.2} parent=5 // pred_fallthru
        _
    $region6: #{transformer_forward.2} parent=1 // loop_footer
      %s55 = sadd.s32 1, %s51
    $region7: #{transformer_forward.2} parent=1 // loop_footer_branch
      %50 = sbr.rel target = $region3
    $region8: #{transformer_forward.2} parent=1 // loop_exit
      _
    %5831 = vsyncpa [#allocation3], 1
    %s5832 = scalar_lea.sflag [#allocation3], 1
    %5833 = vsyncpa %s5832, 1
    %5834 = vsyncpa [#allocation5], 1
    %s5835 = scalar_lea.sflag [#allocation5], 1
    %5836 = vsyncpa %s5835, 1
    %5837 = vsyncpa [#allocation8], 1
    %s5838 = scalar_lea.sflag [#allocation8], 1
    %5839 = vsyncpa %s5838, 1
    %5840 = vsyncpa [#allocation11], 1
    %s5841 = scalar_lea.sflag [#allocation11], 1
    %5842 = vsyncpa %s5841, 1
    %5843 = vsyncpa [#allocation14], 1
    %s5844 = scalar_lea.sflag [#allocation14], 1
    %5845 = vsyncpa %s5844, 1
    %5846 = vsyncpa [#allocation17], 1
    %s5847 = scalar_lea.sflag [#allocation17], 1
    %5848 = vsyncpa %s5847, 1
    %5849 = vsyncpa [#allocation20], 1
    %s5850 = scalar_lea.sflag [#allocation20], 1
    %5851 = vsyncpa %s5850, 1
    %5852 = vsyncpa [#allocation23], 1
    %s5853 = scalar_lea.sflag [#allocation23], 1
    %5854 = vsyncpa %s5853, 1

</llo_original>
